<compile_context>
chip_gen: v7x
topology: tpu7x:2x2x1
jax: 0.10.0
libtpu: 0.0.40
codegen_flags: <defaults>
</compile_context>

<pallas_src>
import functools

import jax
import jax.numpy as jnp
from jax.experimental import pallas as pl
from jax.experimental.pallas import tpu as pltpu

TM = 256       # matmul row tile (rows = pixels)
TME = 1024     # elementwise row tile
_CP = pltpu.CompilerParams(dimension_semantics=("parallel",),
                           vmem_limit_bytes=48 * 1024 * 1024)


def _round_up(n, m):
    return (n + m - 1) // m * m


def _pad_rows(x, rows):
    if x.shape[0] == rows:
        return x
    return jnp.pad(x, ((0, rows - x.shape[0]),) + ((0, 0),) * (x.ndim - 1))


def _apply_act(y, act):
    if act == "leaky_relu":
        return jnp.where(y > 0, y, 0.2 * y)
    if act == "relu":
        return jnp.maximum(y, 0.0)
    if act == "sigmoid":
        return jax.nn.sigmoid(y)
    return y


# ---------------------------------------------------------------------------
# Pallas kernels
# ---------------------------------------------------------------------------
def _matmul_act_kernel(a_ref, w_ref, o_ref, *, act):
    y = jnp.dot(a_ref[...], w_ref[...], preferred_element_type=jnp.float32)
    o_ref[...] = _apply_act(y, act).astype(o_ref.dtype)


def _matmul_stats_kernel(a_ref, w_ref, o_ref, s_ref):
    # raw conv output + per-block per-column sum / sum-of-squares (for BatchNorm)
    y = jnp.dot(a_ref[...], w_ref[...], preferred_element_type=jnp.float32)
    o_ref[...] = y.astype(o_ref.dtype)
    s = jnp.sum(y, axis=0, keepdims=True)
    ss = jnp.sum(y * y, axis=0, keepdims=True)
    s_ref[...] = jnp.concatenate([s, ss], axis=0)[None]


def _matmul_head_kernel(a_ref, w_ref, img_ref, sig_ref, new_ref):
    # fused final conv-transpose (image+mask heads), sigmoid, and mask blend.
    # columns of y: (phase r*2+s) major, then [R, G, B, mask]
    y = jnp.dot(a_ref[...], w_ref[...], preferred_element_type=jnp.float32)
    y = jax.nn.sigmoid(y)
    sig_ref[...] = y
    img = img_ref[...]
    for p in range(4):
        rgb = y[:, p * 4:p * 4 + 3]
        msk = y[:, p * 4 + 3:p * 4 + 4]
        im = img[:, p * 3:p * 3 + 3]
        new_ref[:, p * 3:p * 3 + 3] = msk * rgb + (1.0 - msk) * im


def _affine_act_kernel(x_ref, s_ref, b_ref, o_ref, *, act):
    y = x_ref[...].astype(jnp.float32) * s_ref[...] + b_ref[...]
    o_ref[...] = _apply_act(y, act).astype(o_ref.dtype)


def _affine_act_noise_kernel(x_ref, s_ref, b_ref, n_ref, o_ref, *, act):
    y = x_ref[...].astype(jnp.float32) * s_ref[...] + b_ref[...]
    y = _apply_act(y, act) + n_ref[...]
    o_ref[...] = y.astype(o_ref.dtype)


# ---------------------------------------------------------------------------
# Pallas wrappers
# ---------------------------------------------------------------------------
def matmul_act(a, w, act, out_dtype=jnp.bfloat16):
    """act(a @ w). a:[M,K] bf16, w:[K,N] bf16."""
    m, k = a.shape
    n = w.shape[1]
    tm = min(TM, _round_up(m, 16))
    mp = _round_up(m, tm)
    a_p = _pad_rows(a, mp)
    out = pl.pallas_call(
        functools.partial(_matmul_act_kernel, act=act),
        out_shape=jax.ShapeDtypeStruct((mp, n), out_dtype),
        grid=(mp // tm,),
        in_specs=[pl.BlockSpec((tm, k), lambda i: (i, 0)),
                  pl.BlockSpec((k, n), lambda i: (0, 0))],
        out_specs=pl.BlockSpec((tm, n), lambda i: (i, 0)),
        compiler_params=_CP,
    )(a_p, w)
    return out[:m]


def matmul_stats(a, w):
    """a @ w (bf16 out) plus per-column sum / sumsq (f32) for BatchNorm stats."""
    m, k = a.shape
    n = w.shape[1]
    tm = min(TM, _round_up(m, 16))
    mp = _round_up(m, tm)
    g = mp // tm
    a_p = _pad_rows(a, mp)        # zero rows contribute 0 to both sums
    y, sums = pl.pallas_call(
        _matmul_stats_kernel,
        out_shape=(jax.ShapeDtypeStruct((mp, n), jnp.bfloat16),
                   jax.ShapeDtypeStruct((g, 2, n), jnp.float32)),
        grid=(g,),
        in_specs=[pl.BlockSpec((tm, k), lambda i: (i, 0)),
                  pl.BlockSpec((k, n), lambda i: (0, 0))],
        out_specs=(pl.BlockSpec((tm, n), lambda i: (i, 0)),
                   pl.BlockSpec((1, 2, n), lambda i: (i, 0, 0))),
        compiler_params=_CP,
    )(a_p, w)
    tot = jnp.sum(sums, axis=0)   # (2, n)
    return y[:m], tot[0], tot[1]


def matmul_head_blend(a, w, img12):
    """Fused final heads: sigmoid(a @ w) and mask-blend against the input image."""
    m, k = a.shape
    n = w.shape[1]                # = 16 (4 phases x [R,G,B,mask])
    tm = min(TM, _round_up(m, 16))
    mp = _round_up(m, tm)
    a_p = _pad_rows(a, mp)
    img_p = _pad_rows(img12.astype(jnp.float32), mp)
    sig, new = pl.pallas_call(
        _matmul_head_kernel,
        out_shape=(jax.ShapeDtypeStruct((mp, 16), jnp.float32),
                   jax.ShapeDtypeStruct((mp, 12), jnp.float32)),
        grid=(mp // tm,),
        in_specs=[pl.BlockSpec((tm, k), lambda i: (i, 0)),
                  pl.BlockSpec((k, n), lambda i: (0, 0)),
                  pl.BlockSpec((tm, 12), lambda i: (i, 0))],
        out_specs=(pl.BlockSpec((tm, 16), lambda i: (i, 0)),
                   pl.BlockSpec((tm, 12), lambda i: (i, 0))),
        compiler_params=_CP,
    )(a_p, w, img_p)
    return sig[:m], new[:m]


def affine_act(x2d, scale, shift, act, noise=None, out_dtype=jnp.bfloat16):
    """act(x * scale + shift) [+ noise]; rows folded into lanes for lane density."""
    m, c = x2d.shape
    k = 1
    for cand in (8, 4, 2):
        if m % cand == 0 and c * cand <= 512:
            k = cand
            break
    mf, cf = m // k, c * k
    x = x2d.reshape(mf, cf)
    s = jnp.tile(scale.astype(jnp.float32), k).reshape(1, cf)
    b = jnp.tile(shift.astype(jnp.float32), k).reshape(1, cf)
    tm = min(TME, _round_up(mf, 16))
    mp = _round_up(mf, tm)
    x_p = _pad_rows(x, mp)
    if noise is None:
        kern = functools.partial(_affine_act_kernel, act=act)
        arrays = (x_p, s, b)
        in_specs = [pl.BlockSpec((tm, cf), lambda i: (i, 0)),
                    pl.BlockSpec((1, cf), lambda i: (0, 0)),
                    pl.BlockSpec((1, cf), lambda i: (0, 0))]
    else:
        n_p = _pad_rows(noise.reshape(mf, cf).astype(jnp.float32), mp)
        kern = functools.partial(_affine_act_noise_kernel, act=act)
        arrays = (x_p, s, b, n_p)
        in_specs = [pl.BlockSpec((tm, cf), lambda i: (i, 0)),
                    pl.BlockSpec((1, cf), lambda i: (0, 0)),
                    pl.BlockSpec((1, cf), lambda i: (0, 0)),
                    pl.BlockSpec((tm, cf), lambda i: (i, 0))]
    out = pl.pallas_call(
        kern,
        out_shape=jax.ShapeDtypeStruct((mp, cf), out_dtype),
        grid=(mp // tm,),
        in_specs=in_specs,
        out_specs=pl.BlockSpec((tm, cf), lambda i: (i, 0)),
        compiler_params=_CP,
    )(*arrays)
    return out[:mf].reshape(m, c)


# ---------------------------------------------------------------------------
# Conv lowering glue (pure data rearrangement in XLA; compute in Pallas)
# ---------------------------------------------------------------------------
def conv2d_s2_patches(x):
    """im2col for Conv2d(k=4, s=2, p=1). x: NHWC -> [B*Ho*Wo, 16*Cin]."""
    b, h, w, c = x.shape
    ho, wo = h // 2, w // 2
    xp = jnp.pad(x, ((0, 0), (1, 1), (1, 1), (0, 0)))
    cols = [xp[:, i:i + 2 * ho - 1:2, j:j + 2 * wo - 1:2, :]
            for i in range(4) for j in range(4)]
    patches = jnp.stack(cols, axis=3).reshape(b * ho * wo, 16 * c)
    return patches, (b, ho, wo)


def convt_s2_patches(x):
    """Phase formulation of ConvTranspose2d(k=4, s=2, p=1):
    3x3 window of the pad-1 input -> [B*h*w, 9*Cin] (feeds all 4 output phases)."""
    b, h, w, c = x.shape
    xp = jnp.pad(x, ((0, 0), (1, 1), (1, 1), (0, 0)))
    cols = [xp[:, di:di + h, dj:dj + w, :] for di in range(3) for dj in range(3)]
    patches = jnp.stack(cols, axis=3).reshape(b * h * w, 9 * c)
    return patches, (b, h, w)


def phase_to_space(y, b, h, w, cout):
    """[B*h*w, 4*cout] (cols = (r, s, c)) -> NHWC (B, 2h, 2w, cout)."""
    t = y.reshape(b, h, w, 2, 2, cout)
    t = jnp.transpose(t, (0, 1, 3, 2, 4, 5))
    return t.reshape(b, 2 * h, 2 * w, cout)


def space_to_phase(x):
    """NHWC (B, H, W, c) -> [B*(H/2)*(W/2), 4*c] with cols ordered (r, s, c)."""
    b, hh, ww, c = x.shape
    t = x.reshape(b, hh // 2, 2, ww // 2, 2, c)
    t = jnp.transpose(t, (0, 1, 3, 2, 4, 5))
    return t.reshape(b * (hh // 2) * (ww // 2), 4 * c)


def bn_scale_shift(col_sum, col_sumsq, count, phases=1, eps=1e-5):
    """Training-mode BatchNorm (gamma=1, beta=0) folded to per-column scale/shift."""
    if phases > 1:
        cs = col_sum.reshape(phases, -1).sum(0)
        css = col_sumsq.reshape(phases, -1).sum(0)
    else:
        cs, css = col_sum, col_sumsq
    n = count * phases
    mean = cs / n
    var = jnp.maximum(css / n - mean * mean, 0.0)   # biased variance
    scale = 1.0 / jnp.sqrt(var + eps)
    shift = -mean * scale
    if phases > 1:
        scale = jnp.tile(scale, phases)
        shift = jnp.tile(shift, phases)
    return scale, shift


# ---------------------------------------------------------------------------
# Weight preparation (bf16 matmul matrices; heads fused)
# ---------------------------------------------------------------------------
def _fwd_mat(w):
    """Conv2d weight [Cout, Cin, 4, 4] -> [16*Cin, Cout], order (kh, kw, cin)."""
    co, ci, kh, kw = w.shape
    return jnp.transpose(w, (2, 3, 1, 0)).reshape(kh * kw * ci, co).astype(jnp.bfloat16)


def _convt_phase_mat(w):
    """ConvTranspose2d weight [Cin, Cout, 4, 4] -> [9*Cin, 4*Cout] phase matrix.
    out[2m+r, 2n+s] = sum_{di,dj} xp[m+di, n+dj] * W[:, :, ktap[r][di], ktap[s][dj]]."""
    ci, co = w.shape[0], w.shape[1]
    ktap = ({0: 3, 1: 1}, {1: 2, 2: 0})
    wm = jnp.zeros((9 * ci, 4 * co), jnp.float32)
    for r in (0, 1):
        for s in (0, 1):
            for di, kh in ktap[r].items():
                for dj, kw in ktap[s].items():
                    row0 = (di * 3 + dj) * ci
                    col0 = (r * 2 + s) * co
                    wm = wm.at[row0:row0 + ci, col0:col0 + co].set(w[:, :, kh, kw])
    return wm.astype(jnp.bfloat16)


def prepare_weights(params):
    wb = {
        "e1": _fwd_mat(params["e1"]),
        "e2": _fwd_mat(params["e2"]),
        "e3": _fwd_mat(params["e3"]),
        "e4": _fwd_mat(params["e4"]),
        "g1": _convt_phase_mat(params["g1"]),
        "g2": _convt_phase_mat(params["g2"]),
    }
    # fused image/mask head layer 1: concat along Cout (image feats first)
    wb["hm1"] = _convt_phase_mat(jnp.concatenate([params["i1"], params["m1"]], axis=1))
    # fused final layer: block diagonal over (Cin split, Cout split); cols = [R,G,B,mask]
    w_i2, w_m2 = params["i2"], params["m2"]
    nh = w_i2.shape[0]
    w_h2 = jnp.zeros((2 * nh, 4, 4, 4), jnp.float32)
    w_h2 = w_h2.at[:nh, :3].set(w_i2)
    w_h2 = w_h2.at[nh:, 3:].set(w_m2)
    wb["hm2"] = _convt_phase_mat(w_h2)
    return wb


# ---------------------------------------------------------------------------
# Generator forward
# ---------------------------------------------------------------------------
def init_params(key, num_hidden, num_input_channel=3):
    nh = num_hidden
    shapes = {
        "e1": (nh, num_input_channel, 4, 4),
        "e2": (2 * nh, nh, 4, 4),
        "e3": (4 * nh, 2 * nh, 4, 4),
        "e4": (8 * nh, 4 * nh, 4, 4),
        "g1": (8 * nh, 4 * nh, 4, 4),
        "g2": (4 * nh, 2 * nh, 4, 4),
        "i1": (2 * nh, nh, 4, 4),
        "i2": (nh, num_input_channel, 4, 4),
        "m1": (2 * nh, nh, 4, 4),
        "m2": (nh, 1, 4, 4),
    }
    params = {}
    for name, shp in sorted(shapes.items()):
        key, sub = jax.random.split(key)
        params[name] = 0.02 * jax.random.normal(sub, shp, jnp.float32)
    return params


def generator_forward(image_nchw, params, noise_key):
    x_nhwc = jnp.transpose(image_nchw, (0, 2, 3, 1)).astype(jnp.float32)
    wb = prepare_weights(params)
    x = x_nhwc.astype(jnp.bfloat16)

    # ---- encoder ----
    p, (b, h, w) = conv2d_s2_patches(x)
    h1 = matmul_act(p, wb["e1"], "leaky_relu").reshape(b, h, w, -1)

    def enc_bn(xin, wmat, noise=None):
        pt, (bb, hh, ww) = conv2d_s2_patches(xin)
        y, s, ss = matmul_stats(pt, wmat)
        sc, sh = bn_scale_shift(s, ss, count=bb * hh * ww)
        return affine_act(y, sc, sh, "leaky_relu", noise=noise).reshape(bb, hh, ww, -1)

    h2 = enc_bn(h1, wb["e2"])
    h3 = enc_bn(h2, wb["e3"])

    # e4 + BN + LeakyReLU with the noise add fused into the same kernel
    p4, (b4, h4, w4) = conv2d_s2_patches(h3)
    y4, s4, ss4 = matmul_stats(p4, wb["e4"])
    sc4, sh4 = bn_scale_shift(s4, ss4, count=b4 * h4 * w4)
    # TODO(synk): draw the noise in-kernel via pltpu.prng_seed/prng_random_bits.
    noise = jax.random.normal(noise_key, (b4 * h4 * w4, y4.shape[1]), jnp.float32)
    noised = affine_act(y4, sc4, sh4, "leaky_relu", noise=noise).reshape(b4, h4, w4, -1)

    # ---- decoder (phase-formulated transposed convs) ----
    def dec_bn(xin, wphase):
        pt, (bb, hh, ww) = convt_s2_patches(xin)
        cout = wphase.shape[1] // 4
        y, s, ss = matmul_stats(pt, wphase)
        sc, sh = bn_scale_shift(s, ss, count=bb * hh * ww, phases=4)
        yp = affine_act(y, sc, sh, "relu")
        return phase_to_space(yp, bb, hh, ww, cout)

    g1 = dec_bn(noised, wb["g1"])
    g2 = dec_bn(g1, wb["g2"])
    heads = dec_bn(g2, wb["hm1"])        # fused image/mask head features (2*nh channels)

    # ---- fused final convT + sigmoid + blend ----
    pf, (bf, hf, wf) = convt_s2_patches(heads)
    img12 = space_to_phase(x_nhwc)       # original image in phase layout (lane-dense)
    sig, new12 = matmul_head_blend(pf, wb["hm2"], img12)

    out4 = phase_to_space(sig, bf, hf, wf, 4)          # (B, H, W, [R,G,B,mask])
    modify = out4[..., :3]
    mask = out4[..., 3:4]
    new_image = phase_to_space(new12, bf, hf, wf, 3)

    to_nchw = lambda t: jnp.transpose(t, (0, 3, 1, 2)).astype(jnp.float32)
    return to_nchw(new_image), to_nchw(modify), to_nchw(mask)


if __name__ == "__main__":
    key = jax.random.PRNGKey(0)
    k_param, k_img, k_noise = jax.random.split(key, 3)

    num_hidden = 8
    B, C, H, W = 2, 3, 32, 32            # H, W must be multiples of 16
    image = jax.random.uniform(k_img, (B, C, H, W), jnp.float32)
    params = init_params(k_param, num_hidden, num_input_channel=C)

    fwd = jax.jit(generator_forward)
    new_image, modify, mask = fwd(image, params, k_noise)
    jax.block_until_ready((new_image, modify, mask))

    assert new_image.shape == (B, C, H, W)
    assert modify.shape == (B, C, H, W)
    assert mask.shape == (B, 1, H, W)
    assert bool(jnp.all(jnp.isfinite(new_image)))
    assert bool(jnp.all((mask >= 0) & (mask <= 1)))
    print("KERNEL_OK")
</pallas_src>

<mosaic_0001>
module attributes {stable_mosaic.version = 11 : i64} {
  func.func @_matmul_act_kernel(%arg0: i32, %arg1: memref<256x48xbf16, #tpu.memory_space<vmem>>, %arg2: memref<48x8xbf16, #tpu.memory_space<vmem>>, %arg3: memref<256x8xbf16, #tpu.memory_space<vmem>>) attributes {dimension_semantics = [#tpu.dimension_semantics<parallel>], iteration_bounds = array<i64: 2>, scalar_prefetch = 0 : i64, scratch_operands = 0 : i64, tpu.core_type = #tpu.core_type<tc>, window_params = [{transform_indices = @transform_0, window_bounds = array<i64: 256, 48>}, {pipeline_mode = #tpu.pipeline_mode<synchronous>, transform_indices = @transform_1, window_bounds = array<i64: 48, 8>}, {transform_indices = @transform_2, window_bounds = array<i64: 256, 8>}]} {
    %c0 = arith.constant 0 : index
    %c0_0 = arith.constant 0 : index
    %0 = vector.load %arg1[%c0, %c0_0] : memref<256x48xbf16, #tpu.memory_space<vmem>>, vector<256x48xbf16>
    %c0_1 = arith.constant 0 : index
    %c0_2 = arith.constant 0 : index
    %1 = vector.load %arg2[%c0_1, %c0_2] : memref<48x8xbf16, #tpu.memory_space<vmem>>, vector<48x8xbf16>
    %cst = arith.constant dense<0.000000e+00> : vector<256x8xf32>
    %2 = tpu.matmul %0, %1, %cst {dimension_numbers = #tpu.dot_dimension_numbers<[1], [0], [0], [1], [0, 0, 1, 1], [], []>} : vector<256x48xbf16>, vector<48x8xbf16>, vector<256x8xf32> -> vector<256x8xf32>
    %cst_3 = arith.constant 0.000000e+00 : f32
    %3 = vector.broadcast %cst_3 : f32 to vector<256x8xf32>
    %4 = arith.cmpf ogt, %2, %3 : vector<256x8xf32>
    %cst_4 = arith.constant 2.000000e-01 : f32
    %5 = vector.broadcast %cst_4 : f32 to vector<256x8xf32>
    %6 = arith.mulf %5, %2 : vector<256x8xf32>
    %7 = arith.select %4, %2, %6 : vector<256x8xi1>, vector<256x8xf32>
    %8 = arith.truncf %7 : vector<256x8xf32> to vector<256x8xbf16>
    %c0_5 = arith.constant 0 : index
    %c0_6 = arith.constant 0 : index
    %9 = vector.load %arg3[%c0_5, %c0_6] : memref<256x8xbf16, #tpu.memory_space<vmem>>, vector<256x8xbf16>
    tpu.vector_store %arg3[%c0_5, %c0_6], %8 {strides = array<i32>} : memref<256x8xbf16, #tpu.memory_space<vmem>>, vector<256x8xbf16>,
    return
  }
  func.func @transform_0(%arg0: i32) -> (i32, i32) {
    %c0_i32 = arith.constant 0 : i32
    %c0_i32_0 = arith.constant 0 : i32
    return %arg0, %c0_i32 : i32, i32
  }
  func.func @transform_1(%arg0: i32) -> (i32, i32) {
    %c0_i32 = arith.constant 0 : i32
    %c0_i32_0 = arith.constant 0 : i32
    %c0_i32_1 = arith.constant 0 : i32
    return %c0_i32, %c0_i32_0 : i32, i32
  }
  func.func @transform_2(%arg0: i32) -> (i32, i32) {
    %c0_i32 = arith.constant 0 : i32
    %c0_i32_0 = arith.constant 0 : i32
    return %arg0, %c0_i32 : i32, i32
  }
}

module attributes {stable_mosaic.version = 11 : i64} {
  func.func @_matmul_stats_kernel(%arg0: i32, %arg1: memref<128x128xbf16, #tpu.memory_space<vmem>>, %arg2: memref<128x16xbf16, #tpu.memory_space<vmem>>, %arg3: memref<128x16xbf16, #tpu.memory_space<vmem>>, %arg4: memref<1x2x16xf32, #tpu.memory_space<vmem>>) attributes {dimension_semantics = [#tpu.dimension_semantics<parallel>], iteration_bounds = array<i64: 1>, scalar_prefetch = 0 : i64, scratch_operands = 0 : i64, tpu.core_type = #tpu.core_type<tc>, window_params = [{transform_indices = @transform_0, window_bounds = array<i64: 128, 128>}, {pipeline_mode = #tpu.pipeline_mode<synchronous>, transform_indices = @transform_1, window_bounds = array<i64: 128, 16>}, {transform_indices = @transform_2, window_bounds = array<i64: 128, 16>}, {transform_indices = @transform_3, window_bounds = array<i64: 1, 2, 16>}]} {
    %c0 = arith.constant 0 : index
    %c0_0 = arith.constant 0 : index
    %0 = vector.load %arg1[%c0, %c0_0] : memref<128x128xbf16, #tpu.memory_space<vmem>>, vector<128x128xbf16>
    %c0_1 = arith.constant 0 : index
    %c0_2 = arith.constant 0 : index
    %1 = vector.load %arg2[%c0_1, %c0_2] : memref<128x16xbf16, #tpu.memory_space<vmem>>, vector<128x16xbf16>
    %cst = arith.constant dense<0.000000e+00> : vector<128x16xf32>
    %2 = tpu.matmul %0, %1, %cst {dimension_numbers = #tpu.dot_dimension_numbers<[1], [0], [0], [1], [0, 0, 1, 1], [], []>} : vector<128x128xbf16>, vector<128x16xbf16>, vector<128x16xf32> -> vector<128x16xf32>
    %3 = arith.truncf %2 : vector<128x16xf32> to vector<128x16xbf16>
    %c0_3 = arith.constant 0 : index
    %c0_4 = arith.constant 0 : index
    %4 = vector.load %arg3[%c0_3, %c0_4] : memref<128x16xbf16, #tpu.memory_space<vmem>>, vector<128x16xbf16>
    tpu.vector_store %arg3[%c0_3, %c0_4], %3 {strides = array<i32>} : memref<128x16xbf16, #tpu.memory_space<vmem>>, vector<128x16xbf16>,
    %cst_5 = arith.constant dense<0.000000e+00> : vector<16xf32>
    %5 = vector.multi_reduction <add>, %2, %cst_5 [0] : vector<128x16xf32> to vector<16xf32>
    %6 = vector.shape_cast %5 : vector<16xf32> to vector<1x16xf32>
    %7 = arith.mulf %2, %2 : vector<128x16xf32>
    %cst_6 = arith.constant dense<0.000000e+00> : vector<16xf32>
    %8 = vector.multi_reduction <add>, %7, %cst_6 [0] : vector<128x16xf32> to vector<16xf32>
    %9 = vector.shape_cast %8 : vector<16xf32> to vector<1x16xf32>
    %10 = tpu.concatenate %6, %9 in 0 : vector<1x16xf32>, vector<1x16xf32> -> vector<2x16xf32>
    %11 = vector.shape_cast %10 : vector<2x16xf32> to vector<1x2x16xf32>
    %c0_7 = arith.constant 0 : index
    %c0_8 = arith.constant 0 : index
    %c0_9 = arith.constant 0 : index
    %12 = vector.load %arg4[%c0_7, %c0_8, %c0_9] : memref<1x2x16xf32, #tpu.memory_space<vmem>>, vector<1x2x16xf32>
    tpu.vector_store %arg4[%c0_7, %c0_8, %c0_9], %11 {strides = array<i32>} : memref<1x2x16xf32, #tpu.memory_space<vmem>>, vector<1x2x16xf32>,
    return
  }
  func.func @transform_0(%arg0: i32) -> (i32, i32) {
    %c0_i32 = arith.constant 0 : i32
    %c0_i32_0 = arith.constant 0 : i32
    return %arg0, %c0_i32 : i32, i32
  }
  func.func @transform_1(%arg0: i32) -> (i32, i32) {
    %c0_i32 = arith.constant 0 : i32
    %c0_i32_0 = arith.constant 0 : i32
    %c0_i32_1 = arith.constant 0 : i32
    return %c0_i32, %c0_i32_0 : i32, i32
  }
  func.func @transform_2(%arg0: i32) -> (i32, i32) {
    %c0_i32 = arith.constant 0 : i32
    %c0_i32_0 = arith.constant 0 : i32
    return %arg0, %c0_i32 : i32, i32
  }
  func.func @transform_3(%arg0: i32) -> (i32, i32, i32) {
    %c0_i32 = arith.constant 0 : i32
    %c0_i32_0 = arith.constant 0 : i32
    %c0_i32_1 = arith.constant 0 : i32
    return %arg0, %c0_i32, %c0_i32_0 : i32, i32, i32
  }
}

module attributes {stable_mosaic.version = 11 : i64} {
  func.func @_affine_act_kernel(%arg0: i32, %arg1: memref<16x128xbf16, #tpu.memory_space<vmem>>, %arg2: memref<1x128xf32, #tpu.memory_space<vmem>>, %arg3: memref<1x128xf32, #tpu.memory_space<vmem>>, %arg4: memref<16x128xbf16, #tpu.memory_space<vmem>>) attributes {dimension_semantics = [#tpu.dimension_semantics<parallel>], iteration_bounds = array<i64: 1>, scalar_prefetch = 0 : i64, scratch_operands = 0 : i64, tpu.core_type = #tpu.core_type<tc>, window_params = [{transform_indices = @transform_0, window_bounds = array<i64: 16, 128>}, {pipeline_mode = #tpu.pipeline_mode<synchronous>, transform_indices = @transform_1, window_bounds = array<i64: 1, 128>}, {pipeline_mode = #tpu.pipeline_mode<synchronous>, transform_indices = @transform_2, window_bounds = array<i64: 1, 128>}, {transform_indices = @transform_3, window_bounds = array<i64: 16, 128>}]} {
    %c0 = arith.constant 0 : index
    %c0_0 = arith.constant 0 : index
    %0 = vector.load %arg1[%c0, %c0_0] : memref<16x128xbf16, #tpu.memory_space<vmem>>, vector<16x128xbf16>
    %1 = arith.extf %0 : vector<16x128xbf16> to vector<16x128xf32>
    %c0_1 = arith.constant 0 : index
    %c0_2 = arith.constant 0 : index
    %2 = vector.load %arg2[%c0_1, %c0_2] : memref<1x128xf32, #tpu.memory_space<vmem>>, vector<1x128xf32>
    %3 = vector.broadcast %2 : vector<1x128xf32> to vector<16x128xf32>
    %4 = arith.mulf %1, %3 : vector<16x128xf32>
    %c0_3 = arith.constant 0 : index
    %c0_4 = arith.constant 0 : index
    %5 = vector.load %arg3[%c0_3, %c0_4] : memref<1x128xf32, #tpu.memory_space<vmem>>, vector<1x128xf32>
    %6 = vector.broadcast %5 : vector<1x128xf32> to vector<16x128xf32>
    %7 = arith.addf %4, %6 : vector<16x128xf32>
    %cst = arith.constant 0.000000e+00 : f32
    %8 = vector.broadcast %cst : f32 to vector<16x128xf32>
    %9 = arith.cmpf ogt, %7, %8 : vector<16x128xf32>
    %cst_5 = arith.constant 2.000000e-01 : f32
    %10 = vector.broadcast %cst_5 : f32 to vector<16x128xf32>
    %11 = arith.mulf %10, %7 : vector<16x128xf32>
    %12 = arith.select %9, %7, %11 : vector<16x128xi1>, vector<16x128xf32>
    %13 = arith.truncf %12 : vector<16x128xf32> to vector<16x128xbf16>
    %c0_6 = arith.constant 0 : index
    %c0_7 = arith.constant 0 : index
    %14 = vector.load %arg4[%c0_6, %c0_7] : memref<16x128xbf16, #tpu.memory_space<vmem>>, vector<16x128xbf16>
    tpu.vector_store %arg4[%c0_6, %c0_7], %13 {strides = array<i32>} : memref<16x128xbf16, #tpu.memory_space<vmem>>, vector<16x128xbf16>,
    return
  }
  func.func @transform_0(%arg0: i32) -> (i32, i32) {
    %c0_i32 = arith.constant 0 : i32
    %c0_i32_0 = arith.constant 0 : i32
    return %arg0, %c0_i32 : i32, i32
  }
  func.func @transform_1(%arg0: i32) -> (i32, i32) {
    %c0_i32 = arith.constant 0 : i32
    %c0_i32_0 = arith.constant 0 : i32
    %c0_i32_1 = arith.constant 0 : i32
    return %c0_i32, %c0_i32_0 : i32, i32
  }
  func.func @transform_2(%arg0: i32) -> (i32, i32) {
    %c0_i32 = arith.constant 0 : i32
    %c0_i32_0 = arith.constant 0 : i32
    %c0_i32_1 = arith.constant 0 : i32
    return %c0_i32, %c0_i32_0 : i32, i32
  }
  func.func @transform_3(%arg0: i32) -> (i32, i32) {
    %c0_i32 = arith.constant 0 : i32
    %c0_i32_0 = arith.constant 0 : i32
    return %arg0, %c0_i32 : i32, i32
  }
}

module attributes {stable_mosaic.version = 11 : i64} {
  func.func @_matmul_stats_kernel(%arg0: i32, %arg1: memref<32x256xbf16, #tpu.memory_space<vmem>>, %arg2: memref<256x32xbf16, #tpu.memory_space<vmem>>, %arg3: memref<32x32xbf16, #tpu.memory_space<vmem>>, %arg4: memref<1x2x32xf32, #tpu.memory_space<vmem>>) attributes {dimension_semantics = [#tpu.dimension_semantics<parallel>], iteration_bounds = array<i64: 1>, scalar_prefetch = 0 : i64, scratch_operands = 0 : i64, tpu.core_type = #tpu.core_type<tc>, window_params = [{transform_indices = @transform_0, window_bounds = array<i64: 32, 256>}, {pipeline_mode = #tpu.pipeline_mode<synchronous>, transform_indices = @transform_1, window_bounds = array<i64: 256, 32>}, {transform_indices = @transform_2, window_bounds = array<i64: 32, 32>}, {transform_indices = @transform_3, window_bounds = array<i64: 1, 2, 32>}]} {
    %c0 = arith.constant 0 : index
    %c0_0 = arith.constant 0 : index
    %0 = vector.load %arg1[%c0, %c0_0] : memref<32x256xbf16, #tpu.memory_space<vmem>>, vector<32x256xbf16>
    %c0_1 = arith.constant 0 : index
    %c0_2 = arith.constant 0 : index
    %1 = vector.load %arg2[%c0_1, %c0_2] : memref<256x32xbf16, #tpu.memory_space<vmem>>, vector<256x32xbf16>
    %cst = arith.constant dense<0.000000e+00> : vector<32x32xf32>
    %2 = tpu.matmul %0, %1, %cst {dimension_numbers = #tpu.dot_dimension_numbers<[1], [0], [0], [1], [0, 0, 1, 1], [], []>} : vector<32x256xbf16>, vector<256x32xbf16>, vector<32x32xf32> -> vector<32x32xf32>
    %3 = arith.truncf %2 : vector<32x32xf32> to vector<32x32xbf16>
    %c0_3 = arith.constant 0 : index
    %c0_4 = arith.constant 0 : index
    %4 = vector.load %arg3[%c0_3, %c0_4] : memref<32x32xbf16, #tpu.memory_space<vmem>>, vector<32x32xbf16>
    tpu.vector_store %arg3[%c0_3, %c0_4], %3 {strides = array<i32>} : memref<32x32xbf16, #tpu.memory_space<vmem>>, vector<32x32xbf16>,
    %cst_5 = arith.constant dense<0.000000e+00> : vector<32xf32>
    %5 = vector.multi_reduction <add>, %2, %cst_5 [0] : vector<32x32xf32> to vector<32xf32>
    %6 = vector.shape_cast %5 : vector<32xf32> to vector<1x32xf32>
    %7 = arith.mulf %2, %2 : vector<32x32xf32>
    %cst_6 = arith.constant dense<0.000000e+00> : vector<32xf32>
    %8 = vector.multi_reduction <add>, %7, %cst_6 [0] : vector<32x32xf32> to vector<32xf32>
    %9 = vector.shape_cast %8 : vector<32xf32> to vector<1x32xf32>
    %10 = tpu.concatenate %6, %9 in 0 : vector<1x32xf32>, vector<1x32xf32> -> vector<2x32xf32>
    %11 = vector.shape_cast %10 : vector<2x32xf32> to vector<1x2x32xf32>
    %c0_7 = arith.constant 0 : index
    %c0_8 = arith.constant 0 : index
    %c0_9 = arith.constant 0 : index
    %12 = vector.load %arg4[%c0_7, %c0_8, %c0_9] : memref<1x2x32xf32, #tpu.memory_space<vmem>>, vector<1x2x32xf32>
    tpu.vector_store %arg4[%c0_7, %c0_8, %c0_9], %11 {strides = array<i32>} : memref<1x2x32xf32, #tpu.memory_space<vmem>>, vector<1x2x32xf32>,
    return
  }
  func.func @transform_0(%arg0: i32) -> (i32, i32) {
    %c0_i32 = arith.constant 0 : i32
    %c0_i32_0 = arith.constant 0 : i32
    return %arg0, %c0_i32 : i32, i32
  }
  func.func @transform_1(%arg0: i32) -> (i32, i32) {
    %c0_i32 = arith.constant 0 : i32
    %c0_i32_0 = arith.constant 0 : i32
    %c0_i32_1 = arith.constant 0 : i32
    return %c0_i32, %c0_i32_0 : i32, i32
  }
  func.func @transform_2(%arg0: i32) -> (i32, i32) {
    %c0_i32 = arith.constant 0 : i32
    %c0_i32_0 = arith.constant 0 : i32
    return %arg0, %c0_i32 : i32, i32
  }
  func.func @transform_3(%arg0: i32) -> (i32, i32, i32) {
    %c0_i32 = arith.constant 0 : i32
    %c0_i32_0 = arith.constant 0 : i32
    %c0_i32_1 = arith.constant 0 : i32
    return %arg0, %c0_i32, %c0_i32_0 : i32, i32, i32
  }
}

module attributes {stable_mosaic.version = 11 : i64} {
  func.func @_affine_act_kernel(%arg0: i32, %arg1: memref<16x256xbf16, #tpu.memory_space<vmem>>, %arg2: memref<1x256xf32, #tpu.memory_space<vmem>>, %arg3: memref<1x256xf32, #tpu.memory_space<vmem>>, %arg4: memref<16x256xbf16, #tpu.memory_space<vmem>>) attributes {dimension_semantics = [#tpu.dimension_semantics<parallel>], iteration_bounds = array<i64: 1>, scalar_prefetch = 0 : i64, scratch_operands = 0 : i64, tpu.core_type = #tpu.core_type<tc>, window_params = [{transform_indices = @transform_0, window_bounds = array<i64: 16, 256>}, {pipeline_mode = #tpu.pipeline_mode<synchronous>, transform_indices = @transform_1, window_bounds = array<i64: 1, 256>}, {pipeline_mode = #tpu.pipeline_mode<synchronous>, transform_indices = @transform_2, window_bounds = array<i64: 1, 256>}, {transform_indices = @transform_3, window_bounds = array<i64: 16, 256>}]} {
    %c0 = arith.constant 0 : index
    %c0_0 = arith.constant 0 : index
    %0 = vector.load %arg1[%c0, %c0_0] : memref<16x256xbf16, #tpu.memory_space<vmem>>, vector<16x256xbf16>
    %1 = arith.extf %0 : vector<16x256xbf16> to vector<16x256xf32>
    %c0_1 = arith.constant 0 : index
    %c0_2 = arith.constant 0 : index
    %2 = vector.load %arg2[%c0_1, %c0_2] : memref<1x256xf32, #tpu.memory_space<vmem>>, vector<1x256xf32>
    %3 = vector.broadcast %2 : vector<1x256xf32> to vector<16x256xf32>
    %4 = arith.mulf %1, %3 : vector<16x256xf32>
    %c0_3 = arith.constant 0 : index
    %c0_4 = arith.constant 0 : index
    %5 = vector.load %arg3[%c0_3, %c0_4] : memref<1x256xf32, #tpu.memory_space<vmem>>, vector<1x256xf32>
    %6 = vector.broadcast %5 : vector<1x256xf32> to vector<16x256xf32>
    %7 = arith.addf %4, %6 : vector<16x256xf32>
    %cst = arith.constant 0.000000e+00 : f32
    %8 = vector.broadcast %cst : f32 to vector<16x256xf32>
    %9 = arith.cmpf ogt, %7, %8 : vector<16x256xf32>
    %cst_5 = arith.constant 2.000000e-01 : f32
    %10 = vector.broadcast %cst_5 : f32 to vector<16x256xf32>
    %11 = arith.mulf %10, %7 : vector<16x256xf32>
    %12 = arith.select %9, %7, %11 : vector<16x256xi1>, vector<16x256xf32>
    %13 = arith.truncf %12 : vector<16x256xf32> to vector<16x256xbf16>
    %c0_6 = arith.constant 0 : index
    %c0_7 = arith.constant 0 : index
    %14 = vector.load %arg4[%c0_6, %c0_7] : memref<16x256xbf16, #tpu.memory_space<vmem>>, vector<16x256xbf16>
    tpu.vector_store %arg4[%c0_6, %c0_7], %13 {strides = array<i32>} : memref<16x256xbf16, #tpu.memory_space<vmem>>, vector<16x256xbf16>,
    return
  }
  func.func @transform_0(%arg0: i32) -> (i32, i32) {
    %c0_i32 = arith.constant 0 : i32
    %c0_i32_0 = arith.constant 0 : i32
    return %arg0, %c0_i32 : i32, i32
  }
  func.func @transform_1(%arg0: i32) -> (i32, i32) {
    %c0_i32 = arith.constant 0 : i32
    %c0_i32_0 = arith.constant 0 : i32
    %c0_i32_1 = arith.constant 0 : i32
    return %c0_i32, %c0_i32_0 : i32, i32
  }
  func.func @transform_2(%arg0: i32) -> (i32, i32) {
    %c0_i32 = arith.constant 0 : i32
    %c0_i32_0 = arith.constant 0 : i32
    %c0_i32_1 = arith.constant 0 : i32
    return %c0_i32, %c0_i32_0 : i32, i32
  }
  func.func @transform_3(%arg0: i32) -> (i32, i32) {
    %c0_i32 = arith.constant 0 : i32
    %c0_i32_0 = arith.constant 0 : i32
    return %arg0, %c0_i32 : i32, i32
  }
}

module attributes {stable_mosaic.version = 11 : i64} {
  func.func @_matmul_stats_kernel(%arg0: i32, %arg1: memref<16x512xbf16, #tpu.memory_space<vmem>>, %arg2: memref<512x64xbf16, #tpu.memory_space<vmem>>, %arg3: memref<16x64xbf16, #tpu.memory_space<vmem>>, %arg4: memref<1x2x64xf32, #tpu.memory_space<vmem>>) attributes {dimension_semantics = [#tpu.dimension_semantics<parallel>], iteration_bounds = array<i64: 1>, scalar_prefetch = 0 : i64, scratch_operands = 0 : i64, tpu.core_type = #tpu.core_type<tc>, window_params = [{transform_indices = @transform_0, window_bounds = array<i64: 16, 512>}, {pipeline_mode = #tpu.pipeline_mode<synchronous>, transform_indices = @transform_1, window_bounds = array<i64: 512, 64>}, {transform_indices = @transform_2, window_bounds = array<i64: 16, 64>}, {transform_indices = @transform_3, window_bounds = array<i64: 1, 2, 64>}]} {
    %c0 = arith.constant 0 : index
    %c0_0 = arith.constant 0 : index
    %0 = vector.load %arg1[%c0, %c0_0] : memref<16x512xbf16, #tpu.memory_space<vmem>>, vector<16x512xbf16>
    %c0_1 = arith.constant 0 : index
    %c0_2 = arith.constant 0 : index
    %1 = vector.load %arg2[%c0_1, %c0_2] : memref<512x64xbf16, #tpu.memory_space<vmem>>, vector<512x64xbf16>
    %cst = arith.constant dense<0.000000e+00> : vector<16x64xf32>
    %2 = tpu.matmul %0, %1, %cst {dimension_numbers = #tpu.dot_dimension_numbers<[1], [0], [0], [1], [0, 0, 1, 1], [], []>} : vector<16x512xbf16>, vector<512x64xbf16>, vector<16x64xf32> -> vector<16x64xf32>
    %3 = arith.truncf %2 : vector<16x64xf32> to vector<16x64xbf16>
    %c0_3 = arith.constant 0 : index
    %c0_4 = arith.constant 0 : index
    %4 = vector.load %arg3[%c0_3, %c0_4] : memref<16x64xbf16, #tpu.memory_space<vmem>>, vector<16x64xbf16>
    tpu.vector_store %arg3[%c0_3, %c0_4], %3 {strides = array<i32>} : memref<16x64xbf16, #tpu.memory_space<vmem>>, vector<16x64xbf16>,
    %cst_5 = arith.constant dense<0.000000e+00> : vector<64xf32>
    %5 = vector.multi_reduction <add>, %2, %cst_5 [0] : vector<16x64xf32> to vector<64xf32>
    %6 = vector.shape_cast %5 : vector<64xf32> to vector<1x64xf32>
    %7 = arith.mulf %2, %2 : vector<16x64xf32>
    %cst_6 = arith.constant dense<0.000000e+00> : vector<64xf32>
    %8 = vector.multi_reduction <add>, %7, %cst_6 [0] : vector<16x64xf32> to vector<64xf32>
    %9 = vector.shape_cast %8 : vector<64xf32> to vector<1x64xf32>
    %10 = tpu.concatenate %6, %9 in 0 : vector<1x64xf32>, vector<1x64xf32> -> vector<2x64xf32>
    %11 = vector.shape_cast %10 : vector<2x64xf32> to vector<1x2x64xf32>
    %c0_7 = arith.constant 0 : index
    %c0_8 = arith.constant 0 : index
    %c0_9 = arith.constant 0 : index
    %12 = vector.load %arg4[%c0_7, %c0_8, %c0_9] : memref<1x2x64xf32, #tpu.memory_space<vmem>>, vector<1x2x64xf32>
    tpu.vector_store %arg4[%c0_7, %c0_8, %c0_9], %11 {strides = array<i32>} : memref<1x2x64xf32, #tpu.memory_space<vmem>>, vector<1x2x64xf32>,
    return
  }
  func.func @transform_0(%arg0: i32) -> (i32, i32) {
    %c0_i32 = arith.constant 0 : i32
    %c0_i32_0 = arith.constant 0 : i32
    return %arg0, %c0_i32 : i32, i32
  }
  func.func @transform_1(%arg0: i32) -> (i32, i32) {
    %c0_i32 = arith.constant 0 : i32
    %c0_i32_0 = arith.constant 0 : i32
    %c0_i32_1 = arith.constant 0 : i32
    return %c0_i32, %c0_i32_0 : i32, i32
  }
  func.func @transform_2(%arg0: i32) -> (i32, i32) {
    %c0_i32 = arith.constant 0 : i32
    %c0_i32_0 = arith.constant 0 : i32
    return %arg0, %c0_i32 : i32, i32
  }
  func.func @transform_3(%arg0: i32) -> (i32, i32, i32) {
    %c0_i32 = arith.constant 0 : i32
    %c0_i32_0 = arith.constant 0 : i32
    %c0_i32_1 = arith.constant 0 : i32
    return %arg0, %c0_i32, %c0_i32_0 : i32, i32, i32
  }
}

module attributes {stable_mosaic.version = 11 : i64} {
  func.func @_affine_act_noise_kernel(%arg0: i32, %arg1: memref<16x512xbf16, #tpu.memory_space<vmem>>, %arg2: memref<1x512xf32, #tpu.memory_space<vmem>>, %arg3: memref<1x512xf32, #tpu.memory_space<vmem>>, %arg4: memref<16x512xf32, #tpu.memory_space<vmem>>, %arg5: memref<16x512xbf16, #tpu.memory_space<vmem>>) attributes {dimension_semantics = [#tpu.dimension_semantics<parallel>], iteration_bounds = array<i64: 1>, scalar_prefetch = 0 : i64, scratch_operands = 0 : i64, tpu.core_type = #tpu.core_type<tc>, window_params = [{transform_indices = @transform_0, window_bounds = array<i64: 16, 512>}, {pipeline_mode = #tpu.pipeline_mode<synchronous>, transform_indices = @transform_1, window_bounds = array<i64: 1, 512>}, {pipeline_mode = #tpu.pipeline_mode<synchronous>, transform_indices = @transform_2, window_bounds = array<i64: 1, 512>}, {transform_indices = @transform_3, window_bounds = array<i64: 16, 512>}, {transform_indices = @transform_4, window_bounds = array<i64: 16, 512>}]} {
    %c0 = arith.constant 0 : index
    %c0_0 = arith.constant 0 : index
    %0 = vector.load %arg1[%c0, %c0_0] : memref<16x512xbf16, #tpu.memory_space<vmem>>, vector<16x512xbf16>
    %1 = arith.extf %0 : vector<16x512xbf16> to vector<16x512xf32>
    %c0_1 = arith.constant 0 : index
    %c0_2 = arith.constant 0 : index
    %2 = vector.load %arg2[%c0_1, %c0_2] : memref<1x512xf32, #tpu.memory_space<vmem>>, vector<1x512xf32>
    %3 = vector.broadcast %2 : vector<1x512xf32> to vector<16x512xf32>
    %4 = arith.mulf %1, %3 : vector<16x512xf32>
    %c0_3 = arith.constant 0 : index
    %c0_4 = arith.constant 0 : index
    %5 = vector.load %arg3[%c0_3, %c0_4] : memref<1x512xf32, #tpu.memory_space<vmem>>, vector<1x512xf32>
    %6 = vector.broadcast %5 : vector<1x512xf32> to vector<16x512xf32>
    %7 = arith.addf %4, %6 : vector<16x512xf32>
    %cst = arith.constant 0.000000e+00 : f32
    %8 = vector.broadcast %cst : f32 to vector<16x512xf32>
    %9 = arith.cmpf ogt, %7, %8 : vector<16x512xf32>
    %cst_5 = arith.constant 2.000000e-01 : f32
    %10 = vector.broadcast %cst_5 : f32 to vector<16x512xf32>
    %11 = arith.mulf %10, %7 : vector<16x512xf32>
    %12 = arith.select %9, %7, %11 : vector<16x512xi1>, vector<16x512xf32>
    %c0_6 = arith.constant 0 : index
    %c0_7 = arith.constant 0 : index
    %13 = vector.load %arg4[%c0_6, %c0_7] : memref<16x512xf32, #tpu.memory_space<vmem>>, vector<16x512xf32>
    %14 = arith.addf %12, %13 : vector<16x512xf32>
    %15 = arith.truncf %14 : vector<16x512xf32> to vector<16x512xbf16>
    %c0_8 = arith.constant 0 : index
    %c0_9 = arith.constant 0 : index
    %16 = vector.load %arg5[%c0_8, %c0_9] : memref<16x512xbf16, #tpu.memory_space<vmem>>, vector<16x512xbf16>
    tpu.vector_store %arg5[%c0_8, %c0_9], %15 {strides = array<i32>} : memref<16x512xbf16, #tpu.memory_space<vmem>>, vector<16x512xbf16>,
    return
  }
  func.func @transform_0(%arg0: i32) -> (i32, i32) {
    %c0_i32 = arith.constant 0 : i32
    %c0_i32_0 = arith.constant 0 : i32
    return %arg0, %c0_i32 : i32, i32
  }
  func.func @transform_1(%arg0: i32) -> (i32, i32) {
    %c0_i32 = arith.constant 0 : i32
    %c0_i32_0 = arith.constant 0 : i32
    %c0_i32_1 = arith.constant 0 : i32
    return %c0_i32, %c0_i32_0 : i32, i32
  }
  func.func @transform_2(%arg0: i32) -> (i32, i32) {
    %c0_i32 = arith.constant 0 : i32
    %c0_i32_0 = arith.constant 0 : i32
    %c0_i32_1 = arith.constant 0 : i32
    return %c0_i32, %c0_i32_0 : i32, i32
  }
  func.func @transform_3(%arg0: i32) -> (i32, i32) {
    %c0_i32 = arith.constant 0 : i32
    %c0_i32_0 = arith.constant 0 : i32
    return %arg0, %c0_i32 : i32, i32
  }
  func.func @transform_4(%arg0: i32) -> (i32, i32) {
    %c0_i32 = arith.constant 0 : i32
    %c0_i32_0 = arith.constant 0 : i32
    return %arg0, %c0_i32 : i32, i32
  }
}

module attributes {stable_mosaic.version = 11 : i64} {
  func.func @_matmul_stats_kernel(%arg0: i32, %arg1: memref<16x576xbf16, #tpu.memory_space<vmem>>, %arg2: memref<576x128xbf16, #tpu.memory_space<vmem>>, %arg3: memref<16x128xbf16, #tpu.memory_space<vmem>>, %arg4: memref<1x2x128xf32, #tpu.memory_space<vmem>>) attributes {dimension_semantics = [#tpu.dimension_semantics<parallel>], iteration_bounds = array<i64: 1>, scalar_prefetch = 0 : i64, scratch_operands = 0 : i64, tpu.core_type = #tpu.core_type<tc>, window_params = [{transform_indices = @transform_0, window_bounds = array<i64: 16, 576>}, {pipeline_mode = #tpu.pipeline_mode<synchronous>, transform_indices = @transform_1, window_bounds = array<i64: 576, 128>}, {transform_indices = @transform_2, window_bounds = array<i64: 16, 128>}, {transform_indices = @transform_3, window_bounds = array<i64: 1, 2, 128>}]} {
    %c0 = arith.constant 0 : index
    %c0_0 = arith.constant 0 : index
    %0 = vector.load %arg1[%c0, %c0_0] : memref<16x576xbf16, #tpu.memory_space<vmem>>, vector<16x576xbf16>
    %c0_1 = arith.constant 0 : index
    %c0_2 = arith.constant 0 : index
    %1 = vector.load %arg2[%c0_1, %c0_2] : memref<576x128xbf16, #tpu.memory_space<vmem>>, vector<576x128xbf16>
    %cst = arith.constant dense<0.000000e+00> : vector<16x128xf32>
    %2 = tpu.matmul %0, %1, %cst {dimension_numbers = #tpu.dot_dimension_numbers<[1], [0], [0], [1], [0, 0, 1, 1], [], []>} : vector<16x576xbf16>, vector<576x128xbf16>, vector<16x128xf32> -> vector<16x128xf32>
    %3 = arith.truncf %2 : vector<16x128xf32> to vector<16x128xbf16>
    %c0_3 = arith.constant 0 : index
    %c0_4 = arith.constant 0 : index
    %4 = vector.load %arg3[%c0_3, %c0_4] : memref<16x128xbf16, #tpu.memory_space<vmem>>, vector<16x128xbf16>
    tpu.vector_store %arg3[%c0_3, %c0_4], %3 {strides = array<i32>} : memref<16x128xbf16, #tpu.memory_space<vmem>>, vector<16x128xbf16>,
    %cst_5 = arith.constant dense<0.000000e+00> : vector<128xf32>
    %5 = vector.multi_reduction <add>, %2, %cst_5 [0] : vector<16x128xf32> to vector<128xf32>
    %6 = vector.shape_cast %5 : vector<128xf32> to vector<1x128xf32>
    %7 = arith.mulf %2, %2 : vector<16x128xf32>
    %cst_6 = arith.constant dense<0.000000e+00> : vector<128xf32>
    %8 = vector.multi_reduction <add>, %7, %cst_6 [0] : vector<16x128xf32> to vector<128xf32>
    %9 = vector.shape_cast %8 : vector<128xf32> to vector<1x128xf32>
    %10 = tpu.concatenate %6, %9 in 0 : vector<1x128xf32>, vector<1x128xf32> -> vector<2x128xf32>
    %11 = vector.shape_cast %10 : vector<2x128xf32> to vector<1x2x128xf32>
    %c0_7 = arith.constant 0 : index
    %c0_8 = arith.constant 0 : index
    %c0_9 = arith.constant 0 : index
    %12 = vector.load %arg4[%c0_7, %c0_8, %c0_9] : memref<1x2x128xf32, #tpu.memory_space<vmem>>, vector<1x2x128xf32>
    tpu.vector_store %arg4[%c0_7, %c0_8, %c0_9], %11 {strides = array<i32>} : memref<1x2x128xf32, #tpu.memory_space<vmem>>, vector<1x2x128xf32>,
    return
  }
  func.func @transform_0(%arg0: i32) -> (i32, i32) {
    %c0_i32 = arith.constant 0 : i32
    %c0_i32_0 = arith.constant 0 : i32
    return %arg0, %c0_i32 : i32, i32
  }
  func.func @transform_1(%arg0: i32) -> (i32, i32) {
    %c0_i32 = arith.constant 0 : i32
    %c0_i32_0 = arith.constant 0 : i32
    %c0_i32_1 = arith.constant 0 : i32
    return %c0_i32, %c0_i32_0 : i32, i32
  }
  func.func @transform_2(%arg0: i32) -> (i32, i32) {
    %c0_i32 = arith.constant 0 : i32
    %c0_i32_0 = arith.constant 0 : i32
    return %arg0, %c0_i32 : i32, i32
  }
  func.func @transform_3(%arg0: i32) -> (i32, i32, i32) {
    %c0_i32 = arith.constant 0 : i32
    %c0_i32_0 = arith.constant 0 : i32
    %c0_i32_1 = arith.constant 0 : i32
    return %arg0, %c0_i32, %c0_i32_0 : i32, i32, i32
  }
}

module attributes {stable_mosaic.version = 11 : i64} {
  func.func @_affine_act_kernel(%arg0: i32, %arg1: memref<16x512xbf16, #tpu.memory_space<vmem>>, %arg2: memref<1x512xf32, #tpu.memory_space<vmem>>, %arg3: memref<1x512xf32, #tpu.memory_space<vmem>>, %arg4: memref<16x512xbf16, #tpu.memory_space<vmem>>) attributes {dimension_semantics = [#tpu.dimension_semantics<parallel>], iteration_bounds = array<i64: 1>, scalar_prefetch = 0 : i64, scratch_operands = 0 : i64, tpu.core_type = #tpu.core_type<tc>, window_params = [{transform_indices = @transform_0, window_bounds = array<i64: 16, 512>}, {pipeline_mode = #tpu.pipeline_mode<synchronous>, transform_indices = @transform_1, window_bounds = array<i64: 1, 512>}, {pipeline_mode = #tpu.pipeline_mode<synchronous>, transform_indices = @transform_2, window_bounds = array<i64: 1, 512>}, {transform_indices = @transform_3, window_bounds = array<i64: 16, 512>}]} {
    %c0 = arith.constant 0 : index
    %c0_0 = arith.constant 0 : index
    %0 = vector.load %arg1[%c0, %c0_0] : memref<16x512xbf16, #tpu.memory_space<vmem>>, vector<16x512xbf16>
    %1 = arith.extf %0 : vector<16x512xbf16> to vector<16x512xf32>
    %c0_1 = arith.constant 0 : index
    %c0_2 = arith.constant 0 : index
    %2 = vector.load %arg2[%c0_1, %c0_2] : memref<1x512xf32, #tpu.memory_space<vmem>>, vector<1x512xf32>
    %3 = vector.broadcast %2 : vector<1x512xf32> to vector<16x512xf32>
    %4 = arith.mulf %1, %3 : vector<16x512xf32>
    %c0_3 = arith.constant 0 : index
    %c0_4 = arith.constant 0 : index
    %5 = vector.load %arg3[%c0_3, %c0_4] : memref<1x512xf32, #tpu.memory_space<vmem>>, vector<1x512xf32>
    %6 = vector.broadcast %5 : vector<1x512xf32> to vector<16x512xf32>
    %7 = arith.addf %4, %6 : vector<16x512xf32>
    %cst = arith.constant 0.000000e+00 : f32
    %8 = vector.broadcast %cst : f32 to vector<16x512xf32>
    %9 = arith.maximumf %7, %8 : vector<16x512xf32>
    %10 = arith.truncf %9 : vector<16x512xf32> to vector<16x512xbf16>
    %c0_5 = arith.constant 0 : index
    %c0_6 = arith.constant 0 : index
    %11 = vector.load %arg4[%c0_5, %c0_6] : memref<16x512xbf16, #tpu.memory_space<vmem>>, vector<16x512xbf16>
    tpu.vector_store %arg4[%c0_5, %c0_6], %10 {strides = array<i32>} : memref<16x512xbf16, #tpu.memory_space<vmem>>, vector<16x512xbf16>,
    return
  }
  func.func @transform_0(%arg0: i32) -> (i32, i32) {
    %c0_i32 = arith.constant 0 : i32
    %c0_i32_0 = arith.constant 0 : i32
    return %arg0, %c0_i32 : i32, i32
  }
  func.func @transform_1(%arg0: i32) -> (i32, i32) {
    %c0_i32 = arith.constant 0 : i32
    %c0_i32_0 = arith.constant 0 : i32
    %c0_i32_1 = arith.constant 0 : i32
    return %c0_i32, %c0_i32_0 : i32, i32
  }
  func.func @transform_2(%arg0: i32) -> (i32, i32) {
    %c0_i32 = arith.constant 0 : i32
    %c0_i32_0 = arith.constant 0 : i32
    %c0_i32_1 = arith.constant 0 : i32
    return %c0_i32, %c0_i32_0 : i32, i32
  }
  func.func @transform_3(%arg0: i32) -> (i32, i32) {
    %c0_i32 = arith.constant 0 : i32
    %c0_i32_0 = arith.constant 0 : i32
    return %arg0, %c0_i32 : i32, i32
  }
}

module attributes {stable_mosaic.version = 11 : i64} {
  func.func @_matmul_stats_kernel(%arg0: i32, %arg1: memref<32x288xbf16, #tpu.memory_space<vmem>>, %arg2: memref<288x64xbf16, #tpu.memory_space<vmem>>, %arg3: memref<32x64xbf16, #tpu.memory_space<vmem>>, %arg4: memref<1x2x64xf32, #tpu.memory_space<vmem>>) attributes {dimension_semantics = [#tpu.dimension_semantics<parallel>], iteration_bounds = array<i64: 1>, scalar_prefetch = 0 : i64, scratch_operands = 0 : i64, tpu.core_type = #tpu.core_type<tc>, window_params = [{transform_indices = @transform_0, window_bounds = array<i64: 32, 288>}, {pipeline_mode = #tpu.pipeline_mode<synchronous>, transform_indices = @transform_1, window_bounds = array<i64: 288, 64>}, {transform_indices = @transform_2, window_bounds = array<i64: 32, 64>}, {transform_indices = @transform_3, window_bounds = array<i64: 1, 2, 64>}]} {
    %c0 = arith.constant 0 : index
    %c0_0 = arith.constant 0 : index
    %0 = vector.load %arg1[%c0, %c0_0] : memref<32x288xbf16, #tpu.memory_space<vmem>>, vector<32x288xbf16>
    %c0_1 = arith.constant 0 : index
    %c0_2 = arith.constant 0 : index
    %1 = vector.load %arg2[%c0_1, %c0_2] : memref<288x64xbf16, #tpu.memory_space<vmem>>, vector<288x64xbf16>
    %cst = arith.constant dense<0.000000e+00> : vector<32x64xf32>
    %2 = tpu.matmul %0, %1, %cst {dimension_numbers = #tpu.dot_dimension_numbers<[1], [0], [0], [1], [0, 0, 1, 1], [], []>} : vector<32x288xbf16>, vector<288x64xbf16>, vector<32x64xf32> -> vector<32x64xf32>
    %3 = arith.truncf %2 : vector<32x64xf32> to vector<32x64xbf16>
    %c0_3 = arith.constant 0 : index
    %c0_4 = arith.constant 0 : index
    %4 = vector.load %arg3[%c0_3, %c0_4] : memref<32x64xbf16, #tpu.memory_space<vmem>>, vector<32x64xbf16>
    tpu.vector_store %arg3[%c0_3, %c0_4], %3 {strides = array<i32>} : memref<32x64xbf16, #tpu.memory_space<vmem>>, vector<32x64xbf16>,
    %cst_5 = arith.constant dense<0.000000e+00> : vector<64xf32>
    %5 = vector.multi_reduction <add>, %2, %cst_5 [0] : vector<32x64xf32> to vector<64xf32>
    %6 = vector.shape_cast %5 : vector<64xf32> to vector<1x64xf32>
    %7 = arith.mulf %2, %2 : vector<32x64xf32>
    %cst_6 = arith.constant dense<0.000000e+00> : vector<64xf32>
    %8 = vector.multi_reduction <add>, %7, %cst_6 [0] : vector<32x64xf32> to vector<64xf32>
    %9 = vector.shape_cast %8 : vector<64xf32> to vector<1x64xf32>
    %10 = tpu.concatenate %6, %9 in 0 : vector<1x64xf32>, vector<1x64xf32> -> vector<2x64xf32>
    %11 = vector.shape_cast %10 : vector<2x64xf32> to vector<1x2x64xf32>
    %c0_7 = arith.constant 0 : index
    %c0_8 = arith.constant 0 : index
    %c0_9 = arith.constant 0 : index
    %12 = vector.load %arg4[%c0_7, %c0_8, %c0_9] : memref<1x2x64xf32, #tpu.memory_space<vmem>>, vector<1x2x64xf32>
    tpu.vector_store %arg4[%c0_7, %c0_8, %c0_9], %11 {strides = array<i32>} : memref<1x2x64xf32, #tpu.memory_space<vmem>>, vector<1x2x64xf32>,
    return
  }
  func.func @transform_0(%arg0: i32) -> (i32, i32) {
    %c0_i32 = arith.constant 0 : i32
    %c0_i32_0 = arith.constant 0 : i32
    return %arg0, %c0_i32 : i32, i32
  }
  func.func @transform_1(%arg0: i32) -> (i32, i32) {
    %c0_i32 = arith.constant 0 : i32
    %c0_i32_0 = arith.constant 0 : i32
    %c0_i32_1 = arith.constant 0 : i32
    return %c0_i32, %c0_i32_0 : i32, i32
  }
  func.func @transform_2(%arg0: i32) -> (i32, i32) {
    %c0_i32 = arith.constant 0 : i32
    %c0_i32_0 = arith.constant 0 : i32
    return %arg0, %c0_i32 : i32, i32
  }
  func.func @transform_3(%arg0: i32) -> (i32, i32, i32) {
    %c0_i32 = arith.constant 0 : i32
    %c0_i32_0 = arith.constant 0 : i32
    %c0_i32_1 = arith.constant 0 : i32
    return %arg0, %c0_i32, %c0_i32_0 : i32, i32, i32
  }
}

module attributes {stable_mosaic.version = 11 : i64} {
  func.func @_matmul_stats_kernel(%arg0: i32, %arg1: memref<128x144xbf16, #tpu.memory_space<vmem>>, %arg2: memref<144x64xbf16, #tpu.memory_space<vmem>>, %arg3: memref<128x64xbf16, #tpu.memory_space<vmem>>, %arg4: memref<1x2x64xf32, #tpu.memory_space<vmem>>) attributes {dimension_semantics = [#tpu.dimension_semantics<parallel>], iteration_bounds = array<i64: 1>, scalar_prefetch = 0 : i64, scratch_operands = 0 : i64, tpu.core_type = #tpu.core_type<tc>, window_params = [{transform_indices = @transform_0, window_bounds = array<i64: 128, 144>}, {pipeline_mode = #tpu.pipeline_mode<synchronous>, transform_indices = @transform_1, window_bounds = array<i64: 144, 64>}, {transform_indices = @transform_2, window_bounds = array<i64: 128, 64>}, {transform_indices = @transform_3, window_bounds = array<i64: 1, 2, 64>}]} {
    %c0 = arith.constant 0 : index
    %c0_0 = arith.constant 0 : index
    %0 = vector.load %arg1[%c0, %c0_0] : memref<128x144xbf16, #tpu.memory_space<vmem>>, vector<128x144xbf16>
    %c0_1 = arith.constant 0 : index
    %c0_2 = arith.constant 0 : index
    %1 = vector.load %arg2[%c0_1, %c0_2] : memref<144x64xbf16, #tpu.memory_space<vmem>>, vector<144x64xbf16>
    %cst = arith.constant dense<0.000000e+00> : vector<128x64xf32>
    %2 = tpu.matmul %0, %1, %cst {dimension_numbers = #tpu.dot_dimension_numbers<[1], [0], [0], [1], [0, 0, 1, 1], [], []>} : vector<128x144xbf16>, vector<144x64xbf16>, vector<128x64xf32> -> vector<128x64xf32>
    %3 = arith.truncf %2 : vector<128x64xf32> to vector<128x64xbf16>
    %c0_3 = arith.constant 0 : index
    %c0_4 = arith.constant 0 : index
    %4 = vector.load %arg3[%c0_3, %c0_4] : memref<128x64xbf16, #tpu.memory_space<vmem>>, vector<128x64xbf16>
    tpu.vector_store %arg3[%c0_3, %c0_4], %3 {strides = array<i32>} : memref<128x64xbf16, #tpu.memory_space<vmem>>, vector<128x64xbf16>,
    %cst_5 = arith.constant dense<0.000000e+00> : vector<64xf32>
    %5 = vector.multi_reduction <add>, %2, %cst_5 [0] : vector<128x64xf32> to vector<64xf32>
    %6 = vector.shape_cast %5 : vector<64xf32> to vector<1x64xf32>
    %7 = arith.mulf %2, %2 : vector<128x64xf32>
    %cst_6 = arith.constant dense<0.000000e+00> : vector<64xf32>
    %8 = vector.multi_reduction <add>, %7, %cst_6 [0] : vector<128x64xf32> to vector<64xf32>
    %9 = vector.shape_cast %8 : vector<64xf32> to vector<1x64xf32>
    %10 = tpu.concatenate %6, %9 in 0 : vector<1x64xf32>, vector<1x64xf32> -> vector<2x64xf32>
    %11 = vector.shape_cast %10 : vector<2x64xf32> to vector<1x2x64xf32>
    %c0_7 = arith.constant 0 : index
    %c0_8 = arith.constant 0 : index
    %c0_9 = arith.constant 0 : index
    %12 = vector.load %arg4[%c0_7, %c0_8, %c0_9] : memref<1x2x64xf32, #tpu.memory_space<vmem>>, vector<1x2x64xf32>
    tpu.vector_store %arg4[%c0_7, %c0_8, %c0_9], %11 {strides = array<i32>} : memref<1x2x64xf32, #tpu.memory_space<vmem>>, vector<1x2x64xf32>,
    return
  }
  func.func @transform_0(%arg0: i32) -> (i32, i32) {
    %c0_i32 = arith.constant 0 : i32
    %c0_i32_0 = arith.constant 0 : i32
    return %arg0, %c0_i32 : i32, i32
  }
  func.func @transform_1(%arg0: i32) -> (i32, i32) {
    %c0_i32 = arith.constant 0 : i32
    %c0_i32_0 = arith.constant 0 : i32
    %c0_i32_1 = arith.constant 0 : i32
    return %c0_i32, %c0_i32_0 : i32, i32
  }
  func.func @transform_2(%arg0: i32) -> (i32, i32) {
    %c0_i32 = arith.constant 0 : i32
    %c0_i32_0 = arith.constant 0 : i32
    return %arg0, %c0_i32 : i32, i32
  }
  func.func @transform_3(%arg0: i32) -> (i32, i32, i32) {
    %c0_i32 = arith.constant 0 : i32
    %c0_i32_0 = arith.constant 0 : i32
    %c0_i32_1 = arith.constant 0 : i32
    return %arg0, %c0_i32, %c0_i32_0 : i32, i32, i32
  }
}

module attributes {stable_mosaic.version = 11 : i64} {
  func.func @_matmul_head_kernel(%arg0: i32, %arg1: memref<256x144xbf16, #tpu.memory_space<vmem>>, %arg2: memref<144x16xbf16, #tpu.memory_space<vmem>>, %arg3: memref<256x12xf32, #tpu.memory_space<vmem>>, %arg4: memref<256x16xf32, #tpu.memory_space<vmem>>, %arg5: memref<256x12xf32, #tpu.memory_space<vmem>>) attributes {dimension_semantics = [#tpu.dimension_semantics<parallel>], iteration_bounds = array<i64: 2>, scalar_prefetch = 0 : i64, scratch_operands = 0 : i64, tpu.core_type = #tpu.core_type<tc>, window_params = [{transform_indices = @transform_0, window_bounds = array<i64: 256, 144>}, {pipeline_mode = #tpu.pipeline_mode<synchronous>, transform_indices = @transform_1, window_bounds = array<i64: 144, 16>}, {transform_indices = @transform_2, window_bounds = array<i64: 256, 12>}, {transform_indices = @transform_3, window_bounds = array<i64: 256, 16>}, {transform_indices = @transform_4, window_bounds = array<i64: 256, 12>}]} {
    %c0 = arith.constant 0 : index
    %c0_0 = arith.constant 0 : index
    %0 = vector.load %arg1[%c0, %c0_0] : memref<256x144xbf16, #tpu.memory_space<vmem>>, vector<256x144xbf16>
    %c0_1 = arith.constant 0 : index
    %c0_2 = arith.constant 0 : index
    %1 = vector.load %arg2[%c0_1, %c0_2] : memref<144x16xbf16, #tpu.memory_space<vmem>>, vector<144x16xbf16>
    %cst = arith.constant dense<0.000000e+00> : vector<256x16xf32>
    %2 = tpu.matmul %0, %1, %cst {dimension_numbers = #tpu.dot_dimension_numbers<[1], [0], [0], [1], [0, 0, 1, 1], [], []>} : vector<256x144xbf16>, vector<144x16xbf16>, vector<256x16xf32> -> vector<256x16xf32>
    %3 = arith.negf %2 : vector<256x16xf32>
    %4 = math.exp %3 : vector<256x16xf32>
    %cst_3 = arith.constant 1.000000e+00 : f32
    %5 = vector.broadcast %cst_3 : f32 to vector<256x16xf32>
    %6 = arith.addf %5, %4 : vector<256x16xf32>
    %7 = arith.divf %5, %6 : vector<256x16xf32>
    %c0_4 = arith.constant 0 : index
    %c0_5 = arith.constant 0 : index
    %8 = vector.load %arg4[%c0_4, %c0_5] : memref<256x16xf32, #tpu.memory_space<vmem>>, vector<256x16xf32>
    tpu.vector_store %arg4[%c0_4, %c0_5], %7 {strides = array<i32>} : memref<256x16xf32, #tpu.memory_space<vmem>>, vector<256x16xf32>,
    %c0_6 = arith.constant 0 : index
    %c0_7 = arith.constant 0 : index
    %9 = vector.load %arg3[%c0_6, %c0_7] : memref<256x12xf32, #tpu.memory_space<vmem>>, vector<256x12xf32>
    %10 = vector.extract_strided_slice %7 {offsets = [0, 0], sizes = [256, 3], strides = [1, 1]} : vector<256x16xf32> to vector<256x3xf32>
    %11 = vector.extract_strided_slice %7 {offsets = [0, 3], sizes = [256, 1], strides = [1, 1]} : vector<256x16xf32> to vector<256x1xf32>
    %12 = vector.extract_strided_slice %9 {offsets = [0, 0], sizes = [256, 3], strides = [1, 1]} : vector<256x12xf32> to vector<256x3xf32>
    %13 = vector.broadcast %11 : vector<256x1xf32> to vector<256x3xf32>
    %14 = arith.mulf %13, %10 : vector<256x3xf32>
    %cst_8 = arith.constant 1.000000e+00 : f32
    %15 = vector.broadcast %cst_8 : f32 to vector<256x1xf32>
    %16 = arith.subf %15, %11 : vector<256x1xf32>
    %17 = vector.broadcast %16 : vector<256x1xf32> to vector<256x3xf32>
    %18 = arith.mulf %17, %12 : vector<256x3xf32>
    %19 = arith.addf %14, %18 : vector<256x3xf32>
    %c0_9 = arith.constant 0 : index
    %c0_10 = arith.constant 0 : index
    %20 = vector.load %arg5[%c0_9, %c0_10] : memref<256x12xf32, #tpu.memory_space<vmem>>, vector<256x3xf32>
    tpu.vector_store %arg5[%c0_9, %c0_10], %19 {strides = array<i32>} : memref<256x12xf32, #tpu.memory_space<vmem>>, vector<256x3xf32>,
    %21 = vector.extract_strided_slice %7 {offsets = [0, 4], sizes = [256, 3], strides = [1, 1]} : vector<256x16xf32> to vector<256x3xf32>
    %22 = vector.extract_strided_slice %7 {offsets = [0, 7], sizes = [256, 1], strides = [1, 1]} : vector<256x16xf32> to vector<256x1xf32>
    %23 = vector.extract_strided_slice %9 {offsets = [0, 3], sizes = [256, 3], strides = [1, 1]} : vector<256x12xf32> to vector<256x3xf32>
    %24 = vector.broadcast %22 : vector<256x1xf32> to vector<256x3xf32>
    %25 = arith.mulf %24, %21 : vector<256x3xf32>
    %cst_11 = arith.constant 1.000000e+00 : f32
    %26 = vector.broadcast %cst_11 : f32 to vector<256x1xf32>
    %27 = arith.subf %26, %22 : vector<256x1xf32>
    %28 = vector.broadcast %27 : vector<256x1xf32> to vector<256x3xf32>
    %29 = arith.mulf %28, %23 : vector<256x3xf32>
    %30 = arith.addf %25, %29 : vector<256x3xf32>
    %c0_12 = arith.constant 0 : index
    %c3 = arith.constant 3 : index
    %31 = vector.load %arg5[%c0_12, %c3] : memref<256x12xf32, #tpu.memory_space<vmem>>, vector<256x3xf32>
    tpu.vector_store %arg5[%c0_12, %c3], %30 {strides = array<i32>} : memref<256x12xf32, #tpu.memory_space<vmem>>, vector<256x3xf32>,
    %32 = vector.extract_strided_slice %7 {offsets = [0, 8], sizes = [256, 3], strides = [1, 1]} : vector<256x16xf32> to vector<256x3xf32>
    %33 = vector.extract_strided_slice %7 {offsets = [0, 11], sizes = [256, 1], strides = [1, 1]} : vector<256x16xf32> to vector<256x1xf32>
    %34 = vector.extract_strided_slice %9 {offsets = [0, 6], sizes = [256, 3], strides = [1, 1]} : vector<256x12xf32> to vector<256x3xf32>
    %35 = vector.broadcast %33 : vector<256x1xf32> to vector<256x3xf32>
    %36 = arith.mulf %35, %32 : vector<256x3xf32>
    %cst_13 = arith.constant 1.000000e+00 : f32
    %37 = vector.broadcast %cst_13 : f32 to vector<256x1xf32>
    %38 = arith.subf %37, %33 : vector<256x1xf32>
    %39 = vector.broadcast %38 : vector<256x1xf32> to vector<256x3xf32>
    %40 = arith.mulf %39, %34 : vector<256x3xf32>
    %41 = arith.addf %36, %40 : vector<256x3xf32>
    %c0_14 = arith.constant 0 : index
    %c6 = arith.constant 6 : index
    %42 = vector.load %arg5[%c0_14, %c6] : memref<256x12xf32, #tpu.memory_space<vmem>>, vector<256x3xf32>
    tpu.vector_store %arg5[%c0_14, %c6], %41 {strides = array<i32>} : memref<256x12xf32, #tpu.memory_space<vmem>>, vector<256x3xf32>,
    %43 = vector.extract_strided_slice %7 {offsets = [0, 12], sizes = [256, 3], strides = [1, 1]} : vector<256x16xf32> to vector<256x3xf32>
    %44 = vector.extract_strided_slice %7 {offsets = [0, 15], sizes = [256, 1], strides = [1, 1]} : vector<256x16xf32> to vector<256x1xf32>
    %45 = vector.extract_strided_slice %9 {offsets = [0, 9], sizes = [256, 3], strides = [1, 1]} : vector<256x12xf32> to vector<256x3xf32>
    %46 = vector.broadcast %44 : vector<256x1xf32> to vector<256x3xf32>
    %47 = arith.mulf %46, %43 : vector<256x3xf32>
    %cst_15 = arith.constant 1.000000e+00 : f32
    %48 = vector.broadcast %cst_15 : f32 to vector<256x1xf32>
    %49 = arith.subf %48, %44 : vector<256x1xf32>
    %50 = vector.broadcast %49 : vector<256x1xf32> to vector<256x3xf32>
    %51 = arith.mulf %50, %45 : vector<256x3xf32>
    %52 = arith.addf %47, %51 : vector<256x3xf32>
    %c0_16 = arith.constant 0 : index
    %c9 = arith.constant 9 : index
    %53 = vector.load %arg5[%c0_16, %c9] : memref<256x12xf32, #tpu.memory_space<vmem>>, vector<256x3xf32>
    tpu.vector_store %arg5[%c0_16, %c9], %52 {strides = array<i32>} : memref<256x12xf32, #tpu.memory_space<vmem>>, vector<256x3xf32>,
    return
  }
  func.func @transform_0(%arg0: i32) -> (i32, i32) {
    %c0_i32 = arith.constant 0 : i32
    %c0_i32_0 = arith.constant 0 : i32
    return %arg0, %c0_i32 : i32, i32
  }
  func.func @transform_1(%arg0: i32) -> (i32, i32) {
    %c0_i32 = arith.constant 0 : i32
    %c0_i32_0 = arith.constant 0 : i32
    %c0_i32_1 = arith.constant 0 : i32
    return %c0_i32, %c0_i32_0 : i32, i32
  }
  func.func @transform_2(%arg0: i32) -> (i32, i32) {
    %c0_i32 = arith.constant 0 : i32
    %c0_i32_0 = arith.constant 0 : i32
    return %arg0, %c0_i32 : i32, i32
  }
  func.func @transform_3(%arg0: i32) -> (i32, i32) {
    %c0_i32 = arith.constant 0 : i32
    %c0_i32_0 = arith.constant 0 : i32
    return %arg0, %c0_i32 : i32, i32
  }
  func.func @transform_4(%arg0: i32) -> (i32, i32) {
    %c0_i32 = arith.constant 0 : i32
    %c0_i32_0 = arith.constant 0 : i32
    return %arg0, %c0_i32 : i32, i32
  }
}

</mosaic_0001>

<llo_original>
// kernel: generator_forward.14
$region0: #{generator_forward.14}
  #allocation0 [shape = 'u32[]', space=smem, size = 0x4, offset = 0x4, fixed_abs, tag = 'smem constant byte address 0x4 - core index']
  #allocation1 [shape = 'u32[144,128]{1,0:T(1,128)}', space=vmem, size = 0x12000, scoped, tag = 'internal scratch']
  %s0 = inlined_call_operand.vmem [shape: bf16[512,48], index: 0, kind: input, shape index: {}]
  %s1 = inlined_call_operand.vmem [shape: bf16[48,8], index: 1, kind: input, shape index: {}]
  %s2 = inlined_call_operand.vmem [shape: bf16[512,8], index: 2, kind: output, shape index: {}]
  %s3 = sld [smem:[#allocation0]]
  $region41: #{generator_forward.14} parent=0
    _
  %s5 = ssub.s32 1, %s3
  %s6 = scalar_select 0, %s5, %s3
  loop: start=0, step=1, limit=4
  $region2: #{generator_forward.14} parent=0 // loop_pre_header
    _
  $region3: #{generator_forward.14} parent=0 // loop_header
    %s8 = sphi 0, %s12
    %p9 = scmp.ge.s32.totalorder %s8, 4
    %s18 = sphi 0, %s20
    %s21 = sphi 0, %s18
    %s22 = sphi 0, %s21
    %s38 = sphi 0, %s22
    %s42 = sphi 0, %s42
    %s44 = sphi 0, %s42
    %s45 = sphi 0, %s44
    %s59 = sphi 0, %s45
    %s65 = sphi 0, %s67
    %s68 = sphi 0, %s65
    %s69 = sphi 0, %s68
    %s85 = sphi 0, %s69
  $region4: #{generator_forward.14} parent=0 // loop_header_branch
    %11 = sbr.rel (%p9) target = $region8
  $region5: #{generator_forward.14} parent=0 // loop_body
    %s13 = ssub.s32 %s8, 1
    %s14 = ssub.s32 %s8, 2
    %s15 = sadd.s32 %s8, 1
    %s16 = ssub.s32 %s8, %s15
    %p17 = scmp.eq.s32.totalorder %s16, 0
    %s19 = sadd.s32 %s18, 1
    %s20 = scalar_select %p17, %s18, %s19
    %p23 = pneg %p17
    %p24 = scmp.eq.s32.totalorder %s8, 1
    %p25 = por %p23, %p24
    %p26 = scmp.ne.s32.totalorder %s18, %s21
    %p27 = scmp.eq.s32.totalorder %s8, 0
    %p28 = por %p26, %p27
    %p29 = scmp.ne.s32.totalorder %s18, %s21
    %p30 = scmp.eq.s32.totalorder %s13, 1
    %p31 = por %p29, %p30
    %p32 = scmp.ne.s32.totalorder %s21, %s22
    %p33 = scmp.eq.s32.totalorder %s13, 0
    %p34 = por %p32, %p33
    %p35 = scmp.ne.s32.totalorder %s21, %s22
    %p36 = scmp.eq.s32.totalorder %s14, 1
    %p37 = por %p35, %p36
    %p39 = scmp.ne.s32.totalorder %s22, %s38
    %p40 = scmp.eq.s32.totalorder %s14, 0
    %p41 = por %p39, %p40
    %s43 = sadd.s32 %s42, 1
    %p46 = scmp.eq.s32.totalorder %s8, 1
    %p47 = scmp.ne.s32.totalorder %s42, %s44
    %p48 = scmp.eq.s32.totalorder %s8, 0
    %p49 = por %p47, %p48
    %p50 = scmp.ne.s32.totalorder %s42, %s44
    %p51 = scmp.eq.s32.totalorder %s13, 1
    %p52 = por %p50, %p51
    %p53 = scmp.ne.s32.totalorder %s44, %s45
    %p54 = scmp.eq.s32.totalorder %s13, 0
    %p55 = por %p53, %p54
    %p56 = scmp.ne.s32.totalorder %s44, %s45
    %p57 = scmp.eq.s32.totalorder %s14, 1
    %p58 = por %p56, %p57
    %p60 = scmp.ne.s32.totalorder %s45, %s59
    %p61 = scmp.eq.s32.totalorder %s14, 0
    %p62 = por %p60, %p61
    %s63 = ssub.s32 %s8, %s15
    %p64 = scmp.eq.s32.totalorder %s63, 0
    %s66 = sadd.s32 %s65, 1
    %s67 = scalar_select %p64, %s65, %s66
    %p70 = pneg %p64
    %p71 = scmp.eq.s32.totalorder %s8, 1
    %p72 = por %p70, %p71
    %p73 = scmp.ne.s32.totalorder %s65, %s68
    %p74 = scmp.eq.s32.totalorder %s8, 0
    %p75 = por %p73, %p74
    %p76 = scmp.ne.s32.totalorder %s65, %s68
    %p77 = scmp.eq.s32.totalorder %s13, 1
    %p78 = por %p76, %p77
    %p79 = scmp.ne.s32.totalorder %s68, %s69
    %p80 = scmp.eq.s32.totalorder %s13, 0
    %p81 = por %p79, %p80
    %p82 = scmp.ne.s32.totalorder %s68, %s69
    %p83 = scmp.eq.s32.totalorder %s14, 1
    %p84 = por %p82, %p83
    %p86 = scmp.ne.s32.totalorder %s69, %s85
    %p87 = scmp.eq.s32.totalorder %s14, 0
    %p88 = por %p86, %p87
    %p89 = scmp.le.s32.totalorder 1, %s8
    %p90 = scmp.lt.s32.totalorder %s8, 3
    %p91 = pnand %p89, %p90
    %p92 = pneg %p91
    // Predicated region
    $region9: #{generator_forward.14} parent=5 // pred_check
      _
    $region10: #{generator_forward.14} parent=5 // pred_check_branch
      %94 = sbr.rel (%p91) target = $region12
    $region11: #{generator_forward.14} parent=5 // pred_region
      %s95 = ssub.s32 %s8, 1
      // Predicated region
      $region13: #{generator_forward.14} parent=11 // pred_check
        %p96 = pneg %p55
      $region14: #{generator_forward.14} parent=11 // pred_check_branch
        %98 = sbr.rel (%p96) target = $region16
      $region15: #{generator_forward.14} parent=11 // pred_region
        _
      $region16: #{generator_forward.14} parent=11 // pred_fallthru
        _
    $region12: #{generator_forward.14} parent=5 // pred_fallthru
      _
    %p99 = scmp.lt.s32.totalorder %s8, 2
    // Predicated region
    $region17: #{generator_forward.14} parent=5 // pred_check
      %p100 = pneg %p99
    $region18: #{generator_forward.14} parent=5 // pred_check_branch
      %102 = sbr.rel (%p100) target = $region20
    $region19: #{generator_forward.14} parent=5 // pred_region
      // Predicated region
      $region21: #{generator_forward.14} parent=19 // pred_check
        %p103 = pneg %p28
      $region22: #{generator_forward.14} parent=19 // pred_check_branch
        %105 = sbr.rel (%p103) target = $region24
      $region23: #{generator_forward.14} parent=19 // pred_region
        %s106 = smul.u32 32, %s8
        %p107 = scmp.lt.s32.totalorder %s106, 63
        %s108 = scalar_select %p107, %s106, 63
        %s109 = smul.addr %s108, 4
        %s110 = scalar_lea.vmem %s0, %s109
        %s111 = smul.u32 32, %s8
      $region24: #{generator_forward.14} parent=19 // pred_fallthru
        _
    $region20: #{generator_forward.14} parent=5 // pred_fallthru
      _
    %p112 = scmp.le.s32.totalorder 1, %s8
    %p113 = scmp.lt.s32.totalorder %s8, 3
    %p114 = pnand %p112, %p113
    %p115 = pneg %p114
    // Predicated region
    $region25: #{generator_forward.14} parent=5 // pred_check
      _
    $region26: #{generator_forward.14} parent=5 // pred_check_branch
      %117 = sbr.rel (%p114) target = $region28
    $region27: #{generator_forward.14} parent=5 // pred_region
      %s118 = ssub.s32 %s8, 1
      %s119 = smul.u32 32, %s13
      %p120 = scmp.lt.s32.totalorder %s119, 63
      %s121 = scalar_select %p120, %s119, 63
      %s122 = smul.addr %s121, 4
      %s123 = scalar_lea.vmem %s0, %s122
      %p124 = pneg %p34
      %p125 = pneg %p31
      %p126 = pneg %p55
      %p127 = pneg %p52
      %p128 = pneg %p81
      %p129 = pneg %p78
      %s130 = smul.u32 32, %s13
      %p131 = scmp.lt.s32.totalorder %s130, 63
      %s132 = scalar_select %p131, %s130, 63
      %s133 = smul.addr %s132, 4
      %s134 = scalar_lea.vmem %s2, %s133
      %s135 = smul.u32 32, %s13
      %p136 = scmp.lt.s32.totalorder %s135, 63
      %s137 = scalar_select %p136, %s135, 63
      %s138 = smul.addr %s137, 4
      %s139 = scalar_lea.vmem %s0, %s138
      %s140 = smul.u32 32, %s13
      %s141 = smul.u32 32, %s13
      %p142 = scmp.lt.s32.totalorder %s141, 63
      %s143 = scalar_select %p142, %s141, 63
      %s144 = smul.addr %s143, 4
      %s145 = scalar_lea.vmem %s2, %s144
      %s146 = smul.u32 32, %s13
      %v148 = vld [vmem:[%s139] sm:$0xf]
      %v149 = vld [vmem:[%s139 + $0x4] sm:$0xf]
      %v150 = vld [vmem:[%s139 + $0x8] sm:$0xf]
      %v151 = vld [vmem:[%s139 + $0xc] sm:$0xf]
      %v152 = vld [vmem:[%s139 + $0x10] sm:$0xf]
      %v153 = vld [vmem:[%s139 + $0x14] sm:$0xf]
      %v154 = vld [vmem:[%s139 + $0x18] sm:$0xf]
      %v155 = vld [vmem:[%s139 + $0x1c] sm:$0xf]
      %v156 = vld [vmem:[%s139 + $0x20] sm:$0xf]
      %v157 = vld [vmem:[%s139 + $0x24] sm:$0xf]
      %v158 = vld [vmem:[%s139 + $0x28] sm:$0xf]
      %v159 = vld [vmem:[%s139 + $0x2c] sm:$0xf]
      %v160 = vld [vmem:[%s139 + $0x30] sm:$0xf]
      %v161 = vld [vmem:[%s139 + $0x34] sm:$0xf]
      %v162 = vld [vmem:[%s139 + $0x38] sm:$0xf]
      %v163 = vld [vmem:[%s139 + $0x3c] sm:$0xf]
      %v164 = vld [vmem:[%s139 + $0x40] sm:$0xf]
      %v165 = vld [vmem:[%s139 + $0x44] sm:$0xf]
      %v166 = vld [vmem:[%s139 + $0x48] sm:$0xf]
      %v167 = vld [vmem:[%s139 + $0x4c] sm:$0xf]
      %v168 = vld [vmem:[%s139 + $0x50] sm:$0xf]
      %v169 = vld [vmem:[%s139 + $0x54] sm:$0xf]
      %v170 = vld [vmem:[%s139 + $0x58] sm:$0xf]
      %v171 = vld [vmem:[%s139 + $0x5c] sm:$0xf]
      %v172 = vld [vmem:[%s139 + $0x60] sm:$0xf]
      %v173 = vld [vmem:[%s139 + $0x64] sm:$0xf]
      %v174 = vld [vmem:[%s139 + $0x68] sm:$0xf]
      %v175 = vld [vmem:[%s139 + $0x6c] sm:$0xf]
      %v176 = vld [vmem:[%s139 + $0x70] sm:$0xf]
      %v177 = vld [vmem:[%s139 + $0x74] sm:$0xf]
      %v178 = vld [vmem:[%s139 + $0x78] sm:$0xf]
      %v179 = vld [vmem:[%s139 + $0x7c] sm:$0xf]
      %v180 = vld [vmem:[%s1] sm:$0xf]
      %v181 = vld [vmem:[%s1 + $0x4] sm:$0xf]
      %v182 = vld [vmem:[%s1 + $0x8] sm:$0xf]
      %v183 = vld [vmem:[%s1 + $0xc] sm:$0xf]
      %v184 = vld [vmem:[%s1 + $0x10] sm:$0xf]
      %v185 = vld [vmem:[%s1 + $0x14] sm:$0xf]
      %v218 = vunpack.c.l.b16 %v148
      %v219 = vunpack.c.l.b16 %v149
      %v220 = vunpack.c.l.b16 %v150
      %v221 = vunpack.c.l.b16 %v151
      %v222 = vunpack.c.l.b16 %v152
      %v223 = vunpack.c.l.b16 %v153
      %v224 = vunpack.c.l.b16 %v154
      %v225 = vunpack.c.l.b16 %v155
      %v226 = vunpack.c.l.b16 %v156
      %v227 = vunpack.c.l.b16 %v157
      %v228 = vunpack.c.l.b16 %v158
      %v229 = vunpack.c.l.b16 %v159
      %v230 = vunpack.c.l.b16 %v160
      %v231 = vunpack.c.l.b16 %v161
      %v232 = vunpack.c.l.b16 %v162
      %v233 = vunpack.c.l.b16 %v163
      %v234 = vunpack.c.l.b16 %v164
      %v235 = vunpack.c.l.b16 %v165
      %v236 = vunpack.c.l.b16 %v166
      %v237 = vunpack.c.l.b16 %v167
      %v238 = vunpack.c.l.b16 %v168
      %v239 = vunpack.c.l.b16 %v169
      %v240 = vunpack.c.l.b16 %v170
      %v241 = vunpack.c.l.b16 %v171
      %v242 = vunpack.c.l.b16 %v172
      %v243 = vunpack.c.l.b16 %v173
      %v244 = vunpack.c.l.b16 %v174
      %v245 = vunpack.c.l.b16 %v175
      %v246 = vunpack.c.l.b16 %v176
      %v247 = vunpack.c.l.b16 %v177
      %v248 = vunpack.c.l.b16 %v178
      %v249 = vunpack.c.l.b16 %v179
      %v250 = vpack.c.b16 %v219, %v218
      %v251 = vpack.c.b16 %v221, %v220
      %v252 = vpack.c.b16 %v223, %v222
      %v253 = vpack.c.b16 %v225, %v224
      %v254 = vpack.c.b16 %v227, %v226
      %v255 = vpack.c.b16 %v229, %v228
      %v256 = vpack.c.b16 %v231, %v230
      %v257 = vpack.c.b16 %v233, %v232
      %v258 = vpack.c.b16 %v235, %v234
      %v259 = vpack.c.b16 %v237, %v236
      %v260 = vpack.c.b16 %v239, %v238
      %v261 = vpack.c.b16 %v241, %v240
      %v262 = vpack.c.b16 %v243, %v242
      %v263 = vpack.c.b16 %v245, %v244
      %v264 = vpack.c.b16 %v247, %v246
      %v265 = vpack.c.b16 %v249, %v248
      %v272 = vunpack.c.l.b16 %v180
      %v273 = vunpack.c.l.b16 %v181
      %v274 = vunpack.c.l.b16 %v182
      %v275 = vunpack.c.l.b16 %v183
      %v276 = vunpack.c.l.b16 %v184
      %v277 = vunpack.c.l.b16 %v185
      %v278 = vpack.c.b16 %v273, %v272
      %v279 = vpack.c.b16 %v275, %v274
      %v280 = vpack.c.b16 %v277, %v276
      %vm284 = vcmask 392192
      %v286 = vsel %vm284, %v250, 0
      %v289 = vsel %vm284, %v251, 0
      %v292 = vsel %vm284, %v252, 0
      %v295 = vsel %vm284, %v253, 0
      %v298 = vsel %vm284, %v254, 0
      %v301 = vsel %vm284, %v255, 0
      %v304 = vsel %vm284, %v256, 0
      %v307 = vsel %vm284, %v257, 0
      %v310 = vsel %vm284, %v258, 0
      %v313 = vsel %vm284, %v259, 0
      %v316 = vsel %vm284, %v260, 0
      %v319 = vsel %vm284, %v261, 0
      %v322 = vsel %vm284, %v262, 0
      %v325 = vsel %vm284, %v263, 0
      %v328 = vsel %vm284, %v264, 0
      %v331 = vsel %vm284, %v265, 0
      %333 = vmatprep.subr.bf16.mxu0 0
      %334 = vmatpush1.bf16.msra.mxu0 %v278
      %335 = vmatprep.subr.bf16.mxu0 0
      %336 = vmatpush1.bf16.msra.mxu0 %v279
      %337 = vmatprep.subr.bf16.mxu0 0
      %338 = vmatpush1.bf16.msra.mxu0 %v280
      %339 = vmatprep.subr.bf16.mxu0 0
      %340 = vmatpush1.bf16.msra.mxu0 0
      %341 = vmatprep.subr.bf16.mxu0 0
      %342 = vmatpush1.bf16.msra.mxu0 0
      %343 = vmatprep.subr.bf16.mxu0 0
      %344 = vmatpush1.bf16.msra.mxu0 0
      %345 = vmatprep.subr.bf16.mxu0 0
      %346 = vmatpush1.bf16.msra.mxu0 0
      %347 = vmatprep.subr.bf16.mxu0 0
      %348 = vmatpush1.bf16.msra.mxu0 0
      %349 = vmatprep.subr.bf16.mxu0 0
      %350 = vmatpush1.bf16.msra.mxu0 0
      %351 = vmatprep.subr.bf16.mxu0 0
      %352 = vmatpush1.bf16.msra.mxu0 0
      %353 = vmatprep.subr.bf16.mxu0 0
      %354 = vmatpush1.bf16.msra.mxu0 0
      %355 = vmatprep.subr.bf16.mxu0 0
      %356 = vmatpush1.bf16.msra.mxu0 0
      %357 = vmatprep.subr.bf16.mxu0 0
      %358 = vmatpush1.bf16.msra.mxu0 0
      %359 = vmatprep.subr.bf16.mxu0 0
      %360 = vmatpush1.bf16.msra.mxu0 0
      %361 = vmatprep.subr.bf16.mxu0 0
      %362 = vmatpush1.bf16.msra.mxu0 0
      %363 = vmatprep.subr.bf16.mxu0 0
      %364 = vmatpush1.bf16.msra.mxu0 0
      %365 = vmatprep.mubr.bf16.mxu0 0
      %366 = vmatmul.mubr.bf16.gmra.mrb[0].mxu0 %v286
      %v367 = vpop.f32.mrb[0].mxu0
      %v368 = vadd.f32 0.0, %v367
      %v369 = vpop.f32.mrb[0].mxu0
      %v370 = vpop.f32.mrb[0].mxu0
      %v371 = vadd.f32 0.0, %v370
      %v372 = vpop.f32.mrb[0].mxu0
      %373 = vmatprep.mubr.bf16.mxu0 0
      %374 = vmatmul.mubr.bf16.gmra.mrb[0].mxu0 %v289
      %v375 = vpop.f32.mrb[0].mxu0
      %v376 = vadd.f32 0.0, %v375
      %v377 = vpop.f32.mrb[0].mxu0
      %v378 = vpop.f32.mrb[0].mxu0
      %v379 = vadd.f32 0.0, %v378
      %v380 = vpop.f32.mrb[0].mxu0
      %381 = vmatprep.mubr.bf16.mxu0 0
      %382 = vmatmul.mubr.bf16.gmra.mrb[0].mxu0 %v292
      %v383 = vpop.f32.mrb[0].mxu0
      %v384 = vadd.f32 0.0, %v383
      %v385 = vpop.f32.mrb[0].mxu0
      %v386 = vpop.f32.mrb[0].mxu0
      %v387 = vadd.f32 0.0, %v386
      %v388 = vpop.f32.mrb[0].mxu0
      %389 = vmatprep.mubr.bf16.mxu0 0
      %390 = vmatmul.mubr.bf16.gmra.mrb[0].mxu0 %v295
      %v391 = vpop.f32.mrb[0].mxu0
      %v392 = vadd.f32 0.0, %v391
      %v393 = vpop.f32.mrb[0].mxu0
      %v394 = vpop.f32.mrb[0].mxu0
      %v395 = vadd.f32 0.0, %v394
      %v396 = vpop.f32.mrb[0].mxu0
      %397 = vmatprep.mubr.bf16.mxu0 0
      %398 = vmatmul.mubr.bf16.gmra.mrb[0].mxu0 %v298
      %v399 = vpop.f32.mrb[0].mxu0
      %v400 = vadd.f32 0.0, %v399
      %v401 = vpop.f32.mrb[0].mxu0
      %v402 = vpop.f32.mrb[0].mxu0
      %v403 = vadd.f32 0.0, %v402
      %v404 = vpop.f32.mrb[0].mxu0
      %405 = vmatprep.mubr.bf16.mxu0 0
      %406 = vmatmul.mubr.bf16.gmra.mrb[0].mxu0 %v301
      %v407 = vpop.f32.mrb[0].mxu0
      %v408 = vadd.f32 0.0, %v407
      %v409 = vpop.f32.mrb[0].mxu0
      %v410 = vpop.f32.mrb[0].mxu0
      %v411 = vadd.f32 0.0, %v410
      %v412 = vpop.f32.mrb[0].mxu0
      %413 = vmatprep.mubr.bf16.mxu0 0
      %414 = vmatmul.mubr.bf16.gmra.mrb[0].mxu0 %v304
      %v415 = vpop.f32.mrb[0].mxu0
      %v416 = vadd.f32 0.0, %v415
      %v417 = vpop.f32.mrb[0].mxu0
      %v418 = vpop.f32.mrb[0].mxu0
      %v419 = vadd.f32 0.0, %v418
      %v420 = vpop.f32.mrb[0].mxu0
      %421 = vmatprep.mubr.bf16.mxu0 0
      %422 = vmatmul.mubr.bf16.gmra.mrb[0].mxu0 %v307
      %v423 = vpop.f32.mrb[0].mxu0
      %v424 = vadd.f32 0.0, %v423
      %v425 = vpop.f32.mrb[0].mxu0
      %v426 = vpop.f32.mrb[0].mxu0
      %v427 = vadd.f32 0.0, %v426
      %v428 = vpop.f32.mrb[0].mxu0
      %429 = vmatprep.mubr.bf16.mxu0 0
      %430 = vmatmul.mubr.bf16.gmra.mrb[0].mxu0 %v310
      %v431 = vpop.f32.mrb[0].mxu0
      %v432 = vadd.f32 0.0, %v431
      %v433 = vpop.f32.mrb[0].mxu0
      %v434 = vpop.f32.mrb[0].mxu0
      %v435 = vadd.f32 0.0, %v434
      %v436 = vpop.f32.mrb[0].mxu0
      %437 = vmatprep.mubr.bf16.mxu0 0
      %438 = vmatmul.mubr.bf16.gmra.mrb[0].mxu0 %v313
      %v439 = vpop.f32.mrb[0].mxu0
      %v440 = vadd.f32 0.0, %v439
      %v441 = vpop.f32.mrb[0].mxu0
      %v442 = vpop.f32.mrb[0].mxu0
      %v443 = vadd.f32 0.0, %v442
      %v444 = vpop.f32.mrb[0].mxu0
      %445 = vmatprep.mubr.bf16.mxu0 0
      %446 = vmatmul.mubr.bf16.gmra.mrb[0].mxu0 %v316
      %v447 = vpop.f32.mrb[0].mxu0
      %v448 = vadd.f32 0.0, %v447
      %v449 = vpop.f32.mrb[0].mxu0
      %v450 = vpop.f32.mrb[0].mxu0
      %v451 = vadd.f32 0.0, %v450
      %v452 = vpop.f32.mrb[0].mxu0
      %453 = vmatprep.mubr.bf16.mxu0 0
      %454 = vmatmul.mubr.bf16.gmra.mrb[0].mxu0 %v319
      %v455 = vpop.f32.mrb[0].mxu0
      %v456 = vadd.f32 0.0, %v455
      %v457 = vpop.f32.mrb[0].mxu0
      %v458 = vpop.f32.mrb[0].mxu0
      %v459 = vadd.f32 0.0, %v458
      %v460 = vpop.f32.mrb[0].mxu0
      %461 = vmatprep.mubr.bf16.mxu0 0
      %462 = vmatmul.mubr.bf16.gmra.mrb[0].mxu0 %v322
      %v463 = vpop.f32.mrb[0].mxu0
      %v464 = vadd.f32 0.0, %v463
      %v465 = vpop.f32.mrb[0].mxu0
      %v466 = vpop.f32.mrb[0].mxu0
      %v467 = vadd.f32 0.0, %v466
      %v468 = vpop.f32.mrb[0].mxu0
      %469 = vmatprep.mubr.bf16.mxu0 0
      %470 = vmatmul.mubr.bf16.gmra.mrb[0].mxu0 %v325
      %v471 = vpop.f32.mrb[0].mxu0
      %v472 = vadd.f32 0.0, %v471
      %v473 = vpop.f32.mrb[0].mxu0
      %v474 = vpop.f32.mrb[0].mxu0
      %v475 = vadd.f32 0.0, %v474
      %v476 = vpop.f32.mrb[0].mxu0
      %477 = vmatprep.mubr.bf16.mxu0 0
      %478 = vmatmul.mubr.bf16.gmra.mrb[0].mxu0 %v328
      %v479 = vpop.f32.mrb[0].mxu0
      %v480 = vadd.f32 0.0, %v479
      %v481 = vpop.f32.mrb[0].mxu0
      %v482 = vpop.f32.mrb[0].mxu0
      %v483 = vadd.f32 0.0, %v482
      %v484 = vpop.f32.mrb[0].mxu0
      %485 = vmatprep.mubr.bf16.mxu0 0
      %486 = vmatmul.mubr.bf16.gmra.mrb[0].mxu0 %v331
      %v487 = vpop.f32.mrb[0].mxu0
      %v488 = vadd.f32 0.0, %v487
      %v489 = vpop.f32.mrb[0].mxu0
      %v490 = vpop.f32.mrb[0].mxu0
      %v491 = vadd.f32 0.0, %v490
      %v492 = vpop.f32.mrb[0].mxu0
      %493 = vdwg.mxu0
      %vm494 = vcmp.gt.f32.partialorder %v368, 0.0
      %vm495 = vcmp.gt.f32.partialorder %v371, 0.0
      %vm496 = vcmp.gt.f32.partialorder %v376, 0.0
      %vm497 = vcmp.gt.f32.partialorder %v379, 0.0
      %vm498 = vcmp.gt.f32.partialorder %v384, 0.0
      %vm499 = vcmp.gt.f32.partialorder %v387, 0.0
      %vm500 = vcmp.gt.f32.partialorder %v392, 0.0
      %vm501 = vcmp.gt.f32.partialorder %v395, 0.0
      %vm502 = vcmp.gt.f32.partialorder %v400, 0.0
      %vm503 = vcmp.gt.f32.partialorder %v403, 0.0
      %vm504 = vcmp.gt.f32.partialorder %v408, 0.0
      %vm505 = vcmp.gt.f32.partialorder %v411, 0.0
      %vm506 = vcmp.gt.f32.partialorder %v416, 0.0
      %vm507 = vcmp.gt.f32.partialorder %v419, 0.0
      %vm508 = vcmp.gt.f32.partialorder %v424, 0.0
      %vm509 = vcmp.gt.f32.partialorder %v427, 0.0
      %vm510 = vcmp.gt.f32.partialorder %v432, 0.0
      %vm511 = vcmp.gt.f32.partialorder %v435, 0.0
      %vm512 = vcmp.gt.f32.partialorder %v440, 0.0
      %vm513 = vcmp.gt.f32.partialorder %v443, 0.0
      %vm514 = vcmp.gt.f32.partialorder %v448, 0.0
      %vm515 = vcmp.gt.f32.partialorder %v451, 0.0
      %vm516 = vcmp.gt.f32.partialorder %v456, 0.0
      %vm517 = vcmp.gt.f32.partialorder %v459, 0.0
      %vm518 = vcmp.gt.f32.partialorder %v464, 0.0
      %vm519 = vcmp.gt.f32.partialorder %v467, 0.0
      %vm520 = vcmp.gt.f32.partialorder %v472, 0.0
      %vm521 = vcmp.gt.f32.partialorder %v475, 0.0
      %vm522 = vcmp.gt.f32.partialorder %v480, 0.0
      %vm523 = vcmp.gt.f32.partialorder %v483, 0.0
      %vm524 = vcmp.gt.f32.partialorder %v488, 0.0
      %vm525 = vcmp.gt.f32.partialorder %v491, 0.0
      %v526 = vmul.f32 %v368, 0.2
      %v527 = vmul.f32 %v371, 0.2
      %v528 = vmul.f32 %v376, 0.2
      %v529 = vmul.f32 %v379, 0.2
      %v530 = vmul.f32 %v384, 0.2
      %v531 = vmul.f32 %v387, 0.2
      %v532 = vmul.f32 %v392, 0.2
      %v533 = vmul.f32 %v395, 0.2
      %v534 = vmul.f32 %v400, 0.2
      %v535 = vmul.f32 %v403, 0.2
      %v536 = vmul.f32 %v408, 0.2
      %v537 = vmul.f32 %v411, 0.2
      %v538 = vmul.f32 %v416, 0.2
      %v539 = vmul.f32 %v419, 0.2
      %v540 = vmul.f32 %v424, 0.2
      %v541 = vmul.f32 %v427, 0.2
      %v542 = vmul.f32 %v432, 0.2
      %v543 = vmul.f32 %v435, 0.2
      %v544 = vmul.f32 %v440, 0.2
      %v545 = vmul.f32 %v443, 0.2
      %v546 = vmul.f32 %v448, 0.2
      %v547 = vmul.f32 %v451, 0.2
      %v548 = vmul.f32 %v456, 0.2
      %v549 = vmul.f32 %v459, 0.2
      %v550 = vmul.f32 %v464, 0.2
      %v551 = vmul.f32 %v467, 0.2
      %v552 = vmul.f32 %v472, 0.2
      %v553 = vmul.f32 %v475, 0.2
      %v554 = vmul.f32 %v480, 0.2
      %v555 = vmul.f32 %v483, 0.2
      %v556 = vmul.f32 %v488, 0.2
      %v557 = vmul.f32 %v491, 0.2
      %v558 = vsel %vm494, %v368, %v526
      %v559 = vsel %vm495, %v371, %v527
      %v560 = vsel %vm496, %v376, %v528
      %v561 = vsel %vm497, %v379, %v529
      %v562 = vsel %vm498, %v384, %v530
      %v563 = vsel %vm499, %v387, %v531
      %v564 = vsel %vm500, %v392, %v532
      %v565 = vsel %vm501, %v395, %v533
      %v566 = vsel %vm502, %v400, %v534
      %v567 = vsel %vm503, %v403, %v535
      %v568 = vsel %vm504, %v408, %v536
      %v569 = vsel %vm505, %v411, %v537
      %v570 = vsel %vm506, %v416, %v538
      %v571 = vsel %vm507, %v419, %v539
      %v572 = vsel %vm508, %v424, %v540
      %v573 = vsel %vm509, %v427, %v541
      %v574 = vsel %vm510, %v432, %v542
      %v575 = vsel %vm511, %v435, %v543
      %v576 = vsel %vm512, %v440, %v544
      %v577 = vsel %vm513, %v443, %v545
      %v578 = vsel %vm514, %v448, %v546
      %v579 = vsel %vm515, %v451, %v547
      %v580 = vsel %vm516, %v456, %v548
      %v581 = vsel %vm517, %v459, %v549
      %v582 = vsel %vm518, %v464, %v550
      %v583 = vsel %vm519, %v467, %v551
      %v584 = vsel %vm520, %v472, %v552
      %v585 = vsel %vm521, %v475, %v553
      %v586 = vsel %vm522, %v480, %v554
      %v587 = vsel %vm523, %v483, %v555
      %v588 = vsel %vm524, %v488, %v556
      %v589 = vsel %vm525, %v491, %v557
      %v590 = vpack.c.bf16 %v559, %v558
      %v591 = vpack.c.bf16 %v561, %v560
      %v592 = vpack.c.bf16 %v563, %v562
      %v593 = vpack.c.bf16 %v565, %v564
      %v594 = vpack.c.bf16 %v567, %v566
      %v595 = vpack.c.bf16 %v569, %v568
      %v596 = vpack.c.bf16 %v571, %v570
      %v597 = vpack.c.bf16 %v573, %v572
      %v598 = vpack.c.bf16 %v575, %v574
      %v599 = vpack.c.bf16 %v577, %v576
      %v600 = vpack.c.bf16 %v579, %v578
      %v601 = vpack.c.bf16 %v581, %v580
      %v602 = vpack.c.bf16 %v583, %v582
      %v603 = vpack.c.bf16 %v585, %v584
      %v604 = vpack.c.bf16 %v587, %v586
      %v605 = vpack.c.bf16 %v589, %v588
      %v622 = vunpack.c.l.b16 %v590
      %v623 = vunpack.c.h.b16 %v590
      %v624 = vunpack.c.l.b16 %v591
      %v625 = vunpack.c.h.b16 %v591
      %v626 = vunpack.c.l.b16 %v592
      %v627 = vunpack.c.h.b16 %v592
      %v628 = vunpack.c.l.b16 %v593
      %v629 = vunpack.c.h.b16 %v593
      %v630 = vunpack.c.l.b16 %v594
      %v631 = vunpack.c.h.b16 %v594
      %v632 = vunpack.c.l.b16 %v595
      %v633 = vunpack.c.h.b16 %v595
      %v634 = vunpack.c.l.b16 %v596
      %v635 = vunpack.c.h.b16 %v596
      %v636 = vunpack.c.l.b16 %v597
      %v637 = vunpack.c.h.b16 %v597
      %v638 = vunpack.c.l.b16 %v598
      %v639 = vunpack.c.h.b16 %v598
      %v640 = vunpack.c.l.b16 %v599
      %v641 = vunpack.c.h.b16 %v599
      %v642 = vunpack.c.l.b16 %v600
      %v643 = vunpack.c.h.b16 %v600
      %v644 = vunpack.c.l.b16 %v601
      %v645 = vunpack.c.h.b16 %v601
      %v646 = vunpack.c.l.b16 %v602
      %v647 = vunpack.c.h.b16 %v602
      %v648 = vunpack.c.l.b16 %v603
      %v649 = vunpack.c.h.b16 %v603
      %v650 = vunpack.c.l.b16 %v604
      %v651 = vunpack.c.h.b16 %v604
      %v652 = vunpack.c.l.b16 %v605
      %v653 = vunpack.c.h.b16 %v605
      %v654 = vpack.c.b16 %v622, %v622
      %v655 = vpack.c.b16 %v623, %v623
      %v656 = vpack.c.b16 %v624, %v624
      %v657 = vpack.c.b16 %v625, %v625
      %v658 = vpack.c.b16 %v626, %v626
      %v659 = vpack.c.b16 %v627, %v627
      %v660 = vpack.c.b16 %v628, %v628
      %v661 = vpack.c.b16 %v629, %v629
      %v662 = vpack.c.b16 %v630, %v630
      %v663 = vpack.c.b16 %v631, %v631
      %v664 = vpack.c.b16 %v632, %v632
      %v665 = vpack.c.b16 %v633, %v633
      %v666 = vpack.c.b16 %v634, %v634
      %v667 = vpack.c.b16 %v635, %v635
      %v668 = vpack.c.b16 %v636, %v636
      %v669 = vpack.c.b16 %v637, %v637
      %v670 = vpack.c.b16 %v638, %v638
      %v671 = vpack.c.b16 %v639, %v639
      %v672 = vpack.c.b16 %v640, %v640
      %v673 = vpack.c.b16 %v641, %v641
      %v674 = vpack.c.b16 %v642, %v642
      %v675 = vpack.c.b16 %v643, %v643
      %v676 = vpack.c.b16 %v644, %v644
      %v677 = vpack.c.b16 %v645, %v645
      %v678 = vpack.c.b16 %v646, %v646
      %v679 = vpack.c.b16 %v647, %v647
      %v680 = vpack.c.b16 %v648, %v648
      %v681 = vpack.c.b16 %v649, %v649
      %v682 = vpack.c.b16 %v650, %v650
      %v683 = vpack.c.b16 %v651, %v651
      %v684 = vpack.c.b16 %v652, %v652
      %v685 = vpack.c.b16 %v653, %v653
      %vm718 = vcmask 60416
      %719 = vst.msk [vmem:[%s145] sm:$0xf] %vm718, %v654
      %720 = vst.msk [vmem:[%s145 + $0x4] sm:$0xf] %vm718, %v655
      %721 = vst.msk [vmem:[%s145 + $0x8] sm:$0xf] %vm718, %v656
      %722 = vst.msk [vmem:[%s145 + $0xc] sm:$0xf] %vm718, %v657
      %723 = vst.msk [vmem:[%s145 + $0x10] sm:$0xf] %vm718, %v658
      %724 = vst.msk [vmem:[%s145 + $0x14] sm:$0xf] %vm718, %v659
      %725 = vst.msk [vmem:[%s145 + $0x18] sm:$0xf] %vm718, %v660
      %726 = vst.msk [vmem:[%s145 + $0x1c] sm:$0xf] %vm718, %v661
      %727 = vst.msk [vmem:[%s145 + $0x20] sm:$0xf] %vm718, %v662
      %728 = vst.msk [vmem:[%s145 + $0x24] sm:$0xf] %vm718, %v663
      %729 = vst.msk [vmem:[%s145 + $0x28] sm:$0xf] %vm718, %v664
      %730 = vst.msk [vmem:[%s145 + $0x2c] sm:$0xf] %vm718, %v665
      %731 = vst.msk [vmem:[%s145 + $0x30] sm:$0xf] %vm718, %v666
      %732 = vst.msk [vmem:[%s145 + $0x34] sm:$0xf] %vm718, %v667
      %733 = vst.msk [vmem:[%s145 + $0x38] sm:$0xf] %vm718, %v668
      %734 = vst.msk [vmem:[%s145 + $0x3c] sm:$0xf] %vm718, %v669
      %735 = vst.msk [vmem:[%s145 + $0x40] sm:$0xf] %vm718, %v670
      %736 = vst.msk [vmem:[%s145 + $0x44] sm:$0xf] %vm718, %v671
      %737 = vst.msk [vmem:[%s145 + $0x48] sm:$0xf] %vm718, %v672
      %738 = vst.msk [vmem:[%s145 + $0x4c] sm:$0xf] %vm718, %v673
      %739 = vst.msk [vmem:[%s145 + $0x50] sm:$0xf] %vm718, %v674
      %740 = vst.msk [vmem:[%s145 + $0x54] sm:$0xf] %vm718, %v675
      %741 = vst.msk [vmem:[%s145 + $0x58] sm:$0xf] %vm718, %v676
      %742 = vst.msk [vmem:[%s145 + $0x5c] sm:$0xf] %vm718, %v677
      %743 = vst.msk [vmem:[%s145 + $0x60] sm:$0xf] %vm718, %v678
      %744 = vst.msk [vmem:[%s145 + $0x64] sm:$0xf] %vm718, %v679
      %745 = vst.msk [vmem:[%s145 + $0x68] sm:$0xf] %vm718, %v680
      %746 = vst.msk [vmem:[%s145 + $0x6c] sm:$0xf] %vm718, %v681
      %747 = vst.msk [vmem:[%s145 + $0x70] sm:$0xf] %vm718, %v682
      %748 = vst.msk [vmem:[%s145 + $0x74] sm:$0xf] %vm718, %v683
      %749 = vst.msk [vmem:[%s145 + $0x78] sm:$0xf] %vm718, %v684
      %750 = vst.msk [vmem:[%s145 + $0x7c] sm:$0xf] %vm718, %v685
      %s751 = smul.u32 32, %s13
      %p752 = scmp.lt.s32.totalorder %s751, 63
      %s753 = scalar_select %p752, %s751, 63
      %s754 = smul.addr %s753, 4
      %s755 = scalar_lea.vmem %s2, %s754
      // Predicated region
      $region29: #{generator_forward.14} parent=27 // pred_check
        %p756 = pneg %p78
      $region30: #{generator_forward.14} parent=27 // pred_check_branch
        %758 = sbr.rel (%p756) target = $region32
      $region31: #{generator_forward.14} parent=27 // pred_region
        %s759 = smul.u32 32, %s13
      $region32: #{generator_forward.14} parent=27 // pred_fallthru
        _
    $region28: #{generator_forward.14} parent=5 // pred_fallthru
      _
    %p760 = scmp.le.s32.totalorder 2, %s8
    // Predicated region
    $region33: #{generator_forward.14} parent=5 // pred_check
      %p761 = pneg %p760
    $region34: #{generator_forward.14} parent=5 // pred_check_branch
      %763 = sbr.rel (%p761) target = $region36
    $region35: #{generator_forward.14} parent=5 // pred_region
      %s764 = ssub.s32 %s8, 2
      // Predicated region
      $region37: #{generator_forward.14} parent=35 // pred_check
        %p765 = pneg %p84
      $region38: #{generator_forward.14} parent=35 // pred_check_branch
        %767 = sbr.rel (%p765) target = $region40
      $region39: #{generator_forward.14} parent=35 // pred_region
        %s768 = smul.u32 32, %s14
        %p769 = scmp.lt.s32.totalorder %s768, 63
        %s770 = scalar_select %p769, %s768, 63
        %s771 = smul.addr %s770, 4
        %s772 = scalar_lea.vmem %s2, %s771
      $region40: #{generator_forward.14} parent=35 // pred_fallthru
        _
    $region36: #{generator_forward.14} parent=5 // pred_fallthru
      _
  $region6: #{generator_forward.14} parent=0 // loop_footer
    %s12 = sadd.s32 1, %s8
  $region7: #{generator_forward.14} parent=0 // loop_footer_branch
    %7 = sbr.rel target = $region3
  $region8: #{generator_forward.14} parent=0 // loop_exit
    _

// kernel: generator_forward.15
$region0: #{generator_forward.15}
  #allocation0 [shape = 'u32[]', space=smem, size = 0x4, offset = 0x4, fixed_abs, tag = 'smem constant byte address 0x4 - core index']
  #allocation1 [shape = 'u32[144,128]{1,0:T(1,128)}', space=vmem, size = 0x12000, scoped, tag = 'internal scratch']
  %s0 = inlined_call_operand.vmem [shape: bf16[128,128], index: 0, kind: input, shape index: {}]
  %s1 = inlined_call_operand.vmem [shape: bf16[128,16], index: 1, kind: input, shape index: {}]
  %s2 = inlined_call_operand.vmem [shape: bf16[128,16], index: 2, kind: output, shape index: {0}]
  %s3 = inlined_call_operand.vmem [shape: f32[1,2,16], index: 3, kind: output, shape index: {1}]
  %4 = xla_tuple %s2, %s3
  %s5 = sld [smem:[#allocation0]]
  $region26: #{generator_forward.15} parent=0
    _
  %s7 = ssub.s32 1, %s5
  %s8 = scalar_select 0, %s7, %s5
  // Predicated region
  $region2: #{generator_forward.15} parent=0 // pred_check
    _
  $region3: #{generator_forward.15} parent=0 // pred_check_branch
    %10 = sbr.rel (0) target = $region5
  $region4: #{generator_forward.15} parent=0 // pred_region
    _
  $region5: #{generator_forward.15} parent=0 // pred_fallthru
    _
  // Predicated region
  $region6: #{generator_forward.15} parent=0 // pred_check
    _
  $region7: #{generator_forward.15} parent=0 // pred_check_branch
    %12 = sbr.rel (0) target = $region9
  $region8: #{generator_forward.15} parent=0 // pred_region
    _
  $region9: #{generator_forward.15} parent=0 // pred_fallthru
    _
  %v14 = vld [vmem:[%s0] sm:$0xf]
  %v15 = vld [vmem:[%s0 + $0x4] sm:$0xf]
  %v16 = vld [vmem:[%s0 + $0x8] sm:$0xf]
  %v17 = vld [vmem:[%s0 + $0xc] sm:$0xf]
  %v18 = vld [vmem:[%s0 + $0x10] sm:$0xf]
  %v19 = vld [vmem:[%s0 + $0x14] sm:$0xf]
  %v20 = vld [vmem:[%s0 + $0x18] sm:$0xf]
  %v21 = vld [vmem:[%s0 + $0x1c] sm:$0xf]
  %v22 = vld [vmem:[%s0 + $0x20] sm:$0xf]
  %v23 = vld [vmem:[%s0 + $0x24] sm:$0xf]
  %v24 = vld [vmem:[%s0 + $0x28] sm:$0xf]
  %v25 = vld [vmem:[%s0 + $0x2c] sm:$0xf]
  %v26 = vld [vmem:[%s0 + $0x30] sm:$0xf]
  %v27 = vld [vmem:[%s0 + $0x34] sm:$0xf]
  %v28 = vld [vmem:[%s0 + $0x38] sm:$0xf]
  %v29 = vld [vmem:[%s0 + $0x3c] sm:$0xf]
  %v30 = vld [vmem:[%s1] sm:$0xf]
  %v31 = vld [vmem:[%s1 + $0x4] sm:$0xf]
  %v32 = vld [vmem:[%s1 + $0x8] sm:$0xf]
  %v33 = vld [vmem:[%s1 + $0xc] sm:$0xf]
  %v34 = vld [vmem:[%s1 + $0x10] sm:$0xf]
  %v35 = vld [vmem:[%s1 + $0x14] sm:$0xf]
  %v36 = vld [vmem:[%s1 + $0x18] sm:$0xf]
  %v37 = vld [vmem:[%s1 + $0x1c] sm:$0xf]
  %v38 = vld [vmem:[%s1 + $0x20] sm:$0xf]
  %v39 = vld [vmem:[%s1 + $0x24] sm:$0xf]
  %v40 = vld [vmem:[%s1 + $0x28] sm:$0xf]
  %v41 = vld [vmem:[%s1 + $0x2c] sm:$0xf]
  %v42 = vld [vmem:[%s1 + $0x30] sm:$0xf]
  %v43 = vld [vmem:[%s1 + $0x34] sm:$0xf]
  %v44 = vld [vmem:[%s1 + $0x38] sm:$0xf]
  %v45 = vld [vmem:[%s1 + $0x3c] sm:$0xf]
  %v62 = vunpack.c.l.b16 %v14
  %v63 = vunpack.c.l.b16 %v15
  %v64 = vunpack.c.l.b16 %v16
  %v65 = vunpack.c.l.b16 %v17
  %v66 = vunpack.c.l.b16 %v18
  %v67 = vunpack.c.l.b16 %v19
  %v68 = vunpack.c.l.b16 %v20
  %v69 = vunpack.c.l.b16 %v21
  %v70 = vunpack.c.l.b16 %v22
  %v71 = vunpack.c.l.b16 %v23
  %v72 = vunpack.c.l.b16 %v24
  %v73 = vunpack.c.l.b16 %v25
  %v74 = vunpack.c.l.b16 %v26
  %v75 = vunpack.c.l.b16 %v27
  %v76 = vunpack.c.l.b16 %v28
  %v77 = vunpack.c.l.b16 %v29
  %v78 = vpack.c.b16 %v63, %v62
  %v79 = vpack.c.b16 %v65, %v64
  %v80 = vpack.c.b16 %v67, %v66
  %v81 = vpack.c.b16 %v69, %v68
  %v82 = vpack.c.b16 %v71, %v70
  %v83 = vpack.c.b16 %v73, %v72
  %v84 = vpack.c.b16 %v75, %v74
  %v85 = vpack.c.b16 %v77, %v76
  %v110 = vunpack.c.l.b16 %v30
  %v111 = vunpack.c.l.b16 %v31
  %v112 = vunpack.c.l.b16 %v32
  %v113 = vunpack.c.l.b16 %v33
  %v114 = vunpack.c.l.b16 %v34
  %v115 = vunpack.c.l.b16 %v35
  %v116 = vunpack.c.l.b16 %v36
  %v117 = vunpack.c.l.b16 %v37
  %v118 = vunpack.c.l.b16 %v38
  %v119 = vunpack.c.l.b16 %v39
  %v120 = vunpack.c.l.b16 %v40
  %v121 = vunpack.c.l.b16 %v41
  %v122 = vunpack.c.l.b16 %v42
  %v123 = vunpack.c.l.b16 %v43
  %v124 = vunpack.c.l.b16 %v44
  %v125 = vunpack.c.l.b16 %v45
  %v126 = vpack.c.b16 %v111, %v110
  %v127 = vpack.c.b16 %v113, %v112
  %v128 = vpack.c.b16 %v115, %v114
  %v129 = vpack.c.b16 %v117, %v116
  %v130 = vpack.c.b16 %v119, %v118
  %v131 = vpack.c.b16 %v121, %v120
  %v132 = vpack.c.b16 %v123, %v122
  %v133 = vpack.c.b16 %v125, %v124
  %142 = vmatprep.subr.bf16.mxu0 0
  %143 = vmatpush1.bf16.msra.mxu0 %v126
  %144 = vmatprep.subr.bf16.mxu0 0
  %145 = vmatpush1.bf16.msra.mxu0 %v127
  %146 = vmatprep.subr.bf16.mxu0 0
  %147 = vmatpush1.bf16.msra.mxu0 %v128
  %148 = vmatprep.subr.bf16.mxu0 0
  %149 = vmatpush1.bf16.msra.mxu0 %v129
  %150 = vmatprep.subr.bf16.mxu0 0
  %151 = vmatpush1.bf16.msra.mxu0 %v130
  %152 = vmatprep.subr.bf16.mxu0 0
  %153 = vmatpush1.bf16.msra.mxu0 %v131
  %154 = vmatprep.subr.bf16.mxu0 0
  %155 = vmatpush1.bf16.msra.mxu0 %v132
  %156 = vmatprep.subr.bf16.mxu0 0
  %157 = vmatpush1.bf16.msra.mxu0 %v133
  %158 = vmatprep.subr.bf16.mxu0 0
  %159 = vmatpush1.bf16.msra.mxu0 0
  %160 = vmatprep.subr.bf16.mxu0 0
  %161 = vmatpush1.bf16.msra.mxu0 0
  %162 = vmatprep.subr.bf16.mxu0 0
  %163 = vmatpush1.bf16.msra.mxu0 0
  %164 = vmatprep.subr.bf16.mxu0 0
  %165 = vmatpush1.bf16.msra.mxu0 0
  %166 = vmatprep.subr.bf16.mxu0 0
  %167 = vmatpush1.bf16.msra.mxu0 0
  %168 = vmatprep.subr.bf16.mxu0 0
  %169 = vmatpush1.bf16.msra.mxu0 0
  %170 = vmatprep.subr.bf16.mxu0 0
  %171 = vmatpush1.bf16.msra.mxu0 0
  %172 = vmatprep.subr.bf16.mxu0 0
  %173 = vmatpush1.bf16.msra.mxu0 0
  %174 = vmatprep.mubr.bf16.mxu0 0
  %175 = vmatmul.mubr.bf16.gmra.mrb[0].mxu0 %v78
  %v176 = vpop.f32.mrb[0].mxu0
  %v177 = vadd.f32 0.0, %v176
  %v178 = vpop.f32.mrb[0].mxu0
  %v179 = vpop.f32.mrb[0].mxu0
  %v180 = vadd.f32 0.0, %v179
  %v181 = vpop.f32.mrb[0].mxu0
  %182 = vmatprep.mubr.bf16.mxu0 0
  %183 = vmatmul.mubr.bf16.gmra.mrb[0].mxu0 %v79
  %v184 = vpop.f32.mrb[0].mxu0
  %v185 = vadd.f32 0.0, %v184
  %v186 = vpop.f32.mrb[0].mxu0
  %v187 = vpop.f32.mrb[0].mxu0
  %v188 = vadd.f32 0.0, %v187
  %v189 = vpop.f32.mrb[0].mxu0
  %190 = vmatprep.mubr.bf16.mxu0 0
  %191 = vmatmul.mubr.bf16.gmra.mrb[0].mxu0 %v80
  %v192 = vpop.f32.mrb[0].mxu0
  %v193 = vadd.f32 0.0, %v192
  %v194 = vpop.f32.mrb[0].mxu0
  %v195 = vpop.f32.mrb[0].mxu0
  %v196 = vadd.f32 0.0, %v195
  %v197 = vpop.f32.mrb[0].mxu0
  %198 = vmatprep.mubr.bf16.mxu0 0
  %199 = vmatmul.mubr.bf16.gmra.mrb[0].mxu0 %v81
  %v200 = vpop.f32.mrb[0].mxu0
  %v201 = vadd.f32 0.0, %v200
  %v202 = vpop.f32.mrb[0].mxu0
  %v203 = vpop.f32.mrb[0].mxu0
  %v204 = vadd.f32 0.0, %v203
  %v205 = vpop.f32.mrb[0].mxu0
  %206 = vmatprep.mubr.bf16.mxu0 0
  %207 = vmatmul.mubr.bf16.gmra.mrb[0].mxu0 %v82
  %v208 = vpop.f32.mrb[0].mxu0
  %v209 = vadd.f32 0.0, %v208
  %v210 = vpop.f32.mrb[0].mxu0
  %v211 = vpop.f32.mrb[0].mxu0
  %v212 = vadd.f32 0.0, %v211
  %v213 = vpop.f32.mrb[0].mxu0
  %214 = vmatprep.mubr.bf16.mxu0 0
  %215 = vmatmul.mubr.bf16.gmra.mrb[0].mxu0 %v83
  %v216 = vpop.f32.mrb[0].mxu0
  %v217 = vadd.f32 0.0, %v216
  %v218 = vpop.f32.mrb[0].mxu0
  %v219 = vpop.f32.mrb[0].mxu0
  %v220 = vadd.f32 0.0, %v219
  %v221 = vpop.f32.mrb[0].mxu0
  %222 = vmatprep.mubr.bf16.mxu0 0
  %223 = vmatmul.mubr.bf16.gmra.mrb[0].mxu0 %v84
  %v224 = vpop.f32.mrb[0].mxu0
  %v225 = vadd.f32 0.0, %v224
  %v226 = vpop.f32.mrb[0].mxu0
  %v227 = vpop.f32.mrb[0].mxu0
  %v228 = vadd.f32 0.0, %v227
  %v229 = vpop.f32.mrb[0].mxu0
  %230 = vmatprep.mubr.bf16.mxu0 0
  %231 = vmatmul.mubr.bf16.gmra.mrb[0].mxu0 %v85
  %v232 = vpop.f32.mrb[0].mxu0
  %v233 = vadd.f32 0.0, %v232
  %v234 = vpop.f32.mrb[0].mxu0
  %v235 = vpop.f32.mrb[0].mxu0
  %v236 = vadd.f32 0.0, %v235
  %v237 = vpop.f32.mrb[0].mxu0
  %238 = vdwg.mxu0
  %v239 = vpack.c.bf16 %v180, %v177
  %v240 = vpack.c.bf16 %v188, %v185
  %v241 = vpack.c.bf16 %v196, %v193
  %v242 = vpack.c.bf16 %v204, %v201
  %v243 = vpack.c.bf16 %v212, %v209
  %v244 = vpack.c.bf16 %v220, %v217
  %v245 = vpack.c.bf16 %v228, %v225
  %v246 = vpack.c.bf16 %v236, %v233
  %v255 = vunpack.c.l.b16 %v239
  %v256 = vunpack.c.h.b16 %v239
  %v257 = vunpack.c.l.b16 %v240
  %v258 = vunpack.c.h.b16 %v240
  %v259 = vunpack.c.l.b16 %v241
  %v260 = vunpack.c.h.b16 %v241
  %v261 = vunpack.c.l.b16 %v242
  %v262 = vunpack.c.h.b16 %v242
  %v263 = vunpack.c.l.b16 %v243
  %v264 = vunpack.c.h.b16 %v243
  %v265 = vunpack.c.l.b16 %v244
  %v266 = vunpack.c.h.b16 %v244
  %v267 = vunpack.c.l.b16 %v245
  %v268 = vunpack.c.h.b16 %v245
  %v269 = vunpack.c.l.b16 %v246
  %v270 = vunpack.c.h.b16 %v246
  %v271 = vpack.c.b16 %v255, %v255
  %v272 = vpack.c.b16 %v256, %v256
  %v273 = vpack.c.b16 %v257, %v257
  %v274 = vpack.c.b16 %v258, %v258
  %v275 = vpack.c.b16 %v259, %v259
  %v276 = vpack.c.b16 %v260, %v260
  %v277 = vpack.c.b16 %v261, %v261
  %v278 = vpack.c.b16 %v262, %v262
  %v279 = vpack.c.b16 %v263, %v263
  %v280 = vpack.c.b16 %v264, %v264
  %v281 = vpack.c.b16 %v265, %v265
  %v282 = vpack.c.b16 %v266, %v266
  %v283 = vpack.c.b16 %v267, %v267
  %v284 = vpack.c.b16 %v268, %v268
  %v285 = vpack.c.b16 %v269, %v269
  %v286 = vpack.c.b16 %v270, %v270
  %vm303 = vcmask 125952
  %304 = vst.msk [vmem:[%s2] sm:$0xf] %vm303, %v271
  %305 = vst.msk [vmem:[%s2 + $0x4] sm:$0xf] %vm303, %v272
  %306 = vst.msk [vmem:[%s2 + $0x8] sm:$0xf] %vm303, %v273
  %307 = vst.msk [vmem:[%s2 + $0xc] sm:$0xf] %vm303, %v274
  %308 = vst.msk [vmem:[%s2 + $0x10] sm:$0xf] %vm303, %v275
  %309 = vst.msk [vmem:[%s2 + $0x14] sm:$0xf] %vm303, %v276
  %310 = vst.msk [vmem:[%s2 + $0x18] sm:$0xf] %vm303, %v277
  %311 = vst.msk [vmem:[%s2 + $0x1c] sm:$0xf] %vm303, %v278
  %312 = vst.msk [vmem:[%s2 + $0x20] sm:$0xf] %vm303, %v279
  %313 = vst.msk [vmem:[%s2 + $0x24] sm:$0xf] %vm303, %v280
  %314 = vst.msk [vmem:[%s2 + $0x28] sm:$0xf] %vm303, %v281
  %315 = vst.msk [vmem:[%s2 + $0x2c] sm:$0xf] %vm303, %v282
  %316 = vst.msk [vmem:[%s2 + $0x30] sm:$0xf] %vm303, %v283
  %317 = vst.msk [vmem:[%s2 + $0x34] sm:$0xf] %vm303, %v284
  %318 = vst.msk [vmem:[%s2 + $0x38] sm:$0xf] %vm303, %v285
  %319 = vst.msk [vmem:[%s2 + $0x3c] sm:$0xf] %vm303, %v286
  %vm320 = vcmask 130048
  %v321 = vsel %vm320, %v177, 0.0
  %v322 = vsel %vm320, %v180, 0.0
  %v323 = vadd.f32 %v321, %v322
  %v324 = vsel %vm320, %v185, 0.0
  %v325 = vadd.f32 %v323, %v324
  %v326 = vsel %vm320, %v188, 0.0
  %v327 = vadd.f32 %v325, %v326
  %v328 = vsel %vm320, %v193, 0.0
  %v329 = vadd.f32 %v327, %v328
  %v330 = vsel %vm320, %v196, 0.0
  %v331 = vadd.f32 %v329, %v330
  %v332 = vsel %vm320, %v201, 0.0
  %v333 = vadd.f32 %v331, %v332
  %v334 = vsel %vm320, %v204, 0.0
  %v335 = vadd.f32 %v333, %v334
  %v336 = vsel %vm320, %v209, 0.0
  %v337 = vadd.f32 %v335, %v336
  %v338 = vsel %vm320, %v212, 0.0
  %v339 = vadd.f32 %v337, %v338
  %v340 = vsel %vm320, %v217, 0.0
  %v341 = vadd.f32 %v339, %v340
  %v342 = vsel %vm320, %v220, 0.0
  %v343 = vadd.f32 %v341, %v342
  %v344 = vsel %vm320, %v225, 0.0
  %v345 = vadd.f32 %v343, %v344
  %v346 = vsel %vm320, %v228, 0.0
  %v347 = vadd.f32 %v345, %v346
  %v348 = vsel %vm320, %v233, 0.0
  %v349 = vadd.f32 %v347, %v348
  %v350 = vsel %vm320, %v236, 0.0
  %v351 = vadd.f32 %v349, %v350
  %v352 = vrot.slane %v351, 4
  %v353 = vadd.f32 %v351, %v352
  %v354 = vrot.slane %v353, 2
  %v355 = vadd.f32 %v353, %v354
  %v356 = vrot.slane %v355, 1
  %v357 = vadd.f32 %v355, %v356
  %v358 = vmul.f32 %v177, %v177
  %v359 = vmul.f32 %v180, %v180
  %v360 = vmul.f32 %v185, %v185
  %v361 = vmul.f32 %v188, %v188
  %v362 = vmul.f32 %v193, %v193
  %v363 = vmul.f32 %v196, %v196
  %v364 = vmul.f32 %v201, %v201
  %v365 = vmul.f32 %v204, %v204
  %v366 = vmul.f32 %v209, %v209
  %v367 = vmul.f32 %v212, %v212
  %v368 = vmul.f32 %v217, %v217
  %v369 = vmul.f32 %v220, %v220
  %v370 = vmul.f32 %v225, %v225
  %v371 = vmul.f32 %v228, %v228
  %v372 = vmul.f32 %v233, %v233
  %v373 = vmul.f32 %v236, %v236
  %v374 = vsel %vm320, %v358, 0.0
  %v375 = vsel %vm320, %v359, 0.0
  %v376 = vadd.f32 %v374, %v375
  %v377 = vsel %vm320, %v360, 0.0
  %v378 = vadd.f32 %v376, %v377
  %v379 = vsel %vm320, %v361, 0.0
  %v380 = vadd.f32 %v378, %v379
  %v381 = vsel %vm320, %v362, 0.0
  %v382 = vadd.f32 %v380, %v381
  %v383 = vsel %vm320, %v363, 0.0
  %v384 = vadd.f32 %v382, %v383
  %v385 = vsel %vm320, %v364, 0.0
  %v386 = vadd.f32 %v384, %v385
  %v387 = vsel %vm320, %v365, 0.0
  %v388 = vadd.f32 %v386, %v387
  %v389 = vsel %vm320, %v366, 0.0
  %v390 = vadd.f32 %v388, %v389
  %v391 = vsel %vm320, %v367, 0.0
  %v392 = vadd.f32 %v390, %v391
  %v393 = vsel %vm320, %v368, 0.0
  %v394 = vadd.f32 %v392, %v393
  %v395 = vsel %vm320, %v369, 0.0
  %v396 = vadd.f32 %v394, %v395
  %v397 = vsel %vm320, %v370, 0.0
  %v398 = vadd.f32 %v396, %v397
  %v399 = vsel %vm320, %v371, 0.0
  %v400 = vadd.f32 %v398, %v399
  %v401 = vsel %vm320, %v372, 0.0
  %v402 = vadd.f32 %v400, %v401
  %v403 = vsel %vm320, %v373, 0.0
  %v404 = vadd.f32 %v402, %v403
  %v405 = vrot.slane %v404, 4
  %v406 = vadd.f32 %v404, %v405
  %v407 = vrot.slane %v406, 2
  %v408 = vadd.f32 %v406, %v407
  %v409 = vrot.slane %v408, 1
  %v410 = vadd.f32 %v408, %v409
  %vm411 = vcmask 1040384
  %v412 = vsel %vm411, %v357, %v410
  %vm413 = vcmask 123904
  %414 = vst.msk [vmem:[%s3] sm:$0x3] %vm413, %v412
  // Predicated region
  $region10: #{generator_forward.15} parent=0 // pred_check
    _
  $region11: #{generator_forward.15} parent=0 // pred_check_branch
    %416 = sbr.rel (0) target = $region13
  $region12: #{generator_forward.15} parent=0 // pred_region
    _
  $region13: #{generator_forward.15} parent=0 // pred_fallthru
    _
  // Predicated region
  $region14: #{generator_forward.15} parent=0 // pred_check
    _
  $region15: #{generator_forward.15} parent=0 // pred_check_branch
    %418 = sbr.rel (0) target = $region17
  $region16: #{generator_forward.15} parent=0 // pred_region
    _
  $region17: #{generator_forward.15} parent=0 // pred_fallthru
    _
  // Predicated region
  $region18: #{generator_forward.15} parent=0 // pred_check
    _
  $region19: #{generator_forward.15} parent=0 // pred_check_branch
    %420 = sbr.rel (0) target = $region21
  $region20: #{generator_forward.15} parent=0 // pred_region
    _
  $region21: #{generator_forward.15} parent=0 // pred_fallthru
    _
  // Predicated region
  $region22: #{generator_forward.15} parent=0 // pred_check
    _
  $region23: #{generator_forward.15} parent=0 // pred_check_branch
    %422 = sbr.rel (0) target = $region25
  $region24: #{generator_forward.15} parent=0 // pred_region
    _
  $region25: #{generator_forward.15} parent=0 // pred_fallthru
    _

// kernel: tile.87
$region0: #{tile.87}
  #allocation0 [shape = 's32[1]{0}', space=sflag, size = 0x4, scoped, tag = 'scoped memory for tile.87']
  %s0 = inlined_call_operand.vmem [shape: f32[16], index: 0, kind: input, shape index: {}]
  %s1 = inlined_call_operand.vmem [shape: f32[8,16], index: 1, kind: output, shape index: {}]
  // Predicated region
  $region2: #{tile.87} parent=0 // pred_check
    _
  $region3: #{tile.87} parent=0 // pred_check_branch
    %3 = sbr.rel (0) target = $region5
  $region4: #{tile.87} parent=0 // pred_region
    _
  $region5: #{tile.87} parent=0 // pred_fallthru
    _
  %v4 = vld [vmem:[%s0] ss:$0 sm:$0xff]
  %5 = vst [vmem:[%s1] sm:$0xff] %v4

// kernel: tile.88
$region0: #{tile.88}
  %s0 = inlined_call_operand.vmem [shape: f32[8,16], index: 0, kind: input, shape index: {}]
  %s1 = inlined_call_operand.vmem [shape: f32[1,128], index: 1, kind: output, shape index: {}]
  $region1: #{tile.88} parent=0
    #allocation0 [shape = 'u8[4096]{0}', space=vmem, size = 0x1000, scoped, tag = 'scoped mem for output reshape']
    %v2 = vld [vmem:[%s0] sm:$0x1]
    %vm3 = vcmask 130048
    %4 = vst.msk [vmem:[#allocation0] sm:$0x1] %vm3, %v2
    %s5 = scalar_lea.vmem %s0, 7
    %v6 = vld [vmem:[%s5] sm:$0x1]
    %7 = vrot.lane.b32.xlu0 %v6, 112
    %v8 = vpop.permute.xlu0 %7
    %vm9 = vcmask 1048448
    %10 = vst.msk [vmem:[#allocation0] sm:$0x1] %vm9, %v8
    %s11 = scalar_lea.vmem %s0, 6
    %v12 = vld [vmem:[%s11] sm:$0x1]
    %13 = vrot.lane.b32.xlu0 %v12, 96
    %v14 = vpop.permute.xlu0 %13
    %vm15 = vcmask 917248
    %16 = vst.msk [vmem:[#allocation0] sm:$0x1] %vm15, %v14
    %s17 = scalar_lea.vmem %s0, 5
    %v18 = vld [vmem:[%s17] sm:$0x1]
    %19 = vrot.lane.b32.xlu0 %v18, 80
    %v20 = vpop.permute.xlu0 %19
    %vm21 = vcmask 786048
    %22 = vst.msk [vmem:[#allocation0] sm:$0x1] %vm21, %v20
    %s23 = scalar_lea.vmem %s0, 4
    %v24 = vld [vmem:[%s23] sm:$0x1]
    %25 = vrot.lane.b32.xlu0 %v24, 64
    %v26 = vpop.permute.xlu0 %25
    %vm27 = vcmask 654848
    %28 = vst.msk [vmem:[#allocation0] sm:$0x1] %vm27, %v26
    %s29 = scalar_lea.vmem %s0, 3
    %v30 = vld [vmem:[%s29] sm:$0x1]
    %31 = vrot.lane.b32.xlu0 %v30, 48
    %v32 = vpop.permute.xlu0 %31
    %vm33 = vcmask 523648
    %34 = vst.msk [vmem:[#allocation0] sm:$0x1] %vm33, %v32
    %s35 = scalar_lea.vmem %s0, 2
    %v36 = vld [vmem:[%s35] sm:$0x1]
    %37 = vrot.lane.b32.xlu0 %v36, 32
    %v38 = vpop.permute.xlu0 %37
    %vm39 = vcmask 392448
    %40 = vst.msk [vmem:[#allocation0] sm:$0x1] %vm39, %v38
    %s41 = scalar_lea.vmem %s0, 1
    %v42 = vld [vmem:[%s41] sm:$0x1]
    %43 = vrot.lane.b32.xlu0 %v42, 16
    %v44 = vpop.permute.xlu0 %43
    %vm45 = vcmask 261248
    %46 = vst.msk [vmem:[#allocation0] sm:$0x1] %vm45, %v44
    %s48 = sshllo.u32 0, 1
    %v50 = vld [vmem:[#allocation0] sm:%s48]
    %s51 = sshllo.u32 0, 1
    %52 = vst [vmem:[%s1] sm:%s51] %v50

// kernel: generator_forward.16
$region0: #{generator_forward.16}
  #allocation0 [shape = 'u32[]', space=smem, size = 0x4, offset = 0x4, fixed_abs, tag = 'smem constant byte address 0x4 - core index']
  #allocation1 [shape = 'u32[144,128]{1,0:T(1,128)}', space=vmem, size = 0x12000, scoped, tag = 'internal scratch']
  %s0 = inlined_call_operand.vmem [shape: bf16[16,128], index: 0, kind: input, shape index: {}]
  %s1 = inlined_call_operand.vmem [shape: f32[1,128], index: 1, kind: input, shape index: {}]
  %s2 = inlined_call_operand.vmem [shape: f32[1,128], index: 2, kind: input, shape index: {}]
  %s3 = inlined_call_operand.vmem [shape: bf16[16,128], index: 3, kind: output, shape index: {}]
  %s4 = sld [smem:[#allocation0]]
  $region22: #{generator_forward.16} parent=0
    _
  %s6 = ssub.s32 1, %s4
  %s7 = scalar_select 0, %s6, %s4
  // Predicated region
  $region2: #{generator_forward.16} parent=0 // pred_check
    _
  $region3: #{generator_forward.16} parent=0 // pred_check_branch
    %9 = sbr.rel (0) target = $region5
  $region4: #{generator_forward.16} parent=0 // pred_region
    _
  $region5: #{generator_forward.16} parent=0 // pred_fallthru
    _
  // Predicated region
  $region6: #{generator_forward.16} parent=0 // pred_check
    _
  $region7: #{generator_forward.16} parent=0 // pred_check_branch
    %11 = sbr.rel (0) target = $region9
  $region8: #{generator_forward.16} parent=0 // pred_region
    _
  $region9: #{generator_forward.16} parent=0 // pred_fallthru
    _
  // Predicated region
  $region10: #{generator_forward.16} parent=0 // pred_check
    _
  $region11: #{generator_forward.16} parent=0 // pred_check_branch
    %13 = sbr.rel (0) target = $region13
  $region12: #{generator_forward.16} parent=0 // pred_region
    _
  $region13: #{generator_forward.16} parent=0 // pred_fallthru
    _
  %v14 = vld [vmem:[%s0] sm:$0xf]
  %v15 = vld [vmem:[%s0 + $0x4] sm:$0xf]
  %v16 = vunpack.c.l.bf16 %v14
  %v17 = vunpack.c.l.bf16 %v15
  %v18 = vld [vmem:[%s1] sm:$0x1]
  %v20 = vlaneseq
  %v21 = vshrl.u32 %v20, 7
  %v22 = vsub.s32 0, %v21
  %v23 = vrot.slane %v18, %v22
  %v25 = vmul.f32 %v16, %v23
  %v26 = vmul.f32 %v17, %v23
  %v27 = vld [vmem:[%s2] sm:$0x1]
  %v29 = vlaneseq
  %v30 = vshrl.u32 %v29, 7
  %v31 = vsub.s32 0, %v30
  %v32 = vrot.slane %v27, %v31
  %v34 = vadd.f32 %v25, %v32
  %v35 = vadd.f32 %v26, %v32
  %vm36 = vcmp.gt.f32.partialorder %v34, 0.0
  %vm37 = vcmp.gt.f32.partialorder %v35, 0.0
  %v38 = vmul.f32 %v34, 0.2
  %v39 = vmul.f32 %v35, 0.2
  %v40 = vsel %vm36, %v34, %v38
  %v41 = vsel %vm37, %v35, %v39
  %v42 = vpack.c.bf16 %v41, %v40
  %v44 = vunpack.c.l.b16 %v42
  %v45 = vunpack.c.h.b16 %v42
  %v46 = vpack.c.b16 %v44, %v44
  %v47 = vpack.c.b16 %v45, %v45
  %50 = vst [vmem:[%s3] sm:$0xf] %v46
  %51 = vst [vmem:[%s3 + $0x4] sm:$0xf] %v47
  // Predicated region
  $region14: #{generator_forward.16} parent=0 // pred_check
    _
  $region15: #{generator_forward.16} parent=0 // pred_check_branch
    %53 = sbr.rel (0) target = $region17
  $region16: #{generator_forward.16} parent=0 // pred_region
    _
  $region17: #{generator_forward.16} parent=0 // pred_fallthru
    _
  // Predicated region
  $region18: #{generator_forward.16} parent=0 // pred_check
    _
  $region19: #{generator_forward.16} parent=0 // pred_check_branch
    %55 = sbr.rel (0) target = $region21
  $region20: #{generator_forward.16} parent=0 // pred_region
    _
  $region21: #{generator_forward.16} parent=0 // pred_fallthru
    _

// kernel: tile.97
$region0: #{tile.97}
  #allocation0 [shape = 's32[1]{0}', space=sflag, size = 0x4, scoped, tag = 'scoped memory for tile.97']
  %s0 = inlined_call_operand.vmem [shape: f32[32], index: 0, kind: input, shape index: {}]
  %s1 = inlined_call_operand.vmem [shape: f32[8,32], index: 1, kind: output, shape index: {}]
  // Predicated region
  $region2: #{tile.97} parent=0 // pred_check
    _
  $region3: #{tile.97} parent=0 // pred_check_branch
    %3 = sbr.rel (0) target = $region5
  $region4: #{tile.97} parent=0 // pred_region
    _
  $region5: #{tile.97} parent=0 // pred_fallthru
    _
  %v4 = vld [vmem:[%s0] ss:$0 sm:$0xff]
  %5 = vst [vmem:[%s1] sm:$0xff] %v4

// kernel: tile.98
$region0: #{tile.98}
  %s0 = inlined_call_operand.vmem [shape: f32[8,32], index: 0, kind: input, shape index: {}]
  %s1 = inlined_call_operand.vmem [shape: f32[1,256], index: 1, kind: output, shape index: {}]
  $region1: #{tile.98} parent=0
    #allocation0 [shape = 'u8[8192]{0}', space=vmem, size = 0x2000, scoped, tag = 'scoped mem for output reshape']
    %s2 = smov 3
    %v3 = vld [vmem:[%s0] ss:$4 sm:%s2]
    %vm4 = vcmask 261120
    %5 = vst.msk [vmem:[#allocation0] ss:$8 sm:$0x3] %vm4, %v3
    %s6 = scalar_lea.vmem %s0, 3
    %s7 = smov 3
    %v8 = vld [vmem:[%s6] ss:$4 sm:%s7]
    %9 = vrot.lane.b32.xlu0 %v8, 96
    %v10 = vpop.permute.xlu0 %9
    %vm11 = vcmask 1048320
    %12 = vst.msk [vmem:[#allocation0] ss:$8 sm:$0x3] %vm11, %v10
    %s13 = scalar_lea.vmem %s0, 2
    %s14 = smov 3
    %v15 = vld [vmem:[%s13] ss:$4 sm:%s14]
    %16 = vrot.lane.b32.xlu0 %v15, 64
    %v17 = vpop.permute.xlu0 %16
    %vm18 = vcmask 785920
    %19 = vst.msk [vmem:[#allocation0] ss:$8 sm:$0x3] %vm18, %v17
    %s20 = scalar_lea.vmem %s0, 1
    %s21 = smov 3
    %v22 = vld [vmem:[%s20] ss:$4 sm:%s21]
    %23 = vrot.lane.b32.xlu0 %v22, 32
    %v24 = vpop.permute.xlu0 %23
    %vm25 = vcmask 523520
    %26 = vst.msk [vmem:[#allocation0] ss:$8 sm:$0x3] %vm25, %v24
    %s28 = sshllo.u32 0, 1
    %v30 = vld [vmem:[#allocation0] sm:%s28]
    %s31 = sshllo.u32 0, 1
    %32 = vst [vmem:[%s1] sm:%s31] %v30
    %s33 = scalar_lea.vmem [#allocation0], 8
    %v34 = vld [vmem:[%s33] sm:%s28]
    %s35 = sshllo.u32 0, 1
    %s36 = scalar_lea.vmem %s1, 1
    %37 = vst [vmem:[%s36] sm:%s35] %v34

// kernel: generator_forward.17
$region0: #{generator_forward.17}
  #allocation0 [shape = 'u32[]', space=smem, size = 0x4, offset = 0x4, fixed_abs, tag = 'smem constant byte address 0x4 - core index']
  #allocation1 [shape = 'u32[144,128]{1,0:T(1,128)}', space=vmem, size = 0x12000, scoped, tag = 'internal scratch']
  %s0 = inlined_call_operand.vmem [shape: bf16[32,256], index: 0, kind: input, shape index: {}]
  %s1 = inlined_call_operand.vmem [shape: bf16[256,32], index: 1, kind: input, shape index: {}]
  %s2 = inlined_call_operand.vmem [shape: bf16[32,32], index: 2, kind: output, shape index: {0}]
  %s3 = inlined_call_operand.vmem [shape: f32[1,2,32], index: 3, kind: output, shape index: {1}]
  %4 = xla_tuple %s2, %s3
  %s5 = sld [smem:[#allocation0]]
  $region26: #{generator_forward.17} parent=0
    _
  %s7 = ssub.s32 1, %s5
  %s8 = scalar_select 0, %s7, %s5
  // Predicated region
  $region2: #{generator_forward.17} parent=0 // pred_check
    _
  $region3: #{generator_forward.17} parent=0 // pred_check_branch
    %10 = sbr.rel (0) target = $region5
  $region4: #{generator_forward.17} parent=0 // pred_region
    _
  $region5: #{generator_forward.17} parent=0 // pred_fallthru
    _
  // Predicated region
  $region6: #{generator_forward.17} parent=0 // pred_check
    _
  $region7: #{generator_forward.17} parent=0 // pred_check_branch
    %12 = sbr.rel (0) target = $region9
  $region8: #{generator_forward.17} parent=0 // pred_region
    _
  $region9: #{generator_forward.17} parent=0 // pred_fallthru
    _
  %v14 = vld [vmem:[%s0] sm:$0xff]
  %v15 = vld [vmem:[%s0 + $0x8] sm:$0xff]
  %v16 = vld [vmem:[%s0 + $0x10] sm:$0xff]
  %v17 = vld [vmem:[%s0 + $0x18] sm:$0xff]
  %v18 = vld [vmem:[%s1] sm:$0xf]
  %v19 = vld [vmem:[%s1 + $0x4] sm:$0xf]
  %v20 = vld [vmem:[%s1 + $0x8] sm:$0xf]
  %v21 = vld [vmem:[%s1 + $0xc] sm:$0xf]
  %v22 = vld [vmem:[%s1 + $0x10] sm:$0xf]
  %v23 = vld [vmem:[%s1 + $0x14] sm:$0xf]
  %v24 = vld [vmem:[%s1 + $0x18] sm:$0xf]
  %v25 = vld [vmem:[%s1 + $0x1c] sm:$0xf]
  %v26 = vld [vmem:[%s1 + $0x20] sm:$0xf]
  %v27 = vld [vmem:[%s1 + $0x24] sm:$0xf]
  %v28 = vld [vmem:[%s1 + $0x28] sm:$0xf]
  %v29 = vld [vmem:[%s1 + $0x2c] sm:$0xf]
  %v30 = vld [vmem:[%s1 + $0x30] sm:$0xf]
  %v31 = vld [vmem:[%s1 + $0x34] sm:$0xf]
  %v32 = vld [vmem:[%s1 + $0x38] sm:$0xf]
  %v33 = vld [vmem:[%s1 + $0x3c] sm:$0xf]
  %v34 = vld [vmem:[%s1 + $0x40] sm:$0xf]
  %v35 = vld [vmem:[%s1 + $0x44] sm:$0xf]
  %v36 = vld [vmem:[%s1 + $0x48] sm:$0xf]
  %v37 = vld [vmem:[%s1 + $0x4c] sm:$0xf]
  %v38 = vld [vmem:[%s1 + $0x50] sm:$0xf]
  %v39 = vld [vmem:[%s1 + $0x54] sm:$0xf]
  %v40 = vld [vmem:[%s1 + $0x58] sm:$0xf]
  %v41 = vld [vmem:[%s1 + $0x5c] sm:$0xf]
  %v42 = vld [vmem:[%s1 + $0x60] sm:$0xf]
  %v43 = vld [vmem:[%s1 + $0x64] sm:$0xf]
  %v44 = vld [vmem:[%s1 + $0x68] sm:$0xf]
  %v45 = vld [vmem:[%s1 + $0x6c] sm:$0xf]
  %v46 = vld [vmem:[%s1 + $0x70] sm:$0xf]
  %v47 = vld [vmem:[%s1 + $0x74] sm:$0xf]
  %v48 = vld [vmem:[%s1 + $0x78] sm:$0xf]
  %v49 = vld [vmem:[%s1 + $0x7c] sm:$0xf]
  %v54 = vunpack.c.l.b16 %v14
  %v55 = vunpack.c.h.b16 %v14
  %v56 = vunpack.c.l.b16 %v15
  %v57 = vunpack.c.h.b16 %v15
  %v58 = vunpack.c.l.b16 %v16
  %v59 = vunpack.c.h.b16 %v16
  %v60 = vunpack.c.l.b16 %v17
  %v61 = vunpack.c.h.b16 %v17
  %v62 = vpack.c.b16 %v56, %v54
  %v63 = vpack.c.b16 %v57, %v55
  %v64 = vpack.c.b16 %v60, %v58
  %v65 = vpack.c.b16 %v61, %v59
  %v102 = vunpack.c.l.b16 %v18
  %v103 = vunpack.c.l.b16 %v19
  %v104 = vunpack.c.l.b16 %v20
  %v105 = vunpack.c.l.b16 %v21
  %v106 = vunpack.c.l.b16 %v22
  %v107 = vunpack.c.l.b16 %v23
  %v108 = vunpack.c.l.b16 %v24
  %v109 = vunpack.c.l.b16 %v25
  %v110 = vunpack.c.l.b16 %v26
  %v111 = vunpack.c.l.b16 %v27
  %v112 = vunpack.c.l.b16 %v28
  %v113 = vunpack.c.l.b16 %v29
  %v114 = vunpack.c.l.b16 %v30
  %v115 = vunpack.c.l.b16 %v31
  %v116 = vunpack.c.l.b16 %v32
  %v117 = vunpack.c.l.b16 %v33
  %v118 = vunpack.c.l.b16 %v34
  %v119 = vunpack.c.l.b16 %v35
  %v120 = vunpack.c.l.b16 %v36
  %v121 = vunpack.c.l.b16 %v37
  %v122 = vunpack.c.l.b16 %v38
  %v123 = vunpack.c.l.b16 %v39
  %v124 = vunpack.c.l.b16 %v40
  %v125 = vunpack.c.l.b16 %v41
  %v126 = vunpack.c.l.b16 %v42
  %v127 = vunpack.c.l.b16 %v43
  %v128 = vunpack.c.l.b16 %v44
  %v129 = vunpack.c.l.b16 %v45
  %v130 = vunpack.c.l.b16 %v46
  %v131 = vunpack.c.l.b16 %v47
  %v132 = vunpack.c.l.b16 %v48
  %v133 = vunpack.c.l.b16 %v49
  %v134 = vpack.c.b16 %v103, %v102
  %v135 = vpack.c.b16 %v105, %v104
  %v136 = vpack.c.b16 %v107, %v106
  %v137 = vpack.c.b16 %v109, %v108
  %v138 = vpack.c.b16 %v111, %v110
  %v139 = vpack.c.b16 %v113, %v112
  %v140 = vpack.c.b16 %v115, %v114
  %v141 = vpack.c.b16 %v117, %v116
  %v142 = vpack.c.b16 %v119, %v118
  %v143 = vpack.c.b16 %v121, %v120
  %v144 = vpack.c.b16 %v123, %v122
  %v145 = vpack.c.b16 %v125, %v124
  %v146 = vpack.c.b16 %v127, %v126
  %v147 = vpack.c.b16 %v129, %v128
  %v148 = vpack.c.b16 %v131, %v130
  %v149 = vpack.c.b16 %v133, %v132
  %166 = vmatprep.subr.bf16.mxu0 0
  %167 = vmatpush1.bf16.msra.mxu0 %v134
  %168 = vmatprep.subr.bf16.mxu0 0
  %169 = vmatpush1.bf16.msra.mxu0 %v135
  %170 = vmatprep.subr.bf16.mxu0 0
  %171 = vmatpush1.bf16.msra.mxu0 %v136
  %172 = vmatprep.subr.bf16.mxu0 0
  %173 = vmatpush1.bf16.msra.mxu0 %v137
  %174 = vmatprep.subr.bf16.mxu0 0
  %175 = vmatpush1.bf16.msra.mxu0 %v138
  %176 = vmatprep.subr.bf16.mxu0 0
  %177 = vmatpush1.bf16.msra.mxu0 %v139
  %178 = vmatprep.subr.bf16.mxu0 0
  %179 = vmatpush1.bf16.msra.mxu0 %v140
  %180 = vmatprep.subr.bf16.mxu0 0
  %181 = vmatpush1.bf16.msra.mxu0 %v141
  %182 = vmatprep.subr.bf16.mxu0 0
  %183 = vmatpush1.bf16.msra.mxu0 %v142
  %184 = vmatprep.subr.bf16.mxu0 0
  %185 = vmatpush1.bf16.msra.mxu0 %v143
  %186 = vmatprep.subr.bf16.mxu0 0
  %187 = vmatpush1.bf16.msra.mxu0 %v144
  %188 = vmatprep.subr.bf16.mxu0 0
  %189 = vmatpush1.bf16.msra.mxu0 %v145
  %190 = vmatprep.subr.bf16.mxu0 0
  %191 = vmatpush1.bf16.msra.mxu0 %v146
  %192 = vmatprep.subr.bf16.mxu0 0
  %193 = vmatpush1.bf16.msra.mxu0 %v147
  %194 = vmatprep.subr.bf16.mxu0 0
  %195 = vmatpush1.bf16.msra.mxu0 %v148
  %196 = vmatprep.subr.bf16.mxu0 0
  %197 = vmatpush1.bf16.msra.mxu0 %v149
  %198 = vmatprep.mubr.bf16.mxu0 %v63
  %199 = vmatmul.mubr.bf16.gmra.mrb[0].mxu0 %v62
  %v200 = vpop.f32.mrb[0].mxu0
  %v201 = vadd.f32 0.0, %v200
  %v202 = vpop.f32.mrb[0].mxu0
  %v203 = vpop.f32.mrb[0].mxu0
  %v204 = vadd.f32 0.0, %v203
  %v205 = vpop.f32.mrb[0].mxu0
  %206 = vmatprep.mubr.bf16.mxu0 %v65
  %207 = vmatmul.mubr.bf16.gmra.mrb[0].mxu0 %v64
  %v208 = vpop.f32.mrb[0].mxu0
  %v209 = vadd.f32 0.0, %v208
  %v210 = vpop.f32.mrb[0].mxu0
  %v211 = vpop.f32.mrb[0].mxu0
  %v212 = vadd.f32 0.0, %v211
  %v213 = vpop.f32.mrb[0].mxu0
  %214 = vdwg.mxu0
  %v215 = vpack.c.bf16 %v204, %v201
  %v216 = vpack.c.bf16 %v212, %v209
  %v219 = vunpack.c.l.b16 %v215
  %v220 = vunpack.c.h.b16 %v215
  %v221 = vunpack.c.l.b16 %v216
  %v222 = vunpack.c.h.b16 %v216
  %v223 = vpack.c.b16 %v219, %v219
  %v224 = vpack.c.b16 %v220, %v220
  %v225 = vpack.c.b16 %v221, %v221
  %v226 = vpack.c.b16 %v222, %v222
  %vm231 = vcmask 257024
  %232 = vst.msk [vmem:[%s2] sm:$0xf] %vm231, %v223
  %233 = vst.msk [vmem:[%s2 + $0x4] sm:$0xf] %vm231, %v224
  %234 = vst.msk [vmem:[%s2 + $0x8] sm:$0xf] %vm231, %v225
  %235 = vst.msk [vmem:[%s2 + $0xc] sm:$0xf] %vm231, %v226
  %vm236 = vcmask 261120
  %v237 = vsel %vm236, %v201, 0.0
  %v238 = vsel %vm236, %v204, 0.0
  %v239 = vadd.f32 %v237, %v238
  %v240 = vsel %vm236, %v209, 0.0
  %v241 = vadd.f32 %v239, %v240
  %v242 = vsel %vm236, %v212, 0.0
  %v243 = vadd.f32 %v241, %v242
  %v244 = vrot.slane %v243, 4
  %v245 = vadd.f32 %v243, %v244
  %v246 = vrot.slane %v245, 2
  %v247 = vadd.f32 %v245, %v246
  %v248 = vrot.slane %v247, 1
  %v249 = vadd.f32 %v247, %v248
  %v250 = vmul.f32 %v201, %v201
  %v251 = vmul.f32 %v204, %v204
  %v252 = vmul.f32 %v209, %v209
  %v253 = vmul.f32 %v212, %v212
  %v254 = vsel %vm236, %v250, 0.0
  %v255 = vsel %vm236, %v251, 0.0
  %v256 = vadd.f32 %v254, %v255
  %v257 = vsel %vm236, %v252, 0.0
  %v258 = vadd.f32 %v256, %v257
  %v259 = vsel %vm236, %v253, 0.0
  %v260 = vadd.f32 %v258, %v259
  %v261 = vrot.slane %v260, 4
  %v262 = vadd.f32 %v260, %v261
  %v263 = vrot.slane %v262, 2
  %v264 = vadd.f32 %v262, %v263
  %v265 = vrot.slane %v264, 1
  %v266 = vadd.f32 %v264, %v265
  %vm267 = vcmask 1040384
  %v268 = vsel %vm267, %v249, %v266
  %vm269 = vcmask 254976
  %270 = vst.msk [vmem:[%s3] sm:$0x3] %vm269, %v268
  // Predicated region
  $region10: #{generator_forward.17} parent=0 // pred_check
    _
  $region11: #{generator_forward.17} parent=0 // pred_check_branch
    %272 = sbr.rel (0) target = $region13
  $region12: #{generator_forward.17} parent=0 // pred_region
    _
  $region13: #{generator_forward.17} parent=0 // pred_fallthru
    _
  // Predicated region
  $region14: #{generator_forward.17} parent=0 // pred_check
    _
  $region15: #{generator_forward.17} parent=0 // pred_check_branch
    %274 = sbr.rel (0) target = $region17
  $region16: #{generator_forward.17} parent=0 // pred_region
    _
  $region17: #{generator_forward.17} parent=0 // pred_fallthru
    _
  // Predicated region
  $region18: #{generator_forward.17} parent=0 // pred_check
    _
  $region19: #{generator_forward.17} parent=0 // pred_check_branch
    %276 = sbr.rel (0) target = $region21
  $region20: #{generator_forward.17} parent=0 // pred_region
    _
  $region21: #{generator_forward.17} parent=0 // pred_fallthru
    _
  // Predicated region
  $region22: #{generator_forward.17} parent=0 // pred_check
    _
  $region23: #{generator_forward.17} parent=0 // pred_check_branch
    %278 = sbr.rel (0) target = $region25
  $region24: #{generator_forward.17} parent=0 // pred_region
    _
  $region25: #{generator_forward.17} parent=0 // pred_fallthru
    _

// kernel: generator_forward.18
$region0: #{generator_forward.18}
  #allocation0 [shape = 'u32[]', space=smem, size = 0x4, offset = 0x4, fixed_abs, tag = 'smem constant byte address 0x4 - core index']
  #allocation1 [shape = 'u32[144,128]{1,0:T(1,128)}', space=vmem, size = 0x12000, scoped, tag = 'internal scratch']
  %s0 = inlined_call_operand.vmem [shape: bf16[16,256], index: 0, kind: input, shape index: {}]
  %s1 = inlined_call_operand.vmem [shape: f32[1,256], index: 1, kind: input, shape index: {}]
  %s2 = inlined_call_operand.vmem [shape: f32[1,256], index: 2, kind: input, shape index: {}]
  %s3 = inlined_call_operand.vmem [shape: bf16[16,256], index: 3, kind: output, shape index: {}]
  %s4 = sld [smem:[#allocation0]]
  $region22: #{generator_forward.18} parent=0
    _
  %s6 = ssub.s32 1, %s4
  %s7 = scalar_select 0, %s6, %s4
  // Predicated region
  $region2: #{generator_forward.18} parent=0 // pred_check
    _
  $region3: #{generator_forward.18} parent=0 // pred_check_branch
    %9 = sbr.rel (0) target = $region5
  $region4: #{generator_forward.18} parent=0 // pred_region
    _
  $region5: #{generator_forward.18} parent=0 // pred_fallthru
    _
  // Predicated region
  $region6: #{generator_forward.18} parent=0 // pred_check
    _
  $region7: #{generator_forward.18} parent=0 // pred_check_branch
    %11 = sbr.rel (0) target = $region9
  $region8: #{generator_forward.18} parent=0 // pred_region
    _
  $region9: #{generator_forward.18} parent=0 // pred_fallthru
    _
  // Predicated region
  $region10: #{generator_forward.18} parent=0 // pred_check
    _
  $region11: #{generator_forward.18} parent=0 // pred_check_branch
    %13 = sbr.rel (0) target = $region13
  $region12: #{generator_forward.18} parent=0 // pred_region
    _
  $region13: #{generator_forward.18} parent=0 // pred_fallthru
    _
  %v14 = vld [vmem:[%s0] sm:$0xff]
  %v15 = vld [vmem:[%s0 + $0x8] sm:$0xff]
  %v16 = vunpack.c.l.bf16 %v14
  %v17 = vunpack.c.h.bf16 %v14
  %v18 = vunpack.c.l.bf16 %v15
  %v19 = vunpack.c.h.bf16 %v15
  %v20 = vld [vmem:[%s1] sm:$0x3]
  %v22 = vlaneseq
  %v23 = vshrl.u32 %v22, 7
  %v24 = vsub.s32 0, %v23
  %v25 = vrot.slane %v20, %v24
  %v26 = vlaneseq
  %v27 = vshrl.u32 %v26, 7
  %v28 = vsub.s32 1, %v27
  %v29 = vrot.slane %v20, %v28
  %v32 = vmul.f32 %v16, %v25
  %v33 = vmul.f32 %v17, %v29
  %v34 = vmul.f32 %v18, %v25
  %v35 = vmul.f32 %v19, %v29
  %v36 = vld [vmem:[%s2] sm:$0x3]
  %v38 = vlaneseq
  %v39 = vshrl.u32 %v38, 7
  %v40 = vsub.s32 0, %v39
  %v41 = vrot.slane %v36, %v40
  %v42 = vlaneseq
  %v43 = vshrl.u32 %v42, 7
  %v44 = vsub.s32 1, %v43
  %v45 = vrot.slane %v36, %v44
  %v48 = vadd.f32 %v32, %v41
  %v49 = vadd.f32 %v33, %v45
  %v50 = vadd.f32 %v34, %v41
  %v51 = vadd.f32 %v35, %v45
  %vm52 = vcmp.gt.f32.partialorder %v48, 0.0
  %vm53 = vcmp.gt.f32.partialorder %v49, 0.0
  %vm54 = vcmp.gt.f32.partialorder %v50, 0.0
  %vm55 = vcmp.gt.f32.partialorder %v51, 0.0
  %v56 = vmul.f32 %v48, 0.2
  %v57 = vmul.f32 %v49, 0.2
  %v58 = vmul.f32 %v50, 0.2
  %v59 = vmul.f32 %v51, 0.2
  %v60 = vsel %vm52, %v48, %v56
  %v61 = vsel %vm53, %v49, %v57
  %v62 = vsel %vm54, %v50, %v58
  %v63 = vsel %vm55, %v51, %v59
  %v64 = vpack.c.bf16 %v62, %v60
  %v65 = vpack.c.bf16 %v63, %v61
  %v68 = vunpack.c.l.b16 %v64
  %v69 = vunpack.c.l.b16 %v65
  %v70 = vunpack.c.h.b16 %v64
  %v71 = vunpack.c.h.b16 %v65
  %v72 = vpack.c.b16 %v69, %v68
  %v73 = vpack.c.b16 %v71, %v70
  %76 = vst [vmem:[%s3] sm:$0xff] %v72
  %77 = vst [vmem:[%s3 + $0x8] sm:$0xff] %v73
  // Predicated region
  $region14: #{generator_forward.18} parent=0 // pred_check
    _
  $region15: #{generator_forward.18} parent=0 // pred_check_branch
    %79 = sbr.rel (0) target = $region17
  $region16: #{generator_forward.18} parent=0 // pred_region
    _
  $region17: #{generator_forward.18} parent=0 // pred_fallthru
    _
  // Predicated region
  $region18: #{generator_forward.18} parent=0 // pred_check
    _
  $region19: #{generator_forward.18} parent=0 // pred_check_branch
    %81 = sbr.rel (0) target = $region21
  $region20: #{generator_forward.18} parent=0 // pred_region
    _
  $region21: #{generator_forward.18} parent=0 // pred_fallthru
    _

// kernel: tile.107
$region0: #{tile.107}
  #allocation0 [shape = 's32[1]{0}', space=sflag, size = 0x4, scoped, tag = 'scoped memory for tile.107']
  %s0 = inlined_call_operand.vmem [shape: f32[64], index: 0, kind: input, shape index: {}]
  %s1 = inlined_call_operand.vmem [shape: f32[8,64], index: 1, kind: output, shape index: {}]
  // Predicated region
  $region2: #{tile.107} parent=0 // pred_check
    _
  $region3: #{tile.107} parent=0 // pred_check_branch
    %3 = sbr.rel (0) target = $region5
  $region4: #{tile.107} parent=0 // pred_region
    _
  $region5: #{tile.107} parent=0 // pred_fallthru
    _
  %v4 = vld [vmem:[%s0] ss:$0 sm:$0xff]
  %5 = vst [vmem:[%s1] sm:$0xff] %v4

// kernel: tile.108
$region0: #{tile.108}
  %s0 = inlined_call_operand.vmem [shape: f32[8,64], index: 0, kind: input, shape index: {}]
  %s1 = inlined_call_operand.vmem [shape: f32[1,512], index: 1, kind: output, shape index: {}]
  $region1: #{tile.108} parent=0
    #allocation0 [shape = 'u8[16384]{0}', space=vmem, size = 0x4000, scoped, tag = 'scoped mem for output reshape']
    %v2 = vld [vmem:[%s0] ss:$2 sm:$0xf]
    %vm3 = vcmask 523264
    %4 = vst.msk [vmem:[#allocation0] ss:$8 sm:$0xf] %vm3, %v2
    %s5 = scalar_lea.vmem %s0, 1
    %v6 = vld [vmem:[%s5] ss:$2 sm:$0xf]
    %7 = vrot.lane.b32.xlu0 %v6, 64
    %v8 = vpop.permute.xlu0 %7
    %vm9 = vcmask 1048064
    %10 = vst.msk [vmem:[#allocation0] ss:$8 sm:$0xf] %vm9, %v8
    %s12 = sshllo.u32 0, 1
    %v14 = vld [vmem:[#allocation0] sm:%s12]
    %s15 = sshllo.u32 0, 1
    %16 = vst [vmem:[%s1] sm:%s15] %v14
    %s17 = scalar_lea.vmem [#allocation0], 8
    %v18 = vld [vmem:[%s17] sm:%s12]
    %s19 = sshllo.u32 0, 1
    %s20 = scalar_lea.vmem %s1, 1
    %21 = vst [vmem:[%s20] sm:%s19] %v18
    %s22 = scalar_lea.vmem [#allocation0], 16
    %v23 = vld [vmem:[%s22] sm:%s12]
    %s24 = sshllo.u32 0, 1
    %s25 = smul.addr 1, 2
    %s26 = scalar_lea.vmem %s1, %s25
    %27 = vst [vmem:[%s26] sm:%s24] %v23
    %s28 = scalar_lea.vmem [#allocation0], 24
    %v29 = vld [vmem:[%s28] sm:%s12]
    %s30 = sshllo.u32 0, 1
    %s31 = smul.addr 1, 3
    %s32 = scalar_lea.vmem %s1, %s31
    %33 = vst [vmem:[%s32] sm:%s30] %v29

// kernel: generator_forward.20
$region0: #{generator_forward.20}
  #allocation0 [shape = 'u32[]', space=smem, size = 0x4, offset = 0x4, fixed_abs, tag = 'smem constant byte address 0x4 - core index']
  #allocation1 [shape = 'u32[144,128]{1,0:T(1,128)}', space=vmem, size = 0x12000, scoped, tag = 'internal scratch']
  %s0 = inlined_call_operand.vmem [shape: bf16[16,512], index: 0, kind: input, shape index: {}]
  %s1 = inlined_call_operand.vmem [shape: f32[1,512], index: 1, kind: input, shape index: {}]
  %s2 = inlined_call_operand.vmem [shape: f32[1,512], index: 2, kind: input, shape index: {}]
  %s3 = inlined_call_operand.vmem [shape: f32[16,512], index: 3, kind: input, shape index: {}]
  %s4 = inlined_call_operand.vmem [shape: bf16[16,512], index: 4, kind: output, shape index: {}]
  %s5 = sld [smem:[#allocation0]]
  $region26: #{generator_forward.20} parent=0
    _
  %s7 = ssub.s32 1, %s5
  %s8 = scalar_select 0, %s7, %s5
  // Predicated region
  $region2: #{generator_forward.20} parent=0 // pred_check
    _
  $region3: #{generator_forward.20} parent=0 // pred_check_branch
    %10 = sbr.rel (0) target = $region5
  $region4: #{generator_forward.20} parent=0 // pred_region
    _
  $region5: #{generator_forward.20} parent=0 // pred_fallthru
    _
  // Predicated region
  $region6: #{generator_forward.20} parent=0 // pred_check
    _
  $region7: #{generator_forward.20} parent=0 // pred_check_branch
    %12 = sbr.rel (0) target = $region9
  $region8: #{generator_forward.20} parent=0 // pred_region
    _
  $region9: #{generator_forward.20} parent=0 // pred_fallthru
    _
  // Predicated region
  $region10: #{generator_forward.20} parent=0 // pred_check
    _
  $region11: #{generator_forward.20} parent=0 // pred_check_branch
    %14 = sbr.rel (0) target = $region13
  $region12: #{generator_forward.20} parent=0 // pred_region
    _
  $region13: #{generator_forward.20} parent=0 // pred_fallthru
    _
  // Predicated region
  $region14: #{generator_forward.20} parent=0 // pred_check
    _
  $region15: #{generator_forward.20} parent=0 // pred_check_branch
    %16 = sbr.rel (0) target = $region17
  $region16: #{generator_forward.20} parent=0 // pred_region
    _
  $region17: #{generator_forward.20} parent=0 // pred_fallthru
    _
  %v17 = vld [vmem:[%s0] sm:$0xff]
  %v18 = vld [vmem:[%s0 + $0x8] sm:$0xff]
  %v19 = vld [vmem:[%s0 + $0x10] sm:$0xff]
  %v20 = vld [vmem:[%s0 + $0x18] sm:$0xff]
  %v21 = vunpack.c.l.bf16 %v17
  %v22 = vunpack.c.h.bf16 %v17
  %v23 = vunpack.c.l.bf16 %v18
  %v24 = vunpack.c.h.bf16 %v18
  %v25 = vunpack.c.l.bf16 %v19
  %v26 = vunpack.c.h.bf16 %v19
  %v27 = vunpack.c.l.bf16 %v20
  %v28 = vunpack.c.h.bf16 %v20
  %v29 = vld [vmem:[%s1] sm:$0xf]
  %v31 = vlaneseq
  %v32 = vshrl.u32 %v31, 7
  %v33 = vsub.s32 0, %v32
  %v34 = vrot.slane %v29, %v33
  %v35 = vlaneseq
  %v36 = vshrl.u32 %v35, 7
  %v37 = vsub.s32 1, %v36
  %v38 = vrot.slane %v29, %v37
  %v39 = vlaneseq
  %v40 = vshrl.u32 %v39, 7
  %v41 = vsub.s32 2, %v40
  %v42 = vrot.slane %v29, %v41
  %v43 = vlaneseq
  %v44 = vshrl.u32 %v43, 7
  %v45 = vsub.s32 3, %v44
  %v46 = vrot.slane %v29, %v45
  %v51 = vmul.f32 %v21, %v34
  %v52 = vmul.f32 %v22, %v38
  %v53 = vmul.f32 %v23, %v42
  %v54 = vmul.f32 %v24, %v46
  %v55 = vmul.f32 %v25, %v34
  %v56 = vmul.f32 %v26, %v38
  %v57 = vmul.f32 %v27, %v42
  %v58 = vmul.f32 %v28, %v46
  %v59 = vld [vmem:[%s2] sm:$0xf]
  %v61 = vlaneseq
  %v62 = vshrl.u32 %v61, 7
  %v63 = vsub.s32 0, %v62
  %v64 = vrot.slane %v59, %v63
  %v65 = vlaneseq
  %v66 = vshrl.u32 %v65, 7
  %v67 = vsub.s32 1, %v66
  %v68 = vrot.slane %v59, %v67
  %v69 = vlaneseq
  %v70 = vshrl.u32 %v69, 7
  %v71 = vsub.s32 2, %v70
  %v72 = vrot.slane %v59, %v71
  %v73 = vlaneseq
  %v74 = vshrl.u32 %v73, 7
  %v75 = vsub.s32 3, %v74
  %v76 = vrot.slane %v59, %v75
  %v81 = vadd.f32 %v51, %v64
  %v82 = vadd.f32 %v52, %v68
  %v83 = vadd.f32 %v53, %v72
  %v84 = vadd.f32 %v54, %v76
  %v85 = vadd.f32 %v55, %v64
  %v86 = vadd.f32 %v56, %v68
  %v87 = vadd.f32 %v57, %v72
  %v88 = vadd.f32 %v58, %v76
  %vm89 = vcmp.gt.f32.partialorder %v81, 0.0
  %vm90 = vcmp.gt.f32.partialorder %v82, 0.0
  %vm91 = vcmp.gt.f32.partialorder %v83, 0.0
  %vm92 = vcmp.gt.f32.partialorder %v84, 0.0
  %vm93 = vcmp.gt.f32.partialorder %v85, 0.0
  %vm94 = vcmp.gt.f32.partialorder %v86, 0.0
  %vm95 = vcmp.gt.f32.partialorder %v87, 0.0
  %vm96 = vcmp.gt.f32.partialorder %v88, 0.0
  %v97 = vmul.f32 %v81, 0.2
  %v98 = vmul.f32 %v82, 0.2
  %v99 = vmul.f32 %v83, 0.2
  %v100 = vmul.f32 %v84, 0.2
  %v101 = vmul.f32 %v85, 0.2
  %v102 = vmul.f32 %v86, 0.2
  %v103 = vmul.f32 %v87, 0.2
  %v104 = vmul.f32 %v88, 0.2
  %v105 = vsel %vm89, %v81, %v97
  %v106 = vsel %vm90, %v82, %v98
  %v107 = vsel %vm91, %v83, %v99
  %v108 = vsel %vm92, %v84, %v100
  %v109 = vsel %vm93, %v85, %v101
  %v110 = vsel %vm94, %v86, %v102
  %v111 = vsel %vm95, %v87, %v103
  %v112 = vsel %vm96, %v88, %v104
  %v113 = vld [vmem:[%s3] sm:$0xff]
  %v114 = vld [vmem:[%s3 + $0x8] sm:$0xff]
  %v115 = vld [vmem:[%s3 + $0x10] sm:$0xff]
  %v116 = vld [vmem:[%s3 + $0x18] sm:$0xff]
  %v117 = vld [vmem:[%s3 + $0x20] sm:$0xff]
  %v118 = vld [vmem:[%s3 + $0x28] sm:$0xff]
  %v119 = vld [vmem:[%s3 + $0x30] sm:$0xff]
  %v120 = vld [vmem:[%s3 + $0x38] sm:$0xff]
  %v121 = vadd.f32 %v105, %v113
  %v122 = vadd.f32 %v106, %v114
  %v123 = vadd.f32 %v107, %v115
  %v124 = vadd.f32 %v108, %v116
  %v125 = vadd.f32 %v109, %v117
  %v126 = vadd.f32 %v110, %v118
  %v127 = vadd.f32 %v111, %v119
  %v128 = vadd.f32 %v112, %v120
  %v129 = vpack.c.bf16 %v125, %v121
  %v130 = vpack.c.bf16 %v126, %v122
  %v131 = vpack.c.bf16 %v127, %v123
  %v132 = vpack.c.bf16 %v128, %v124
  %v137 = vunpack.c.l.b16 %v129
  %v138 = vunpack.c.l.b16 %v130
  %v139 = vunpack.c.l.b16 %v131
  %v140 = vunpack.c.l.b16 %v132
  %v141 = vunpack.c.h.b16 %v129
  %v142 = vunpack.c.h.b16 %v130
  %v143 = vunpack.c.h.b16 %v131
  %v144 = vunpack.c.h.b16 %v132
  %v145 = vpack.c.b16 %v138, %v137
  %v146 = vpack.c.b16 %v140, %v139
  %v147 = vpack.c.b16 %v142, %v141
  %v148 = vpack.c.b16 %v144, %v143
  %153 = vst [vmem:[%s4] sm:$0xff] %v145
  %154 = vst [vmem:[%s4 + $0x8] sm:$0xff] %v146
  %155 = vst [vmem:[%s4 + $0x10] sm:$0xff] %v147
  %156 = vst [vmem:[%s4 + $0x18] sm:$0xff] %v148
  // Predicated region
  $region18: #{generator_forward.20} parent=0 // pred_check
    _
  $region19: #{generator_forward.20} parent=0 // pred_check_branch
    %158 = sbr.rel (0) target = $region21
  $region20: #{generator_forward.20} parent=0 // pred_region
    _
  $region21: #{generator_forward.20} parent=0 // pred_fallthru
    _
  // Predicated region
  $region22: #{generator_forward.20} parent=0 // pred_check
    _
  $region23: #{generator_forward.20} parent=0 // pred_check_branch
    %160 = sbr.rel (0) target = $region25
  $region24: #{generator_forward.20} parent=0 // pred_region
    _
  $region25: #{generator_forward.20} parent=0 // pred_fallthru
    _

// kernel: generator_forward.19
$region0: #{generator_forward.19}
  #allocation0 [shape = 'u32[]', space=smem, size = 0x4, offset = 0x4, fixed_abs, tag = 'smem constant byte address 0x4 - core index']
  #allocation1 [shape = 'u32[144,128]{1,0:T(1,128)}', space=vmem, size = 0x12000, scoped, tag = 'internal scratch']
  %s0 = inlined_call_operand.vmem [shape: bf16[16,512], index: 0, kind: input, shape index: {}]
  %s1 = inlined_call_operand.vmem [shape: bf16[512,64], index: 1, kind: input, shape index: {}]
  %s2 = inlined_call_operand.vmem [shape: bf16[16,64], index: 2, kind: output, shape index: {0}]
  %s3 = inlined_call_operand.vmem [shape: f32[1,2,64], index: 3, kind: output, shape index: {1}]
  %4 = xla_tuple %s2, %s3
  %s5 = sld [smem:[#allocation0]]
  $region26: #{generator_forward.19} parent=0
    _
  %s7 = ssub.s32 1, %s5
  %s8 = scalar_select 0, %s7, %s5
  // Predicated region
  $region2: #{generator_forward.19} parent=0 // pred_check
    _
  $region3: #{generator_forward.19} parent=0 // pred_check_branch
    %10 = sbr.rel (0) target = $region5
  $region4: #{generator_forward.19} parent=0 // pred_region
    _
  $region5: #{generator_forward.19} parent=0 // pred_fallthru
    _
  // Predicated region
  $region6: #{generator_forward.19} parent=0 // pred_check
    _
  $region7: #{generator_forward.19} parent=0 // pred_check_branch
    %12 = sbr.rel (0) target = $region9
  $region8: #{generator_forward.19} parent=0 // pred_region
    _
  $region9: #{generator_forward.19} parent=0 // pred_fallthru
    _
  %v14 = vld [vmem:[%s0] sm:$0xff]
  %v15 = vld [vmem:[%s0 + $0x8] sm:$0xff]
  %v16 = vld [vmem:[%s0 + $0x10] sm:$0xff]
  %v17 = vld [vmem:[%s0 + $0x18] sm:$0xff]
  %v18 = vld [vmem:[%s1] sm:$0xf]
  %v19 = vld [vmem:[%s1 + $0x4] sm:$0xf]
  %v20 = vld [vmem:[%s1 + $0x8] sm:$0xf]
  %v21 = vld [vmem:[%s1 + $0xc] sm:$0xf]
  %v22 = vld [vmem:[%s1 + $0x10] sm:$0xf]
  %v23 = vld [vmem:[%s1 + $0x14] sm:$0xf]
  %v24 = vld [vmem:[%s1 + $0x18] sm:$0xf]
  %v25 = vld [vmem:[%s1 + $0x1c] sm:$0xf]
  %v26 = vld [vmem:[%s1 + $0x20] sm:$0xf]
  %v27 = vld [vmem:[%s1 + $0x24] sm:$0xf]
  %v28 = vld [vmem:[%s1 + $0x28] sm:$0xf]
  %v29 = vld [vmem:[%s1 + $0x2c] sm:$0xf]
  %v30 = vld [vmem:[%s1 + $0x30] sm:$0xf]
  %v31 = vld [vmem:[%s1 + $0x34] sm:$0xf]
  %v32 = vld [vmem:[%s1 + $0x38] sm:$0xf]
  %v33 = vld [vmem:[%s1 + $0x3c] sm:$0xf]
  %v34 = vld [vmem:[%s1 + $0x40] sm:$0xf]
  %v35 = vld [vmem:[%s1 + $0x44] sm:$0xf]
  %v36 = vld [vmem:[%s1 + $0x48] sm:$0xf]
  %v37 = vld [vmem:[%s1 + $0x4c] sm:$0xf]
  %v38 = vld [vmem:[%s1 + $0x50] sm:$0xf]
  %v39 = vld [vmem:[%s1 + $0x54] sm:$0xf]
  %v40 = vld [vmem:[%s1 + $0x58] sm:$0xf]
  %v41 = vld [vmem:[%s1 + $0x5c] sm:$0xf]
  %v42 = vld [vmem:[%s1 + $0x60] sm:$0xf]
  %v43 = vld [vmem:[%s1 + $0x64] sm:$0xf]
  %v44 = vld [vmem:[%s1 + $0x68] sm:$0xf]
  %v45 = vld [vmem:[%s1 + $0x6c] sm:$0xf]
  %v46 = vld [vmem:[%s1 + $0x70] sm:$0xf]
  %v47 = vld [vmem:[%s1 + $0x74] sm:$0xf]
  %v48 = vld [vmem:[%s1 + $0x78] sm:$0xf]
  %v49 = vld [vmem:[%s1 + $0x7c] sm:$0xf]
  %v50 = vld [vmem:[%s1 + $0x80] sm:$0xf]
  %v51 = vld [vmem:[%s1 + $0x84] sm:$0xf]
  %v52 = vld [vmem:[%s1 + $0x88] sm:$0xf]
  %v53 = vld [vmem:[%s1 + $0x8c] sm:$0xf]
  %v54 = vld [vmem:[%s1 + $0x90] sm:$0xf]
  %v55 = vld [vmem:[%s1 + $0x94] sm:$0xf]
  %v56 = vld [vmem:[%s1 + $0x98] sm:$0xf]
  %v57 = vld [vmem:[%s1 + $0x9c] sm:$0xf]
  %v58 = vld [vmem:[%s1 + $0xa0] sm:$0xf]
  %v59 = vld [vmem:[%s1 + $0xa4] sm:$0xf]
  %v60 = vld [vmem:[%s1 + $0xa8] sm:$0xf]
  %v61 = vld [vmem:[%s1 + $0xac] sm:$0xf]
  %v62 = vld [vmem:[%s1 + $0xb0] sm:$0xf]
  %v63 = vld [vmem:[%s1 + $0xb4] sm:$0xf]
  %v64 = vld [vmem:[%s1 + $0xb8] sm:$0xf]
  %v65 = vld [vmem:[%s1 + $0xbc] sm:$0xf]
  %v66 = vld [vmem:[%s1 + $0xc0] sm:$0xf]
  %v67 = vld [vmem:[%s1 + $0xc4] sm:$0xf]
  %v68 = vld [vmem:[%s1 + $0xc8] sm:$0xf]
  %v69 = vld [vmem:[%s1 + $0xcc] sm:$0xf]
  %v70 = vld [vmem:[%s1 + $0xd0] sm:$0xf]
  %v71 = vld [vmem:[%s1 + $0xd4] sm:$0xf]
  %v72 = vld [vmem:[%s1 + $0xd8] sm:$0xf]
  %v73 = vld [vmem:[%s1 + $0xdc] sm:$0xf]
  %v74 = vld [vmem:[%s1 + $0xe0] sm:$0xf]
  %v75 = vld [vmem:[%s1 + $0xe4] sm:$0xf]
  %v76 = vld [vmem:[%s1 + $0xe8] sm:$0xf]
  %v77 = vld [vmem:[%s1 + $0xec] sm:$0xf]
  %v78 = vld [vmem:[%s1 + $0xf0] sm:$0xf]
  %v79 = vld [vmem:[%s1 + $0xf4] sm:$0xf]
  %v80 = vld [vmem:[%s1 + $0xf8] sm:$0xf]
  %v81 = vld [vmem:[%s1 + $0xfc] sm:$0xf]
  %v86 = vunpack.c.l.b16 %v14
  %v87 = vunpack.c.h.b16 %v14
  %v88 = vunpack.c.l.b16 %v15
  %v89 = vunpack.c.h.b16 %v15
  %v90 = vunpack.c.l.b16 %v16
  %v91 = vunpack.c.h.b16 %v16
  %v92 = vunpack.c.l.b16 %v17
  %v93 = vunpack.c.h.b16 %v17
  %v94 = vpack.c.b16 %v90, %v86
  %v95 = vpack.c.b16 %v91, %v87
  %v96 = vpack.c.b16 %v92, %v88
  %v97 = vpack.c.b16 %v93, %v89
  %v166 = vunpack.c.l.b16 %v18
  %v167 = vunpack.c.l.b16 %v19
  %v168 = vunpack.c.l.b16 %v20
  %v169 = vunpack.c.l.b16 %v21
  %v170 = vunpack.c.l.b16 %v22
  %v171 = vunpack.c.l.b16 %v23
  %v172 = vunpack.c.l.b16 %v24
  %v173 = vunpack.c.l.b16 %v25
  %v174 = vunpack.c.l.b16 %v26
  %v175 = vunpack.c.l.b16 %v27
  %v176 = vunpack.c.l.b16 %v28
  %v177 = vunpack.c.l.b16 %v29
  %v178 = vunpack.c.l.b16 %v30
  %v179 = vunpack.c.l.b16 %v31
  %v180 = vunpack.c.l.b16 %v32
  %v181 = vunpack.c.l.b16 %v33
  %v182 = vunpack.c.l.b16 %v34
  %v183 = vunpack.c.l.b16 %v35
  %v184 = vunpack.c.l.b16 %v36
  %v185 = vunpack.c.l.b16 %v37
  %v186 = vunpack.c.l.b16 %v38
  %v187 = vunpack.c.l.b16 %v39
  %v188 = vunpack.c.l.b16 %v40
  %v189 = vunpack.c.l.b16 %v41
  %v190 = vunpack.c.l.b16 %v42
  %v191 = vunpack.c.l.b16 %v43
  %v192 = vunpack.c.l.b16 %v44
  %v193 = vunpack.c.l.b16 %v45
  %v194 = vunpack.c.l.b16 %v46
  %v195 = vunpack.c.l.b16 %v47
  %v196 = vunpack.c.l.b16 %v48
  %v197 = vunpack.c.l.b16 %v49
  %v198 = vunpack.c.l.b16 %v50
  %v199 = vunpack.c.l.b16 %v51
  %v200 = vunpack.c.l.b16 %v52
  %v201 = vunpack.c.l.b16 %v53
  %v202 = vunpack.c.l.b16 %v54
  %v203 = vunpack.c.l.b16 %v55
  %v204 = vunpack.c.l.b16 %v56
  %v205 = vunpack.c.l.b16 %v57
  %v206 = vunpack.c.l.b16 %v58
  %v207 = vunpack.c.l.b16 %v59
  %v208 = vunpack.c.l.b16 %v60
  %v209 = vunpack.c.l.b16 %v61
  %v210 = vunpack.c.l.b16 %v62
  %v211 = vunpack.c.l.b16 %v63
  %v212 = vunpack.c.l.b16 %v64
  %v213 = vunpack.c.l.b16 %v65
  %v214 = vunpack.c.l.b16 %v66
  %v215 = vunpack.c.l.b16 %v67
  %v216 = vunpack.c.l.b16 %v68
  %v217 = vunpack.c.l.b16 %v69
  %v218 = vunpack.c.l.b16 %v70
  %v219 = vunpack.c.l.b16 %v71
  %v220 = vunpack.c.l.b16 %v72
  %v221 = vunpack.c.l.b16 %v73
  %v222 = vunpack.c.l.b16 %v74
  %v223 = vunpack.c.l.b16 %v75
  %v224 = vunpack.c.l.b16 %v76
  %v225 = vunpack.c.l.b16 %v77
  %v226 = vunpack.c.l.b16 %v78
  %v227 = vunpack.c.l.b16 %v79
  %v228 = vunpack.c.l.b16 %v80
  %v229 = vunpack.c.l.b16 %v81
  %v230 = vpack.c.b16 %v167, %v166
  %v231 = vpack.c.b16 %v169, %v168
  %v232 = vpack.c.b16 %v171, %v170
  %v233 = vpack.c.b16 %v173, %v172
  %v234 = vpack.c.b16 %v175, %v174
  %v235 = vpack.c.b16 %v177, %v176
  %v236 = vpack.c.b16 %v179, %v178
  %v237 = vpack.c.b16 %v181, %v180
  %v238 = vpack.c.b16 %v183, %v182
  %v239 = vpack.c.b16 %v185, %v184
  %v240 = vpack.c.b16 %v187, %v186
  %v241 = vpack.c.b16 %v189, %v188
  %v242 = vpack.c.b16 %v191, %v190
  %v243 = vpack.c.b16 %v193, %v192
  %v244 = vpack.c.b16 %v195, %v194
  %v245 = vpack.c.b16 %v197, %v196
  %v246 = vpack.c.b16 %v199, %v198
  %v247 = vpack.c.b16 %v201, %v200
  %v248 = vpack.c.b16 %v203, %v202
  %v249 = vpack.c.b16 %v205, %v204
  %v250 = vpack.c.b16 %v207, %v206
  %v251 = vpack.c.b16 %v209, %v208
  %v252 = vpack.c.b16 %v211, %v210
  %v253 = vpack.c.b16 %v213, %v212
  %v254 = vpack.c.b16 %v215, %v214
  %v255 = vpack.c.b16 %v217, %v216
  %v256 = vpack.c.b16 %v219, %v218
  %v257 = vpack.c.b16 %v221, %v220
  %v258 = vpack.c.b16 %v223, %v222
  %v259 = vpack.c.b16 %v225, %v224
  %v260 = vpack.c.b16 %v227, %v226
  %v261 = vpack.c.b16 %v229, %v228
  %294 = vmatprep.subr.bf16.mxu0 0
  %295 = vmatpush1.bf16.msra.mxu0 %v230
  %296 = vmatprep.subr.bf16.mxu0 0
  %297 = vmatpush1.bf16.msra.mxu0 %v231
  %298 = vmatprep.subr.bf16.mxu0 0
  %299 = vmatpush1.bf16.msra.mxu0 %v232
  %300 = vmatprep.subr.bf16.mxu0 0
  %301 = vmatpush1.bf16.msra.mxu0 %v233
  %302 = vmatprep.subr.bf16.mxu0 0
  %303 = vmatpush1.bf16.msra.mxu0 %v234
  %304 = vmatprep.subr.bf16.mxu0 0
  %305 = vmatpush1.bf16.msra.mxu0 %v235
  %306 = vmatprep.subr.bf16.mxu0 0
  %307 = vmatpush1.bf16.msra.mxu0 %v236
  %308 = vmatprep.subr.bf16.mxu0 0
  %309 = vmatpush1.bf16.msra.mxu0 %v237
  %310 = vmatprep.subr.bf16.mxu0 0
  %311 = vmatpush1.bf16.msra.mxu0 %v238
  %312 = vmatprep.subr.bf16.mxu0 0
  %313 = vmatpush1.bf16.msra.mxu0 %v239
  %314 = vmatprep.subr.bf16.mxu0 0
  %315 = vmatpush1.bf16.msra.mxu0 %v240
  %316 = vmatprep.subr.bf16.mxu0 0
  %317 = vmatpush1.bf16.msra.mxu0 %v241
  %318 = vmatprep.subr.bf16.mxu0 0
  %319 = vmatpush1.bf16.msra.mxu0 %v242
  %320 = vmatprep.subr.bf16.mxu0 0
  %321 = vmatpush1.bf16.msra.mxu0 %v243
  %322 = vmatprep.subr.bf16.mxu0 0
  %323 = vmatpush1.bf16.msra.mxu0 %v244
  %324 = vmatprep.subr.bf16.mxu0 0
  %325 = vmatpush1.bf16.msra.mxu0 %v245
  %326 = vmatprep.mubr.bf16.mxu0 %v95
  %327 = vmatmul.mubr.bf16.gmra.mrb[0].mxu0 %v94
  %v328 = vpop.f32.mrb[0].mxu0
  %v329 = vadd.f32 0.0, %v328
  %v330 = vpop.f32.mrb[0].mxu0
  %v331 = vpop.f32.mrb[0].mxu0
  %v332 = vadd.f32 0.0, %v331
  %v333 = vpop.f32.mrb[0].mxu0
  %334 = vdwg.mxu0
  %335 = vmatprep.subr.bf16.mxu0 0
  %336 = vmatpush1.bf16.msra.mxu0 %v246
  %337 = vmatprep.subr.bf16.mxu0 0
  %338 = vmatpush1.bf16.msra.mxu0 %v247
  %339 = vmatprep.subr.bf16.mxu0 0
  %340 = vmatpush1.bf16.msra.mxu0 %v248
  %341 = vmatprep.subr.bf16.mxu0 0
  %342 = vmatpush1.bf16.msra.mxu0 %v249
  %343 = vmatprep.subr.bf16.mxu0 0
  %344 = vmatpush1.bf16.msra.mxu0 %v250
  %345 = vmatprep.subr.bf16.mxu0 0
  %346 = vmatpush1.bf16.msra.mxu0 %v251
  %347 = vmatprep.subr.bf16.mxu0 0
  %348 = vmatpush1.bf16.msra.mxu0 %v252
  %349 = vmatprep.subr.bf16.mxu0 0
  %350 = vmatpush1.bf16.msra.mxu0 %v253
  %351 = vmatprep.subr.bf16.mxu0 0
  %352 = vmatpush1.bf16.msra.mxu0 %v254
  %353 = vmatprep.subr.bf16.mxu0 0
  %354 = vmatpush1.bf16.msra.mxu0 %v255
  %355 = vmatprep.subr.bf16.mxu0 0
  %356 = vmatpush1.bf16.msra.mxu0 %v256
  %357 = vmatprep.subr.bf16.mxu0 0
  %358 = vmatpush1.bf16.msra.mxu0 %v257
  %359 = vmatprep.subr.bf16.mxu0 0
  %360 = vmatpush1.bf16.msra.mxu0 %v258
  %361 = vmatprep.subr.bf16.mxu0 0
  %362 = vmatpush1.bf16.msra.mxu0 %v259
  %363 = vmatprep.subr.bf16.mxu0 0
  %364 = vmatpush1.bf16.msra.mxu0 %v260
  %365 = vmatprep.subr.bf16.mxu0 0
  %366 = vmatpush1.bf16.msra.mxu0 %v261
  %367 = vmatprep.mubr.bf16.mxu0 %v97
  %368 = vmatmul.mubr.bf16.gmra.mrb[0].mxu0 %v96
  %v369 = vpop.f32.mrb[0].mxu0
  %v370 = vadd.f32 %v329, %v369
  %v371 = vpop.f32.mrb[0].mxu0
  %v372 = vpop.f32.mrb[0].mxu0
  %v373 = vadd.f32 %v332, %v372
  %v374 = vpop.f32.mrb[0].mxu0
  %375 = vdwg.mxu0
  %v376 = vpack.c.bf16 %v373, %v370
  %v378 = vunpack.c.l.b16 %v376
  %v379 = vunpack.c.h.b16 %v376
  %v380 = vpack.c.b16 %v378, %v378
  %v381 = vpack.c.b16 %v379, %v379
  %vm384 = vcmask 519168
  %385 = vst.msk [vmem:[%s2] sm:$0xf] %vm384, %v380
  %386 = vst.msk [vmem:[%s2 + $0x4] sm:$0xf] %vm384, %v381
  %vm387 = vcmask 523264
  %v388 = vsel %vm387, %v370, 0.0
  %v389 = vsel %vm387, %v373, 0.0
  %v390 = vadd.f32 %v388, %v389
  %v391 = vrot.slane %v390, 4
  %v392 = vadd.f32 %v390, %v391
  %v393 = vrot.slane %v392, 2
  %v394 = vadd.f32 %v392, %v393
  %v395 = vrot.slane %v394, 1
  %v396 = vadd.f32 %v394, %v395
  %v397 = vmul.f32 %v370, %v370
  %v398 = vmul.f32 %v373, %v373
  %v399 = vsel %vm387, %v397, 0.0
  %v400 = vsel %vm387, %v398, 0.0
  %v401 = vadd.f32 %v399, %v400
  %v402 = vrot.slane %v401, 4
  %v403 = vadd.f32 %v401, %v402
  %v404 = vrot.slane %v403, 2
  %v405 = vadd.f32 %v403, %v404
  %v406 = vrot.slane %v405, 1
  %v407 = vadd.f32 %v405, %v406
  %vm408 = vcmask 1040384
  %v409 = vsel %vm408, %v396, %v407
  %vm410 = vcmask 517120
  %411 = vst.msk [vmem:[%s3] sm:$0x3] %vm410, %v409
  // Predicated region
  $region10: #{generator_forward.19} parent=0 // pred_check
    _
  $region11: #{generator_forward.19} parent=0 // pred_check_branch
    %413 = sbr.rel (0) target = $region13
  $region12: #{generator_forward.19} parent=0 // pred_region
    _
  $region13: #{generator_forward.19} parent=0 // pred_fallthru
    _
  // Predicated region
  $region14: #{generator_forward.19} parent=0 // pred_check
    _
  $region15: #{generator_forward.19} parent=0 // pred_check_branch
    %415 = sbr.rel (0) target = $region17
  $region16: #{generator_forward.19} parent=0 // pred_region
    _
  $region17: #{generator_forward.19} parent=0 // pred_fallthru
    _
  // Predicated region
  $region18: #{generator_forward.19} parent=0 // pred_check
    _
  $region19: #{generator_forward.19} parent=0 // pred_check_branch
    %417 = sbr.rel (0) target = $region21
  $region20: #{generator_forward.19} parent=0 // pred_region
    _
  $region21: #{generator_forward.19} parent=0 // pred_fallthru
    _
  // Predicated region
  $region22: #{generator_forward.19} parent=0 // pred_check
    _
  $region23: #{generator_forward.19} parent=0 // pred_check_branch
    %419 = sbr.rel (0) target = $region25
  $region24: #{generator_forward.19} parent=0 // pred_region
    _
  $region25: #{generator_forward.19} parent=0 // pred_fallthru
    _

// kernel: generator_forward.21
$region0: #{generator_forward.21}
  #allocation0 [shape = 'u32[]', space=smem, size = 0x4, offset = 0x4, fixed_abs, tag = 'smem constant byte address 0x4 - core index']
  #allocation1 [shape = 'u32[144,128]{1,0:T(1,128)}', space=vmem, size = 0x12000, scoped, tag = 'internal scratch']
  %s0 = inlined_call_operand.vmem [shape: bf16[16,576], index: 0, kind: input, shape index: {}]
  %s1 = inlined_call_operand.vmem [shape: bf16[576,128], index: 1, kind: input, shape index: {}]
  %s2 = inlined_call_operand.vmem [shape: bf16[16,128], index: 2, kind: output, shape index: {0}]
  %s3 = inlined_call_operand.vmem [shape: f32[1,2,128], index: 3, kind: output, shape index: {1}]
  %4 = xla_tuple %s2, %s3
  %s5 = sld [smem:[#allocation0]]
  $region26: #{generator_forward.21} parent=0
    _
  %s7 = ssub.s32 1, %s5
  %s8 = scalar_select 0, %s7, %s5
  // Predicated region
  $region2: #{generator_forward.21} parent=0 // pred_check
    _
  $region3: #{generator_forward.21} parent=0 // pred_check_branch
    %10 = sbr.rel (0) target = $region5
  $region4: #{generator_forward.21} parent=0 // pred_region
    _
  $region5: #{generator_forward.21} parent=0 // pred_fallthru
    _
  // Predicated region
  $region6: #{generator_forward.21} parent=0 // pred_check
    _
  $region7: #{generator_forward.21} parent=0 // pred_check_branch
    %12 = sbr.rel (0) target = $region9
  $region8: #{generator_forward.21} parent=0 // pred_region
    _
  $region9: #{generator_forward.21} parent=0 // pred_fallthru
    _
  %v14 = vld [vmem:[%s0] sm:$0xff]
  %v15 = vld [vmem:[%s0 + $0x8] sm:$0xff]
  %v16 = vld [vmem:[%s0 + $0x10] sm:$0xf]
  %v17 = vld [vmem:[%s0 + $0x14] sm:$0xff]
  %v18 = vld [vmem:[%s0 + $0x1c] sm:$0xff]
  %v19 = vld [vmem:[%s0 + $0x24] sm:$0xf]
  %v20 = vld [vmem:[%s1] sm:$0xf]
  %v21 = vld [vmem:[%s1 + $0x4] sm:$0xf]
  %v22 = vld [vmem:[%s1 + $0x8] sm:$0xf]
  %v23 = vld [vmem:[%s1 + $0xc] sm:$0xf]
  %v24 = vld [vmem:[%s1 + $0x10] sm:$0xf]
  %v25 = vld [vmem:[%s1 + $0x14] sm:$0xf]
  %v26 = vld [vmem:[%s1 + $0x18] sm:$0xf]
  %v27 = vld [vmem:[%s1 + $0x1c] sm:$0xf]
  %v28 = vld [vmem:[%s1 + $0x20] sm:$0xf]
  %v29 = vld [vmem:[%s1 + $0x24] sm:$0xf]
  %v30 = vld [vmem:[%s1 + $0x28] sm:$0xf]
  %v31 = vld [vmem:[%s1 + $0x2c] sm:$0xf]
  %v32 = vld [vmem:[%s1 + $0x30] sm:$0xf]
  %v33 = vld [vmem:[%s1 + $0x34] sm:$0xf]
  %v34 = vld [vmem:[%s1 + $0x38] sm:$0xf]
  %v35 = vld [vmem:[%s1 + $0x3c] sm:$0xf]
  %v36 = vld [vmem:[%s1 + $0x40] sm:$0xf]
  %v37 = vld [vmem:[%s1 + $0x44] sm:$0xf]
  %v38 = vld [vmem:[%s1 + $0x48] sm:$0xf]
  %v39 = vld [vmem:[%s1 + $0x4c] sm:$0xf]
  %v40 = vld [vmem:[%s1 + $0x50] sm:$0xf]
  %v41 = vld [vmem:[%s1 + $0x54] sm:$0xf]
  %v42 = vld [vmem:[%s1 + $0x58] sm:$0xf]
  %v43 = vld [vmem:[%s1 + $0x5c] sm:$0xf]
  %v44 = vld [vmem:[%s1 + $0x60] sm:$0xf]
  %v45 = vld [vmem:[%s1 + $0x64] sm:$0xf]
  %v46 = vld [vmem:[%s1 + $0x68] sm:$0xf]
  %v47 = vld [vmem:[%s1 + $0x6c] sm:$0xf]
  %v48 = vld [vmem:[%s1 + $0x70] sm:$0xf]
  %v49 = vld [vmem:[%s1 + $0x74] sm:$0xf]
  %v50 = vld [vmem:[%s1 + $0x78] sm:$0xf]
  %v51 = vld [vmem:[%s1 + $0x7c] sm:$0xf]
  %v52 = vld [vmem:[%s1 + $0x80] sm:$0xf]
  %v53 = vld [vmem:[%s1 + $0x84] sm:$0xf]
  %v54 = vld [vmem:[%s1 + $0x88] sm:$0xf]
  %v55 = vld [vmem:[%s1 + $0x8c] sm:$0xf]
  %v56 = vld [vmem:[%s1 + $0x90] sm:$0xf]
  %v57 = vld [vmem:[%s1 + $0x94] sm:$0xf]
  %v58 = vld [vmem:[%s1 + $0x98] sm:$0xf]
  %v59 = vld [vmem:[%s1 + $0x9c] sm:$0xf]
  %v60 = vld [vmem:[%s1 + $0xa0] sm:$0xf]
  %v61 = vld [vmem:[%s1 + $0xa4] sm:$0xf]
  %v62 = vld [vmem:[%s1 + $0xa8] sm:$0xf]
  %v63 = vld [vmem:[%s1 + $0xac] sm:$0xf]
  %v64 = vld [vmem:[%s1 + $0xb0] sm:$0xf]
  %v65 = vld [vmem:[%s1 + $0xb4] sm:$0xf]
  %v66 = vld [vmem:[%s1 + $0xb8] sm:$0xf]
  %v67 = vld [vmem:[%s1 + $0xbc] sm:$0xf]
  %v68 = vld [vmem:[%s1 + $0xc0] sm:$0xf]
  %v69 = vld [vmem:[%s1 + $0xc4] sm:$0xf]
  %v70 = vld [vmem:[%s1 + $0xc8] sm:$0xf]
  %v71 = vld [vmem:[%s1 + $0xcc] sm:$0xf]
  %v72 = vld [vmem:[%s1 + $0xd0] sm:$0xf]
  %v73 = vld [vmem:[%s1 + $0xd4] sm:$0xf]
  %v74 = vld [vmem:[%s1 + $0xd8] sm:$0xf]
  %v75 = vld [vmem:[%s1 + $0xdc] sm:$0xf]
  %v76 = vld [vmem:[%s1 + $0xe0] sm:$0xf]
  %v77 = vld [vmem:[%s1 + $0xe4] sm:$0xf]
  %v78 = vld [vmem:[%s1 + $0xe8] sm:$0xf]
  %v79 = vld [vmem:[%s1 + $0xec] sm:$0xf]
  %v80 = vld [vmem:[%s1 + $0xf0] sm:$0xf]
  %v81 = vld [vmem:[%s1 + $0xf4] sm:$0xf]
  %v82 = vld [vmem:[%s1 + $0xf8] sm:$0xf]
  %v83 = vld [vmem:[%s1 + $0xfc] sm:$0xf]
  %v84 = vld [vmem:[%s1 + $0x100] sm:$0xf]
  %v85 = vld [vmem:[%s1 + $0x104] sm:$0xf]
  %v86 = vld [vmem:[%s1 + $0x108] sm:$0xf]
  %v87 = vld [vmem:[%s1 + $0x10c] sm:$0xf]
  %v88 = vld [vmem:[%s1 + $0x110] sm:$0xf]
  %v89 = vld [vmem:[%s1 + $0x114] sm:$0xf]
  %v90 = vld [vmem:[%s1 + $0x118] sm:$0xf]
  %v91 = vld [vmem:[%s1 + $0x11c] sm:$0xf]
  %v98 = vunpack.c.l.b16 %v14
  %v99 = vunpack.c.h.b16 %v14
  %v100 = vunpack.c.l.b16 %v15
  %v101 = vunpack.c.h.b16 %v15
  %v102 = vunpack.c.l.b16 %v16
  %v103 = vunpack.c.l.b16 %v17
  %v104 = vunpack.c.h.b16 %v17
  %v105 = vunpack.c.l.b16 %v18
  %v106 = vunpack.c.h.b16 %v18
  %v107 = vunpack.c.l.b16 %v19
  %v108 = vpack.c.b16 %v103, %v98
  %v109 = vpack.c.b16 %v104, %v99
  %v110 = vpack.c.b16 %v105, %v100
  %v111 = vpack.c.b16 %v106, %v101
  %v112 = vpack.c.b16 %v107, %v102
  %v189 = vunpack.c.l.b16 %v20
  %v190 = vunpack.c.l.b16 %v21
  %v191 = vunpack.c.l.b16 %v22
  %v192 = vunpack.c.l.b16 %v23
  %v193 = vunpack.c.l.b16 %v24
  %v194 = vunpack.c.l.b16 %v25
  %v195 = vunpack.c.l.b16 %v26
  %v196 = vunpack.c.l.b16 %v27
  %v197 = vunpack.c.l.b16 %v28
  %v198 = vunpack.c.l.b16 %v29
  %v199 = vunpack.c.l.b16 %v30
  %v200 = vunpack.c.l.b16 %v31
  %v201 = vunpack.c.l.b16 %v32
  %v202 = vunpack.c.l.b16 %v33
  %v203 = vunpack.c.l.b16 %v34
  %v204 = vunpack.c.l.b16 %v35
  %v205 = vunpack.c.l.b16 %v36
  %v206 = vunpack.c.l.b16 %v37
  %v207 = vunpack.c.l.b16 %v38
  %v208 = vunpack.c.l.b16 %v39
  %v209 = vunpack.c.l.b16 %v40
  %v210 = vunpack.c.l.b16 %v41
  %v211 = vunpack.c.l.b16 %v42
  %v212 = vunpack.c.l.b16 %v43
  %v213 = vunpack.c.l.b16 %v44
  %v214 = vunpack.c.l.b16 %v45
  %v215 = vunpack.c.l.b16 %v46
  %v216 = vunpack.c.l.b16 %v47
  %v217 = vunpack.c.l.b16 %v48
  %v218 = vunpack.c.l.b16 %v49
  %v219 = vunpack.c.l.b16 %v50
  %v220 = vunpack.c.l.b16 %v51
  %v221 = vunpack.c.l.b16 %v52
  %v222 = vunpack.c.l.b16 %v53
  %v223 = vunpack.c.l.b16 %v54
  %v224 = vunpack.c.l.b16 %v55
  %v225 = vunpack.c.l.b16 %v56
  %v226 = vunpack.c.l.b16 %v57
  %v227 = vunpack.c.l.b16 %v58
  %v228 = vunpack.c.l.b16 %v59
  %v229 = vunpack.c.l.b16 %v60
  %v230 = vunpack.c.l.b16 %v61
  %v231 = vunpack.c.l.b16 %v62
  %v232 = vunpack.c.l.b16 %v63
  %v233 = vunpack.c.l.b16 %v64
  %v234 = vunpack.c.l.b16 %v65
  %v235 = vunpack.c.l.b16 %v66
  %v236 = vunpack.c.l.b16 %v67
  %v237 = vunpack.c.l.b16 %v68
  %v238 = vunpack.c.l.b16 %v69
  %v239 = vunpack.c.l.b16 %v70
  %v240 = vunpack.c.l.b16 %v71
  %v241 = vunpack.c.l.b16 %v72
  %v242 = vunpack.c.l.b16 %v73
  %v243 = vunpack.c.l.b16 %v74
  %v244 = vunpack.c.l.b16 %v75
  %v245 = vunpack.c.l.b16 %v76
  %v246 = vunpack.c.l.b16 %v77
  %v247 = vunpack.c.l.b16 %v78
  %v248 = vunpack.c.l.b16 %v79
  %v249 = vunpack.c.l.b16 %v80
  %v250 = vunpack.c.l.b16 %v81
  %v251 = vunpack.c.l.b16 %v82
  %v252 = vunpack.c.l.b16 %v83
  %v253 = vunpack.c.l.b16 %v84
  %v254 = vunpack.c.l.b16 %v85
  %v255 = vunpack.c.l.b16 %v86
  %v256 = vunpack.c.l.b16 %v87
  %v257 = vunpack.c.l.b16 %v88
  %v258 = vunpack.c.l.b16 %v89
  %v259 = vunpack.c.l.b16 %v90
  %v260 = vunpack.c.l.b16 %v91
  %v261 = vpack.c.b16 %v190, %v189
  %v262 = vpack.c.b16 %v192, %v191
  %v263 = vpack.c.b16 %v194, %v193
  %v264 = vpack.c.b16 %v196, %v195
  %v265 = vpack.c.b16 %v198, %v197
  %v266 = vpack.c.b16 %v200, %v199
  %v267 = vpack.c.b16 %v202, %v201
  %v268 = vpack.c.b16 %v204, %v203
  %v269 = vpack.c.b16 %v206, %v205
  %v270 = vpack.c.b16 %v208, %v207
  %v271 = vpack.c.b16 %v210, %v209
  %v272 = vpack.c.b16 %v212, %v211
  %v273 = vpack.c.b16 %v214, %v213
  %v274 = vpack.c.b16 %v216, %v215
  %v275 = vpack.c.b16 %v218, %v217
  %v276 = vpack.c.b16 %v220, %v219
  %v277 = vpack.c.b16 %v222, %v221
  %v278 = vpack.c.b16 %v224, %v223
  %v279 = vpack.c.b16 %v226, %v225
  %v280 = vpack.c.b16 %v228, %v227
  %v281 = vpack.c.b16 %v230, %v229
  %v282 = vpack.c.b16 %v232, %v231
  %v283 = vpack.c.b16 %v234, %v233
  %v284 = vpack.c.b16 %v236, %v235
  %v285 = vpack.c.b16 %v238, %v237
  %v286 = vpack.c.b16 %v240, %v239
  %v287 = vpack.c.b16 %v242, %v241
  %v288 = vpack.c.b16 %v244, %v243
  %v289 = vpack.c.b16 %v246, %v245
  %v290 = vpack.c.b16 %v248, %v247
  %v291 = vpack.c.b16 %v250, %v249
  %v292 = vpack.c.b16 %v252, %v251
  %v293 = vpack.c.b16 %v254, %v253
  %v294 = vpack.c.b16 %v256, %v255
  %v295 = vpack.c.b16 %v258, %v257
  %v296 = vpack.c.b16 %v260, %v259
  %vm333 = vcmask 523264
  %v335 = vsel %vm333, %v112, 0
  %337 = vmatprep.subr.bf16.mxu0 0
  %338 = vmatpush1.bf16.msra.mxu0 %v261
  %339 = vmatprep.subr.bf16.mxu0 0
  %340 = vmatpush1.bf16.msra.mxu0 %v262
  %341 = vmatprep.subr.bf16.mxu0 0
  %342 = vmatpush1.bf16.msra.mxu0 %v263
  %343 = vmatprep.subr.bf16.mxu0 0
  %344 = vmatpush1.bf16.msra.mxu0 %v264
  %345 = vmatprep.subr.bf16.mxu0 0
  %346 = vmatpush1.bf16.msra.mxu0 %v265
  %347 = vmatprep.subr.bf16.mxu0 0
  %348 = vmatpush1.bf16.msra.mxu0 %v266
  %349 = vmatprep.subr.bf16.mxu0 0
  %350 = vmatpush1.bf16.msra.mxu0 %v267
  %351 = vmatprep.subr.bf16.mxu0 0
  %352 = vmatpush1.bf16.msra.mxu0 %v268
  %353 = vmatprep.subr.bf16.mxu0 0
  %354 = vmatpush1.bf16.msra.mxu0 %v269
  %355 = vmatprep.subr.bf16.mxu0 0
  %356 = vmatpush1.bf16.msra.mxu0 %v270
  %357 = vmatprep.subr.bf16.mxu0 0
  %358 = vmatpush1.bf16.msra.mxu0 %v271
  %359 = vmatprep.subr.bf16.mxu0 0
  %360 = vmatpush1.bf16.msra.mxu0 %v272
  %361 = vmatprep.subr.bf16.mxu0 0
  %362 = vmatpush1.bf16.msra.mxu0 %v273
  %363 = vmatprep.subr.bf16.mxu0 0
  %364 = vmatpush1.bf16.msra.mxu0 %v274
  %365 = vmatprep.subr.bf16.mxu0 0
  %366 = vmatpush1.bf16.msra.mxu0 %v275
  %367 = vmatprep.subr.bf16.mxu0 0
  %368 = vmatpush1.bf16.msra.mxu0 %v276
  %369 = vmatprep.mubr.bf16.mxu0 %v109
  %370 = vmatmul.mubr.bf16.gmra.mrb[0].mxu0 %v108
  %v371 = vpop.f32.mrb[0].mxu0
  %v372 = vadd.f32 0.0, %v371
  %v373 = vpop.f32.mrb[0].mxu0
  %v374 = vpop.f32.mrb[0].mxu0
  %v375 = vadd.f32 0.0, %v374
  %v376 = vpop.f32.mrb[0].mxu0
  %377 = vdwg.mxu0
  %378 = vmatprep.subr.bf16.mxu0 0
  %379 = vmatpush1.bf16.msra.mxu0 %v277
  %380 = vmatprep.subr.bf16.mxu0 0
  %381 = vmatpush1.bf16.msra.mxu0 %v278
  %382 = vmatprep.subr.bf16.mxu0 0
  %383 = vmatpush1.bf16.msra.mxu0 %v279
  %384 = vmatprep.subr.bf16.mxu0 0
  %385 = vmatpush1.bf16.msra.mxu0 %v280
  %386 = vmatprep.subr.bf16.mxu0 0
  %387 = vmatpush1.bf16.msra.mxu0 %v281
  %388 = vmatprep.subr.bf16.mxu0 0
  %389 = vmatpush1.bf16.msra.mxu0 %v282
  %390 = vmatprep.subr.bf16.mxu0 0
  %391 = vmatpush1.bf16.msra.mxu0 %v283
  %392 = vmatprep.subr.bf16.mxu0 0
  %393 = vmatpush1.bf16.msra.mxu0 %v284
  %394 = vmatprep.subr.bf16.mxu0 0
  %395 = vmatpush1.bf16.msra.mxu0 %v285
  %396 = vmatprep.subr.bf16.mxu0 0
  %397 = vmatpush1.bf16.msra.mxu0 %v286
  %398 = vmatprep.subr.bf16.mxu0 0
  %399 = vmatpush1.bf16.msra.mxu0 %v287
  %400 = vmatprep.subr.bf16.mxu0 0
  %401 = vmatpush1.bf16.msra.mxu0 %v288
  %402 = vmatprep.subr.bf16.mxu0 0
  %403 = vmatpush1.bf16.msra.mxu0 %v289
  %404 = vmatprep.subr.bf16.mxu0 0
  %405 = vmatpush1.bf16.msra.mxu0 %v290
  %406 = vmatprep.subr.bf16.mxu0 0
  %407 = vmatpush1.bf16.msra.mxu0 %v291
  %408 = vmatprep.subr.bf16.mxu0 0
  %409 = vmatpush1.bf16.msra.mxu0 %v292
  %410 = vmatprep.mubr.bf16.mxu0 %v111
  %411 = vmatmul.mubr.bf16.gmra.mrb[0].mxu0 %v110
  %v412 = vpop.f32.mrb[0].mxu0
  %v413 = vadd.f32 %v372, %v412
  %v414 = vpop.f32.mrb[0].mxu0
  %v415 = vpop.f32.mrb[0].mxu0
  %v416 = vadd.f32 %v375, %v415
  %v417 = vpop.f32.mrb[0].mxu0
  %418 = vdwg.mxu0
  %419 = vmatprep.subr.bf16.mxu0 0
  %420 = vmatpush1.bf16.msra.mxu0 %v293
  %421 = vmatprep.subr.bf16.mxu0 0
  %422 = vmatpush1.bf16.msra.mxu0 %v294
  %423 = vmatprep.subr.bf16.mxu0 0
  %424 = vmatpush1.bf16.msra.mxu0 %v295
  %425 = vmatprep.subr.bf16.mxu0 0
  %426 = vmatpush1.bf16.msra.mxu0 %v296
  %427 = vmatprep.subr.bf16.mxu0 0
  %428 = vmatpush1.bf16.msra.mxu0 0
  %429 = vmatprep.subr.bf16.mxu0 0
  %430 = vmatpush1.bf16.msra.mxu0 0
  %431 = vmatprep.subr.bf16.mxu0 0
  %432 = vmatpush1.bf16.msra.mxu0 0
  %433 = vmatprep.subr.bf16.mxu0 0
  %434 = vmatpush1.bf16.msra.mxu0 0
  %435 = vmatprep.subr.bf16.mxu0 0
  %436 = vmatpush1.bf16.msra.mxu0 0
  %437 = vmatprep.subr.bf16.mxu0 0
  %438 = vmatpush1.bf16.msra.mxu0 0
  %439 = vmatprep.subr.bf16.mxu0 0
  %440 = vmatpush1.bf16.msra.mxu0 0
  %441 = vmatprep.subr.bf16.mxu0 0
  %442 = vmatpush1.bf16.msra.mxu0 0
  %443 = vmatprep.subr.bf16.mxu0 0
  %444 = vmatpush1.bf16.msra.mxu0 0
  %445 = vmatprep.subr.bf16.mxu0 0
  %446 = vmatpush1.bf16.msra.mxu0 0
  %447 = vmatprep.subr.bf16.mxu0 0
  %448 = vmatpush1.bf16.msra.mxu0 0
  %449 = vmatprep.subr.bf16.mxu0 0
  %450 = vmatpush1.bf16.msra.mxu0 0
  %451 = vmatprep.mubr.bf16.mxu0 0
  %452 = vmatmul.mubr.bf16.gmra.mrb[0].mxu0 %v335
  %v453 = vpop.f32.mrb[0].mxu0
  %v454 = vadd.f32 %v413, %v453
  %v455 = vpop.f32.mrb[0].mxu0
  %v456 = vpop.f32.mrb[0].mxu0
  %v457 = vadd.f32 %v416, %v456
  %v458 = vpop.f32.mrb[0].mxu0
  %459 = vdwg.mxu0
  %v460 = vpack.c.bf16 %v457, %v454
  %v462 = vunpack.c.l.b16 %v460
  %v463 = vunpack.c.h.b16 %v460
  %v464 = vpack.c.b16 %v462, %v462
  %v465 = vpack.c.b16 %v463, %v463
  %468 = vst [vmem:[%s2] sm:$0xf] %v464
  %469 = vst [vmem:[%s2 + $0x4] sm:$0xf] %v465
  %v470 = vadd.f32 %v454, %v457
  %v471 = vrot.slane %v470, 4
  %v472 = vadd.f32 %v470, %v471
  %v473 = vrot.slane %v472, 2
  %v474 = vadd.f32 %v472, %v473
  %v475 = vrot.slane %v474, 1
  %v476 = vadd.f32 %v474, %v475
  %v477 = vmul.f32 %v454, %v454
  %v478 = vmul.f32 %v457, %v457
  %v479 = vadd.f32 %v477, %v478
  %v480 = vrot.slane %v479, 4
  %v481 = vadd.f32 %v479, %v480
  %v482 = vrot.slane %v481, 2
  %v483 = vadd.f32 %v481, %v482
  %v484 = vrot.slane %v483, 1
  %v485 = vadd.f32 %v483, %v484
  %vm486 = vcmask 1040384
  %v487 = vsel %vm486, %v476, %v485
  %488 = vst [vmem:[%s3] sm:$0x3] %v487
  // Predicated region
  $region10: #{generator_forward.21} parent=0 // pred_check
    _
  $region11: #{generator_forward.21} parent=0 // pred_check_branch
    %490 = sbr.rel (0) target = $region13
  $region12: #{generator_forward.21} parent=0 // pred_region
    _
  $region13: #{generator_forward.21} parent=0 // pred_fallthru
    _
  // Predicated region
  $region14: #{generator_forward.21} parent=0 // pred_check
    _
  $region15: #{generator_forward.21} parent=0 // pred_check_branch
    %492 = sbr.rel (0) target = $region17
  $region16: #{generator_forward.21} parent=0 // pred_region
    _
  $region17: #{generator_forward.21} parent=0 // pred_fallthru
    _
  // Predicated region
  $region18: #{generator_forward.21} parent=0 // pred_check
    _
  $region19: #{generator_forward.21} parent=0 // pred_check_branch
    %494 = sbr.rel (0) target = $region21
  $region20: #{generator_forward.21} parent=0 // pred_region
    _
  $region21: #{generator_forward.21} parent=0 // pred_fallthru
    _
  // Predicated region
  $region22: #{generator_forward.21} parent=0 // pred_check
    _
  $region23: #{generator_forward.21} parent=0 // pred_check_branch
    %496 = sbr.rel (0) target = $region25
  $region24: #{generator_forward.21} parent=0 // pred_region
    _
  $region25: #{generator_forward.21} parent=0 // pred_fallthru
    _

// kernel: squeeze.150
$region0: #{squeeze.150}
  %s0 = inlined_call_operand.vmem [shape: f32[128], index: 0, kind: input, shape index: {}]
  %s1 = inlined_call_operand.vmem [shape: f32[4,32], index: 1, kind: output, shape index: {}]
  $region1: #{squeeze.150} parent=0
    #allocation0 [shape = 'u8[4096]{0}', space=vmem, size = 0x1000, scoped, tag = 'scoped mem for output reshape']
    #allocation1 [shape = 'u8[4096]{0}', space=vmem, size = 0x1000, scoped, tag = 'scoped mem for input reshape']
    %s3 = sshllo.u32 0, 1
    %v4 = vld [vmem:[%s0] sm:%s3]
    %5 = vst [vmem:[#allocation1] sm:%s3] %v4
    %v6 = vld [vmem:[#allocation1] sm:$0x1]
    %vm7 = vcmask 261120
    %8 = vst.msk [vmem:[#allocation0] sm:$0x1] %vm7, %v6
    %v9 = vld [vmem:[#allocation1] sm:$0x1]
    %10 = vrot.lane.b32.xlu0 %v9, 96
    %v11 = vpop.permute.xlu0 %10
    %vm12 = vcmask 261120
    %s13 = scalar_lea.vmem [#allocation0], 1
    %14 = vst.msk [vmem:[%s13] sm:$0x1] %vm12, %v11
    %v15 = vld [vmem:[#allocation1] sm:$0x1]
    %16 = vrot.lane.b32.xlu0 %v15, 64
    %v17 = vpop.permute.xlu0 %16
    %vm18 = vcmask 261120
    %s19 = scalar_lea.vmem [#allocation0], 2
    %20 = vst.msk [vmem:[%s19] sm:$0x1] %vm18, %v17
    %v21 = vld [vmem:[#allocation1] sm:$0x1]
    %22 = vrot.lane.b32.xlu0 %v21, 32
    %v23 = vpop.permute.xlu0 %22
    %vm24 = vcmask 261120
    %s25 = scalar_lea.vmem [#allocation0], 3
    %26 = vst.msk [vmem:[%s25] sm:$0x1] %vm24, %v23
    %s28 = sshllo.u32 0, 4
    %v30 = vld [vmem:[#allocation0] sm:%s28]
    %s31 = sshllo.u32 0, 4
    %32 = vst [vmem:[%s1] sm:%s31] %v30

// kernel: tile.117
$region0: #{tile.117}
  #allocation0 [shape = 's32[1]{0}', space=sflag, size = 0x4, scoped, tag = 'scoped memory for tile.117']
  %s0 = inlined_call_operand.vmem [shape: f32[32], index: 0, kind: input, shape index: {}]
  %s1 = inlined_call_operand.vmem [shape: f32[4,32], index: 1, kind: output, shape index: {}]
  // Predicated region
  $region2: #{tile.117} parent=0 // pred_check
    _
  $region3: #{tile.117} parent=0 // pred_check_branch
    %3 = sbr.rel (0) target = $region5
  $region4: #{tile.117} parent=0 // pred_region
    _
  $region5: #{tile.117} parent=0 // pred_fallthru
    _
  %v4 = vld [vmem:[%s0] ss:$0 sm:$0xff]
  %5 = vst [vmem:[%s1] sm:$0xf] %v4

// kernel: tile.124
$region0: #{tile.124}
  %s0 = inlined_call_operand.vmem [shape: f32[4,32], index: 0, kind: input, shape index: {}]
  %s1 = inlined_call_operand.vmem [shape: f32[128], index: 1, kind: output, shape index: {}]
  $region1: #{tile.124} parent=0
    #allocation0 [shape = 'u8[4096]{0}', space=vmem, size = 0x1000, scoped, tag = 'scoped mem for output reshape']
    #allocation1 [shape = 'u8[4096]{0}', space=vmem, size = 0x1000, scoped, tag = 'scoped mem for input reshape']
    %s3 = sshllo.u32 0, 4
    %v4 = vld [vmem:[%s0] sm:%s3]
    %5 = vst [vmem:[#allocation1] sm:%s3] %v4
    %v6 = vld [vmem:[#allocation1] sm:$0x1]
    %vm7 = vcmask 261120
    %8 = vst.msk [vmem:[#allocation0] sm:$0x1] %vm7, %v6
    %s9 = scalar_lea.vmem [#allocation1], 3
    %v10 = vld [vmem:[%s9] sm:$0x1]
    %11 = vrot.lane.b32.xlu0 %v10, 96
    %v12 = vpop.permute.xlu0 %11
    %vm13 = vcmask 1048320
    %14 = vst.msk [vmem:[#allocation0] sm:$0x1] %vm13, %v12
    %s15 = scalar_lea.vmem [#allocation1], 2
    %v16 = vld [vmem:[%s15] sm:$0x1]
    %17 = vrot.lane.b32.xlu0 %v16, 64
    %v18 = vpop.permute.xlu0 %17
    %vm19 = vcmask 785920
    %20 = vst.msk [vmem:[#allocation0] sm:$0x1] %vm19, %v18
    %s21 = scalar_lea.vmem [#allocation1], 1
    %v22 = vld [vmem:[%s21] sm:$0x1]
    %23 = vrot.lane.b32.xlu0 %v22, 32
    %v24 = vpop.permute.xlu0 %23
    %vm25 = vcmask 523520
    %26 = vst.msk [vmem:[#allocation0] sm:$0x1] %vm25, %v24
    %s28 = sshllo.u32 0, 1
    %v30 = vld [vmem:[#allocation0] sm:%s28]
    %s31 = sshllo.u32 0, 1
    %32 = vst [vmem:[%s1] sm:%s31] %v30

// kernel: tile.125
$region0: #{tile.125}
  #allocation0 [shape = 's32[1]{0}', space=sflag, size = 0x4, scoped, tag = 'scoped memory for tile.125']
  %s0 = inlined_call_operand.vmem [shape: f32[128], index: 0, kind: input, shape index: {}]
  %s1 = inlined_call_operand.vmem [shape: f32[4,128], index: 1, kind: output, shape index: {}]
  // Predicated region
  $region2: #{tile.125} parent=0 // pred_check
    _
  $region3: #{tile.125} parent=0 // pred_check_branch
    %3 = sbr.rel (0) target = $region5
  $region4: #{tile.125} parent=0 // pred_region
    _
  $region5: #{tile.125} parent=0 // pred_fallthru
    _
  %v4 = vld [vmem:[%s0] ss:$0 sm:$0xff]
  %5 = vst [vmem:[%s1] sm:$0xf] %v4

// kernel: generator_forward.22
$region0: #{generator_forward.22}
  #allocation0 [shape = 'u32[]', space=smem, size = 0x4, offset = 0x4, fixed_abs, tag = 'smem constant byte address 0x4 - core index']
  #allocation1 [shape = 'u32[144,128]{1,0:T(1,128)}', space=vmem, size = 0x12000, scoped, tag = 'internal scratch']
  %s0 = inlined_call_operand.vmem [shape: bf16[16,512], index: 0, kind: input, shape index: {}]
  %s1 = inlined_call_operand.vmem [shape: f32[1,512], index: 1, kind: input, shape index: {}]
  %s2 = inlined_call_operand.vmem [shape: f32[1,512], index: 2, kind: input, shape index: {}]
  %s3 = inlined_call_operand.vmem [shape: bf16[16,512], index: 3, kind: output, shape index: {}]
  %s4 = sld [smem:[#allocation0]]
  $region22: #{generator_forward.22} parent=0
    _
  %s6 = ssub.s32 1, %s4
  %s7 = scalar_select 0, %s6, %s4
  // Predicated region
  $region2: #{generator_forward.22} parent=0 // pred_check
    _
  $region3: #{generator_forward.22} parent=0 // pred_check_branch
    %9 = sbr.rel (0) target = $region5
  $region4: #{generator_forward.22} parent=0 // pred_region
    _
  $region5: #{generator_forward.22} parent=0 // pred_fallthru
    _
  // Predicated region
  $region6: #{generator_forward.22} parent=0 // pred_check
    _
  $region7: #{generator_forward.22} parent=0 // pred_check_branch
    %11 = sbr.rel (0) target = $region9
  $region8: #{generator_forward.22} parent=0 // pred_region
    _
  $region9: #{generator_forward.22} parent=0 // pred_fallthru
    _
  // Predicated region
  $region10: #{generator_forward.22} parent=0 // pred_check
    _
  $region11: #{generator_forward.22} parent=0 // pred_check_branch
    %13 = sbr.rel (0) target = $region13
  $region12: #{generator_forward.22} parent=0 // pred_region
    _
  $region13: #{generator_forward.22} parent=0 // pred_fallthru
    _
  %v14 = vld [vmem:[%s0] sm:$0xff]
  %v15 = vld [vmem:[%s0 + $0x8] sm:$0xff]
  %v16 = vld [vmem:[%s0 + $0x10] sm:$0xff]
  %v17 = vld [vmem:[%s0 + $0x18] sm:$0xff]
  %v18 = vunpack.c.l.bf16 %v14
  %v19 = vunpack.c.h.bf16 %v14
  %v20 = vunpack.c.l.bf16 %v15
  %v21 = vunpack.c.h.bf16 %v15
  %v22 = vunpack.c.l.bf16 %v16
  %v23 = vunpack.c.h.bf16 %v16
  %v24 = vunpack.c.l.bf16 %v17
  %v25 = vunpack.c.h.bf16 %v17
  %v26 = vld [vmem:[%s1] sm:$0xf]
  %v28 = vlaneseq
  %v29 = vshrl.u32 %v28, 7
  %v30 = vsub.s32 0, %v29
  %v31 = vrot.slane %v26, %v30
  %v32 = vlaneseq
  %v33 = vshrl.u32 %v32, 7
  %v34 = vsub.s32 1, %v33
  %v35 = vrot.slane %v26, %v34
  %v36 = vlaneseq
  %v37 = vshrl.u32 %v36, 7
  %v38 = vsub.s32 2, %v37
  %v39 = vrot.slane %v26, %v38
  %v40 = vlaneseq
  %v41 = vshrl.u32 %v40, 7
  %v42 = vsub.s32 3, %v41
  %v43 = vrot.slane %v26, %v42
  %v48 = vmul.f32 %v18, %v31
  %v49 = vmul.f32 %v19, %v35
  %v50 = vmul.f32 %v20, %v39
  %v51 = vmul.f32 %v21, %v43
  %v52 = vmul.f32 %v22, %v31
  %v53 = vmul.f32 %v23, %v35
  %v54 = vmul.f32 %v24, %v39
  %v55 = vmul.f32 %v25, %v43
  %v56 = vld [vmem:[%s2] sm:$0xf]
  %v58 = vlaneseq
  %v59 = vshrl.u32 %v58, 7
  %v60 = vsub.s32 0, %v59
  %v61 = vrot.slane %v56, %v60
  %v62 = vlaneseq
  %v63 = vshrl.u32 %v62, 7
  %v64 = vsub.s32 1, %v63
  %v65 = vrot.slane %v56, %v64
  %v66 = vlaneseq
  %v67 = vshrl.u32 %v66, 7
  %v68 = vsub.s32 2, %v67
  %v69 = vrot.slane %v56, %v68
  %v70 = vlaneseq
  %v71 = vshrl.u32 %v70, 7
  %v72 = vsub.s32 3, %v71
  %v73 = vrot.slane %v56, %v72
  %v78 = vadd.f32 %v48, %v61
  %v79 = vadd.f32 %v49, %v65
  %v80 = vadd.f32 %v50, %v69
  %v81 = vadd.f32 %v51, %v73
  %v82 = vadd.f32 %v52, %v61
  %v83 = vadd.f32 %v53, %v65
  %v84 = vadd.f32 %v54, %v69
  %v85 = vadd.f32 %v55, %v73
  %v86 = vmax.f32 %v78, 0.0
  %v87 = vmax.f32 %v79, 0.0
  %v88 = vmax.f32 %v80, 0.0
  %v89 = vmax.f32 %v81, 0.0
  %v90 = vmax.f32 %v82, 0.0
  %v91 = vmax.f32 %v83, 0.0
  %v92 = vmax.f32 %v84, 0.0
  %v93 = vmax.f32 %v85, 0.0
  %v94 = vpack.c.bf16 %v90, %v86
  %v95 = vpack.c.bf16 %v91, %v87
  %v96 = vpack.c.bf16 %v92, %v88
  %v97 = vpack.c.bf16 %v93, %v89
  %v102 = vunpack.c.l.b16 %v94
  %v103 = vunpack.c.l.b16 %v95
  %v104 = vunpack.c.l.b16 %v96
  %v105 = vunpack.c.l.b16 %v97
  %v106 = vunpack.c.h.b16 %v94
  %v107 = vunpack.c.h.b16 %v95
  %v108 = vunpack.c.h.b16 %v96
  %v109 = vunpack.c.h.b16 %v97
  %v110 = vpack.c.b16 %v103, %v102
  %v111 = vpack.c.b16 %v105, %v104
  %v112 = vpack.c.b16 %v107, %v106
  %v113 = vpack.c.b16 %v109, %v108
  %118 = vst [vmem:[%s3] sm:$0xff] %v110
  %119 = vst [vmem:[%s3 + $0x8] sm:$0xff] %v111
  %120 = vst [vmem:[%s3 + $0x10] sm:$0xff] %v112
  %121 = vst [vmem:[%s3 + $0x18] sm:$0xff] %v113
  // Predicated region
  $region14: #{generator_forward.22} parent=0 // pred_check
    _
  $region15: #{generator_forward.22} parent=0 // pred_check_branch
    %123 = sbr.rel (0) target = $region17
  $region16: #{generator_forward.22} parent=0 // pred_region
    _
  $region17: #{generator_forward.22} parent=0 // pred_fallthru
    _
  // Predicated region
  $region18: #{generator_forward.22} parent=0 // pred_check
    _
  $region19: #{generator_forward.22} parent=0 // pred_check_branch
    %125 = sbr.rel (0) target = $region21
  $region20: #{generator_forward.22} parent=0 // pred_region
    _
  $region21: #{generator_forward.22} parent=0 // pred_fallthru
    _

// kernel: squeeze.152
$region0: #{squeeze.152}
  %s0 = inlined_call_operand.vmem [shape: f32[64], index: 0, kind: input, shape index: {}]
  %s1 = inlined_call_operand.vmem [shape: f32[4,16], index: 1, kind: output, shape index: {}]
  $region1: #{squeeze.152} parent=0
    #allocation0 [shape = 'u8[4096]{0}', space=vmem, size = 0x1000, scoped, tag = 'scoped mem for output reshape']
    #allocation1 [shape = 'u8[4096]{0}', space=vmem, size = 0x1000, scoped, tag = 'scoped mem for input reshape']
    %s3 = sshllo.u32 0, 1
    %v4 = vld [vmem:[%s0] sm:%s3]
    %5 = vst [vmem:[#allocation1] sm:%s3] %v4
    %v6 = vld [vmem:[#allocation1] sm:$0x1]
    %vm7 = vcmask 130048
    %8 = vst.msk [vmem:[#allocation0] sm:$0x1] %vm7, %v6
    %v9 = vld [vmem:[#allocation1] sm:$0x1]
    %10 = vrot.lane.b32.xlu0 %v9, 112
    %v11 = vpop.permute.xlu0 %10
    %vm12 = vcmask 130048
    %s13 = scalar_lea.vmem [#allocation0], 1
    %14 = vst.msk [vmem:[%s13] sm:$0x1] %vm12, %v11
    %v15 = vld [vmem:[#allocation1] sm:$0x1]
    %16 = vrot.lane.b32.xlu0 %v15, 96
    %v17 = vpop.permute.xlu0 %16
    %vm18 = vcmask 130048
    %s19 = scalar_lea.vmem [#allocation0], 2
    %20 = vst.msk [vmem:[%s19] sm:$0x1] %vm18, %v17
    %v21 = vld [vmem:[#allocation1] sm:$0x1]
    %22 = vrot.lane.b32.xlu0 %v21, 80
    %v23 = vpop.permute.xlu0 %22
    %vm24 = vcmask 130048
    %s25 = scalar_lea.vmem [#allocation0], 3
    %26 = vst.msk [vmem:[%s25] sm:$0x1] %vm24, %v23
    %s28 = sshllo.u32 0, 4
    %v30 = vld [vmem:[#allocation0] sm:%s28]
    %s31 = sshllo.u32 0, 4
    %32 = vst [vmem:[%s1] sm:%s31] %v30

// kernel: generator_forward.23
$region0: #{generator_forward.23}
  #allocation0 [shape = 'u32[]', space=smem, size = 0x4, offset = 0x4, fixed_abs, tag = 'smem constant byte address 0x4 - core index']
  #allocation1 [shape = 'u32[144,128]{1,0:T(1,128)}', space=vmem, size = 0x12000, scoped, tag = 'internal scratch']
  %s0 = inlined_call_operand.vmem [shape: bf16[32,288], index: 0, kind: input, shape index: {}]
  %s1 = inlined_call_operand.vmem [shape: bf16[288,64], index: 1, kind: input, shape index: {}]
  %s2 = inlined_call_operand.vmem [shape: bf16[32,64], index: 2, kind: output, shape index: {0}]
  %s3 = inlined_call_operand.vmem [shape: f32[1,2,64], index: 3, kind: output, shape index: {1}]
  %4 = xla_tuple %s2, %s3
  %s5 = sld [smem:[#allocation0]]
  $region26: #{generator_forward.23} parent=0
    _
  %s7 = ssub.s32 1, %s5
  %s8 = scalar_select 0, %s7, %s5
  // Predicated region
  $region2: #{generator_forward.23} parent=0 // pred_check
    _
  $region3: #{generator_forward.23} parent=0 // pred_check_branch
    %10 = sbr.rel (0) target = $region5
  $region4: #{generator_forward.23} parent=0 // pred_region
    _
  $region5: #{generator_forward.23} parent=0 // pred_fallthru
    _
  // Predicated region
  $region6: #{generator_forward.23} parent=0 // pred_check
    _
  $region7: #{generator_forward.23} parent=0 // pred_check_branch
    %12 = sbr.rel (0) target = $region9
  $region8: #{generator_forward.23} parent=0 // pred_region
    _
  $region9: #{generator_forward.23} parent=0 // pred_fallthru
    _
  %v14 = vld [vmem:[%s0] sm:$0xff]
  %v15 = vld [vmem:[%s0 + $0x8] sm:$0xf]
  %v16 = vld [vmem:[%s0 + $0xc] sm:$0xff]
  %v17 = vld [vmem:[%s0 + $0x14] sm:$0xf]
  %v18 = vld [vmem:[%s0 + $0x18] sm:$0xff]
  %v19 = vld [vmem:[%s0 + $0x20] sm:$0xf]
  %v20 = vld [vmem:[%s0 + $0x24] sm:$0xff]
  %v21 = vld [vmem:[%s0 + $0x2c] sm:$0xf]
  %v22 = vld [vmem:[%s1] sm:$0xf]
  %v23 = vld [vmem:[%s1 + $0x4] sm:$0xf]
  %v24 = vld [vmem:[%s1 + $0x8] sm:$0xf]
  %v25 = vld [vmem:[%s1 + $0xc] sm:$0xf]
  %v26 = vld [vmem:[%s1 + $0x10] sm:$0xf]
  %v27 = vld [vmem:[%s1 + $0x14] sm:$0xf]
  %v28 = vld [vmem:[%s1 + $0x18] sm:$0xf]
  %v29 = vld [vmem:[%s1 + $0x1c] sm:$0xf]
  %v30 = vld [vmem:[%s1 + $0x20] sm:$0xf]
  %v31 = vld [vmem:[%s1 + $0x24] sm:$0xf]
  %v32 = vld [vmem:[%s1 + $0x28] sm:$0xf]
  %v33 = vld [vmem:[%s1 + $0x2c] sm:$0xf]
  %v34 = vld [vmem:[%s1 + $0x30] sm:$0xf]
  %v35 = vld [vmem:[%s1 + $0x34] sm:$0xf]
  %v36 = vld [vmem:[%s1 + $0x38] sm:$0xf]
  %v37 = vld [vmem:[%s1 + $0x3c] sm:$0xf]
  %v38 = vld [vmem:[%s1 + $0x40] sm:$0xf]
  %v39 = vld [vmem:[%s1 + $0x44] sm:$0xf]
  %v40 = vld [vmem:[%s1 + $0x48] sm:$0xf]
  %v41 = vld [vmem:[%s1 + $0x4c] sm:$0xf]
  %v42 = vld [vmem:[%s1 + $0x50] sm:$0xf]
  %v43 = vld [vmem:[%s1 + $0x54] sm:$0xf]
  %v44 = vld [vmem:[%s1 + $0x58] sm:$0xf]
  %v45 = vld [vmem:[%s1 + $0x5c] sm:$0xf]
  %v46 = vld [vmem:[%s1 + $0x60] sm:$0xf]
  %v47 = vld [vmem:[%s1 + $0x64] sm:$0xf]
  %v48 = vld [vmem:[%s1 + $0x68] sm:$0xf]
  %v49 = vld [vmem:[%s1 + $0x6c] sm:$0xf]
  %v50 = vld [vmem:[%s1 + $0x70] sm:$0xf]
  %v51 = vld [vmem:[%s1 + $0x74] sm:$0xf]
  %v52 = vld [vmem:[%s1 + $0x78] sm:$0xf]
  %v53 = vld [vmem:[%s1 + $0x7c] sm:$0xf]
  %v54 = vld [vmem:[%s1 + $0x80] sm:$0xf]
  %v55 = vld [vmem:[%s1 + $0x84] sm:$0xf]
  %v56 = vld [vmem:[%s1 + $0x88] sm:$0xf]
  %v57 = vld [vmem:[%s1 + $0x8c] sm:$0xf]
  %v66 = vunpack.c.l.b16 %v14
  %v67 = vunpack.c.h.b16 %v14
  %v68 = vunpack.c.l.b16 %v15
  %v69 = vunpack.c.l.b16 %v16
  %v70 = vunpack.c.h.b16 %v16
  %v71 = vunpack.c.l.b16 %v17
  %v72 = vunpack.c.l.b16 %v18
  %v73 = vunpack.c.h.b16 %v18
  %v74 = vunpack.c.l.b16 %v19
  %v75 = vunpack.c.l.b16 %v20
  %v76 = vunpack.c.h.b16 %v20
  %v77 = vunpack.c.l.b16 %v21
  %v78 = vpack.c.b16 %v69, %v66
  %v79 = vpack.c.b16 %v70, %v67
  %v80 = vpack.c.b16 %v71, %v68
  %v81 = vpack.c.b16 %v75, %v72
  %v82 = vpack.c.b16 %v76, %v73
  %v83 = vpack.c.b16 %v77, %v74
  %v124 = vunpack.c.l.b16 %v22
  %v125 = vunpack.c.l.b16 %v23
  %v126 = vunpack.c.l.b16 %v24
  %v127 = vunpack.c.l.b16 %v25
  %v128 = vunpack.c.l.b16 %v26
  %v129 = vunpack.c.l.b16 %v27
  %v130 = vunpack.c.l.b16 %v28
  %v131 = vunpack.c.l.b16 %v29
  %v132 = vunpack.c.l.b16 %v30
  %v133 = vunpack.c.l.b16 %v31
  %v134 = vunpack.c.l.b16 %v32
  %v135 = vunpack.c.l.b16 %v33
  %v136 = vunpack.c.l.b16 %v34
  %v137 = vunpack.c.l.b16 %v35
  %v138 = vunpack.c.l.b16 %v36
  %v139 = vunpack.c.l.b16 %v37
  %v140 = vunpack.c.l.b16 %v38
  %v141 = vunpack.c.l.b16 %v39
  %v142 = vunpack.c.l.b16 %v40
  %v143 = vunpack.c.l.b16 %v41
  %v144 = vunpack.c.l.b16 %v42
  %v145 = vunpack.c.l.b16 %v43
  %v146 = vunpack.c.l.b16 %v44
  %v147 = vunpack.c.l.b16 %v45
  %v148 = vunpack.c.l.b16 %v46
  %v149 = vunpack.c.l.b16 %v47
  %v150 = vunpack.c.l.b16 %v48
  %v151 = vunpack.c.l.b16 %v49
  %v152 = vunpack.c.l.b16 %v50
  %v153 = vunpack.c.l.b16 %v51
  %v154 = vunpack.c.l.b16 %v52
  %v155 = vunpack.c.l.b16 %v53
  %v156 = vunpack.c.l.b16 %v54
  %v157 = vunpack.c.l.b16 %v55
  %v158 = vunpack.c.l.b16 %v56
  %v159 = vunpack.c.l.b16 %v57
  %v160 = vpack.c.b16 %v125, %v124
  %v161 = vpack.c.b16 %v127, %v126
  %v162 = vpack.c.b16 %v129, %v128
  %v163 = vpack.c.b16 %v131, %v130
  %v164 = vpack.c.b16 %v133, %v132
  %v165 = vpack.c.b16 %v135, %v134
  %v166 = vpack.c.b16 %v137, %v136
  %v167 = vpack.c.b16 %v139, %v138
  %v168 = vpack.c.b16 %v141, %v140
  %v169 = vpack.c.b16 %v143, %v142
  %v170 = vpack.c.b16 %v145, %v144
  %v171 = vpack.c.b16 %v147, %v146
  %v172 = vpack.c.b16 %v149, %v148
  %v173 = vpack.c.b16 %v151, %v150
  %v174 = vpack.c.b16 %v153, %v152
  %v175 = vpack.c.b16 %v155, %v154
  %v176 = vpack.c.b16 %v157, %v156
  %v177 = vpack.c.b16 %v159, %v158
  %vm196 = vcmask 261120
  %v198 = vsel %vm196, %v80, 0
  %v201 = vsel %vm196, %v83, 0
  %203 = vmatprep.subr.bf16.mxu0 0
  %204 = vmatpush1.bf16.msra.mxu0 %v160
  %205 = vmatprep.subr.bf16.mxu0 0
  %206 = vmatpush1.bf16.msra.mxu0 %v161
  %207 = vmatprep.subr.bf16.mxu0 0
  %208 = vmatpush1.bf16.msra.mxu0 %v162
  %209 = vmatprep.subr.bf16.mxu0 0
  %210 = vmatpush1.bf16.msra.mxu0 %v163
  %211 = vmatprep.subr.bf16.mxu0 0
  %212 = vmatpush1.bf16.msra.mxu0 %v164
  %213 = vmatprep.subr.bf16.mxu0 0
  %214 = vmatpush1.bf16.msra.mxu0 %v165
  %215 = vmatprep.subr.bf16.mxu0 0
  %216 = vmatpush1.bf16.msra.mxu0 %v166
  %217 = vmatprep.subr.bf16.mxu0 0
  %218 = vmatpush1.bf16.msra.mxu0 %v167
  %219 = vmatprep.subr.bf16.mxu0 0
  %220 = vmatpush1.bf16.msra.mxu0 %v168
  %221 = vmatprep.subr.bf16.mxu0 0
  %222 = vmatpush1.bf16.msra.mxu0 %v169
  %223 = vmatprep.subr.bf16.mxu0 0
  %224 = vmatpush1.bf16.msra.mxu0 %v170
  %225 = vmatprep.subr.bf16.mxu0 0
  %226 = vmatpush1.bf16.msra.mxu0 %v171
  %227 = vmatprep.subr.bf16.mxu0 0
  %228 = vmatpush1.bf16.msra.mxu0 %v172
  %229 = vmatprep.subr.bf16.mxu0 0
  %230 = vmatpush1.bf16.msra.mxu0 %v173
  %231 = vmatprep.subr.bf16.mxu0 0
  %232 = vmatpush1.bf16.msra.mxu0 %v174
  %233 = vmatprep.subr.bf16.mxu0 0
  %234 = vmatpush1.bf16.msra.mxu0 %v175
  %235 = vmatprep.mubr.bf16.mxu0 %v79
  %236 = vmatmul.mubr.bf16.gmra.mrb[0].mxu0 %v78
  %v237 = vpop.f32.mrb[0].mxu0
  %v238 = vadd.f32 0.0, %v237
  %v239 = vpop.f32.mrb[0].mxu0
  %v240 = vpop.f32.mrb[0].mxu0
  %v241 = vadd.f32 0.0, %v240
  %v242 = vpop.f32.mrb[0].mxu0
  %243 = vmatprep.mubr.bf16.mxu0 %v82
  %244 = vmatmul.mubr.bf16.gmra.mrb[0].mxu0 %v81
  %v245 = vpop.f32.mrb[0].mxu0
  %v246 = vadd.f32 0.0, %v245
  %v247 = vpop.f32.mrb[0].mxu0
  %v248 = vpop.f32.mrb[0].mxu0
  %v249 = vadd.f32 0.0, %v248
  %v250 = vpop.f32.mrb[0].mxu0
  %251 = vdwg.mxu0
  %252 = vmatprep.subr.bf16.mxu0 0
  %253 = vmatpush1.bf16.msra.mxu0 %v176
  %254 = vmatprep.subr.bf16.mxu0 0
  %255 = vmatpush1.bf16.msra.mxu0 %v177
  %256 = vmatprep.subr.bf16.mxu0 0
  %257 = vmatpush1.bf16.msra.mxu0 0
  %258 = vmatprep.subr.bf16.mxu0 0
  %259 = vmatpush1.bf16.msra.mxu0 0
  %260 = vmatprep.subr.bf16.mxu0 0
  %261 = vmatpush1.bf16.msra.mxu0 0
  %262 = vmatprep.subr.bf16.mxu0 0
  %263 = vmatpush1.bf16.msra.mxu0 0
  %264 = vmatprep.subr.bf16.mxu0 0
  %265 = vmatpush1.bf16.msra.mxu0 0
  %266 = vmatprep.subr.bf16.mxu0 0
  %267 = vmatpush1.bf16.msra.mxu0 0
  %268 = vmatprep.subr.bf16.mxu0 0
  %269 = vmatpush1.bf16.msra.mxu0 0
  %270 = vmatprep.subr.bf16.mxu0 0
  %271 = vmatpush1.bf16.msra.mxu0 0
  %272 = vmatprep.subr.bf16.mxu0 0
  %273 = vmatpush1.bf16.msra.mxu0 0
  %274 = vmatprep.subr.bf16.mxu0 0
  %275 = vmatpush1.bf16.msra.mxu0 0
  %276 = vmatprep.subr.bf16.mxu0 0
  %277 = vmatpush1.bf16.msra.mxu0 0
  %278 = vmatprep.subr.bf16.mxu0 0
  %279 = vmatpush1.bf16.msra.mxu0 0
  %280 = vmatprep.subr.bf16.mxu0 0
  %281 = vmatpush1.bf16.msra.mxu0 0
  %282 = vmatprep.subr.bf16.mxu0 0
  %283 = vmatpush1.bf16.msra.mxu0 0
  %284 = vmatprep.mubr.bf16.mxu0 0
  %285 = vmatmul.mubr.bf16.gmra.mrb[0].mxu0 %v198
  %v286 = vpop.f32.mrb[0].mxu0
  %v287 = vadd.f32 %v238, %v286
  %v288 = vpop.f32.mrb[0].mxu0
  %v289 = vpop.f32.mrb[0].mxu0
  %v290 = vadd.f32 %v241, %v289
  %v291 = vpop.f32.mrb[0].mxu0
  %292 = vmatprep.mubr.bf16.mxu0 0
  %293 = vmatmul.mubr.bf16.gmra.mrb[0].mxu0 %v201
  %v294 = vpop.f32.mrb[0].mxu0
  %v295 = vadd.f32 %v246, %v294
  %v296 = vpop.f32.mrb[0].mxu0
  %v297 = vpop.f32.mrb[0].mxu0
  %v298 = vadd.f32 %v249, %v297
  %v299 = vpop.f32.mrb[0].mxu0
  %300 = vdwg.mxu0
  %v301 = vpack.c.bf16 %v290, %v287
  %v302 = vpack.c.bf16 %v298, %v295
  %v305 = vunpack.c.l.b16 %v301
  %v306 = vunpack.c.h.b16 %v301
  %v307 = vunpack.c.l.b16 %v302
  %v308 = vunpack.c.h.b16 %v302
  %v309 = vpack.c.b16 %v305, %v305
  %v310 = vpack.c.b16 %v306, %v306
  %v311 = vpack.c.b16 %v307, %v307
  %v312 = vpack.c.b16 %v308, %v308
  %vm317 = vcmask 519168
  %318 = vst.msk [vmem:[%s2] sm:$0xf] %vm317, %v309
  %319 = vst.msk [vmem:[%s2 + $0x4] sm:$0xf] %vm317, %v310
  %320 = vst.msk [vmem:[%s2 + $0x8] sm:$0xf] %vm317, %v311
  %321 = vst.msk [vmem:[%s2 + $0xc] sm:$0xf] %vm317, %v312
  %vm322 = vcmask 523264
  %v323 = vsel %vm322, %v287, 0.0
  %v324 = vsel %vm322, %v290, 0.0
  %v325 = vadd.f32 %v323, %v324
  %v326 = vsel %vm322, %v295, 0.0
  %v327 = vadd.f32 %v325, %v326
  %v328 = vsel %vm322, %v298, 0.0
  %v329 = vadd.f32 %v327, %v328
  %v330 = vrot.slane %v329, 4
  %v331 = vadd.f32 %v329, %v330
  %v332 = vrot.slane %v331, 2
  %v333 = vadd.f32 %v331, %v332
  %v334 = vrot.slane %v333, 1
  %v335 = vadd.f32 %v333, %v334
  %v336 = vmul.f32 %v287, %v287
  %v337 = vmul.f32 %v290, %v290
  %v338 = vmul.f32 %v295, %v295
  %v339 = vmul.f32 %v298, %v298
  %v340 = vsel %vm322, %v336, 0.0
  %v341 = vsel %vm322, %v337, 0.0
  %v342 = vadd.f32 %v340, %v341
  %v343 = vsel %vm322, %v338, 0.0
  %v344 = vadd.f32 %v342, %v343
  %v345 = vsel %vm322, %v339, 0.0
  %v346 = vadd.f32 %v344, %v345
  %v347 = vrot.slane %v346, 4
  %v348 = vadd.f32 %v346, %v347
  %v349 = vrot.slane %v348, 2
  %v350 = vadd.f32 %v348, %v349
  %v351 = vrot.slane %v350, 1
  %v352 = vadd.f32 %v350, %v351
  %vm353 = vcmask 1040384
  %v354 = vsel %vm353, %v335, %v352
  %vm355 = vcmask 517120
  %356 = vst.msk [vmem:[%s3] sm:$0x3] %vm355, %v354
  // Predicated region
  $region10: #{generator_forward.23} parent=0 // pred_check
    _
  $region11: #{generator_forward.23} parent=0 // pred_check_branch
    %358 = sbr.rel (0) target = $region13
  $region12: #{generator_forward.23} parent=0 // pred_region
    _
  $region13: #{generator_forward.23} parent=0 // pred_fallthru
    _
  // Predicated region
  $region14: #{generator_forward.23} parent=0 // pred_check
    _
  $region15: #{generator_forward.23} parent=0 // pred_check_branch
    %360 = sbr.rel (0) target = $region17
  $region16: #{generator_forward.23} parent=0 // pred_region
    _
  $region17: #{generator_forward.23} parent=0 // pred_fallthru
    _
  // Predicated region
  $region18: #{generator_forward.23} parent=0 // pred_check
    _
  $region19: #{generator_forward.23} parent=0 // pred_check_branch
    %362 = sbr.rel (0) target = $region21
  $region20: #{generator_forward.23} parent=0 // pred_region
    _
  $region21: #{generator_forward.23} parent=0 // pred_fallthru
    _
  // Predicated region
  $region22: #{generator_forward.23} parent=0 // pred_check
    _
  $region23: #{generator_forward.23} parent=0 // pred_check_branch
    %364 = sbr.rel (0) target = $region25
  $region24: #{generator_forward.23} parent=0 // pred_region
    _
  $region25: #{generator_forward.23} parent=0 // pred_fallthru
    _

// kernel: tile.135
$region0: #{tile.135}
  #allocation0 [shape = 's32[1]{0}', space=sflag, size = 0x4, scoped, tag = 'scoped memory for tile.135']
  %s0 = inlined_call_operand.vmem [shape: f32[16], index: 0, kind: input, shape index: {}]
  %s1 = inlined_call_operand.vmem [shape: f32[4,16], index: 1, kind: output, shape index: {}]
  // Predicated region
  $region2: #{tile.135} parent=0 // pred_check
    _
  $region3: #{tile.135} parent=0 // pred_check_branch
    %3 = sbr.rel (0) target = $region5
  $region4: #{tile.135} parent=0 // pred_region
    _
  $region5: #{tile.135} parent=0 // pred_fallthru
    _
  %v4 = vld [vmem:[%s0] ss:$0 sm:$0xff]
  %5 = vst [vmem:[%s1] sm:$0xf] %v4

// kernel: tile.142
$region0: #{tile.142}
  %s0 = inlined_call_operand.vmem [shape: f32[4,16], index: 0, kind: input, shape index: {}]
  %s1 = inlined_call_operand.vmem [shape: f32[64], index: 1, kind: output, shape index: {}]
  $region1: #{tile.142} parent=0
    #allocation0 [shape = 'u8[4096]{0}', space=vmem, size = 0x1000, scoped, tag = 'scoped mem for output reshape']
    #allocation1 [shape = 'u8[4096]{0}', space=vmem, size = 0x1000, scoped, tag = 'scoped mem for input reshape']
    %s3 = sshllo.u32 0, 4
    %v4 = vld [vmem:[%s0] sm:%s3]
    %5 = vst [vmem:[#allocation1] sm:%s3] %v4
    %v6 = vld [vmem:[#allocation1] sm:$0x1]
    %vm7 = vcmask 130048
    %8 = vst.msk [vmem:[#allocation0] sm:$0x1] %vm7, %v6
    %s9 = scalar_lea.vmem [#allocation1], 3
    %v10 = vld [vmem:[%s9] sm:$0x1]
    %11 = vrot.lane.b32.xlu0 %v10, 48
    %v12 = vpop.permute.xlu0 %11
    %vm13 = vcmask 523648
    %14 = vst.msk [vmem:[#allocation0] sm:$0x1] %vm13, %v12
    %s15 = scalar_lea.vmem [#allocation1], 2
    %v16 = vld [vmem:[%s15] sm:$0x1]
    %17 = vrot.lane.b32.xlu0 %v16, 32
    %v18 = vpop.permute.xlu0 %17
    %vm19 = vcmask 392448
    %20 = vst.msk [vmem:[#allocation0] sm:$0x1] %vm19, %v18
    %s21 = scalar_lea.vmem [#allocation1], 1
    %v22 = vld [vmem:[%s21] sm:$0x1]
    %23 = vrot.lane.b32.xlu0 %v22, 16
    %v24 = vpop.permute.xlu0 %23
    %vm25 = vcmask 261248
    %26 = vst.msk [vmem:[#allocation0] sm:$0x1] %vm25, %v24
    %s28 = sshllo.u32 0, 1
    %v30 = vld [vmem:[#allocation0] sm:%s28]
    %s31 = sshllo.u32 0, 1
    %32 = vst [vmem:[%s1] sm:%s31] %v30

// kernel: generator_forward.25
$region0: #{generator_forward.25}
  #allocation0 [shape = 'u32[]', space=smem, size = 0x4, offset = 0x4, fixed_abs, tag = 'smem constant byte address 0x4 - core index']
  #allocation1 [shape = 'u32[144,128]{1,0:T(1,128)}', space=vmem, size = 0x12000, scoped, tag = 'internal scratch']
  %s0 = inlined_call_operand.vmem [shape: bf16[128,144], index: 0, kind: input, shape index: {}]
  %s1 = inlined_call_operand.vmem [shape: bf16[144,64], index: 1, kind: input, shape index: {}]
  %s2 = inlined_call_operand.vmem [shape: bf16[128,64], index: 2, kind: output, shape index: {0}]
  %s3 = inlined_call_operand.vmem [shape: f32[1,2,64], index: 3, kind: output, shape index: {1}]
  %4 = xla_tuple %s2, %s3
  %s5 = sld [smem:[#allocation0]]
  $region26: #{generator_forward.25} parent=0
    _
  %s7 = ssub.s32 1, %s5
  %s8 = scalar_select 0, %s7, %s5
  // Predicated region
  $region2: #{generator_forward.25} parent=0 // pred_check
    _
  $region3: #{generator_forward.25} parent=0 // pred_check_branch
    %10 = sbr.rel (0) target = $region5
  $region4: #{generator_forward.25} parent=0 // pred_region
    _
  $region5: #{generator_forward.25} parent=0 // pred_fallthru
    _
  // Predicated region
  $region6: #{generator_forward.25} parent=0 // pred_check
    _
  $region7: #{generator_forward.25} parent=0 // pred_check_branch
    %12 = sbr.rel (0) target = $region9
  $region8: #{generator_forward.25} parent=0 // pred_region
    _
  $region9: #{generator_forward.25} parent=0 // pred_fallthru
    _
  %v14 = vld [vmem:[%s0] sm:$0xff]
  %v15 = vld [vmem:[%s0 + $0x8] sm:$0xff]
  %v16 = vld [vmem:[%s0 + $0x10] sm:$0xff]
  %v17 = vld [vmem:[%s0 + $0x18] sm:$0xff]
  %v18 = vld [vmem:[%s0 + $0x20] sm:$0xff]
  %v19 = vld [vmem:[%s0 + $0x28] sm:$0xff]
  %v20 = vld [vmem:[%s0 + $0x30] sm:$0xff]
  %v21 = vld [vmem:[%s0 + $0x38] sm:$0xff]
  %v22 = vld [vmem:[%s0 + $0x40] sm:$0xff]
  %v23 = vld [vmem:[%s0 + $0x48] sm:$0xff]
  %v24 = vld [vmem:[%s0 + $0x50] sm:$0xff]
  %v25 = vld [vmem:[%s0 + $0x58] sm:$0xff]
  %v26 = vld [vmem:[%s0 + $0x60] sm:$0xff]
  %v27 = vld [vmem:[%s0 + $0x68] sm:$0xff]
  %v28 = vld [vmem:[%s0 + $0x70] sm:$0xff]
  %v29 = vld [vmem:[%s0 + $0x78] sm:$0xff]
  %v30 = vld [vmem:[%s1] sm:$0xf]
  %v31 = vld [vmem:[%s1 + $0x4] sm:$0xf]
  %v32 = vld [vmem:[%s1 + $0x8] sm:$0xf]
  %v33 = vld [vmem:[%s1 + $0xc] sm:$0xf]
  %v34 = vld [vmem:[%s1 + $0x10] sm:$0xf]
  %v35 = vld [vmem:[%s1 + $0x14] sm:$0xf]
  %v36 = vld [vmem:[%s1 + $0x18] sm:$0xf]
  %v37 = vld [vmem:[%s1 + $0x1c] sm:$0xf]
  %v38 = vld [vmem:[%s1 + $0x20] sm:$0xf]
  %v39 = vld [vmem:[%s1 + $0x24] sm:$0xf]
  %v40 = vld [vmem:[%s1 + $0x28] sm:$0xf]
  %v41 = vld [vmem:[%s1 + $0x2c] sm:$0xf]
  %v42 = vld [vmem:[%s1 + $0x30] sm:$0xf]
  %v43 = vld [vmem:[%s1 + $0x34] sm:$0xf]
  %v44 = vld [vmem:[%s1 + $0x38] sm:$0xf]
  %v45 = vld [vmem:[%s1 + $0x3c] sm:$0xf]
  %v46 = vld [vmem:[%s1 + $0x40] sm:$0xf]
  %v47 = vld [vmem:[%s1 + $0x44] sm:$0xf]
  %v64 = vunpack.c.l.b16 %v14
  %v65 = vunpack.c.h.b16 %v14
  %v66 = vunpack.c.l.b16 %v15
  %v67 = vunpack.c.h.b16 %v15
  %v68 = vunpack.c.l.b16 %v16
  %v69 = vunpack.c.h.b16 %v16
  %v70 = vunpack.c.l.b16 %v17
  %v71 = vunpack.c.h.b16 %v17
  %v72 = vunpack.c.l.b16 %v18
  %v73 = vunpack.c.h.b16 %v18
  %v74 = vunpack.c.l.b16 %v19
  %v75 = vunpack.c.h.b16 %v19
  %v76 = vunpack.c.l.b16 %v20
  %v77 = vunpack.c.h.b16 %v20
  %v78 = vunpack.c.l.b16 %v21
  %v79 = vunpack.c.h.b16 %v21
  %v80 = vunpack.c.l.b16 %v22
  %v81 = vunpack.c.h.b16 %v22
  %v82 = vunpack.c.l.b16 %v23
  %v83 = vunpack.c.h.b16 %v23
  %v84 = vunpack.c.l.b16 %v24
  %v85 = vunpack.c.h.b16 %v24
  %v86 = vunpack.c.l.b16 %v25
  %v87 = vunpack.c.h.b16 %v25
  %v88 = vunpack.c.l.b16 %v26
  %v89 = vunpack.c.h.b16 %v26
  %v90 = vunpack.c.l.b16 %v27
  %v91 = vunpack.c.h.b16 %v27
  %v92 = vunpack.c.l.b16 %v28
  %v93 = vunpack.c.h.b16 %v28
  %v94 = vunpack.c.l.b16 %v29
  %v95 = vunpack.c.h.b16 %v29
  %v96 = vpack.c.b16 %v66, %v64
  %v97 = vpack.c.b16 %v67, %v65
  %v98 = vpack.c.b16 %v70, %v68
  %v99 = vpack.c.b16 %v71, %v69
  %v100 = vpack.c.b16 %v74, %v72
  %v101 = vpack.c.b16 %v75, %v73
  %v102 = vpack.c.b16 %v78, %v76
  %v103 = vpack.c.b16 %v79, %v77
  %v104 = vpack.c.b16 %v82, %v80
  %v105 = vpack.c.b16 %v83, %v81
  %v106 = vpack.c.b16 %v86, %v84
  %v107 = vpack.c.b16 %v87, %v85
  %v108 = vpack.c.b16 %v90, %v88
  %v109 = vpack.c.b16 %v91, %v89
  %v110 = vpack.c.b16 %v94, %v92
  %v111 = vpack.c.b16 %v95, %v93
  %v138 = vunpack.c.l.b16 %v30
  %v139 = vunpack.c.l.b16 %v31
  %v140 = vunpack.c.l.b16 %v32
  %v141 = vunpack.c.l.b16 %v33
  %v142 = vunpack.c.l.b16 %v34
  %v143 = vunpack.c.l.b16 %v35
  %v144 = vunpack.c.l.b16 %v36
  %v145 = vunpack.c.l.b16 %v37
  %v146 = vunpack.c.l.b16 %v38
  %v147 = vunpack.c.l.b16 %v39
  %v148 = vunpack.c.l.b16 %v40
  %v149 = vunpack.c.l.b16 %v41
  %v150 = vunpack.c.l.b16 %v42
  %v151 = vunpack.c.l.b16 %v43
  %v152 = vunpack.c.l.b16 %v44
  %v153 = vunpack.c.l.b16 %v45
  %v154 = vunpack.c.l.b16 %v46
  %v155 = vunpack.c.l.b16 %v47
  %v156 = vpack.c.b16 %v139, %v138
  %v157 = vpack.c.b16 %v141, %v140
  %v158 = vpack.c.b16 %v143, %v142
  %v159 = vpack.c.b16 %v145, %v144
  %v160 = vpack.c.b16 %v147, %v146
  %v161 = vpack.c.b16 %v149, %v148
  %v162 = vpack.c.b16 %v151, %v150
  %v163 = vpack.c.b16 %v153, %v152
  %v164 = vpack.c.b16 %v155, %v154
  %vm174 = vcmask 130048
  %v176 = vsel %vm174, %v97, 0
  %v179 = vsel %vm174, %v99, 0
  %v182 = vsel %vm174, %v101, 0
  %v185 = vsel %vm174, %v103, 0
  %v188 = vsel %vm174, %v105, 0
  %v191 = vsel %vm174, %v107, 0
  %v194 = vsel %vm174, %v109, 0
  %v197 = vsel %vm174, %v111, 0
  %199 = vmatprep.subr.bf16.mxu0 0
  %200 = vmatpush1.bf16.msra.mxu0 %v156
  %201 = vmatprep.subr.bf16.mxu0 0
  %202 = vmatpush1.bf16.msra.mxu0 %v157
  %203 = vmatprep.subr.bf16.mxu0 0
  %204 = vmatpush1.bf16.msra.mxu0 %v158
  %205 = vmatprep.subr.bf16.mxu0 0
  %206 = vmatpush1.bf16.msra.mxu0 %v159
  %207 = vmatprep.subr.bf16.mxu0 0
  %208 = vmatpush1.bf16.msra.mxu0 %v160
  %209 = vmatprep.subr.bf16.mxu0 0
  %210 = vmatpush1.bf16.msra.mxu0 %v161
  %211 = vmatprep.subr.bf16.mxu0 0
  %212 = vmatpush1.bf16.msra.mxu0 %v162
  %213 = vmatprep.subr.bf16.mxu0 0
  %214 = vmatpush1.bf16.msra.mxu0 %v163
  %215 = vmatprep.subr.bf16.mxu0 0
  %216 = vmatpush1.bf16.msra.mxu0 %v164
  %217 = vmatprep.subr.bf16.mxu0 0
  %218 = vmatpush1.bf16.msra.mxu0 0
  %219 = vmatprep.subr.bf16.mxu0 0
  %220 = vmatpush1.bf16.msra.mxu0 0
  %221 = vmatprep.subr.bf16.mxu0 0
  %222 = vmatpush1.bf16.msra.mxu0 0
  %223 = vmatprep.subr.bf16.mxu0 0
  %224 = vmatpush1.bf16.msra.mxu0 0
  %225 = vmatprep.subr.bf16.mxu0 0
  %226 = vmatpush1.bf16.msra.mxu0 0
  %227 = vmatprep.subr.bf16.mxu0 0
  %228 = vmatpush1.bf16.msra.mxu0 0
  %229 = vmatprep.subr.bf16.mxu0 0
  %230 = vmatpush1.bf16.msra.mxu0 0
  %231 = vmatprep.mubr.bf16.mxu0 %v176
  %232 = vmatmul.mubr.bf16.gmra.mrb[0].mxu0 %v96
  %v233 = vpop.f32.mrb[0].mxu0
  %v234 = vadd.f32 0.0, %v233
  %v235 = vpop.f32.mrb[0].mxu0
  %v236 = vpop.f32.mrb[0].mxu0
  %v237 = vadd.f32 0.0, %v236
  %v238 = vpop.f32.mrb[0].mxu0
  %239 = vmatprep.mubr.bf16.mxu0 %v179
  %240 = vmatmul.mubr.bf16.gmra.mrb[0].mxu0 %v98
  %v241 = vpop.f32.mrb[0].mxu0
  %v242 = vadd.f32 0.0, %v241
  %v243 = vpop.f32.mrb[0].mxu0
  %v244 = vpop.f32.mrb[0].mxu0
  %v245 = vadd.f32 0.0, %v244
  %v246 = vpop.f32.mrb[0].mxu0
  %247 = vmatprep.mubr.bf16.mxu0 %v182
  %248 = vmatmul.mubr.bf16.gmra.mrb[0].mxu0 %v100
  %v249 = vpop.f32.mrb[0].mxu0
  %v250 = vadd.f32 0.0, %v249
  %v251 = vpop.f32.mrb[0].mxu0
  %v252 = vpop.f32.mrb[0].mxu0
  %v253 = vadd.f32 0.0, %v252
  %v254 = vpop.f32.mrb[0].mxu0
  %255 = vmatprep.mubr.bf16.mxu0 %v185
  %256 = vmatmul.mubr.bf16.gmra.mrb[0].mxu0 %v102
  %v257 = vpop.f32.mrb[0].mxu0
  %v258 = vadd.f32 0.0, %v257
  %v259 = vpop.f32.mrb[0].mxu0
  %v260 = vpop.f32.mrb[0].mxu0
  %v261 = vadd.f32 0.0, %v260
  %v262 = vpop.f32.mrb[0].mxu0
  %263 = vmatprep.mubr.bf16.mxu0 %v188
  %264 = vmatmul.mubr.bf16.gmra.mrb[0].mxu0 %v104
  %v265 = vpop.f32.mrb[0].mxu0
  %v266 = vadd.f32 0.0, %v265
  %v267 = vpop.f32.mrb[0].mxu0
  %v268 = vpop.f32.mrb[0].mxu0
  %v269 = vadd.f32 0.0, %v268
  %v270 = vpop.f32.mrb[0].mxu0
  %271 = vmatprep.mubr.bf16.mxu0 %v191
  %272 = vmatmul.mubr.bf16.gmra.mrb[0].mxu0 %v106
  %v273 = vpop.f32.mrb[0].mxu0
  %v274 = vadd.f32 0.0, %v273
  %v275 = vpop.f32.mrb[0].mxu0
  %v276 = vpop.f32.mrb[0].mxu0
  %v277 = vadd.f32 0.0, %v276
  %v278 = vpop.f32.mrb[0].mxu0
  %279 = vmatprep.mubr.bf16.mxu0 %v194
  %280 = vmatmul.mubr.bf16.gmra.mrb[0].mxu0 %v108
  %v281 = vpop.f32.mrb[0].mxu0
  %v282 = vadd.f32 0.0, %v281
  %v283 = vpop.f32.mrb[0].mxu0
  %v284 = vpop.f32.mrb[0].mxu0
  %v285 = vadd.f32 0.0, %v284
  %v286 = vpop.f32.mrb[0].mxu0
  %287 = vmatprep.mubr.bf16.mxu0 %v197
  %288 = vmatmul.mubr.bf16.gmra.mrb[0].mxu0 %v110
  %v289 = vpop.f32.mrb[0].mxu0
  %v290 = vadd.f32 0.0, %v289
  %v291 = vpop.f32.mrb[0].mxu0
  %v292 = vpop.f32.mrb[0].mxu0
  %v293 = vadd.f32 0.0, %v292
  %v294 = vpop.f32.mrb[0].mxu0
  %295 = vdwg.mxu0
  %v296 = vpack.c.bf16 %v237, %v234
  %v297 = vpack.c.bf16 %v245, %v242
  %v298 = vpack.c.bf16 %v253, %v250
  %v299 = vpack.c.bf16 %v261, %v258
  %v300 = vpack.c.bf16 %v269, %v266
  %v301 = vpack.c.bf16 %v277, %v274
  %v302 = vpack.c.bf16 %v285, %v282
  %v303 = vpack.c.bf16 %v293, %v290
  %v312 = vunpack.c.l.b16 %v296
  %v313 = vunpack.c.h.b16 %v296
  %v314 = vunpack.c.l.b16 %v297
  %v315 = vunpack.c.h.b16 %v297
  %v316 = vunpack.c.l.b16 %v298
  %v317 = vunpack.c.h.b16 %v298
  %v318 = vunpack.c.l.b16 %v299
  %v319 = vunpack.c.h.b16 %v299
  %v320 = vunpack.c.l.b16 %v300
  %v321 = vunpack.c.h.b16 %v300
  %v322 = vunpack.c.l.b16 %v301
  %v323 = vunpack.c.h.b16 %v301
  %v324 = vunpack.c.l.b16 %v302
  %v325 = vunpack.c.h.b16 %v302
  %v326 = vunpack.c.l.b16 %v303
  %v327 = vunpack.c.h.b16 %v303
  %v328 = vpack.c.b16 %v312, %v312
  %v329 = vpack.c.b16 %v313, %v313
  %v330 = vpack.c.b16 %v314, %v314
  %v331 = vpack.c.b16 %v315, %v315
  %v332 = vpack.c.b16 %v316, %v316
  %v333 = vpack.c.b16 %v317, %v317
  %v334 = vpack.c.b16 %v318, %v318
  %v335 = vpack.c.b16 %v319, %v319
  %v336 = vpack.c.b16 %v320, %v320
  %v337 = vpack.c.b16 %v321, %v321
  %v338 = vpack.c.b16 %v322, %v322
  %v339 = vpack.c.b16 %v323, %v323
  %v340 = vpack.c.b16 %v324, %v324
  %v341 = vpack.c.b16 %v325, %v325
  %v342 = vpack.c.b16 %v326, %v326
  %v343 = vpack.c.b16 %v327, %v327
  %vm360 = vcmask 519168
  %361 = vst.msk [vmem:[%s2] sm:$0xf] %vm360, %v328
  %362 = vst.msk [vmem:[%s2 + $0x4] sm:$0xf] %vm360, %v329
  %363 = vst.msk [vmem:[%s2 + $0x8] sm:$0xf] %vm360, %v330
  %364 = vst.msk [vmem:[%s2 + $0xc] sm:$0xf] %vm360, %v331
  %365 = vst.msk [vmem:[%s2 + $0x10] sm:$0xf] %vm360, %v332
  %366 = vst.msk [vmem:[%s2 + $0x14] sm:$0xf] %vm360, %v333
  %367 = vst.msk [vmem:[%s2 + $0x18] sm:$0xf] %vm360, %v334
  %368 = vst.msk [vmem:[%s2 + $0x1c] sm:$0xf] %vm360, %v335
  %369 = vst.msk [vmem:[%s2 + $0x20] sm:$0xf] %vm360, %v336
  %370 = vst.msk [vmem:[%s2 + $0x24] sm:$0xf] %vm360, %v337
  %371 = vst.msk [vmem:[%s2 + $0x28] sm:$0xf] %vm360, %v338
  %372 = vst.msk [vmem:[%s2 + $0x2c] sm:$0xf] %vm360, %v339
  %373 = vst.msk [vmem:[%s2 + $0x30] sm:$0xf] %vm360, %v340
  %374 = vst.msk [vmem:[%s2 + $0x34] sm:$0xf] %vm360, %v341
  %375 = vst.msk [vmem:[%s2 + $0x38] sm:$0xf] %vm360, %v342
  %376 = vst.msk [vmem:[%s2 + $0x3c] sm:$0xf] %vm360, %v343
  %vm377 = vcmask 523264
  %v378 = vsel %vm377, %v234, 0.0
  %v379 = vsel %vm377, %v237, 0.0
  %v380 = vadd.f32 %v378, %v379
  %v381 = vsel %vm377, %v242, 0.0
  %v382 = vadd.f32 %v380, %v381
  %v383 = vsel %vm377, %v245, 0.0
  %v384 = vadd.f32 %v382, %v383
  %v385 = vsel %vm377, %v250, 0.0
  %v386 = vadd.f32 %v384, %v385
  %v387 = vsel %vm377, %v253, 0.0
  %v388 = vadd.f32 %v386, %v387
  %v389 = vsel %vm377, %v258, 0.0
  %v390 = vadd.f32 %v388, %v389
  %v391 = vsel %vm377, %v261, 0.0
  %v392 = vadd.f32 %v390, %v391
  %v393 = vsel %vm377, %v266, 0.0
  %v394 = vadd.f32 %v392, %v393
  %v395 = vsel %vm377, %v269, 0.0
  %v396 = vadd.f32 %v394, %v395
  %v397 = vsel %vm377, %v274, 0.0
  %v398 = vadd.f32 %v396, %v397
  %v399 = vsel %vm377, %v277, 0.0
  %v400 = vadd.f32 %v398, %v399
  %v401 = vsel %vm377, %v282, 0.0
  %v402 = vadd.f32 %v400, %v401
  %v403 = vsel %vm377, %v285, 0.0
  %v404 = vadd.f32 %v402, %v403
  %v405 = vsel %vm377, %v290, 0.0
  %v406 = vadd.f32 %v404, %v405
  %v407 = vsel %vm377, %v293, 0.0
  %v408 = vadd.f32 %v406, %v407
  %v409 = vrot.slane %v408, 4
  %v410 = vadd.f32 %v408, %v409
  %v411 = vrot.slane %v410, 2
  %v412 = vadd.f32 %v410, %v411
  %v413 = vrot.slane %v412, 1
  %v414 = vadd.f32 %v412, %v413
  %v415 = vmul.f32 %v234, %v234
  %v416 = vmul.f32 %v237, %v237
  %v417 = vmul.f32 %v242, %v242
  %v418 = vmul.f32 %v245, %v245
  %v419 = vmul.f32 %v250, %v250
  %v420 = vmul.f32 %v253, %v253
  %v421 = vmul.f32 %v258, %v258
  %v422 = vmul.f32 %v261, %v261
  %v423 = vmul.f32 %v266, %v266
  %v424 = vmul.f32 %v269, %v269
  %v425 = vmul.f32 %v274, %v274
  %v426 = vmul.f32 %v277, %v277
  %v427 = vmul.f32 %v282, %v282
  %v428 = vmul.f32 %v285, %v285
  %v429 = vmul.f32 %v290, %v290
  %v430 = vmul.f32 %v293, %v293
  %v431 = vsel %vm377, %v415, 0.0
  %v432 = vsel %vm377, %v416, 0.0
  %v433 = vadd.f32 %v431, %v432
  %v434 = vsel %vm377, %v417, 0.0
  %v435 = vadd.f32 %v433, %v434
  %v436 = vsel %vm377, %v418, 0.0
  %v437 = vadd.f32 %v435, %v436
  %v438 = vsel %vm377, %v419, 0.0
  %v439 = vadd.f32 %v437, %v438
  %v440 = vsel %vm377, %v420, 0.0
  %v441 = vadd.f32 %v439, %v440
  %v442 = vsel %vm377, %v421, 0.0
  %v443 = vadd.f32 %v441, %v442
  %v444 = vsel %vm377, %v422, 0.0
  %v445 = vadd.f32 %v443, %v444
  %v446 = vsel %vm377, %v423, 0.0
  %v447 = vadd.f32 %v445, %v446
  %v448 = vsel %vm377, %v424, 0.0
  %v449 = vadd.f32 %v447, %v448
  %v450 = vsel %vm377, %v425, 0.0
  %v451 = vadd.f32 %v449, %v450
  %v452 = vsel %vm377, %v426, 0.0
  %v453 = vadd.f32 %v451, %v452
  %v454 = vsel %vm377, %v427, 0.0
  %v455 = vadd.f32 %v453, %v454
  %v456 = vsel %vm377, %v428, 0.0
  %v457 = vadd.f32 %v455, %v456
  %v458 = vsel %vm377, %v429, 0.0
  %v459 = vadd.f32 %v457, %v458
  %v460 = vsel %vm377, %v430, 0.0
  %v461 = vadd.f32 %v459, %v460
  %v462 = vrot.slane %v461, 4
  %v463 = vadd.f32 %v461, %v462
  %v464 = vrot.slane %v463, 2
  %v465 = vadd.f32 %v463, %v464
  %v466 = vrot.slane %v465, 1
  %v467 = vadd.f32 %v465, %v466
  %vm468 = vcmask 1040384
  %v469 = vsel %vm468, %v414, %v467
  %vm470 = vcmask 517120
  %471 = vst.msk [vmem:[%s3] sm:$0x3] %vm470, %v469
  // Predicated region
  $region10: #{generator_forward.25} parent=0 // pred_check
    _
  $region11: #{generator_forward.25} parent=0 // pred_check_branch
    %473 = sbr.rel (0) target = $region13
  $region12: #{generator_forward.25} parent=0 // pred_region
    _
  $region13: #{generator_forward.25} parent=0 // pred_fallthru
    _
  // Predicated region
  $region14: #{generator_forward.25} parent=0 // pred_check
    _
  $region15: #{generator_forward.25} parent=0 // pred_check_branch
    %475 = sbr.rel (0) target = $region17
  $region16: #{generator_forward.25} parent=0 // pred_region
    _
  $region17: #{generator_forward.25} parent=0 // pred_fallthru
    _
  // Predicated region
  $region18: #{generator_forward.25} parent=0 // pred_check
    _
  $region19: #{generator_forward.25} parent=0 // pred_check_branch
    %477 = sbr.rel (0) target = $region21
  $region20: #{generator_forward.25} parent=0 // pred_region
    _
  $region21: #{generator_forward.25} parent=0 // pred_fallthru
    _
  // Predicated region
  $region22: #{generator_forward.25} parent=0 // pred_check
    _
  $region23: #{generator_forward.25} parent=0 // pred_check_branch
    %479 = sbr.rel (0) target = $region25
  $region24: #{generator_forward.25} parent=0 // pred_region
    _
  $region25: #{generator_forward.25} parent=0 // pred_fallthru
    _

// kernel: generator_forward.27
$region0: #{generator_forward.27}
  #allocation0 [shape = 'u32[]', space=smem, size = 0x4, offset = 0x4, fixed_abs, tag = 'smem constant byte address 0x4 - core index']
  #allocation1 [shape = 'u32[144,128]{1,0:T(1,128)}', space=vmem, size = 0x12000, scoped, tag = 'internal scratch']
  %s0 = inlined_call_operand.vmem [shape: bf16[512,144], index: 0, kind: input, shape index: {}]
  %s1 = inlined_call_operand.vmem [shape: bf16[144,16], index: 1, kind: input, shape index: {}]
  %s2 = inlined_call_operand.vmem [shape: f32[512,12], index: 2, kind: input, shape index: {}]
  %s3 = inlined_call_operand.vmem [shape: f32[512,16], index: 3, kind: output, shape index: {0}]
  %s4 = inlined_call_operand.vmem [shape: f32[512,12], index: 4, kind: output, shape index: {1}]
  %5 = xla_tuple %s3, %s4
  %s6 = sld [smem:[#allocation0]]
  $region53: #{generator_forward.27} parent=0
    _
  %s8 = ssub.s32 1, %s6
  %s9 = scalar_select 0, %s8, %s6
  loop: start=0, step=1, limit=4
  $region2: #{generator_forward.27} parent=0 // loop_pre_header
    _
  $region3: #{generator_forward.27} parent=0 // loop_header
    %s11 = sphi 0, %s15
    %p12 = scmp.ge.s32.totalorder %s11, 4
    %s21 = sphi 0, %s23
    %s24 = sphi 0, %s21
    %s25 = sphi 0, %s24
    %s41 = sphi 0, %s25
    %s45 = sphi 0, %s45
    %s47 = sphi 0, %s45
    %s48 = sphi 0, %s47
    %s62 = sphi 0, %s48
    %s68 = sphi 0, %s70
    %s71 = sphi 0, %s68
    %s72 = sphi 0, %s71
    %s88 = sphi 0, %s72
    %s94 = sphi 0, %s96
    %s97 = sphi 0, %s94
    %s98 = sphi 0, %s97
    %s114 = sphi 0, %s98
    %s120 = sphi 0, %s122
    %s123 = sphi 0, %s120
    %s124 = sphi 0, %s123
    %s140 = sphi 0, %s124
  $region4: #{generator_forward.27} parent=0 // loop_header_branch
    %14 = sbr.rel (%p12) target = $region8
  $region5: #{generator_forward.27} parent=0 // loop_body
    %s16 = ssub.s32 %s11, 1
    %s17 = ssub.s32 %s11, 2
    %s18 = sadd.s32 %s11, 1
    %s19 = ssub.s32 %s11, %s18
    %p20 = scmp.eq.s32.totalorder %s19, 0
    %s22 = sadd.s32 %s21, 1
    %s23 = scalar_select %p20, %s21, %s22
    %p26 = pneg %p20
    %p27 = scmp.eq.s32.totalorder %s11, 1
    %p28 = por %p26, %p27
    %p29 = scmp.ne.s32.totalorder %s21, %s24
    %p30 = scmp.eq.s32.totalorder %s11, 0
    %p31 = por %p29, %p30
    %p32 = scmp.ne.s32.totalorder %s21, %s24
    %p33 = scmp.eq.s32.totalorder %s16, 1
    %p34 = por %p32, %p33
    %p35 = scmp.ne.s32.totalorder %s24, %s25
    %p36 = scmp.eq.s32.totalorder %s16, 0
    %p37 = por %p35, %p36
    %p38 = scmp.ne.s32.totalorder %s24, %s25
    %p39 = scmp.eq.s32.totalorder %s17, 1
    %p40 = por %p38, %p39
    %p42 = scmp.ne.s32.totalorder %s25, %s41
    %p43 = scmp.eq.s32.totalorder %s17, 0
    %p44 = por %p42, %p43
    %s46 = sadd.s32 %s45, 1
    %p49 = scmp.eq.s32.totalorder %s11, 1
    %p50 = scmp.ne.s32.totalorder %s45, %s47
    %p51 = scmp.eq.s32.totalorder %s11, 0
    %p52 = por %p50, %p51
    %p53 = scmp.ne.s32.totalorder %s45, %s47
    %p54 = scmp.eq.s32.totalorder %s16, 1
    %p55 = por %p53, %p54
    %p56 = scmp.ne.s32.totalorder %s47, %s48
    %p57 = scmp.eq.s32.totalorder %s16, 0
    %p58 = por %p56, %p57
    %p59 = scmp.ne.s32.totalorder %s47, %s48
    %p60 = scmp.eq.s32.totalorder %s17, 1
    %p61 = por %p59, %p60
    %p63 = scmp.ne.s32.totalorder %s48, %s62
    %p64 = scmp.eq.s32.totalorder %s17, 0
    %p65 = por %p63, %p64
    %s66 = ssub.s32 %s11, %s18
    %p67 = scmp.eq.s32.totalorder %s66, 0
    %s69 = sadd.s32 %s68, 1
    %s70 = scalar_select %p67, %s68, %s69
    %p73 = pneg %p67
    %p74 = scmp.eq.s32.totalorder %s11, 1
    %p75 = por %p73, %p74
    %p76 = scmp.ne.s32.totalorder %s68, %s71
    %p77 = scmp.eq.s32.totalorder %s11, 0
    %p78 = por %p76, %p77
    %p79 = scmp.ne.s32.totalorder %s68, %s71
    %p80 = scmp.eq.s32.totalorder %s16, 1
    %p81 = por %p79, %p80
    %p82 = scmp.ne.s32.totalorder %s71, %s72
    %p83 = scmp.eq.s32.totalorder %s16, 0
    %p84 = por %p82, %p83
    %p85 = scmp.ne.s32.totalorder %s71, %s72
    %p86 = scmp.eq.s32.totalorder %s17, 1
    %p87 = por %p85, %p86
    %p89 = scmp.ne.s32.totalorder %s72, %s88
    %p90 = scmp.eq.s32.totalorder %s17, 0
    %p91 = por %p89, %p90
    %s92 = ssub.s32 %s11, %s18
    %p93 = scmp.eq.s32.totalorder %s92, 0
    %s95 = sadd.s32 %s94, 1
    %s96 = scalar_select %p93, %s94, %s95
    %p99 = pneg %p93
    %p100 = scmp.eq.s32.totalorder %s11, 1
    %p101 = por %p99, %p100
    %p102 = scmp.ne.s32.totalorder %s94, %s97
    %p103 = scmp.eq.s32.totalorder %s11, 0
    %p104 = por %p102, %p103
    %p105 = scmp.ne.s32.totalorder %s94, %s97
    %p106 = scmp.eq.s32.totalorder %s16, 1
    %p107 = por %p105, %p106
    %p108 = scmp.ne.s32.totalorder %s97, %s98
    %p109 = scmp.eq.s32.totalorder %s16, 0
    %p110 = por %p108, %p109
    %p111 = scmp.ne.s32.totalorder %s97, %s98
    %p112 = scmp.eq.s32.totalorder %s17, 1
    %p113 = por %p111, %p112
    %p115 = scmp.ne.s32.totalorder %s98, %s114
    %p116 = scmp.eq.s32.totalorder %s17, 0
    %p117 = por %p115, %p116
    %s118 = ssub.s32 %s11, %s18
    %p119 = scmp.eq.s32.totalorder %s118, 0
    %s121 = sadd.s32 %s120, 1
    %s122 = scalar_select %p119, %s120, %s121
    %p125 = pneg %p119
    %p126 = scmp.eq.s32.totalorder %s11, 1
    %p127 = por %p125, %p126
    %p128 = scmp.ne.s32.totalorder %s120, %s123
    %p129 = scmp.eq.s32.totalorder %s11, 0
    %p130 = por %p128, %p129
    %p131 = scmp.ne.s32.totalorder %s120, %s123
    %p132 = scmp.eq.s32.totalorder %s16, 1
    %p133 = por %p131, %p132
    %p134 = scmp.ne.s32.totalorder %s123, %s124
    %p135 = scmp.eq.s32.totalorder %s16, 0
    %p136 = por %p134, %p135
    %p137 = scmp.ne.s32.totalorder %s123, %s124
    %p138 = scmp.eq.s32.totalorder %s17, 1
    %p139 = por %p137, %p138
    %p141 = scmp.ne.s32.totalorder %s124, %s140
    %p142 = scmp.eq.s32.totalorder %s17, 0
    %p143 = por %p141, %p142
    %p144 = scmp.le.s32.totalorder 1, %s11
    %p145 = scmp.lt.s32.totalorder %s11, 3
    %p146 = pnand %p144, %p145
    %p147 = pneg %p146
    // Predicated region
    $region9: #{generator_forward.27} parent=5 // pred_check
      _
    $region10: #{generator_forward.27} parent=5 // pred_check_branch
      %149 = sbr.rel (%p146) target = $region12
    $region11: #{generator_forward.27} parent=5 // pred_region
      %s150 = ssub.s32 %s11, 1
      // Predicated region
      $region13: #{generator_forward.27} parent=11 // pred_check
        %p151 = pneg %p58
      $region14: #{generator_forward.27} parent=11 // pred_check_branch
        %153 = sbr.rel (%p151) target = $region16
      $region15: #{generator_forward.27} parent=11 // pred_region
        _
      $region16: #{generator_forward.27} parent=11 // pred_fallthru
        _
    $region12: #{generator_forward.27} parent=5 // pred_fallthru
      _
    %p154 = scmp.lt.s32.totalorder %s11, 2
    // Predicated region
    $region17: #{generator_forward.27} parent=5 // pred_check
      %p155 = pneg %p154
    $region18: #{generator_forward.27} parent=5 // pred_check_branch
      %157 = sbr.rel (%p155) target = $region20
    $region19: #{generator_forward.27} parent=5 // pred_region
      // Predicated region
      $region21: #{generator_forward.27} parent=19 // pred_check
        %p158 = pneg %p31
      $region22: #{generator_forward.27} parent=19 // pred_check_branch
        %160 = sbr.rel (%p158) target = $region24
      $region23: #{generator_forward.27} parent=19 // pred_region
        %s161 = smul.u32 32, %s11
        %p162 = scmp.lt.s32.totalorder %s161, 63
        %s163 = scalar_select %p162, %s161, 63
        %s164 = smul.addr %s163, 2
        %s165 = smul.addr %s164, 4
        %s166 = scalar_lea.vmem %s0, %s165
        %s167 = smul.u32 32, %s11
      $region24: #{generator_forward.27} parent=19 // pred_fallthru
        _
      // Predicated region
      $region25: #{generator_forward.27} parent=19 // pred_check
        %p168 = pneg %p78
      $region26: #{generator_forward.27} parent=19 // pred_check_branch
        %170 = sbr.rel (%p168) target = $region28
      $region27: #{generator_forward.27} parent=19 // pred_region
        %s171 = smul.u32 32, %s11
        %p172 = scmp.lt.s32.totalorder %s171, 63
        %s173 = scalar_select %p172, %s171, 63
        %s174 = smul.addr %s173, 8
        %s175 = scalar_lea.vmem %s2, %s174
        %s176 = smul.u32 32, %s11
      $region28: #{generator_forward.27} parent=19 // pred_fallthru
        _
    $region20: #{generator_forward.27} parent=5 // pred_fallthru
      _
    %p177 = scmp.le.s32.totalorder 1, %s11
    %p178 = scmp.lt.s32.totalorder %s11, 3
    %p179 = pnand %p177, %p178
    %p180 = pneg %p179
    // Predicated region
    $region29: #{generator_forward.27} parent=5 // pred_check
      _
    $region30: #{generator_forward.27} parent=5 // pred_check_branch
      %182 = sbr.rel (%p179) target = $region32
    $region31: #{generator_forward.27} parent=5 // pred_region
      %s183 = ssub.s32 %s11, 1
      %s184 = smul.u32 32, %s16
      %p185 = scmp.lt.s32.totalorder %s184, 63
      %s186 = scalar_select %p185, %s184, 63
      %s187 = smul.addr %s186, 2
      %s188 = smul.addr %s187, 4
      %s189 = scalar_lea.vmem %s0, %s188
      %p190 = pneg %p37
      %p191 = pneg %p34
      %p192 = pneg %p58
      %p193 = pneg %p55
      %s194 = smul.u32 32, %s16
      %p195 = scmp.lt.s32.totalorder %s194, 63
      %s196 = scalar_select %p195, %s194, 63
      %s197 = smul.addr %s196, 8
      %s198 = scalar_lea.vmem %s2, %s197
      %p199 = pneg %p84
      %p200 = pneg %p81
      %p201 = pneg %p110
      %p202 = pneg %p107
      %s203 = smul.u32 32, %s16
      %p204 = scmp.lt.s32.totalorder %s203, 63
      %s205 = scalar_select %p204, %s203, 63
      %s206 = smul.addr %s205, 8
      %s207 = scalar_lea.vmem %s3, %s206
      %p208 = pneg %p136
      %p209 = pneg %p133
      %s210 = smul.u32 32, %s16
      %p211 = scmp.lt.s32.totalorder %s210, 63
      %s212 = scalar_select %p211, %s210, 63
      %s213 = smul.addr %s212, 8
      %s214 = scalar_lea.vmem %s4, %s213
      %s215 = smul.u32 32, %s16
      %p216 = scmp.lt.s32.totalorder %s215, 63
      %s217 = scalar_select %p216, %s215, 63
      %s218 = smul.addr %s217, 2
      %s219 = smul.addr %s218, 4
      %s220 = scalar_lea.vmem %s0, %s219
      %s221 = smul.u32 32, %s16
      %s222 = smul.u32 32, %s16
      %p223 = scmp.lt.s32.totalorder %s222, 63
      %s224 = scalar_select %p223, %s222, 63
      %s225 = smul.addr %s224, 8
      %s226 = scalar_lea.vmem %s2, %s225
      %s227 = smul.u32 32, %s16
      %s228 = smul.u32 32, %s16
      %p229 = scmp.lt.s32.totalorder %s228, 63
      %s230 = scalar_select %p229, %s228, 63
      %s231 = smul.addr %s230, 8
      %s232 = scalar_lea.vmem %s3, %s231
      %s233 = smul.u32 32, %s16
      %s234 = smul.u32 32, %s16
      %p235 = scmp.lt.s32.totalorder %s234, 63
      %s236 = scalar_select %p235, %s234, 63
      %s237 = smul.addr %s236, 8
      %s238 = scalar_lea.vmem %s4, %s237
      %s239 = smul.u32 32, %s16
      %v241 = vld [vmem:[%s220] sm:$0xff]
      %v242 = vld [vmem:[%s220 + $0x8] sm:$0xff]
      %v243 = vld [vmem:[%s220 + $0x10] sm:$0xff]
      %v244 = vld [vmem:[%s220 + $0x18] sm:$0xff]
      %v245 = vld [vmem:[%s220 + $0x20] sm:$0xff]
      %v246 = vld [vmem:[%s220 + $0x28] sm:$0xff]
      %v247 = vld [vmem:[%s220 + $0x30] sm:$0xff]
      %v248 = vld [vmem:[%s220 + $0x38] sm:$0xff]
      %v249 = vld [vmem:[%s220 + $0x40] sm:$0xff]
      %v250 = vld [vmem:[%s220 + $0x48] sm:$0xff]
      %v251 = vld [vmem:[%s220 + $0x50] sm:$0xff]
      %v252 = vld [vmem:[%s220 + $0x58] sm:$0xff]
      %v253 = vld [vmem:[%s220 + $0x60] sm:$0xff]
      %v254 = vld [vmem:[%s220 + $0x68] sm:$0xff]
      %v255 = vld [vmem:[%s220 + $0x70] sm:$0xff]
      %v256 = vld [vmem:[%s220 + $0x78] sm:$0xff]
      %v257 = vld [vmem:[%s220 + $0x80] sm:$0xff]
      %v258 = vld [vmem:[%s220 + $0x88] sm:$0xff]
      %v259 = vld [vmem:[%s220 + $0x90] sm:$0xff]
      %v260 = vld [vmem:[%s220 + $0x98] sm:$0xff]
      %v261 = vld [vmem:[%s220 + $0xa0] sm:$0xff]
      %v262 = vld [vmem:[%s220 + $0xa8] sm:$0xff]
      %v263 = vld [vmem:[%s220 + $0xb0] sm:$0xff]
      %v264 = vld [vmem:[%s220 + $0xb8] sm:$0xff]
      %v265 = vld [vmem:[%s220 + $0xc0] sm:$0xff]
      %v266 = vld [vmem:[%s220 + $0xc8] sm:$0xff]
      %v267 = vld [vmem:[%s220 + $0xd0] sm:$0xff]
      %v268 = vld [vmem:[%s220 + $0xd8] sm:$0xff]
      %v269 = vld [vmem:[%s220 + $0xe0] sm:$0xff]
      %v270 = vld [vmem:[%s220 + $0xe8] sm:$0xff]
      %v271 = vld [vmem:[%s220 + $0xf0] sm:$0xff]
      %v272 = vld [vmem:[%s220 + $0xf8] sm:$0xff]
      %v273 = vld [vmem:[%s1] sm:$0xf]
      %v274 = vld [vmem:[%s1 + $0x4] sm:$0xf]
      %v275 = vld [vmem:[%s1 + $0x8] sm:$0xf]
      %v276 = vld [vmem:[%s1 + $0xc] sm:$0xf]
      %v277 = vld [vmem:[%s1 + $0x10] sm:$0xf]
      %v278 = vld [vmem:[%s1 + $0x14] sm:$0xf]
      %v279 = vld [vmem:[%s1 + $0x18] sm:$0xf]
      %v280 = vld [vmem:[%s1 + $0x1c] sm:$0xf]
      %v281 = vld [vmem:[%s1 + $0x20] sm:$0xf]
      %v282 = vld [vmem:[%s1 + $0x24] sm:$0xf]
      %v283 = vld [vmem:[%s1 + $0x28] sm:$0xf]
      %v284 = vld [vmem:[%s1 + $0x2c] sm:$0xf]
      %v285 = vld [vmem:[%s1 + $0x30] sm:$0xf]
      %v286 = vld [vmem:[%s1 + $0x34] sm:$0xf]
      %v287 = vld [vmem:[%s1 + $0x38] sm:$0xf]
      %v288 = vld [vmem:[%s1 + $0x3c] sm:$0xf]
      %v289 = vld [vmem:[%s1 + $0x40] sm:$0xf]
      %v290 = vld [vmem:[%s1 + $0x44] sm:$0xf]
      %v323 = vunpack.c.l.b16 %v241
      %v324 = vunpack.c.h.b16 %v241
      %v325 = vunpack.c.l.b16 %v242
      %v326 = vunpack.c.h.b16 %v242
      %v327 = vunpack.c.l.b16 %v243
      %v328 = vunpack.c.h.b16 %v243
      %v329 = vunpack.c.l.b16 %v244
      %v330 = vunpack.c.h.b16 %v244
      %v331 = vunpack.c.l.b16 %v245
      %v332 = vunpack.c.h.b16 %v245
      %v333 = vunpack.c.l.b16 %v246
      %v334 = vunpack.c.h.b16 %v246
      %v335 = vunpack.c.l.b16 %v247
      %v336 = vunpack.c.h.b16 %v247
      %v337 = vunpack.c.l.b16 %v248
      %v338 = vunpack.c.h.b16 %v248
      %v339 = vunpack.c.l.b16 %v249
      %v340 = vunpack.c.h.b16 %v249
      %v341 = vunpack.c.l.b16 %v250
      %v342 = vunpack.c.h.b16 %v250
      %v343 = vunpack.c.l.b16 %v251
      %v344 = vunpack.c.h.b16 %v251
      %v345 = vunpack.c.l.b16 %v252
      %v346 = vunpack.c.h.b16 %v252
      %v347 = vunpack.c.l.b16 %v253
      %v348 = vunpack.c.h.b16 %v253
      %v349 = vunpack.c.l.b16 %v254
      %v350 = vunpack.c.h.b16 %v254
      %v351 = vunpack.c.l.b16 %v255
      %v352 = vunpack.c.h.b16 %v255
      %v353 = vunpack.c.l.b16 %v256
      %v354 = vunpack.c.h.b16 %v256
      %v355 = vunpack.c.l.b16 %v257
      %v356 = vunpack.c.h.b16 %v257
      %v357 = vunpack.c.l.b16 %v258
      %v358 = vunpack.c.h.b16 %v258
      %v359 = vunpack.c.l.b16 %v259
      %v360 = vunpack.c.h.b16 %v259
      %v361 = vunpack.c.l.b16 %v260
      %v362 = vunpack.c.h.b16 %v260
      %v363 = vunpack.c.l.b16 %v261
      %v364 = vunpack.c.h.b16 %v261
      %v365 = vunpack.c.l.b16 %v262
      %v366 = vunpack.c.h.b16 %v262
      %v367 = vunpack.c.l.b16 %v263
      %v368 = vunpack.c.h.b16 %v263
      %v369 = vunpack.c.l.b16 %v264
      %v370 = vunpack.c.h.b16 %v264
      %v371 = vunpack.c.l.b16 %v265
      %v372 = vunpack.c.h.b16 %v265
      %v373 = vunpack.c.l.b16 %v266
      %v374 = vunpack.c.h.b16 %v266
      %v375 = vunpack.c.l.b16 %v267
      %v376 = vunpack.c.h.b16 %v267
      %v377 = vunpack.c.l.b16 %v268
      %v378 = vunpack.c.h.b16 %v268
      %v379 = vunpack.c.l.b16 %v269
      %v380 = vunpack.c.h.b16 %v269
      %v381 = vunpack.c.l.b16 %v270
      %v382 = vunpack.c.h.b16 %v270
      %v383 = vunpack.c.l.b16 %v271
      %v384 = vunpack.c.h.b16 %v271
      %v385 = vunpack.c.l.b16 %v272
      %v386 = vunpack.c.h.b16 %v272
      %v387 = vpack.c.b16 %v325, %v323
      %v388 = vpack.c.b16 %v326, %v324
      %v389 = vpack.c.b16 %v329, %v327
      %v390 = vpack.c.b16 %v330, %v328
      %v391 = vpack.c.b16 %v333, %v331
      %v392 = vpack.c.b16 %v334, %v332
      %v393 = vpack.c.b16 %v337, %v335
      %v394 = vpack.c.b16 %v338, %v336
      %v395 = vpack.c.b16 %v341, %v339
      %v396 = vpack.c.b16 %v342, %v340
      %v397 = vpack.c.b16 %v345, %v343
      %v398 = vpack.c.b16 %v346, %v344
      %v399 = vpack.c.b16 %v349, %v347
      %v400 = vpack.c.b16 %v350, %v348
      %v401 = vpack.c.b16 %v353, %v351
      %v402 = vpack.c.b16 %v354, %v352
      %v403 = vpack.c.b16 %v357, %v355
      %v404 = vpack.c.b16 %v358, %v356
      %v405 = vpack.c.b16 %v361, %v359
      %v406 = vpack.c.b16 %v362, %v360
      %v407 = vpack.c.b16 %v365, %v363
      %v408 = vpack.c.b16 %v366, %v364
      %v409 = vpack.c.b16 %v369, %v367
      %v410 = vpack.c.b16 %v370, %v368
      %v411 = vpack.c.b16 %v373, %v371
      %v412 = vpack.c.b16 %v374, %v372
      %v413 = vpack.c.b16 %v377, %v375
      %v414 = vpack.c.b16 %v378, %v376
      %v415 = vpack.c.b16 %v381, %v379
      %v416 = vpack.c.b16 %v382, %v380
      %v417 = vpack.c.b16 %v385, %v383
      %v418 = vpack.c.b16 %v386, %v384
      %v453 = vunpack.c.l.b16 %v273
      %v454 = vunpack.c.l.b16 %v274
      %v455 = vunpack.c.l.b16 %v275
      %v456 = vunpack.c.l.b16 %v276
      %v457 = vunpack.c.l.b16 %v277
      %v458 = vunpack.c.l.b16 %v278
      %v459 = vunpack.c.l.b16 %v279
      %v460 = vunpack.c.l.b16 %v280
      %v461 = vunpack.c.l.b16 %v281
      %v462 = vunpack.c.l.b16 %v282
      %v463 = vunpack.c.l.b16 %v283
      %v464 = vunpack.c.l.b16 %v284
      %v465 = vunpack.c.l.b16 %v285
      %v466 = vunpack.c.l.b16 %v286
      %v467 = vunpack.c.l.b16 %v287
      %v468 = vunpack.c.l.b16 %v288
      %v469 = vunpack.c.l.b16 %v289
      %v470 = vunpack.c.l.b16 %v290
      %v471 = vpack.c.b16 %v454, %v453
      %v472 = vpack.c.b16 %v456, %v455
      %v473 = vpack.c.b16 %v458, %v457
      %v474 = vpack.c.b16 %v460, %v459
      %v475 = vpack.c.b16 %v462, %v461
      %v476 = vpack.c.b16 %v464, %v463
      %v477 = vpack.c.b16 %v466, %v465
      %v478 = vpack.c.b16 %v468, %v467
      %v479 = vpack.c.b16 %v470, %v469
      %vm489 = vcmask 130048
      %v491 = vsel %vm489, %v388, 0
      %v494 = vsel %vm489, %v390, 0
      %v497 = vsel %vm489, %v392, 0
      %v500 = vsel %vm489, %v394, 0
      %v503 = vsel %vm489, %v396, 0
      %v506 = vsel %vm489, %v398, 0
      %v509 = vsel %vm489, %v400, 0
      %v512 = vsel %vm489, %v402, 0
      %v515 = vsel %vm489, %v404, 0
      %v518 = vsel %vm489, %v406, 0
      %v521 = vsel %vm489, %v408, 0
      %v524 = vsel %vm489, %v410, 0
      %v527 = vsel %vm489, %v412, 0
      %v530 = vsel %vm489, %v414, 0
      %v533 = vsel %vm489, %v416, 0
      %v536 = vsel %vm489, %v418, 0
      %538 = vmatprep.subr.bf16.mxu0 0
      %539 = vmatpush1.bf16.msra.mxu0 %v471
      %540 = vmatprep.subr.bf16.mxu0 0
      %541 = vmatpush1.bf16.msra.mxu0 %v472
      %542 = vmatprep.subr.bf16.mxu0 0
      %543 = vmatpush1.bf16.msra.mxu0 %v473
      %544 = vmatprep.subr.bf16.mxu0 0
      %545 = vmatpush1.bf16.msra.mxu0 %v474
      %546 = vmatprep.subr.bf16.mxu0 0
      %547 = vmatpush1.bf16.msra.mxu0 %v475
      %548 = vmatprep.subr.bf16.mxu0 0
      %549 = vmatpush1.bf16.msra.mxu0 %v476
      %550 = vmatprep.subr.bf16.mxu0 0
      %551 = vmatpush1.bf16.msra.mxu0 %v477
      %552 = vmatprep.subr.bf16.mxu0 0
      %553 = vmatpush1.bf16.msra.mxu0 %v478
      %554 = vmatprep.subr.bf16.mxu0 0
      %555 = vmatpush1.bf16.msra.mxu0 %v479
      %556 = vmatprep.subr.bf16.mxu0 0
      %557 = vmatpush1.bf16.msra.mxu0 0
      %558 = vmatprep.subr.bf16.mxu0 0
      %559 = vmatpush1.bf16.msra.mxu0 0
      %560 = vmatprep.subr.bf16.mxu0 0
      %561 = vmatpush1.bf16.msra.mxu0 0
      %562 = vmatprep.subr.bf16.mxu0 0
      %563 = vmatpush1.bf16.msra.mxu0 0
      %564 = vmatprep.subr.bf16.mxu0 0
      %565 = vmatpush1.bf16.msra.mxu0 0
      %566 = vmatprep.subr.bf16.mxu0 0
      %567 = vmatpush1.bf16.msra.mxu0 0
      %568 = vmatprep.subr.bf16.mxu0 0
      %569 = vmatpush1.bf16.msra.mxu0 0
      %570 = vmatprep.mubr.bf16.mxu0 %v491
      %571 = vmatmul.mubr.bf16.gmra.mrb[0].mxu0 %v387
      %v572 = vpop.f32.mrb[0].mxu0
      %v573 = vadd.f32 0.0, %v572
      %v574 = vpop.f32.mrb[0].mxu0
      %v575 = vpop.f32.mrb[0].mxu0
      %v576 = vadd.f32 0.0, %v575
      %v577 = vpop.f32.mrb[0].mxu0
      %578 = vmatprep.mubr.bf16.mxu0 %v494
      %579 = vmatmul.mubr.bf16.gmra.mrb[0].mxu0 %v389
      %v580 = vpop.f32.mrb[0].mxu0
      %v581 = vadd.f32 0.0, %v580
      %v582 = vpop.f32.mrb[0].mxu0
      %v583 = vpop.f32.mrb[0].mxu0
      %v584 = vadd.f32 0.0, %v583
      %v585 = vpop.f32.mrb[0].mxu0
      %586 = vmatprep.mubr.bf16.mxu0 %v497
      %587 = vmatmul.mubr.bf16.gmra.mrb[0].mxu0 %v391
      %v588 = vpop.f32.mrb[0].mxu0
      %v589 = vadd.f32 0.0, %v588
      %v590 = vpop.f32.mrb[0].mxu0
      %v591 = vpop.f32.mrb[0].mxu0
      %v592 = vadd.f32 0.0, %v591
      %v593 = vpop.f32.mrb[0].mxu0
      %594 = vmatprep.mubr.bf16.mxu0 %v500
      %595 = vmatmul.mubr.bf16.gmra.mrb[0].mxu0 %v393
      %v596 = vpop.f32.mrb[0].mxu0
      %v597 = vadd.f32 0.0, %v596
      %v598 = vpop.f32.mrb[0].mxu0
      %v599 = vpop.f32.mrb[0].mxu0
      %v600 = vadd.f32 0.0, %v599
      %v601 = vpop.f32.mrb[0].mxu0
      %602 = vmatprep.mubr.bf16.mxu0 %v503
      %603 = vmatmul.mubr.bf16.gmra.mrb[0].mxu0 %v395
      %v604 = vpop.f32.mrb[0].mxu0
      %v605 = vadd.f32 0.0, %v604
      %v606 = vpop.f32.mrb[0].mxu0
      %v607 = vpop.f32.mrb[0].mxu0
      %v608 = vadd.f32 0.0, %v607
      %v609 = vpop.f32.mrb[0].mxu0
      %610 = vmatprep.mubr.bf16.mxu0 %v506
      %611 = vmatmul.mubr.bf16.gmra.mrb[0].mxu0 %v397
      %v612 = vpop.f32.mrb[0].mxu0
      %v613 = vadd.f32 0.0, %v612
      %v614 = vpop.f32.mrb[0].mxu0
      %v615 = vpop.f32.mrb[0].mxu0
      %v616 = vadd.f32 0.0, %v615
      %v617 = vpop.f32.mrb[0].mxu0
      %618 = vmatprep.mubr.bf16.mxu0 %v509
      %619 = vmatmul.mubr.bf16.gmra.mrb[0].mxu0 %v399
      %v620 = vpop.f32.mrb[0].mxu0
      %v621 = vadd.f32 0.0, %v620
      %v622 = vpop.f32.mrb[0].mxu0
      %v623 = vpop.f32.mrb[0].mxu0
      %v624 = vadd.f32 0.0, %v623
      %v625 = vpop.f32.mrb[0].mxu0
      %626 = vmatprep.mubr.bf16.mxu0 %v512
      %627 = vmatmul.mubr.bf16.gmra.mrb[0].mxu0 %v401
      %v628 = vpop.f32.mrb[0].mxu0
      %v629 = vadd.f32 0.0, %v628
      %v630 = vpop.f32.mrb[0].mxu0
      %v631 = vpop.f32.mrb[0].mxu0
      %v632 = vadd.f32 0.0, %v631
      %v633 = vpop.f32.mrb[0].mxu0
      %634 = vmatprep.mubr.bf16.mxu0 %v515
      %635 = vmatmul.mubr.bf16.gmra.mrb[0].mxu0 %v403
      %v636 = vpop.f32.mrb[0].mxu0
      %v637 = vadd.f32 0.0, %v636
      %v638 = vpop.f32.mrb[0].mxu0
      %v639 = vpop.f32.mrb[0].mxu0
      %v640 = vadd.f32 0.0, %v639
      %v641 = vpop.f32.mrb[0].mxu0
      %642 = vmatprep.mubr.bf16.mxu0 %v518
      %643 = vmatmul.mubr.bf16.gmra.mrb[0].mxu0 %v405
      %v644 = vpop.f32.mrb[0].mxu0
      %v645 = vadd.f32 0.0, %v644
      %v646 = vpop.f32.mrb[0].mxu0
      %v647 = vpop.f32.mrb[0].mxu0
      %v648 = vadd.f32 0.0, %v647
      %v649 = vpop.f32.mrb[0].mxu0
      %650 = vmatprep.mubr.bf16.mxu0 %v521
      %651 = vmatmul.mubr.bf16.gmra.mrb[0].mxu0 %v407
      %v652 = vpop.f32.mrb[0].mxu0
      %v653 = vadd.f32 0.0, %v652
      %v654 = vpop.f32.mrb[0].mxu0
      %v655 = vpop.f32.mrb[0].mxu0
      %v656 = vadd.f32 0.0, %v655
      %v657 = vpop.f32.mrb[0].mxu0
      %658 = vmatprep.mubr.bf16.mxu0 %v524
      %659 = vmatmul.mubr.bf16.gmra.mrb[0].mxu0 %v409
      %v660 = vpop.f32.mrb[0].mxu0
      %v661 = vadd.f32 0.0, %v660
      %v662 = vpop.f32.mrb[0].mxu0
      %v663 = vpop.f32.mrb[0].mxu0
      %v664 = vadd.f32 0.0, %v663
      %v665 = vpop.f32.mrb[0].mxu0
      %666 = vmatprep.mubr.bf16.mxu0 %v527
      %667 = vmatmul.mubr.bf16.gmra.mrb[0].mxu0 %v411
      %v668 = vpop.f32.mrb[0].mxu0
      %v669 = vadd.f32 0.0, %v668
      %v670 = vpop.f32.mrb[0].mxu0
      %v671 = vpop.f32.mrb[0].mxu0
      %v672 = vadd.f32 0.0, %v671
      %v673 = vpop.f32.mrb[0].mxu0
      %674 = vmatprep.mubr.bf16.mxu0 %v530
      %675 = vmatmul.mubr.bf16.gmra.mrb[0].mxu0 %v413
      %v676 = vpop.f32.mrb[0].mxu0
      %v677 = vadd.f32 0.0, %v676
      %v678 = vpop.f32.mrb[0].mxu0
      %v679 = vpop.f32.mrb[0].mxu0
      %v680 = vadd.f32 0.0, %v679
      %v681 = vpop.f32.mrb[0].mxu0
      %682 = vmatprep.mubr.bf16.mxu0 %v533
      %683 = vmatmul.mubr.bf16.gmra.mrb[0].mxu0 %v415
      %v684 = vpop.f32.mrb[0].mxu0
      %v685 = vadd.f32 0.0, %v684
      %v686 = vpop.f32.mrb[0].mxu0
      %v687 = vpop.f32.mrb[0].mxu0
      %v688 = vadd.f32 0.0, %v687
      %v689 = vpop.f32.mrb[0].mxu0
      %690 = vmatprep.mubr.bf16.mxu0 %v536
      %691 = vmatmul.mubr.bf16.gmra.mrb[0].mxu0 %v417
      %v692 = vpop.f32.mrb[0].mxu0
      %v693 = vadd.f32 0.0, %v692
      %v694 = vpop.f32.mrb[0].mxu0
      %v695 = vpop.f32.mrb[0].mxu0
      %v696 = vadd.f32 0.0, %v695
      %v697 = vpop.f32.mrb[0].mxu0
      %698 = vdwg.mxu0
      %v699 = vxor.u32 %v573, 2147483648
      %v700 = vxor.u32 %v576, 2147483648
      %v701 = vxor.u32 %v581, 2147483648
      %v702 = vxor.u32 %v584, 2147483648
      %v703 = vxor.u32 %v589, 2147483648
      %v704 = vxor.u32 %v592, 2147483648
      %v705 = vxor.u32 %v597, 2147483648
      %v706 = vxor.u32 %v600, 2147483648
      %v707 = vxor.u32 %v605, 2147483648
      %v708 = vxor.u32 %v608, 2147483648
      %v709 = vxor.u32 %v613, 2147483648
      %v710 = vxor.u32 %v616, 2147483648
      %v711 = vxor.u32 %v621, 2147483648
      %v712 = vxor.u32 %v624, 2147483648
      %v713 = vxor.u32 %v629, 2147483648
      %v714 = vxor.u32 %v632, 2147483648
      %v715 = vxor.u32 %v637, 2147483648
      %v716 = vxor.u32 %v640, 2147483648
      %v717 = vxor.u32 %v645, 2147483648
      %v718 = vxor.u32 %v648, 2147483648
      %v719 = vxor.u32 %v653, 2147483648
      %v720 = vxor.u32 %v656, 2147483648
      %v721 = vxor.u32 %v661, 2147483648
      %v722 = vxor.u32 %v664, 2147483648
      %v723 = vxor.u32 %v669, 2147483648
      %v724 = vxor.u32 %v672, 2147483648
      %v725 = vxor.u32 %v677, 2147483648
      %v726 = vxor.u32 %v680, 2147483648
      %v727 = vxor.u32 %v685, 2147483648
      %v728 = vxor.u32 %v688, 2147483648
      %v729 = vxor.u32 %v693, 2147483648
      %v730 = vxor.u32 %v696, 2147483648
      %v731 = vmul.f32 %v699, 1.442695
      %v732 = vpow.pop %v731
      %v733 = vmul.f32 %v700, 1.442695
      %v734 = vpow.pop %v733
      %v735 = vmul.f32 %v701, 1.442695
      %v736 = vpow.pop %v735
      %v737 = vmul.f32 %v702, 1.442695
      %v738 = vpow.pop %v737
      %v739 = vmul.f32 %v703, 1.442695
      %v740 = vpow.pop %v739
      %v741 = vmul.f32 %v704, 1.442695
      %v742 = vpow.pop %v741
      %v743 = vmul.f32 %v705, 1.442695
      %v744 = vpow.pop %v743
      %v745 = vmul.f32 %v706, 1.442695
      %v746 = vpow.pop %v745
      %v747 = vmul.f32 %v707, 1.442695
      %v748 = vpow.pop %v747
      %v749 = vmul.f32 %v708, 1.442695
      %v750 = vpow.pop %v749
      %v751 = vmul.f32 %v709, 1.442695
      %v752 = vpow.pop %v751
      %v753 = vmul.f32 %v710, 1.442695
      %v754 = vpow.pop %v753
      %v755 = vmul.f32 %v711, 1.442695
      %v756 = vpow.pop %v755
      %v757 = vmul.f32 %v712, 1.442695
      %v758 = vpow.pop %v757
      %v759 = vmul.f32 %v713, 1.442695
      %v760 = vpow.pop %v759
      %v761 = vmul.f32 %v714, 1.442695
      %v762 = vpow.pop %v761
      %v763 = vmul.f32 %v715, 1.442695
      %v764 = vpow.pop %v763
      %v765 = vmul.f32 %v716, 1.442695
      %v766 = vpow.pop %v765
      %v767 = vmul.f32 %v717, 1.442695
      %v768 = vpow.pop %v767
      %v769 = vmul.f32 %v718, 1.442695
      %v770 = vpow.pop %v769
      %v771 = vmul.f32 %v719, 1.442695
      %v772 = vpow.pop %v771
      %v773 = vmul.f32 %v720, 1.442695
      %v774 = vpow.pop %v773
      %v775 = vmul.f32 %v721, 1.442695
      %v776 = vpow.pop %v775
      %v777 = vmul.f32 %v722, 1.442695
      %v778 = vpow.pop %v777
      %v779 = vmul.f32 %v723, 1.442695
      %v780 = vpow.pop %v779
      %v781 = vmul.f32 %v724, 1.442695
      %v782 = vpow.pop %v781
      %v783 = vmul.f32 %v725, 1.442695
      %v784 = vpow.pop %v783
      %v785 = vmul.f32 %v726, 1.442695
      %v786 = vpow.pop %v785
      %v787 = vmul.f32 %v727, 1.442695
      %v788 = vpow.pop %v787
      %v789 = vmul.f32 %v728, 1.442695
      %v790 = vpow.pop %v789
      %v791 = vmul.f32 %v729, 1.442695
      %v792 = vpow.pop %v791
      %v793 = vmul.f32 %v730, 1.442695
      %v794 = vpow.pop %v793
      %v795 = vadd.f32 %v732, 1.0
      %v796 = vadd.f32 %v734, 1.0
      %v797 = vadd.f32 %v736, 1.0
      %v798 = vadd.f32 %v738, 1.0
      %v799 = vadd.f32 %v740, 1.0
      %v800 = vadd.f32 %v742, 1.0
      %v801 = vadd.f32 %v744, 1.0
      %v802 = vadd.f32 %v746, 1.0
      %v803 = vadd.f32 %v748, 1.0
      %v804 = vadd.f32 %v750, 1.0
      %v805 = vadd.f32 %v752, 1.0
      %v806 = vadd.f32 %v754, 1.0
      %v807 = vadd.f32 %v756, 1.0
      %v808 = vadd.f32 %v758, 1.0
      %v809 = vadd.f32 %v760, 1.0
      %v810 = vadd.f32 %v762, 1.0
      %v811 = vadd.f32 %v764, 1.0
      %v812 = vadd.f32 %v766, 1.0
      %v813 = vadd.f32 %v768, 1.0
      %v814 = vadd.f32 %v770, 1.0
      %v815 = vadd.f32 %v772, 1.0
      %v816 = vadd.f32 %v774, 1.0
      %v817 = vadd.f32 %v776, 1.0
      %v818 = vadd.f32 %v778, 1.0
      %v819 = vadd.f32 %v780, 1.0
      %v820 = vadd.f32 %v782, 1.0
      %v821 = vadd.f32 %v784, 1.0
      %v822 = vadd.f32 %v786, 1.0
      %v823 = vadd.f32 %v788, 1.0
      %v824 = vadd.f32 %v790, 1.0
      %v825 = vadd.f32 %v792, 1.0
      %v826 = vadd.f32 %v794, 1.0
      %v827 = vrcp.pop %v795
      %v828 = vmul.f32 1.0, %v827
      %v829 = vrcp.pop %v796
      %v830 = vmul.f32 1.0, %v829
      %v831 = vrcp.pop %v797
      %v832 = vmul.f32 1.0, %v831
      %v833 = vrcp.pop %v798
      %v834 = vmul.f32 1.0, %v833
      %v835 = vrcp.pop %v799
      %v836 = vmul.f32 1.0, %v835
      %v837 = vrcp.pop %v800
      %v838 = vmul.f32 1.0, %v837
      %v839 = vrcp.pop %v801
      %v840 = vmul.f32 1.0, %v839
      %v841 = vrcp.pop %v802
      %v842 = vmul.f32 1.0, %v841
      %v843 = vrcp.pop %v803
      %v844 = vmul.f32 1.0, %v843
      %v845 = vrcp.pop %v804
      %v846 = vmul.f32 1.0, %v845
      %v847 = vrcp.pop %v805
      %v848 = vmul.f32 1.0, %v847
      %v849 = vrcp.pop %v806
      %v850 = vmul.f32 1.0, %v849
      %v851 = vrcp.pop %v807
      %v852 = vmul.f32 1.0, %v851
      %v853 = vrcp.pop %v808
      %v854 = vmul.f32 1.0, %v853
      %v855 = vrcp.pop %v809
      %v856 = vmul.f32 1.0, %v855
      %v857 = vrcp.pop %v810
      %v858 = vmul.f32 1.0, %v857
      %v859 = vrcp.pop %v811
      %v860 = vmul.f32 1.0, %v859
      %v861 = vrcp.pop %v812
      %v862 = vmul.f32 1.0, %v861
      %v863 = vrcp.pop %v813
      %v864 = vmul.f32 1.0, %v863
      %v865 = vrcp.pop %v814
      %v866 = vmul.f32 1.0, %v865
      %v867 = vrcp.pop %v815
      %v868 = vmul.f32 1.0, %v867
      %v869 = vrcp.pop %v816
      %v870 = vmul.f32 1.0, %v869
      %v871 = vrcp.pop %v817
      %v872 = vmul.f32 1.0, %v871
      %v873 = vrcp.pop %v818
      %v874 = vmul.f32 1.0, %v873
      %v875 = vrcp.pop %v819
      %v876 = vmul.f32 1.0, %v875
      %v877 = vrcp.pop %v820
      %v878 = vmul.f32 1.0, %v877
      %v879 = vrcp.pop %v821
      %v880 = vmul.f32 1.0, %v879
      %v881 = vrcp.pop %v822
      %v882 = vmul.f32 1.0, %v881
      %v883 = vrcp.pop %v823
      %v884 = vmul.f32 1.0, %v883
      %v885 = vrcp.pop %v824
      %v886 = vmul.f32 1.0, %v885
      %v887 = vrcp.pop %v825
      %v888 = vmul.f32 1.0, %v887
      %v889 = vrcp.pop %v826
      %v890 = vmul.f32 1.0, %v889
      %891 = vst.msk [vmem:[%s232] sm:$0xff] %vm489, %v828
      %892 = vst.msk [vmem:[%s232 + $0x8] sm:$0xff] %vm489, %v830
      %893 = vst.msk [vmem:[%s232 + $0x10] sm:$0xff] %vm489, %v832
      %894 = vst.msk [vmem:[%s232 + $0x18] sm:$0xff] %vm489, %v834
      %895 = vst.msk [vmem:[%s232 + $0x20] sm:$0xff] %vm489, %v836
      %896 = vst.msk [vmem:[%s232 + $0x28] sm:$0xff] %vm489, %v838
      %897 = vst.msk [vmem:[%s232 + $0x30] sm:$0xff] %vm489, %v840
      %898 = vst.msk [vmem:[%s232 + $0x38] sm:$0xff] %vm489, %v842
      %899 = vst.msk [vmem:[%s232 + $0x40] sm:$0xff] %vm489, %v844
      %900 = vst.msk [vmem:[%s232 + $0x48] sm:$0xff] %vm489, %v846
      %901 = vst.msk [vmem:[%s232 + $0x50] sm:$0xff] %vm489, %v848
      %902 = vst.msk [vmem:[%s232 + $0x58] sm:$0xff] %vm489, %v850
      %903 = vst.msk [vmem:[%s232 + $0x60] sm:$0xff] %vm489, %v852
      %904 = vst.msk [vmem:[%s232 + $0x68] sm:$0xff] %vm489, %v854
      %905 = vst.msk [vmem:[%s232 + $0x70] sm:$0xff] %vm489, %v856
      %906 = vst.msk [vmem:[%s232 + $0x78] sm:$0xff] %vm489, %v858
      %907 = vst.msk [vmem:[%s232 + $0x80] sm:$0xff] %vm489, %v860
      %908 = vst.msk [vmem:[%s232 + $0x88] sm:$0xff] %vm489, %v862
      %909 = vst.msk [vmem:[%s232 + $0x90] sm:$0xff] %vm489, %v864
      %910 = vst.msk [vmem:[%s232 + $0x98] sm:$0xff] %vm489, %v866
      %911 = vst.msk [vmem:[%s232 + $0xa0] sm:$0xff] %vm489, %v868
      %912 = vst.msk [vmem:[%s232 + $0xa8] sm:$0xff] %vm489, %v870
      %913 = vst.msk [vmem:[%s232 + $0xb0] sm:$0xff] %vm489, %v872
      %914 = vst.msk [vmem:[%s232 + $0xb8] sm:$0xff] %vm489, %v874
      %915 = vst.msk [vmem:[%s232 + $0xc0] sm:$0xff] %vm489, %v876
      %916 = vst.msk [vmem:[%s232 + $0xc8] sm:$0xff] %vm489, %v878
      %917 = vst.msk [vmem:[%s232 + $0xd0] sm:$0xff] %vm489, %v880
      %918 = vst.msk [vmem:[%s232 + $0xd8] sm:$0xff] %vm489, %v882
      %919 = vst.msk [vmem:[%s232 + $0xe0] sm:$0xff] %vm489, %v884
      %920 = vst.msk [vmem:[%s232 + $0xe8] sm:$0xff] %vm489, %v886
      %921 = vst.msk [vmem:[%s232 + $0xf0] sm:$0xff] %vm489, %v888
      %922 = vst.msk [vmem:[%s232 + $0xf8] sm:$0xff] %vm489, %v890
      %v923 = vld [vmem:[%s226] sm:$0xff]
      %v924 = vld [vmem:[%s226 + $0x8] sm:$0xff]
      %v925 = vld [vmem:[%s226 + $0x10] sm:$0xff]
      %v926 = vld [vmem:[%s226 + $0x18] sm:$0xff]
      %v927 = vld [vmem:[%s226 + $0x20] sm:$0xff]
      %v928 = vld [vmem:[%s226 + $0x28] sm:$0xff]
      %v929 = vld [vmem:[%s226 + $0x30] sm:$0xff]
      %v930 = vld [vmem:[%s226 + $0x38] sm:$0xff]
      %v931 = vld [vmem:[%s226 + $0x40] sm:$0xff]
      %v932 = vld [vmem:[%s226 + $0x48] sm:$0xff]
      %v933 = vld [vmem:[%s226 + $0x50] sm:$0xff]
      %v934 = vld [vmem:[%s226 + $0x58] sm:$0xff]
      %v935 = vld [vmem:[%s226 + $0x60] sm:$0xff]
      %v936 = vld [vmem:[%s226 + $0x68] sm:$0xff]
      %v937 = vld [vmem:[%s226 + $0x70] sm:$0xff]
      %v938 = vld [vmem:[%s226 + $0x78] sm:$0xff]
      %v939 = vld [vmem:[%s226 + $0x80] sm:$0xff]
      %v940 = vld [vmem:[%s226 + $0x88] sm:$0xff]
      %v941 = vld [vmem:[%s226 + $0x90] sm:$0xff]
      %v942 = vld [vmem:[%s226 + $0x98] sm:$0xff]
      %v943 = vld [vmem:[%s226 + $0xa0] sm:$0xff]
      %v944 = vld [vmem:[%s226 + $0xa8] sm:$0xff]
      %v945 = vld [vmem:[%s226 + $0xb0] sm:$0xff]
      %v946 = vld [vmem:[%s226 + $0xb8] sm:$0xff]
      %v947 = vld [vmem:[%s226 + $0xc0] sm:$0xff]
      %v948 = vld [vmem:[%s226 + $0xc8] sm:$0xff]
      %v949 = vld [vmem:[%s226 + $0xd0] sm:$0xff]
      %v950 = vld [vmem:[%s226 + $0xd8] sm:$0xff]
      %v951 = vld [vmem:[%s226 + $0xe0] sm:$0xff]
      %v952 = vld [vmem:[%s226 + $0xe8] sm:$0xff]
      %v953 = vld [vmem:[%s226 + $0xf0] sm:$0xff]
      %v954 = vld [vmem:[%s226 + $0xf8] sm:$0xff]
      %956 = vset.pattern.permute.xlu0 3
      %957 = vperm.xlu0 %956, %v828
      %v958 = vpop.permute.xlu0 %957
      %961 = vset.pattern.permute.xlu0 3
      %962 = vperm.xlu0 %961, %v830
      %v963 = vpop.permute.xlu0 %962
      %966 = vset.pattern.permute.xlu0 3
      %967 = vperm.xlu0 %966, %v832
      %v968 = vpop.permute.xlu0 %967
      %971 = vset.pattern.permute.xlu0 3
      %972 = vperm.xlu0 %971, %v834
      %v973 = vpop.permute.xlu0 %972
      %976 = vset.pattern.permute.xlu0 3
      %977 = vperm.xlu0 %976, %v836
      %v978 = vpop.permute.xlu0 %977
      %981 = vset.pattern.permute.xlu0 3
      %982 = vperm.xlu0 %981, %v838
      %v983 = vpop.permute.xlu0 %982
      %986 = vset.pattern.permute.xlu0 3
      %987 = vperm.xlu0 %986, %v840
      %v988 = vpop.permute.xlu0 %987
      %991 = vset.pattern.permute.xlu0 3
      %992 = vperm.xlu0 %991, %v842
      %v993 = vpop.permute.xlu0 %992
      %996 = vset.pattern.permute.xlu0 3
      %997 = vperm.xlu0 %996, %v844
      %v998 = vpop.permute.xlu0 %997
      %1001 = vset.pattern.permute.xlu0 3
      %1002 = vperm.xlu0 %1001, %v846
      %v1003 = vpop.permute.xlu0 %1002
      %1006 = vset.pattern.permute.xlu0 3
      %1007 = vperm.xlu0 %1006, %v848
      %v1008 = vpop.permute.xlu0 %1007
      %1011 = vset.pattern.permute.xlu0 3
      %1012 = vperm.xlu0 %1011, %v850
      %v1013 = vpop.permute.xlu0 %1012
      %1016 = vset.pattern.permute.xlu0 3
      %1017 = vperm.xlu0 %1016, %v852
      %v1018 = vpop.permute.xlu0 %1017
      %1021 = vset.pattern.permute.xlu0 3
      %1022 = vperm.xlu0 %1021, %v854
      %v1023 = vpop.permute.xlu0 %1022
      %1026 = vset.pattern.permute.xlu0 3
      %1027 = vperm.xlu0 %1026, %v856
      %v1028 = vpop.permute.xlu0 %1027
      %1031 = vset.pattern.permute.xlu0 3
      %1032 = vperm.xlu0 %1031, %v858
      %v1033 = vpop.permute.xlu0 %1032
      %1036 = vset.pattern.permute.xlu0 3
      %1037 = vperm.xlu0 %1036, %v860
      %v1038 = vpop.permute.xlu0 %1037
      %1041 = vset.pattern.permute.xlu0 3
      %1042 = vperm.xlu0 %1041, %v862
      %v1043 = vpop.permute.xlu0 %1042
      %1046 = vset.pattern.permute.xlu0 3
      %1047 = vperm.xlu0 %1046, %v864
      %v1048 = vpop.permute.xlu0 %1047
      %1051 = vset.pattern.permute.xlu0 3
      %1052 = vperm.xlu0 %1051, %v866
      %v1053 = vpop.permute.xlu0 %1052
      %1056 = vset.pattern.permute.xlu0 3
      %1057 = vperm.xlu0 %1056, %v868
      %v1058 = vpop.permute.xlu0 %1057
      %1061 = vset.pattern.permute.xlu0 3
      %1062 = vperm.xlu0 %1061, %v870
      %v1063 = vpop.permute.xlu0 %1062
      %1066 = vset.pattern.permute.xlu0 3
      %1067 = vperm.xlu0 %1066, %v872
      %v1068 = vpop.permute.xlu0 %1067
      %1071 = vset.pattern.permute.xlu0 3
      %1072 = vperm.xlu0 %1071, %v874
      %v1073 = vpop.permute.xlu0 %1072
      %1076 = vset.pattern.permute.xlu0 3
      %1077 = vperm.xlu0 %1076, %v876
      %v1078 = vpop.permute.xlu0 %1077
      %1081 = vset.pattern.permute.xlu0 3
      %1082 = vperm.xlu0 %1081, %v878
      %v1083 = vpop.permute.xlu0 %1082
      %1086 = vset.pattern.permute.xlu0 3
      %1087 = vperm.xlu0 %1086, %v880
      %v1088 = vpop.permute.xlu0 %1087
      %1091 = vset.pattern.permute.xlu0 3
      %1092 = vperm.xlu0 %1091, %v882
      %v1093 = vpop.permute.xlu0 %1092
      %1096 = vset.pattern.permute.xlu0 3
      %1097 = vperm.xlu0 %1096, %v884
      %v1098 = vpop.permute.xlu0 %1097
      %1101 = vset.pattern.permute.xlu0 3
      %1102 = vperm.xlu0 %1101, %v886
      %v1103 = vpop.permute.xlu0 %1102
      %1106 = vset.pattern.permute.xlu0 3
      %1107 = vperm.xlu0 %1106, %v888
      %v1108 = vpop.permute.xlu0 %1107
      %1111 = vset.pattern.permute.xlu0 3
      %1112 = vperm.xlu0 %1111, %v890
      %v1113 = vpop.permute.xlu0 %1112
      %v1115 = vmul.f32 %v958, %v828
      %v1116 = vmul.f32 %v963, %v830
      %v1117 = vmul.f32 %v968, %v832
      %v1118 = vmul.f32 %v973, %v834
      %v1119 = vmul.f32 %v978, %v836
      %v1120 = vmul.f32 %v983, %v838
      %v1121 = vmul.f32 %v988, %v840
      %v1122 = vmul.f32 %v993, %v842
      %v1123 = vmul.f32 %v998, %v844
      %v1124 = vmul.f32 %v1003, %v846
      %v1125 = vmul.f32 %v1008, %v848
      %v1126 = vmul.f32 %v1013, %v850
      %v1127 = vmul.f32 %v1018, %v852
      %v1128 = vmul.f32 %v1023, %v854
      %v1129 = vmul.f32 %v1028, %v856
      %v1130 = vmul.f32 %v1033, %v858
      %v1131 = vmul.f32 %v1038, %v860
      %v1132 = vmul.f32 %v1043, %v862
      %v1133 = vmul.f32 %v1048, %v864
      %v1134 = vmul.f32 %v1053, %v866
      %v1135 = vmul.f32 %v1058, %v868
      %v1136 = vmul.f32 %v1063, %v870
      %v1137 = vmul.f32 %v1068, %v872
      %v1138 = vmul.f32 %v1073, %v874
      %v1139 = vmul.f32 %v1078, %v876
      %v1140 = vmul.f32 %v1083, %v878
      %v1141 = vmul.f32 %v1088, %v880
      %v1142 = vmul.f32 %v1093, %v882
      %v1143 = vmul.f32 %v1098, %v884
      %v1144 = vmul.f32 %v1103, %v886
      %v1145 = vmul.f32 %v1108, %v888
      %v1146 = vmul.f32 %v1113, %v890
      %v1147 = vsub.f32 1.0, %v828
      %v1148 = vsub.f32 1.0, %v830
      %v1149 = vsub.f32 1.0, %v832
      %v1150 = vsub.f32 1.0, %v834
      %v1151 = vsub.f32 1.0, %v836
      %v1152 = vsub.f32 1.0, %v838
      %v1153 = vsub.f32 1.0, %v840
      %v1154 = vsub.f32 1.0, %v842
      %v1155 = vsub.f32 1.0, %v844
      %v1156 = vsub.f32 1.0, %v846
      %v1157 = vsub.f32 1.0, %v848
      %v1158 = vsub.f32 1.0, %v850
      %v1159 = vsub.f32 1.0, %v852
      %v1160 = vsub.f32 1.0, %v854
      %v1161 = vsub.f32 1.0, %v856
      %v1162 = vsub.f32 1.0, %v858
      %v1163 = vsub.f32 1.0, %v860
      %v1164 = vsub.f32 1.0, %v862
      %v1165 = vsub.f32 1.0, %v864
      %v1166 = vsub.f32 1.0, %v866
      %v1167 = vsub.f32 1.0, %v868
      %v1168 = vsub.f32 1.0, %v870
      %v1169 = vsub.f32 1.0, %v872
      %v1170 = vsub.f32 1.0, %v874
      %v1171 = vsub.f32 1.0, %v876
      %v1172 = vsub.f32 1.0, %v878
      %v1173 = vsub.f32 1.0, %v880
      %v1174 = vsub.f32 1.0, %v882
      %v1175 = vsub.f32 1.0, %v884
      %v1176 = vsub.f32 1.0, %v886
      %v1177 = vsub.f32 1.0, %v888
      %v1178 = vsub.f32 1.0, %v890
      %1180 = vset.pattern.permute.xlu0 3
      %1181 = vperm.xlu0 %1180, %v1147
      %v1182 = vpop.permute.xlu0 %1181
      %1185 = vset.pattern.permute.xlu0 3
      %1186 = vperm.xlu0 %1185, %v1148
      %v1187 = vpop.permute.xlu0 %1186
      %1190 = vset.pattern.permute.xlu0 3
      %1191 = vperm.xlu0 %1190, %v1149
      %v1192 = vpop.permute.xlu0 %1191
      %1195 = vset.pattern.permute.xlu0 3
      %1196 = vperm.xlu0 %1195, %v1150
      %v1197 = vpop.permute.xlu0 %1196
      %1200 = vset.pattern.permute.xlu0 3
      %1201 = vperm.xlu0 %1200, %v1151
      %v1202 = vpop.permute.xlu0 %1201
      %1205 = vset.pattern.permute.xlu0 3
      %1206 = vperm.xlu0 %1205, %v1152
      %v1207 = vpop.permute.xlu0 %1206
      %1210 = vset.pattern.permute.xlu0 3
      %1211 = vperm.xlu0 %1210, %v1153
      %v1212 = vpop.permute.xlu0 %1211
      %1215 = vset.pattern.permute.xlu0 3
      %1216 = vperm.xlu0 %1215, %v1154
      %v1217 = vpop.permute.xlu0 %1216
      %1220 = vset.pattern.permute.xlu0 3
      %1221 = vperm.xlu0 %1220, %v1155
      %v1222 = vpop.permute.xlu0 %1221
      %1225 = vset.pattern.permute.xlu0 3
      %1226 = vperm.xlu0 %1225, %v1156
      %v1227 = vpop.permute.xlu0 %1226
      %1230 = vset.pattern.permute.xlu0 3
      %1231 = vperm.xlu0 %1230, %v1157
      %v1232 = vpop.permute.xlu0 %1231
      %1235 = vset.pattern.permute.xlu0 3
      %1236 = vperm.xlu0 %1235, %v1158
      %v1237 = vpop.permute.xlu0 %1236
      %1240 = vset.pattern.permute.xlu0 3
      %1241 = vperm.xlu0 %1240, %v1159
      %v1242 = vpop.permute.xlu0 %1241
      %1245 = vset.pattern.permute.xlu0 3
      %1246 = vperm.xlu0 %1245, %v1160
      %v1247 = vpop.permute.xlu0 %1246
      %1250 = vset.pattern.permute.xlu0 3
      %1251 = vperm.xlu0 %1250, %v1161
      %v1252 = vpop.permute.xlu0 %1251
      %1255 = vset.pattern.permute.xlu0 3
      %1256 = vperm.xlu0 %1255, %v1162
      %v1257 = vpop.permute.xlu0 %1256
      %1260 = vset.pattern.permute.xlu0 3
      %1261 = vperm.xlu0 %1260, %v1163
      %v1262 = vpop.permute.xlu0 %1261
      %1265 = vset.pattern.permute.xlu0 3
      %1266 = vperm.xlu0 %1265, %v1164
      %v1267 = vpop.permute.xlu0 %1266
      %1270 = vset.pattern.permute.xlu0 3
      %1271 = vperm.xlu0 %1270, %v1165
      %v1272 = vpop.permute.xlu0 %1271
      %1275 = vset.pattern.permute.xlu0 3
      %1276 = vperm.xlu0 %1275, %v1166
      %v1277 = vpop.permute.xlu0 %1276
      %1280 = vset.pattern.permute.xlu0 3
      %1281 = vperm.xlu0 %1280, %v1167
      %v1282 = vpop.permute.xlu0 %1281
      %1285 = vset.pattern.permute.xlu0 3
      %1286 = vperm.xlu0 %1285, %v1168
      %v1287 = vpop.permute.xlu0 %1286
      %1290 = vset.pattern.permute.xlu0 3
      %1291 = vperm.xlu0 %1290, %v1169
      %v1292 = vpop.permute.xlu0 %1291
      %1295 = vset.pattern.permute.xlu0 3
      %1296 = vperm.xlu0 %1295, %v1170
      %v1297 = vpop.permute.xlu0 %1296
      %1300 = vset.pattern.permute.xlu0 3
      %1301 = vperm.xlu0 %1300, %v1171
      %v1302 = vpop.permute.xlu0 %1301
      %1305 = vset.pattern.permute.xlu0 3
      %1306 = vperm.xlu0 %1305, %v1172
      %v1307 = vpop.permute.xlu0 %1306
      %1310 = vset.pattern.permute.xlu0 3
      %1311 = vperm.xlu0 %1310, %v1173
      %v1312 = vpop.permute.xlu0 %1311
      %1315 = vset.pattern.permute.xlu0 3
      %1316 = vperm.xlu0 %1315, %v1174
      %v1317 = vpop.permute.xlu0 %1316
      %1320 = vset.pattern.permute.xlu0 3
      %1321 = vperm.xlu0 %1320, %v1175
      %v1322 = vpop.permute.xlu0 %1321
      %1325 = vset.pattern.permute.xlu0 3
      %1326 = vperm.xlu0 %1325, %v1176
      %v1327 = vpop.permute.xlu0 %1326
      %1330 = vset.pattern.permute.xlu0 3
      %1331 = vperm.xlu0 %1330, %v1177
      %v1332 = vpop.permute.xlu0 %1331
      %1335 = vset.pattern.permute.xlu0 3
      %1336 = vperm.xlu0 %1335, %v1178
      %v1337 = vpop.permute.xlu0 %1336
      %v1339 = vmul.f32 %v1182, %v923
      %v1340 = vmul.f32 %v1187, %v924
      %v1341 = vmul.f32 %v1192, %v925
      %v1342 = vmul.f32 %v1197, %v926
      %v1343 = vmul.f32 %v1202, %v927
      %v1344 = vmul.f32 %v1207, %v928
      %v1345 = vmul.f32 %v1212, %v929
      %v1346 = vmul.f32 %v1217, %v930
      %v1347 = vmul.f32 %v1222, %v931
      %v1348 = vmul.f32 %v1227, %v932
      %v1349 = vmul.f32 %v1232, %v933
      %v1350 = vmul.f32 %v1237, %v934
      %v1351 = vmul.f32 %v1242, %v935
      %v1352 = vmul.f32 %v1247, %v936
      %v1353 = vmul.f32 %v1252, %v937
      %v1354 = vmul.f32 %v1257, %v938
      %v1355 = vmul.f32 %v1262, %v939
      %v1356 = vmul.f32 %v1267, %v940
      %v1357 = vmul.f32 %v1272, %v941
      %v1358 = vmul.f32 %v1277, %v942
      %v1359 = vmul.f32 %v1282, %v943
      %v1360 = vmul.f32 %v1287, %v944
      %v1361 = vmul.f32 %v1292, %v945
      %v1362 = vmul.f32 %v1297, %v946
      %v1363 = vmul.f32 %v1302, %v947
      %v1364 = vmul.f32 %v1307, %v948
      %v1365 = vmul.f32 %v1312, %v949
      %v1366 = vmul.f32 %v1317, %v950
      %v1367 = vmul.f32 %v1322, %v951
      %v1368 = vmul.f32 %v1327, %v952
      %v1369 = vmul.f32 %v1332, %v953
      %v1370 = vmul.f32 %v1337, %v954
      %v1371 = vadd.f32 %v1115, %v1339
      %v1372 = vadd.f32 %v1116, %v1340
      %v1373 = vadd.f32 %v1117, %v1341
      %v1374 = vadd.f32 %v1118, %v1342
      %v1375 = vadd.f32 %v1119, %v1343
      %v1376 = vadd.f32 %v1120, %v1344
      %v1377 = vadd.f32 %v1121, %v1345
      %v1378 = vadd.f32 %v1122, %v1346
      %v1379 = vadd.f32 %v1123, %v1347
      %v1380 = vadd.f32 %v1124, %v1348
      %v1381 = vadd.f32 %v1125, %v1349
      %v1382 = vadd.f32 %v1126, %v1350
      %v1383 = vadd.f32 %v1127, %v1351
      %v1384 = vadd.f32 %v1128, %v1352
      %v1385 = vadd.f32 %v1129, %v1353
      %v1386 = vadd.f32 %v1130, %v1354
      %v1387 = vadd.f32 %v1131, %v1355
      %v1388 = vadd.f32 %v1132, %v1356
      %v1389 = vadd.f32 %v1133, %v1357
      %v1390 = vadd.f32 %v1134, %v1358
      %v1391 = vadd.f32 %v1135, %v1359
      %v1392 = vadd.f32 %v1136, %v1360
      %v1393 = vadd.f32 %v1137, %v1361
      %v1394 = vadd.f32 %v1138, %v1362
      %v1395 = vadd.f32 %v1139, %v1363
      %v1396 = vadd.f32 %v1140, %v1364
      %v1397 = vadd.f32 %v1141, %v1365
      %v1398 = vadd.f32 %v1142, %v1366
      %v1399 = vadd.f32 %v1143, %v1367
      %v1400 = vadd.f32 %v1144, %v1368
      %v1401 = vadd.f32 %v1145, %v1369
      %v1402 = vadd.f32 %v1146, %v1370
      %vm1403 = vcmask 23552
      %1404 = vst.msk [vmem:[%s238] sm:$0xff] %vm1403, %v1371
      %1405 = vst.msk [vmem:[%s238 + $0x8] sm:$0xff] %vm1403, %v1372
      %1406 = vst.msk [vmem:[%s238 + $0x10] sm:$0xff] %vm1403, %v1373
      %1407 = vst.msk [vmem:[%s238 + $0x18] sm:$0xff] %vm1403, %v1374
      %1408 = vst.msk [vmem:[%s238 + $0x20] sm:$0xff] %vm1403, %v1375
      %1409 = vst.msk [vmem:[%s238 + $0x28] sm:$0xff] %vm1403, %v1376
      %1410 = vst.msk [vmem:[%s238 + $0x30] sm:$0xff] %vm1403, %v1377
      %1411 = vst.msk [vmem:[%s238 + $0x38] sm:$0xff] %vm1403, %v1378
      %1412 = vst.msk [vmem:[%s238 + $0x40] sm:$0xff] %vm1403, %v1379
      %1413 = vst.msk [vmem:[%s238 + $0x48] sm:$0xff] %vm1403, %v1380
      %1414 = vst.msk [vmem:[%s238 + $0x50] sm:$0xff] %vm1403, %v1381
      %1415 = vst.msk [vmem:[%s238 + $0x58] sm:$0xff] %vm1403, %v1382
      %1416 = vst.msk [vmem:[%s238 + $0x60] sm:$0xff] %vm1403, %v1383
      %1417 = vst.msk [vmem:[%s238 + $0x68] sm:$0xff] %vm1403, %v1384
      %1418 = vst.msk [vmem:[%s238 + $0x70] sm:$0xff] %vm1403, %v1385
      %1419 = vst.msk [vmem:[%s238 + $0x78] sm:$0xff] %vm1403, %v1386
      %1420 = vst.msk [vmem:[%s238 + $0x80] sm:$0xff] %vm1403, %v1387
      %1421 = vst.msk [vmem:[%s238 + $0x88] sm:$0xff] %vm1403, %v1388
      %1422 = vst.msk [vmem:[%s238 + $0x90] sm:$0xff] %vm1403, %v1389
      %1423 = vst.msk [vmem:[%s238 + $0x98] sm:$0xff] %vm1403, %v1390
      %1424 = vst.msk [vmem:[%s238 + $0xa0] sm:$0xff] %vm1403, %v1391
      %1425 = vst.msk [vmem:[%s238 + $0xa8] sm:$0xff] %vm1403, %v1392
      %1426 = vst.msk [vmem:[%s238 + $0xb0] sm:$0xff] %vm1403, %v1393
      %1427 = vst.msk [vmem:[%s238 + $0xb8] sm:$0xff] %vm1403, %v1394
      %1428 = vst.msk [vmem:[%s238 + $0xc0] sm:$0xff] %vm1403, %v1395
      %1429 = vst.msk [vmem:[%s238 + $0xc8] sm:$0xff] %vm1403, %v1396
      %1430 = vst.msk [vmem:[%s238 + $0xd0] sm:$0xff] %vm1403, %v1397
      %1431 = vst.msk [vmem:[%s238 + $0xd8] sm:$0xff] %vm1403, %v1398
      %1432 = vst.msk [vmem:[%s238 + $0xe0] sm:$0xff] %vm1403, %v1399
      %1433 = vst.msk [vmem:[%s238 + $0xe8] sm:$0xff] %vm1403, %v1400
      %1434 = vst.msk [vmem:[%s238 + $0xf0] sm:$0xff] %vm1403, %v1401
      %1435 = vst.msk [vmem:[%s238 + $0xf8] sm:$0xff] %vm1403, %v1402
      %1436 = vset.pattern.permute.xlu0 7
      %1437 = vperm.xlu0 %1436, %v828
      %v1438 = vpop.permute.xlu0 %1437
      %1440 = vset.pattern.permute.xlu0 7
      %1441 = vperm.xlu0 %1440, %v830
      %v1442 = vpop.permute.xlu0 %1441
      %1444 = vset.pattern.permute.xlu0 7
      %1445 = vperm.xlu0 %1444, %v832
      %v1446 = vpop.permute.xlu0 %1445
      %1448 = vset.pattern.permute.xlu0 7
      %1449 = vperm.xlu0 %1448, %v834
      %v1450 = vpop.permute.xlu0 %1449
      %1452 = vset.pattern.permute.xlu0 7
      %1453 = vperm.xlu0 %1452, %v836
      %v1454 = vpop.permute.xlu0 %1453
      %1456 = vset.pattern.permute.xlu0 7
      %1457 = vperm.xlu0 %1456, %v838
      %v1458 = vpop.permute.xlu0 %1457
      %1460 = vset.pattern.permute.xlu0 7
      %1461 = vperm.xlu0 %1460, %v840
      %v1462 = vpop.permute.xlu0 %1461
      %1464 = vset.pattern.permute.xlu0 7
      %1465 = vperm.xlu0 %1464, %v842
      %v1466 = vpop.permute.xlu0 %1465
      %1468 = vset.pattern.permute.xlu0 7
      %1469 = vperm.xlu0 %1468, %v844
      %v1470 = vpop.permute.xlu0 %1469
      %1472 = vset.pattern.permute.xlu0 7
      %1473 = vperm.xlu0 %1472, %v846
      %v1474 = vpop.permute.xlu0 %1473
      %1476 = vset.pattern.permute.xlu0 7
      %1477 = vperm.xlu0 %1476, %v848
      %v1478 = vpop.permute.xlu0 %1477
      %1480 = vset.pattern.permute.xlu0 7
      %1481 = vperm.xlu0 %1480, %v850
      %v1482 = vpop.permute.xlu0 %1481
      %1484 = vset.pattern.permute.xlu0 7
      %1485 = vperm.xlu0 %1484, %v852
      %v1486 = vpop.permute.xlu0 %1485
      %1488 = vset.pattern.permute.xlu0 7
      %1489 = vperm.xlu0 %1488, %v854
      %v1490 = vpop.permute.xlu0 %1489
      %1492 = vset.pattern.permute.xlu0 7
      %1493 = vperm.xlu0 %1492, %v856
      %v1494 = vpop.permute.xlu0 %1493
      %1496 = vset.pattern.permute.xlu0 7
      %1497 = vperm.xlu0 %1496, %v858
      %v1498 = vpop.permute.xlu0 %1497
      %1500 = vset.pattern.permute.xlu0 7
      %1501 = vperm.xlu0 %1500, %v860
      %v1502 = vpop.permute.xlu0 %1501
      %1504 = vset.pattern.permute.xlu0 7
      %1505 = vperm.xlu0 %1504, %v862
      %v1506 = vpop.permute.xlu0 %1505
      %1508 = vset.pattern.permute.xlu0 7
      %1509 = vperm.xlu0 %1508, %v864
      %v1510 = vpop.permute.xlu0 %1509
      %1512 = vset.pattern.permute.xlu0 7
      %1513 = vperm.xlu0 %1512, %v866
      %v1514 = vpop.permute.xlu0 %1513
      %1516 = vset.pattern.permute.xlu0 7
      %1517 = vperm.xlu0 %1516, %v868
      %v1518 = vpop.permute.xlu0 %1517
      %1520 = vset.pattern.permute.xlu0 7
      %1521 = vperm.xlu0 %1520, %v870
      %v1522 = vpop.permute.xlu0 %1521
      %1524 = vset.pattern.permute.xlu0 7
      %1525 = vperm.xlu0 %1524, %v872
      %v1526 = vpop.permute.xlu0 %1525
      %1528 = vset.pattern.permute.xlu0 7
      %1529 = vperm.xlu0 %1528, %v874
      %v1530 = vpop.permute.xlu0 %1529
      %1532 = vset.pattern.permute.xlu0 7
      %1533 = vperm.xlu0 %1532, %v876
      %v1534 = vpop.permute.xlu0 %1533
      %1536 = vset.pattern.permute.xlu0 7
      %1537 = vperm.xlu0 %1536, %v878
      %v1538 = vpop.permute.xlu0 %1537
      %1540 = vset.pattern.permute.xlu0 7
      %1541 = vperm.xlu0 %1540, %v880
      %v1542 = vpop.permute.xlu0 %1541
      %1544 = vset.pattern.permute.xlu0 7
      %1545 = vperm.xlu0 %1544, %v882
      %v1546 = vpop.permute.xlu0 %1545
      %1548 = vset.pattern.permute.xlu0 7
      %1549 = vperm.xlu0 %1548, %v884
      %v1550 = vpop.permute.xlu0 %1549
      %1552 = vset.pattern.permute.xlu0 7
      %1553 = vperm.xlu0 %1552, %v886
      %v1554 = vpop.permute.xlu0 %1553
      %1556 = vset.pattern.permute.xlu0 7
      %1557 = vperm.xlu0 %1556, %v888
      %v1558 = vpop.permute.xlu0 %1557
      %1560 = vset.pattern.permute.xlu0 7
      %1561 = vperm.xlu0 %1560, %v890
      %v1562 = vpop.permute.xlu0 %1561
      %v1564 = vmul.f32 %v1438, %v828
      %v1565 = vmul.f32 %v1442, %v830
      %v1566 = vmul.f32 %v1446, %v832
      %v1567 = vmul.f32 %v1450, %v834
      %v1568 = vmul.f32 %v1454, %v836
      %v1569 = vmul.f32 %v1458, %v838
      %v1570 = vmul.f32 %v1462, %v840
      %v1571 = vmul.f32 %v1466, %v842
      %v1572 = vmul.f32 %v1470, %v844
      %v1573 = vmul.f32 %v1474, %v846
      %v1574 = vmul.f32 %v1478, %v848
      %v1575 = vmul.f32 %v1482, %v850
      %v1576 = vmul.f32 %v1486, %v852
      %v1577 = vmul.f32 %v1490, %v854
      %v1578 = vmul.f32 %v1494, %v856
      %v1579 = vmul.f32 %v1498, %v858
      %v1580 = vmul.f32 %v1502, %v860
      %v1581 = vmul.f32 %v1506, %v862
      %v1582 = vmul.f32 %v1510, %v864
      %v1583 = vmul.f32 %v1514, %v866
      %v1584 = vmul.f32 %v1518, %v868
      %v1585 = vmul.f32 %v1522, %v870
      %v1586 = vmul.f32 %v1526, %v872
      %v1587 = vmul.f32 %v1530, %v874
      %v1588 = vmul.f32 %v1534, %v876
      %v1589 = vmul.f32 %v1538, %v878
      %v1590 = vmul.f32 %v1542, %v880
      %v1591 = vmul.f32 %v1546, %v882
      %v1592 = vmul.f32 %v1550, %v884
      %v1593 = vmul.f32 %v1554, %v886
      %v1594 = vmul.f32 %v1558, %v888
      %v1595 = vmul.f32 %v1562, %v890
      %1596 = vset.pattern.permute.xlu0 7
      %1597 = vperm.xlu0 %1596, %v1147
      %v1598 = vpop.permute.xlu0 %1597
      %1600 = vset.pattern.permute.xlu0 7
      %1601 = vperm.xlu0 %1600, %v1148
      %v1602 = vpop.permute.xlu0 %1601
      %1604 = vset.pattern.permute.xlu0 7
      %1605 = vperm.xlu0 %1604, %v1149
      %v1606 = vpop.permute.xlu0 %1605
      %1608 = vset.pattern.permute.xlu0 7
      %1609 = vperm.xlu0 %1608, %v1150
      %v1610 = vpop.permute.xlu0 %1609
      %1612 = vset.pattern.permute.xlu0 7
      %1613 = vperm.xlu0 %1612, %v1151
      %v1614 = vpop.permute.xlu0 %1613
      %1616 = vset.pattern.permute.xlu0 7
      %1617 = vperm.xlu0 %1616, %v1152
      %v1618 = vpop.permute.xlu0 %1617
      %1620 = vset.pattern.permute.xlu0 7
      %1621 = vperm.xlu0 %1620, %v1153
      %v1622 = vpop.permute.xlu0 %1621
      %1624 = vset.pattern.permute.xlu0 7
      %1625 = vperm.xlu0 %1624, %v1154
      %v1626 = vpop.permute.xlu0 %1625
      %1628 = vset.pattern.permute.xlu0 7
      %1629 = vperm.xlu0 %1628, %v1155
      %v1630 = vpop.permute.xlu0 %1629
      %1632 = vset.pattern.permute.xlu0 7
      %1633 = vperm.xlu0 %1632, %v1156
      %v1634 = vpop.permute.xlu0 %1633
      %1636 = vset.pattern.permute.xlu0 7
      %1637 = vperm.xlu0 %1636, %v1157
      %v1638 = vpop.permute.xlu0 %1637
      %1640 = vset.pattern.permute.xlu0 7
      %1641 = vperm.xlu0 %1640, %v1158
      %v1642 = vpop.permute.xlu0 %1641
      %1644 = vset.pattern.permute.xlu0 7
      %1645 = vperm.xlu0 %1644, %v1159
      %v1646 = vpop.permute.xlu0 %1645
      %1648 = vset.pattern.permute.xlu0 7
      %1649 = vperm.xlu0 %1648, %v1160
      %v1650 = vpop.permute.xlu0 %1649
      %1652 = vset.pattern.permute.xlu0 7
      %1653 = vperm.xlu0 %1652, %v1161
      %v1654 = vpop.permute.xlu0 %1653
      %1656 = vset.pattern.permute.xlu0 7
      %1657 = vperm.xlu0 %1656, %v1162
      %v1658 = vpop.permute.xlu0 %1657
      %1660 = vset.pattern.permute.xlu0 7
      %1661 = vperm.xlu0 %1660, %v1163
      %v1662 = vpop.permute.xlu0 %1661
      %1664 = vset.pattern.permute.xlu0 7
      %1665 = vperm.xlu0 %1664, %v1164
      %v1666 = vpop.permute.xlu0 %1665
      %1668 = vset.pattern.permute.xlu0 7
      %1669 = vperm.xlu0 %1668, %v1165
      %v1670 = vpop.permute.xlu0 %1669
      %1672 = vset.pattern.permute.xlu0 7
      %1673 = vperm.xlu0 %1672, %v1166
      %v1674 = vpop.permute.xlu0 %1673
      %1676 = vset.pattern.permute.xlu0 7
      %1677 = vperm.xlu0 %1676, %v1167
      %v1678 = vpop.permute.xlu0 %1677
      %1680 = vset.pattern.permute.xlu0 7
      %1681 = vperm.xlu0 %1680, %v1168
      %v1682 = vpop.permute.xlu0 %1681
      %1684 = vset.pattern.permute.xlu0 7
      %1685 = vperm.xlu0 %1684, %v1169
      %v1686 = vpop.permute.xlu0 %1685
      %1688 = vset.pattern.permute.xlu0 7
      %1689 = vperm.xlu0 %1688, %v1170
      %v1690 = vpop.permute.xlu0 %1689
      %1692 = vset.pattern.permute.xlu0 7
      %1693 = vperm.xlu0 %1692, %v1171
      %v1694 = vpop.permute.xlu0 %1693
      %1696 = vset.pattern.permute.xlu0 7
      %1697 = vperm.xlu0 %1696, %v1172
      %v1698 = vpop.permute.xlu0 %1697
      %1700 = vset.pattern.permute.xlu0 7
      %1701 = vperm.xlu0 %1700, %v1173
      %v1702 = vpop.permute.xlu0 %1701
      %1704 = vset.pattern.permute.xlu0 7
      %1705 = vperm.xlu0 %1704, %v1174
      %v1706 = vpop.permute.xlu0 %1705
      %1708 = vset.pattern.permute.xlu0 7
      %1709 = vperm.xlu0 %1708, %v1175
      %v1710 = vpop.permute.xlu0 %1709
      %1712 = vset.pattern.permute.xlu0 7
      %1713 = vperm.xlu0 %1712, %v1176
      %v1714 = vpop.permute.xlu0 %1713
      %1716 = vset.pattern.permute.xlu0 7
      %1717 = vperm.xlu0 %1716, %v1177
      %v1718 = vpop.permute.xlu0 %1717
      %1720 = vset.pattern.permute.xlu0 7
      %1721 = vperm.xlu0 %1720, %v1178
      %v1722 = vpop.permute.xlu0 %1721
      %v1724 = vmul.f32 %v1598, %v923
      %v1725 = vmul.f32 %v1602, %v924
      %v1726 = vmul.f32 %v1606, %v925
      %v1727 = vmul.f32 %v1610, %v926
      %v1728 = vmul.f32 %v1614, %v927
      %v1729 = vmul.f32 %v1618, %v928
      %v1730 = vmul.f32 %v1622, %v929
      %v1731 = vmul.f32 %v1626, %v930
      %v1732 = vmul.f32 %v1630, %v931
      %v1733 = vmul.f32 %v1634, %v932
      %v1734 = vmul.f32 %v1638, %v933
      %v1735 = vmul.f32 %v1642, %v934
      %v1736 = vmul.f32 %v1646, %v935
      %v1737 = vmul.f32 %v1650, %v936
      %v1738 = vmul.f32 %v1654, %v937
      %v1739 = vmul.f32 %v1658, %v938
      %v1740 = vmul.f32 %v1662, %v939
      %v1741 = vmul.f32 %v1666, %v940
      %v1742 = vmul.f32 %v1670, %v941
      %v1743 = vmul.f32 %v1674, %v942
      %v1744 = vmul.f32 %v1678, %v943
      %v1745 = vmul.f32 %v1682, %v944
      %v1746 = vmul.f32 %v1686, %v945
      %v1747 = vmul.f32 %v1690, %v946
      %v1748 = vmul.f32 %v1694, %v947
      %v1749 = vmul.f32 %v1698, %v948
      %v1750 = vmul.f32 %v1702, %v949
      %v1751 = vmul.f32 %v1706, %v950
      %v1752 = vmul.f32 %v1710, %v951
      %v1753 = vmul.f32 %v1714, %v952
      %v1754 = vmul.f32 %v1718, %v953
      %v1755 = vmul.f32 %v1722, %v954
      %1788 = vrot.lane.b32.xlu0 %v1724, 1
      %v1789 = vpop.permute.xlu0 %1788
      %1790 = vrot.lane.b32.xlu0 %v1725, 1
      %v1791 = vpop.permute.xlu0 %1790
      %1792 = vrot.lane.b32.xlu0 %v1726, 1
      %v1793 = vpop.permute.xlu0 %1792
      %1794 = vrot.lane.b32.xlu0 %v1727, 1
      %v1795 = vpop.permute.xlu0 %1794
      %1796 = vrot.lane.b32.xlu0 %v1728, 1
      %v1797 = vpop.permute.xlu0 %1796
      %1798 = vrot.lane.b32.xlu0 %v1729, 1
      %v1799 = vpop.permute.xlu0 %1798
      %1800 = vrot.lane.b32.xlu0 %v1730, 1
      %v1801 = vpop.permute.xlu0 %1800
      %1802 = vrot.lane.b32.xlu0 %v1731, 1
      %v1803 = vpop.permute.xlu0 %1802
      %1804 = vrot.lane.b32.xlu0 %v1732, 1
      %v1805 = vpop.permute.xlu0 %1804
      %1806 = vrot.lane.b32.xlu0 %v1733, 1
      %v1807 = vpop.permute.xlu0 %1806
      %1808 = vrot.lane.b32.xlu0 %v1734, 1
      %v1809 = vpop.permute.xlu0 %1808
      %1810 = vrot.lane.b32.xlu0 %v1735, 1
      %v1811 = vpop.permute.xlu0 %1810
      %1812 = vrot.lane.b32.xlu0 %v1736, 1
      %v1813 = vpop.permute.xlu0 %1812
      %1814 = vrot.lane.b32.xlu0 %v1737, 1
      %v1815 = vpop.permute.xlu0 %1814
      %1816 = vrot.lane.b32.xlu0 %v1738, 1
      %v1817 = vpop.permute.xlu0 %1816
      %1818 = vrot.lane.b32.xlu0 %v1739, 1
      %v1819 = vpop.permute.xlu0 %1818
      %1820 = vrot.lane.b32.xlu0 %v1740, 1
      %v1821 = vpop.permute.xlu0 %1820
      %1822 = vrot.lane.b32.xlu0 %v1741, 1
      %v1823 = vpop.permute.xlu0 %1822
      %1824 = vrot.lane.b32.xlu0 %v1742, 1
      %v1825 = vpop.permute.xlu0 %1824
      %1826 = vrot.lane.b32.xlu0 %v1743, 1
      %v1827 = vpop.permute.xlu0 %1826
      %1828 = vrot.lane.b32.xlu0 %v1744, 1
      %v1829 = vpop.permute.xlu0 %1828
      %1830 = vrot.lane.b32.xlu0 %v1745, 1
      %v1831 = vpop.permute.xlu0 %1830
      %1832 = vrot.lane.b32.xlu0 %v1746, 1
      %v1833 = vpop.permute.xlu0 %1832
      %1834 = vrot.lane.b32.xlu0 %v1747, 1
      %v1835 = vpop.permute.xlu0 %1834
      %1836 = vrot.lane.b32.xlu0 %v1748, 1
      %v1837 = vpop.permute.xlu0 %1836
      %1838 = vrot.lane.b32.xlu0 %v1749, 1
      %v1839 = vpop.permute.xlu0 %1838
      %1840 = vrot.lane.b32.xlu0 %v1750, 1
      %v1841 = vpop.permute.xlu0 %1840
      %1842 = vrot.lane.b32.xlu0 %v1751, 1
      %v1843 = vpop.permute.xlu0 %1842
      %1844 = vrot.lane.b32.xlu0 %v1752, 1
      %v1845 = vpop.permute.xlu0 %1844
      %1846 = vrot.lane.b32.xlu0 %v1753, 1
      %v1847 = vpop.permute.xlu0 %1846
      %1848 = vrot.lane.b32.xlu0 %v1754, 1
      %v1849 = vpop.permute.xlu0 %1848
      %1850 = vrot.lane.b32.xlu0 %v1755, 1
      %v1851 = vpop.permute.xlu0 %1850
      %v1884 = vadd.f32 %v1564, %v1789
      %v1885 = vadd.f32 %v1565, %v1791
      %v1886 = vadd.f32 %v1566, %v1793
      %v1887 = vadd.f32 %v1567, %v1795
      %v1888 = vadd.f32 %v1568, %v1797
      %v1889 = vadd.f32 %v1569, %v1799
      %v1890 = vadd.f32 %v1570, %v1801
      %v1891 = vadd.f32 %v1571, %v1803
      %v1892 = vadd.f32 %v1572, %v1805
      %v1893 = vadd.f32 %v1573, %v1807
      %v1894 = vadd.f32 %v1574, %v1809
      %v1895 = vadd.f32 %v1575, %v1811
      %v1896 = vadd.f32 %v1576, %v1813
      %v1897 = vadd.f32 %v1577, %v1815
      %v1898 = vadd.f32 %v1578, %v1817
      %v1899 = vadd.f32 %v1579, %v1819
      %v1900 = vadd.f32 %v1580, %v1821
      %v1901 = vadd.f32 %v1581, %v1823
      %v1902 = vadd.f32 %v1582, %v1825
      %v1903 = vadd.f32 %v1583, %v1827
      %v1904 = vadd.f32 %v1584, %v1829
      %v1905 = vadd.f32 %v1585, %v1831
      %v1906 = vadd.f32 %v1586, %v1833
      %v1907 = vadd.f32 %v1587, %v1835
      %v1908 = vadd.f32 %v1588, %v1837
      %v1909 = vadd.f32 %v1589, %v1839
      %v1910 = vadd.f32 %v1590, %v1841
      %v1911 = vadd.f32 %v1591, %v1843
      %v1912 = vadd.f32 %v1592, %v1845
      %v1913 = vadd.f32 %v1593, %v1847
      %v1914 = vadd.f32 %v1594, %v1849
      %v1915 = vadd.f32 %v1595, %v1851
      %1948 = vrot.lane.b32.xlu0 %v1884, 127
      %v1949 = vpop.permute.xlu0 %1948
      %1950 = vrot.lane.b32.xlu0 %v1885, 127
      %v1951 = vpop.permute.xlu0 %1950
      %1952 = vrot.lane.b32.xlu0 %v1886, 127
      %v1953 = vpop.permute.xlu0 %1952
      %1954 = vrot.lane.b32.xlu0 %v1887, 127
      %v1955 = vpop.permute.xlu0 %1954
      %1956 = vrot.lane.b32.xlu0 %v1888, 127
      %v1957 = vpop.permute.xlu0 %1956
      %1958 = vrot.lane.b32.xlu0 %v1889, 127
      %v1959 = vpop.permute.xlu0 %1958
      %1960 = vrot.lane.b32.xlu0 %v1890, 127
      %v1961 = vpop.permute.xlu0 %1960
      %1962 = vrot.lane.b32.xlu0 %v1891, 127
      %v1963 = vpop.permute.xlu0 %1962
      %1964 = vrot.lane.b32.xlu0 %v1892, 127
      %v1965 = vpop.permute.xlu0 %1964
      %1966 = vrot.lane.b32.xlu0 %v1893, 127
      %v1967 = vpop.permute.xlu0 %1966
      %1968 = vrot.lane.b32.xlu0 %v1894, 127
      %v1969 = vpop.permute.xlu0 %1968
      %1970 = vrot.lane.b32.xlu0 %v1895, 127
      %v1971 = vpop.permute.xlu0 %1970
      %1972 = vrot.lane.b32.xlu0 %v1896, 127
      %v1973 = vpop.permute.xlu0 %1972
      %1974 = vrot.lane.b32.xlu0 %v1897, 127
      %v1975 = vpop.permute.xlu0 %1974
      %1976 = vrot.lane.b32.xlu0 %v1898, 127
      %v1977 = vpop.permute.xlu0 %1976
      %1978 = vrot.lane.b32.xlu0 %v1899, 127
      %v1979 = vpop.permute.xlu0 %1978
      %1980 = vrot.lane.b32.xlu0 %v1900, 127
      %v1981 = vpop.permute.xlu0 %1980
      %1982 = vrot.lane.b32.xlu0 %v1901, 127
      %v1983 = vpop.permute.xlu0 %1982
      %1984 = vrot.lane.b32.xlu0 %v1902, 127
      %v1985 = vpop.permute.xlu0 %1984
      %1986 = vrot.lane.b32.xlu0 %v1903, 127
      %v1987 = vpop.permute.xlu0 %1986
      %1988 = vrot.lane.b32.xlu0 %v1904, 127
      %v1989 = vpop.permute.xlu0 %1988
      %1990 = vrot.lane.b32.xlu0 %v1905, 127
      %v1991 = vpop.permute.xlu0 %1990
      %1992 = vrot.lane.b32.xlu0 %v1906, 127
      %v1993 = vpop.permute.xlu0 %1992
      %1994 = vrot.lane.b32.xlu0 %v1907, 127
      %v1995 = vpop.permute.xlu0 %1994
      %1996 = vrot.lane.b32.xlu0 %v1908, 127
      %v1997 = vpop.permute.xlu0 %1996
      %1998 = vrot.lane.b32.xlu0 %v1909, 127
      %v1999 = vpop.permute.xlu0 %1998
      %2000 = vrot.lane.b32.xlu0 %v1910, 127
      %v2001 = vpop.permute.xlu0 %2000
      %2002 = vrot.lane.b32.xlu0 %v1911, 127
      %v2003 = vpop.permute.xlu0 %2002
      %2004 = vrot.lane.b32.xlu0 %v1912, 127
      %v2005 = vpop.permute.xlu0 %2004
      %2006 = vrot.lane.b32.xlu0 %v1913, 127
      %v2007 = vpop.permute.xlu0 %2006
      %2008 = vrot.lane.b32.xlu0 %v1914, 127
      %v2009 = vpop.permute.xlu0 %2008
      %2010 = vrot.lane.b32.xlu0 %v1915, 127
      %v2011 = vpop.permute.xlu0 %2010
      %vm2044 = vcmask 48152
      %2045 = vst.msk [vmem:[%s238] sm:$0xff] %vm2044, %v1949
      %2046 = vst.msk [vmem:[%s238 + $0x8] sm:$0xff] %vm2044, %v1951
      %2047 = vst.msk [vmem:[%s238 + $0x10] sm:$0xff] %vm2044, %v1953
      %2048 = vst.msk [vmem:[%s238 + $0x18] sm:$0xff] %vm2044, %v1955
      %2049 = vst.msk [vmem:[%s238 + $0x20] sm:$0xff] %vm2044, %v1957
      %2050 = vst.msk [vmem:[%s238 + $0x28] sm:$0xff] %vm2044, %v1959
      %2051 = vst.msk [vmem:[%s238 + $0x30] sm:$0xff] %vm2044, %v1961
      %2052 = vst.msk [vmem:[%s238 + $0x38] sm:$0xff] %vm2044, %v1963
      %2053 = vst.msk [vmem:[%s238 + $0x40] sm:$0xff] %vm2044, %v1965
      %2054 = vst.msk [vmem:[%s238 + $0x48] sm:$0xff] %vm2044, %v1967
      %2055 = vst.msk [vmem:[%s238 + $0x50] sm:$0xff] %vm2044, %v1969
      %2056 = vst.msk [vmem:[%s238 + $0x58] sm:$0xff] %vm2044, %v1971
      %2057 = vst.msk [vmem:[%s238 + $0x60] sm:$0xff] %vm2044, %v1973
      %2058 = vst.msk [vmem:[%s238 + $0x68] sm:$0xff] %vm2044, %v1975
      %2059 = vst.msk [vmem:[%s238 + $0x70] sm:$0xff] %vm2044, %v1977
      %2060 = vst.msk [vmem:[%s238 + $0x78] sm:$0xff] %vm2044, %v1979
      %2061 = vst.msk [vmem:[%s238 + $0x80] sm:$0xff] %vm2044, %v1981
      %2062 = vst.msk [vmem:[%s238 + $0x88] sm:$0xff] %vm2044, %v1983
      %2063 = vst.msk [vmem:[%s238 + $0x90] sm:$0xff] %vm2044, %v1985
      %2064 = vst.msk [vmem:[%s238 + $0x98] sm:$0xff] %vm2044, %v1987
      %2065 = vst.msk [vmem:[%s238 + $0xa0] sm:$0xff] %vm2044, %v1989
      %2066 = vst.msk [vmem:[%s238 + $0xa8] sm:$0xff] %vm2044, %v1991
      %2067 = vst.msk [vmem:[%s238 + $0xb0] sm:$0xff] %vm2044, %v1993
      %2068 = vst.msk [vmem:[%s238 + $0xb8] sm:$0xff] %vm2044, %v1995
      %2069 = vst.msk [vmem:[%s238 + $0xc0] sm:$0xff] %vm2044, %v1997
      %2070 = vst.msk [vmem:[%s238 + $0xc8] sm:$0xff] %vm2044, %v1999
      %2071 = vst.msk [vmem:[%s238 + $0xd0] sm:$0xff] %vm2044, %v2001
      %2072 = vst.msk [vmem:[%s238 + $0xd8] sm:$0xff] %vm2044, %v2003
      %2073 = vst.msk [vmem:[%s238 + $0xe0] sm:$0xff] %vm2044, %v2005
      %2074 = vst.msk [vmem:[%s238 + $0xe8] sm:$0xff] %vm2044, %v2007
      %2075 = vst.msk [vmem:[%s238 + $0xf0] sm:$0xff] %vm2044, %v2009
      %2076 = vst.msk [vmem:[%s238 + $0xf8] sm:$0xff] %vm2044, %v2011
      %2077 = vset.pattern.permute.xlu0 11
      %2078 = vperm.xlu0 %2077, %v828
      %v2079 = vpop.permute.xlu0 %2078
      %2081 = vset.pattern.permute.xlu0 11
      %2082 = vperm.xlu0 %2081, %v830
      %v2083 = vpop.permute.xlu0 %2082
      %2085 = vset.pattern.permute.xlu0 11
      %2086 = vperm.xlu0 %2085, %v832
      %v2087 = vpop.permute.xlu0 %2086
      %2089 = vset.pattern.permute.xlu0 11
      %2090 = vperm.xlu0 %2089, %v834
      %v2091 = vpop.permute.xlu0 %2090
      %2093 = vset.pattern.permute.xlu0 11
      %2094 = vperm.xlu0 %2093, %v836
      %v2095 = vpop.permute.xlu0 %2094
      %2097 = vset.pattern.permute.xlu0 11
      %2098 = vperm.xlu0 %2097, %v838
      %v2099 = vpop.permute.xlu0 %2098
      %2101 = vset.pattern.permute.xlu0 11
      %2102 = vperm.xlu0 %2101, %v840
      %v2103 = vpop.permute.xlu0 %2102
      %2105 = vset.pattern.permute.xlu0 11
      %2106 = vperm.xlu0 %2105, %v842
      %v2107 = vpop.permute.xlu0 %2106
      %2109 = vset.pattern.permute.xlu0 11
      %2110 = vperm.xlu0 %2109, %v844
      %v2111 = vpop.permute.xlu0 %2110
      %2113 = vset.pattern.permute.xlu0 11
      %2114 = vperm.xlu0 %2113, %v846
      %v2115 = vpop.permute.xlu0 %2114
      %2117 = vset.pattern.permute.xlu0 11
      %2118 = vperm.xlu0 %2117, %v848
      %v2119 = vpop.permute.xlu0 %2118
      %2121 = vset.pattern.permute.xlu0 11
      %2122 = vperm.xlu0 %2121, %v850
      %v2123 = vpop.permute.xlu0 %2122
      %2125 = vset.pattern.permute.xlu0 11
      %2126 = vperm.xlu0 %2125, %v852
      %v2127 = vpop.permute.xlu0 %2126
      %2129 = vset.pattern.permute.xlu0 11
      %2130 = vperm.xlu0 %2129, %v854
      %v2131 = vpop.permute.xlu0 %2130
      %2133 = vset.pattern.permute.xlu0 11
      %2134 = vperm.xlu0 %2133, %v856
      %v2135 = vpop.permute.xlu0 %2134
      %2137 = vset.pattern.permute.xlu0 11
      %2138 = vperm.xlu0 %2137, %v858
      %v2139 = vpop.permute.xlu0 %2138
      %2141 = vset.pattern.permute.xlu0 11
      %2142 = vperm.xlu0 %2141, %v860
      %v2143 = vpop.permute.xlu0 %2142
      %2145 = vset.pattern.permute.xlu0 11
      %2146 = vperm.xlu0 %2145, %v862
      %v2147 = vpop.permute.xlu0 %2146
      %2149 = vset.pattern.permute.xlu0 11
      %2150 = vperm.xlu0 %2149, %v864
      %v2151 = vpop.permute.xlu0 %2150
      %2153 = vset.pattern.permute.xlu0 11
      %2154 = vperm.xlu0 %2153, %v866
      %v2155 = vpop.permute.xlu0 %2154
      %2157 = vset.pattern.permute.xlu0 11
      %2158 = vperm.xlu0 %2157, %v868
      %v2159 = vpop.permute.xlu0 %2158
      %2161 = vset.pattern.permute.xlu0 11
      %2162 = vperm.xlu0 %2161, %v870
      %v2163 = vpop.permute.xlu0 %2162
      %2165 = vset.pattern.permute.xlu0 11
      %2166 = vperm.xlu0 %2165, %v872
      %v2167 = vpop.permute.xlu0 %2166
      %2169 = vset.pattern.permute.xlu0 11
      %2170 = vperm.xlu0 %2169, %v874
      %v2171 = vpop.permute.xlu0 %2170
      %2173 = vset.pattern.permute.xlu0 11
      %2174 = vperm.xlu0 %2173, %v876
      %v2175 = vpop.permute.xlu0 %2174
      %2177 = vset.pattern.permute.xlu0 11
      %2178 = vperm.xlu0 %2177, %v878
      %v2179 = vpop.permute.xlu0 %2178
      %2181 = vset.pattern.permute.xlu0 11
      %2182 = vperm.xlu0 %2181, %v880
      %v2183 = vpop.permute.xlu0 %2182
      %2185 = vset.pattern.permute.xlu0 11
      %2186 = vperm.xlu0 %2185, %v882
      %v2187 = vpop.permute.xlu0 %2186
      %2189 = vset.pattern.permute.xlu0 11
      %2190 = vperm.xlu0 %2189, %v884
      %v2191 = vpop.permute.xlu0 %2190
      %2193 = vset.pattern.permute.xlu0 11
      %2194 = vperm.xlu0 %2193, %v886
      %v2195 = vpop.permute.xlu0 %2194
      %2197 = vset.pattern.permute.xlu0 11
      %2198 = vperm.xlu0 %2197, %v888
      %v2199 = vpop.permute.xlu0 %2198
      %2201 = vset.pattern.permute.xlu0 11
      %2202 = vperm.xlu0 %2201, %v890
      %v2203 = vpop.permute.xlu0 %2202
      %v2205 = vmul.f32 %v2079, %v828
      %v2206 = vmul.f32 %v2083, %v830
      %v2207 = vmul.f32 %v2087, %v832
      %v2208 = vmul.f32 %v2091, %v834
      %v2209 = vmul.f32 %v2095, %v836
      %v2210 = vmul.f32 %v2099, %v838
      %v2211 = vmul.f32 %v2103, %v840
      %v2212 = vmul.f32 %v2107, %v842
      %v2213 = vmul.f32 %v2111, %v844
      %v2214 = vmul.f32 %v2115, %v846
      %v2215 = vmul.f32 %v2119, %v848
      %v2216 = vmul.f32 %v2123, %v850
      %v2217 = vmul.f32 %v2127, %v852
      %v2218 = vmul.f32 %v2131, %v854
      %v2219 = vmul.f32 %v2135, %v856
      %v2220 = vmul.f32 %v2139, %v858
      %v2221 = vmul.f32 %v2143, %v860
      %v2222 = vmul.f32 %v2147, %v862
      %v2223 = vmul.f32 %v2151, %v864
      %v2224 = vmul.f32 %v2155, %v866
      %v2225 = vmul.f32 %v2159, %v868
      %v2226 = vmul.f32 %v2163, %v870
      %v2227 = vmul.f32 %v2167, %v872
      %v2228 = vmul.f32 %v2171, %v874
      %v2229 = vmul.f32 %v2175, %v876
      %v2230 = vmul.f32 %v2179, %v878
      %v2231 = vmul.f32 %v2183, %v880
      %v2232 = vmul.f32 %v2187, %v882
      %v2233 = vmul.f32 %v2191, %v884
      %v2234 = vmul.f32 %v2195, %v886
      %v2235 = vmul.f32 %v2199, %v888
      %v2236 = vmul.f32 %v2203, %v890
      %2237 = vset.pattern.permute.xlu0 11
      %2238 = vperm.xlu0 %2237, %v1147
      %v2239 = vpop.permute.xlu0 %2238
      %2241 = vset.pattern.permute.xlu0 11
      %2242 = vperm.xlu0 %2241, %v1148
      %v2243 = vpop.permute.xlu0 %2242
      %2245 = vset.pattern.permute.xlu0 11
      %2246 = vperm.xlu0 %2245, %v1149
      %v2247 = vpop.permute.xlu0 %2246
      %2249 = vset.pattern.permute.xlu0 11
      %2250 = vperm.xlu0 %2249, %v1150
      %v2251 = vpop.permute.xlu0 %2250
      %2253 = vset.pattern.permute.xlu0 11
      %2254 = vperm.xlu0 %2253, %v1151
      %v2255 = vpop.permute.xlu0 %2254
      %2257 = vset.pattern.permute.xlu0 11
      %2258 = vperm.xlu0 %2257, %v1152
      %v2259 = vpop.permute.xlu0 %2258
      %2261 = vset.pattern.permute.xlu0 11
      %2262 = vperm.xlu0 %2261, %v1153
      %v2263 = vpop.permute.xlu0 %2262
      %2265 = vset.pattern.permute.xlu0 11
      %2266 = vperm.xlu0 %2265, %v1154
      %v2267 = vpop.permute.xlu0 %2266
      %2269 = vset.pattern.permute.xlu0 11
      %2270 = vperm.xlu0 %2269, %v1155
      %v2271 = vpop.permute.xlu0 %2270
      %2273 = vset.pattern.permute.xlu0 11
      %2274 = vperm.xlu0 %2273, %v1156
      %v2275 = vpop.permute.xlu0 %2274
      %2277 = vset.pattern.permute.xlu0 11
      %2278 = vperm.xlu0 %2277, %v1157
      %v2279 = vpop.permute.xlu0 %2278
      %2281 = vset.pattern.permute.xlu0 11
      %2282 = vperm.xlu0 %2281, %v1158
      %v2283 = vpop.permute.xlu0 %2282
      %2285 = vset.pattern.permute.xlu0 11
      %2286 = vperm.xlu0 %2285, %v1159
      %v2287 = vpop.permute.xlu0 %2286
      %2289 = vset.pattern.permute.xlu0 11
      %2290 = vperm.xlu0 %2289, %v1160
      %v2291 = vpop.permute.xlu0 %2290
      %2293 = vset.pattern.permute.xlu0 11
      %2294 = vperm.xlu0 %2293, %v1161
      %v2295 = vpop.permute.xlu0 %2294
      %2297 = vset.pattern.permute.xlu0 11
      %2298 = vperm.xlu0 %2297, %v1162
      %v2299 = vpop.permute.xlu0 %2298
      %2301 = vset.pattern.permute.xlu0 11
      %2302 = vperm.xlu0 %2301, %v1163
      %v2303 = vpop.permute.xlu0 %2302
      %2305 = vset.pattern.permute.xlu0 11
      %2306 = vperm.xlu0 %2305, %v1164
      %v2307 = vpop.permute.xlu0 %2306
      %2309 = vset.pattern.permute.xlu0 11
      %2310 = vperm.xlu0 %2309, %v1165
      %v2311 = vpop.permute.xlu0 %2310
      %2313 = vset.pattern.permute.xlu0 11
      %2314 = vperm.xlu0 %2313, %v1166
      %v2315 = vpop.permute.xlu0 %2314
      %2317 = vset.pattern.permute.xlu0 11
      %2318 = vperm.xlu0 %2317, %v1167
      %v2319 = vpop.permute.xlu0 %2318
      %2321 = vset.pattern.permute.xlu0 11
      %2322 = vperm.xlu0 %2321, %v1168
      %v2323 = vpop.permute.xlu0 %2322
      %2325 = vset.pattern.permute.xlu0 11
      %2326 = vperm.xlu0 %2325, %v1169
      %v2327 = vpop.permute.xlu0 %2326
      %2329 = vset.pattern.permute.xlu0 11
      %2330 = vperm.xlu0 %2329, %v1170
      %v2331 = vpop.permute.xlu0 %2330
      %2333 = vset.pattern.permute.xlu0 11
      %2334 = vperm.xlu0 %2333, %v1171
      %v2335 = vpop.permute.xlu0 %2334
      %2337 = vset.pattern.permute.xlu0 11
      %2338 = vperm.xlu0 %2337, %v1172
      %v2339 = vpop.permute.xlu0 %2338
      %2341 = vset.pattern.permute.xlu0 11
      %2342 = vperm.xlu0 %2341, %v1173
      %v2343 = vpop.permute.xlu0 %2342
      %2345 = vset.pattern.permute.xlu0 11
      %2346 = vperm.xlu0 %2345, %v1174
      %v2347 = vpop.permute.xlu0 %2346
      %2349 = vset.pattern.permute.xlu0 11
      %2350 = vperm.xlu0 %2349, %v1175
      %v2351 = vpop.permute.xlu0 %2350
      %2353 = vset.pattern.permute.xlu0 11
      %2354 = vperm.xlu0 %2353, %v1176
      %v2355 = vpop.permute.xlu0 %2354
      %2357 = vset.pattern.permute.xlu0 11
      %2358 = vperm.xlu0 %2357, %v1177
      %v2359 = vpop.permute.xlu0 %2358
      %2361 = vset.pattern.permute.xlu0 11
      %2362 = vperm.xlu0 %2361, %v1178
      %v2363 = vpop.permute.xlu0 %2362
      %v2365 = vmul.f32 %v2239, %v923
      %v2366 = vmul.f32 %v2243, %v924
      %v2367 = vmul.f32 %v2247, %v925
      %v2368 = vmul.f32 %v2251, %v926
      %v2369 = vmul.f32 %v2255, %v927
      %v2370 = vmul.f32 %v2259, %v928
      %v2371 = vmul.f32 %v2263, %v929
      %v2372 = vmul.f32 %v2267, %v930
      %v2373 = vmul.f32 %v2271, %v931
      %v2374 = vmul.f32 %v2275, %v932
      %v2375 = vmul.f32 %v2279, %v933
      %v2376 = vmul.f32 %v2283, %v934
      %v2377 = vmul.f32 %v2287, %v935
      %v2378 = vmul.f32 %v2291, %v936
      %v2379 = vmul.f32 %v2295, %v937
      %v2380 = vmul.f32 %v2299, %v938
      %v2381 = vmul.f32 %v2303, %v939
      %v2382 = vmul.f32 %v2307, %v940
      %v2383 = vmul.f32 %v2311, %v941
      %v2384 = vmul.f32 %v2315, %v942
      %v2385 = vmul.f32 %v2319, %v943
      %v2386 = vmul.f32 %v2323, %v944
      %v2387 = vmul.f32 %v2327, %v945
      %v2388 = vmul.f32 %v2331, %v946
      %v2389 = vmul.f32 %v2335, %v947
      %v2390 = vmul.f32 %v2339, %v948
      %v2391 = vmul.f32 %v2343, %v949
      %v2392 = vmul.f32 %v2347, %v950
      %v2393 = vmul.f32 %v2351, %v951
      %v2394 = vmul.f32 %v2355, %v952
      %v2395 = vmul.f32 %v2359, %v953
      %v2396 = vmul.f32 %v2363, %v954
      %2429 = vrot.lane.b32.xlu0 %v2365, 2
      %v2430 = vpop.permute.xlu0 %2429
      %2431 = vrot.lane.b32.xlu0 %v2366, 2
      %v2432 = vpop.permute.xlu0 %2431
      %2433 = vrot.lane.b32.xlu0 %v2367, 2
      %v2434 = vpop.permute.xlu0 %2433
      %2435 = vrot.lane.b32.xlu0 %v2368, 2
      %v2436 = vpop.permute.xlu0 %2435
      %2437 = vrot.lane.b32.xlu0 %v2369, 2
      %v2438 = vpop.permute.xlu0 %2437
      %2439 = vrot.lane.b32.xlu0 %v2370, 2
      %v2440 = vpop.permute.xlu0 %2439
      %2441 = vrot.lane.b32.xlu0 %v2371, 2
      %v2442 = vpop.permute.xlu0 %2441
      %2443 = vrot.lane.b32.xlu0 %v2372, 2
      %v2444 = vpop.permute.xlu0 %2443
      %2445 = vrot.lane.b32.xlu0 %v2373, 2
      %v2446 = vpop.permute.xlu0 %2445
      %2447 = vrot.lane.b32.xlu0 %v2374, 2
      %v2448 = vpop.permute.xlu0 %2447
      %2449 = vrot.lane.b32.xlu0 %v2375, 2
      %v2450 = vpop.permute.xlu0 %2449
      %2451 = vrot.lane.b32.xlu0 %v2376, 2
      %v2452 = vpop.permute.xlu0 %2451
      %2453 = vrot.lane.b32.xlu0 %v2377, 2
      %v2454 = vpop.permute.xlu0 %2453
      %2455 = vrot.lane.b32.xlu0 %v2378, 2
      %v2456 = vpop.permute.xlu0 %2455
      %2457 = vrot.lane.b32.xlu0 %v2379, 2
      %v2458 = vpop.permute.xlu0 %2457
      %2459 = vrot.lane.b32.xlu0 %v2380, 2
      %v2460 = vpop.permute.xlu0 %2459
      %2461 = vrot.lane.b32.xlu0 %v2381, 2
      %v2462 = vpop.permute.xlu0 %2461
      %2463 = vrot.lane.b32.xlu0 %v2382, 2
      %v2464 = vpop.permute.xlu0 %2463
      %2465 = vrot.lane.b32.xlu0 %v2383, 2
      %v2466 = vpop.permute.xlu0 %2465
      %2467 = vrot.lane.b32.xlu0 %v2384, 2
      %v2468 = vpop.permute.xlu0 %2467
      %2469 = vrot.lane.b32.xlu0 %v2385, 2
      %v2470 = vpop.permute.xlu0 %2469
      %2471 = vrot.lane.b32.xlu0 %v2386, 2
      %v2472 = vpop.permute.xlu0 %2471
      %2473 = vrot.lane.b32.xlu0 %v2387, 2
      %v2474 = vpop.permute.xlu0 %2473
      %2475 = vrot.lane.b32.xlu0 %v2388, 2
      %v2476 = vpop.permute.xlu0 %2475
      %2477 = vrot.lane.b32.xlu0 %v2389, 2
      %v2478 = vpop.permute.xlu0 %2477
      %2479 = vrot.lane.b32.xlu0 %v2390, 2
      %v2480 = vpop.permute.xlu0 %2479
      %2481 = vrot.lane.b32.xlu0 %v2391, 2
      %v2482 = vpop.permute.xlu0 %2481
      %2483 = vrot.lane.b32.xlu0 %v2392, 2
      %v2484 = vpop.permute.xlu0 %2483
      %2485 = vrot.lane.b32.xlu0 %v2393, 2
      %v2486 = vpop.permute.xlu0 %2485
      %2487 = vrot.lane.b32.xlu0 %v2394, 2
      %v2488 = vpop.permute.xlu0 %2487
      %2489 = vrot.lane.b32.xlu0 %v2395, 2
      %v2490 = vpop.permute.xlu0 %2489
      %2491 = vrot.lane.b32.xlu0 %v2396, 2
      %v2492 = vpop.permute.xlu0 %2491
      %v2525 = vadd.f32 %v2205, %v2430
      %v2526 = vadd.f32 %v2206, %v2432
      %v2527 = vadd.f32 %v2207, %v2434
      %v2528 = vadd.f32 %v2208, %v2436
      %v2529 = vadd.f32 %v2209, %v2438
      %v2530 = vadd.f32 %v2210, %v2440
      %v2531 = vadd.f32 %v2211, %v2442
      %v2532 = vadd.f32 %v2212, %v2444
      %v2533 = vadd.f32 %v2213, %v2446
      %v2534 = vadd.f32 %v2214, %v2448
      %v2535 = vadd.f32 %v2215, %v2450
      %v2536 = vadd.f32 %v2216, %v2452
      %v2537 = vadd.f32 %v2217, %v2454
      %v2538 = vadd.f32 %v2218, %v2456
      %v2539 = vadd.f32 %v2219, %v2458
      %v2540 = vadd.f32 %v2220, %v2460
      %v2541 = vadd.f32 %v2221, %v2462
      %v2542 = vadd.f32 %v2222, %v2464
      %v2543 = vadd.f32 %v2223, %v2466
      %v2544 = vadd.f32 %v2224, %v2468
      %v2545 = vadd.f32 %v2225, %v2470
      %v2546 = vadd.f32 %v2226, %v2472
      %v2547 = vadd.f32 %v2227, %v2474
      %v2548 = vadd.f32 %v2228, %v2476
      %v2549 = vadd.f32 %v2229, %v2478
      %v2550 = vadd.f32 %v2230, %v2480
      %v2551 = vadd.f32 %v2231, %v2482
      %v2552 = vadd.f32 %v2232, %v2484
      %v2553 = vadd.f32 %v2233, %v2486
      %v2554 = vadd.f32 %v2234, %v2488
      %v2555 = vadd.f32 %v2235, %v2490
      %v2556 = vadd.f32 %v2236, %v2492
      %2589 = vrot.lane.b32.xlu0 %v2525, 126
      %v2590 = vpop.permute.xlu0 %2589
      %2591 = vrot.lane.b32.xlu0 %v2526, 126
      %v2592 = vpop.permute.xlu0 %2591
      %2593 = vrot.lane.b32.xlu0 %v2527, 126
      %v2594 = vpop.permute.xlu0 %2593
      %2595 = vrot.lane.b32.xlu0 %v2528, 126
      %v2596 = vpop.permute.xlu0 %2595
      %2597 = vrot.lane.b32.xlu0 %v2529, 126
      %v2598 = vpop.permute.xlu0 %2597
      %2599 = vrot.lane.b32.xlu0 %v2530, 126
      %v2600 = vpop.permute.xlu0 %2599
      %2601 = vrot.lane.b32.xlu0 %v2531, 126
      %v2602 = vpop.permute.xlu0 %2601
      %2603 = vrot.lane.b32.xlu0 %v2532, 126
      %v2604 = vpop.permute.xlu0 %2603
      %2605 = vrot.lane.b32.xlu0 %v2533, 126
      %v2606 = vpop.permute.xlu0 %2605
      %2607 = vrot.lane.b32.xlu0 %v2534, 126
      %v2608 = vpop.permute.xlu0 %2607
      %2609 = vrot.lane.b32.xlu0 %v2535, 126
      %v2610 = vpop.permute.xlu0 %2609
      %2611 = vrot.lane.b32.xlu0 %v2536, 126
      %v2612 = vpop.permute.xlu0 %2611
      %2613 = vrot.lane.b32.xlu0 %v2537, 126
      %v2614 = vpop.permute.xlu0 %2613
      %2615 = vrot.lane.b32.xlu0 %v2538, 126
      %v2616 = vpop.permute.xlu0 %2615
      %2617 = vrot.lane.b32.xlu0 %v2539, 126
      %v2618 = vpop.permute.xlu0 %2617
      %2619 = vrot.lane.b32.xlu0 %v2540, 126
      %v2620 = vpop.permute.xlu0 %2619
      %2621 = vrot.lane.b32.xlu0 %v2541, 126
      %v2622 = vpop.permute.xlu0 %2621
      %2623 = vrot.lane.b32.xlu0 %v2542, 126
      %v2624 = vpop.permute.xlu0 %2623
      %2625 = vrot.lane.b32.xlu0 %v2543, 126
      %v2626 = vpop.permute.xlu0 %2625
      %2627 = vrot.lane.b32.xlu0 %v2544, 126
      %v2628 = vpop.permute.xlu0 %2627
      %2629 = vrot.lane.b32.xlu0 %v2545, 126
      %v2630 = vpop.permute.xlu0 %2629
      %2631 = vrot.lane.b32.xlu0 %v2546, 126
      %v2632 = vpop.permute.xlu0 %2631
      %2633 = vrot.lane.b32.xlu0 %v2547, 126
      %v2634 = vpop.permute.xlu0 %2633
      %2635 = vrot.lane.b32.xlu0 %v2548, 126
      %v2636 = vpop.permute.xlu0 %2635
      %2637 = vrot.lane.b32.xlu0 %v2549, 126
      %v2638 = vpop.permute.xlu0 %2637
      %2639 = vrot.lane.b32.xlu0 %v2550, 126
      %v2640 = vpop.permute.xlu0 %2639
      %2641 = vrot.lane.b32.xlu0 %v2551, 126
      %v2642 = vpop.permute.xlu0 %2641
      %2643 = vrot.lane.b32.xlu0 %v2552, 126
      %v2644 = vpop.permute.xlu0 %2643
      %2645 = vrot.lane.b32.xlu0 %v2553, 126
      %v2646 = vpop.permute.xlu0 %2645
      %2647 = vrot.lane.b32.xlu0 %v2554, 126
      %v2648 = vpop.permute.xlu0 %2647
      %2649 = vrot.lane.b32.xlu0 %v2555, 126
      %v2650 = vpop.permute.xlu0 %2649
      %2651 = vrot.lane.b32.xlu0 %v2556, 126
      %v2652 = vpop.permute.xlu0 %2651
      %vm2685 = vcmask 72752
      %2686 = vst.msk [vmem:[%s238] sm:$0xff] %vm2685, %v2590
      %2687 = vst.msk [vmem:[%s238 + $0x8] sm:$0xff] %vm2685, %v2592
      %2688 = vst.msk [vmem:[%s238 + $0x10] sm:$0xff] %vm2685, %v2594
      %2689 = vst.msk [vmem:[%s238 + $0x18] sm:$0xff] %vm2685, %v2596
      %2690 = vst.msk [vmem:[%s238 + $0x20] sm:$0xff] %vm2685, %v2598
      %2691 = vst.msk [vmem:[%s238 + $0x28] sm:$0xff] %vm2685, %v2600
      %2692 = vst.msk [vmem:[%s238 + $0x30] sm:$0xff] %vm2685, %v2602
      %2693 = vst.msk [vmem:[%s238 + $0x38] sm:$0xff] %vm2685, %v2604
      %2694 = vst.msk [vmem:[%s238 + $0x40] sm:$0xff] %vm2685, %v2606
      %2695 = vst.msk [vmem:[%s238 + $0x48] sm:$0xff] %vm2685, %v2608
      %2696 = vst.msk [vmem:[%s238 + $0x50] sm:$0xff] %vm2685, %v2610
      %2697 = vst.msk [vmem:[%s238 + $0x58] sm:$0xff] %vm2685, %v2612
      %2698 = vst.msk [vmem:[%s238 + $0x60] sm:$0xff] %vm2685, %v2614
      %2699 = vst.msk [vmem:[%s238 + $0x68] sm:$0xff] %vm2685, %v2616
      %2700 = vst.msk [vmem:[%s238 + $0x70] sm:$0xff] %vm2685, %v2618
      %2701 = vst.msk [vmem:[%s238 + $0x78] sm:$0xff] %vm2685, %v2620
      %2702 = vst.msk [vmem:[%s238 + $0x80] sm:$0xff] %vm2685, %v2622
      %2703 = vst.msk [vmem:[%s238 + $0x88] sm:$0xff] %vm2685, %v2624
      %2704 = vst.msk [vmem:[%s238 + $0x90] sm:$0xff] %vm2685, %v2626
      %2705 = vst.msk [vmem:[%s238 + $0x98] sm:$0xff] %vm2685, %v2628
      %2706 = vst.msk [vmem:[%s238 + $0xa0] sm:$0xff] %vm2685, %v2630
      %2707 = vst.msk [vmem:[%s238 + $0xa8] sm:$0xff] %vm2685, %v2632
      %2708 = vst.msk [vmem:[%s238 + $0xb0] sm:$0xff] %vm2685, %v2634
      %2709 = vst.msk [vmem:[%s238 + $0xb8] sm:$0xff] %vm2685, %v2636
      %2710 = vst.msk [vmem:[%s238 + $0xc0] sm:$0xff] %vm2685, %v2638
      %2711 = vst.msk [vmem:[%s238 + $0xc8] sm:$0xff] %vm2685, %v2640
      %2712 = vst.msk [vmem:[%s238 + $0xd0] sm:$0xff] %vm2685, %v2642
      %2713 = vst.msk [vmem:[%s238 + $0xd8] sm:$0xff] %vm2685, %v2644
      %2714 = vst.msk [vmem:[%s238 + $0xe0] sm:$0xff] %vm2685, %v2646
      %2715 = vst.msk [vmem:[%s238 + $0xe8] sm:$0xff] %vm2685, %v2648
      %2716 = vst.msk [vmem:[%s238 + $0xf0] sm:$0xff] %vm2685, %v2650
      %2717 = vst.msk [vmem:[%s238 + $0xf8] sm:$0xff] %vm2685, %v2652
      %2718 = vset.pattern.permute.xlu0 15
      %2719 = vperm.xlu0 %2718, %v828
      %v2720 = vpop.permute.xlu0 %2719
      %2722 = vset.pattern.permute.xlu0 15
      %2723 = vperm.xlu0 %2722, %v830
      %v2724 = vpop.permute.xlu0 %2723
      %2726 = vset.pattern.permute.xlu0 15
      %2727 = vperm.xlu0 %2726, %v832
      %v2728 = vpop.permute.xlu0 %2727
      %2730 = vset.pattern.permute.xlu0 15
      %2731 = vperm.xlu0 %2730, %v834
      %v2732 = vpop.permute.xlu0 %2731
      %2734 = vset.pattern.permute.xlu0 15
      %2735 = vperm.xlu0 %2734, %v836
      %v2736 = vpop.permute.xlu0 %2735
      %2738 = vset.pattern.permute.xlu0 15
      %2739 = vperm.xlu0 %2738, %v838
      %v2740 = vpop.permute.xlu0 %2739
      %2742 = vset.pattern.permute.xlu0 15
      %2743 = vperm.xlu0 %2742, %v840
      %v2744 = vpop.permute.xlu0 %2743
      %2746 = vset.pattern.permute.xlu0 15
      %2747 = vperm.xlu0 %2746, %v842
      %v2748 = vpop.permute.xlu0 %2747
      %2750 = vset.pattern.permute.xlu0 15
      %2751 = vperm.xlu0 %2750, %v844
      %v2752 = vpop.permute.xlu0 %2751
      %2754 = vset.pattern.permute.xlu0 15
      %2755 = vperm.xlu0 %2754, %v846
      %v2756 = vpop.permute.xlu0 %2755
      %2758 = vset.pattern.permute.xlu0 15
      %2759 = vperm.xlu0 %2758, %v848
      %v2760 = vpop.permute.xlu0 %2759
      %2762 = vset.pattern.permute.xlu0 15
      %2763 = vperm.xlu0 %2762, %v850
      %v2764 = vpop.permute.xlu0 %2763
      %2766 = vset.pattern.permute.xlu0 15
      %2767 = vperm.xlu0 %2766, %v852
      %v2768 = vpop.permute.xlu0 %2767
      %2770 = vset.pattern.permute.xlu0 15
      %2771 = vperm.xlu0 %2770, %v854
      %v2772 = vpop.permute.xlu0 %2771
      %2774 = vset.pattern.permute.xlu0 15
      %2775 = vperm.xlu0 %2774, %v856
      %v2776 = vpop.permute.xlu0 %2775
      %2778 = vset.pattern.permute.xlu0 15
      %2779 = vperm.xlu0 %2778, %v858
      %v2780 = vpop.permute.xlu0 %2779
      %2782 = vset.pattern.permute.xlu0 15
      %2783 = vperm.xlu0 %2782, %v860
      %v2784 = vpop.permute.xlu0 %2783
      %2786 = vset.pattern.permute.xlu0 15
      %2787 = vperm.xlu0 %2786, %v862
      %v2788 = vpop.permute.xlu0 %2787
      %2790 = vset.pattern.permute.xlu0 15
      %2791 = vperm.xlu0 %2790, %v864
      %v2792 = vpop.permute.xlu0 %2791
      %2794 = vset.pattern.permute.xlu0 15
      %2795 = vperm.xlu0 %2794, %v866
      %v2796 = vpop.permute.xlu0 %2795
      %2798 = vset.pattern.permute.xlu0 15
      %2799 = vperm.xlu0 %2798, %v868
      %v2800 = vpop.permute.xlu0 %2799
      %2802 = vset.pattern.permute.xlu0 15
      %2803 = vperm.xlu0 %2802, %v870
      %v2804 = vpop.permute.xlu0 %2803
      %2806 = vset.pattern.permute.xlu0 15
      %2807 = vperm.xlu0 %2806, %v872
      %v2808 = vpop.permute.xlu0 %2807
      %2810 = vset.pattern.permute.xlu0 15
      %2811 = vperm.xlu0 %2810, %v874
      %v2812 = vpop.permute.xlu0 %2811
      %2814 = vset.pattern.permute.xlu0 15
      %2815 = vperm.xlu0 %2814, %v876
      %v2816 = vpop.permute.xlu0 %2815
      %2818 = vset.pattern.permute.xlu0 15
      %2819 = vperm.xlu0 %2818, %v878
      %v2820 = vpop.permute.xlu0 %2819
      %2822 = vset.pattern.permute.xlu0 15
      %2823 = vperm.xlu0 %2822, %v880
      %v2824 = vpop.permute.xlu0 %2823
      %2826 = vset.pattern.permute.xlu0 15
      %2827 = vperm.xlu0 %2826, %v882
      %v2828 = vpop.permute.xlu0 %2827
      %2830 = vset.pattern.permute.xlu0 15
      %2831 = vperm.xlu0 %2830, %v884
      %v2832 = vpop.permute.xlu0 %2831
      %2834 = vset.pattern.permute.xlu0 15
      %2835 = vperm.xlu0 %2834, %v886
      %v2836 = vpop.permute.xlu0 %2835
      %2838 = vset.pattern.permute.xlu0 15
      %2839 = vperm.xlu0 %2838, %v888
      %v2840 = vpop.permute.xlu0 %2839
      %2842 = vset.pattern.permute.xlu0 15
      %2843 = vperm.xlu0 %2842, %v890
      %v2844 = vpop.permute.xlu0 %2843
      %v2846 = vmul.f32 %v2720, %v828
      %v2847 = vmul.f32 %v2724, %v830
      %v2848 = vmul.f32 %v2728, %v832
      %v2849 = vmul.f32 %v2732, %v834
      %v2850 = vmul.f32 %v2736, %v836
      %v2851 = vmul.f32 %v2740, %v838
      %v2852 = vmul.f32 %v2744, %v840
      %v2853 = vmul.f32 %v2748, %v842
      %v2854 = vmul.f32 %v2752, %v844
      %v2855 = vmul.f32 %v2756, %v846
      %v2856 = vmul.f32 %v2760, %v848
      %v2857 = vmul.f32 %v2764, %v850
      %v2858 = vmul.f32 %v2768, %v852
      %v2859 = vmul.f32 %v2772, %v854
      %v2860 = vmul.f32 %v2776, %v856
      %v2861 = vmul.f32 %v2780, %v858
      %v2862 = vmul.f32 %v2784, %v860
      %v2863 = vmul.f32 %v2788, %v862
      %v2864 = vmul.f32 %v2792, %v864
      %v2865 = vmul.f32 %v2796, %v866
      %v2866 = vmul.f32 %v2800, %v868
      %v2867 = vmul.f32 %v2804, %v870
      %v2868 = vmul.f32 %v2808, %v872
      %v2869 = vmul.f32 %v2812, %v874
      %v2870 = vmul.f32 %v2816, %v876
      %v2871 = vmul.f32 %v2820, %v878
      %v2872 = vmul.f32 %v2824, %v880
      %v2873 = vmul.f32 %v2828, %v882
      %v2874 = vmul.f32 %v2832, %v884
      %v2875 = vmul.f32 %v2836, %v886
      %v2876 = vmul.f32 %v2840, %v888
      %v2877 = vmul.f32 %v2844, %v890
      %2878 = vset.pattern.permute.xlu0 15
      %2879 = vperm.xlu0 %2878, %v1147
      %v2880 = vpop.permute.xlu0 %2879
      %2882 = vset.pattern.permute.xlu0 15
      %2883 = vperm.xlu0 %2882, %v1148
      %v2884 = vpop.permute.xlu0 %2883
      %2886 = vset.pattern.permute.xlu0 15
      %2887 = vperm.xlu0 %2886, %v1149
      %v2888 = vpop.permute.xlu0 %2887
      %2890 = vset.pattern.permute.xlu0 15
      %2891 = vperm.xlu0 %2890, %v1150
      %v2892 = vpop.permute.xlu0 %2891
      %2894 = vset.pattern.permute.xlu0 15
      %2895 = vperm.xlu0 %2894, %v1151
      %v2896 = vpop.permute.xlu0 %2895
      %2898 = vset.pattern.permute.xlu0 15
      %2899 = vperm.xlu0 %2898, %v1152
      %v2900 = vpop.permute.xlu0 %2899
      %2902 = vset.pattern.permute.xlu0 15
      %2903 = vperm.xlu0 %2902, %v1153
      %v2904 = vpop.permute.xlu0 %2903
      %2906 = vset.pattern.permute.xlu0 15
      %2907 = vperm.xlu0 %2906, %v1154
      %v2908 = vpop.permute.xlu0 %2907
      %2910 = vset.pattern.permute.xlu0 15
      %2911 = vperm.xlu0 %2910, %v1155
      %v2912 = vpop.permute.xlu0 %2911
      %2914 = vset.pattern.permute.xlu0 15
      %2915 = vperm.xlu0 %2914, %v1156
      %v2916 = vpop.permute.xlu0 %2915
      %2918 = vset.pattern.permute.xlu0 15
      %2919 = vperm.xlu0 %2918, %v1157
      %v2920 = vpop.permute.xlu0 %2919
      %2922 = vset.pattern.permute.xlu0 15
      %2923 = vperm.xlu0 %2922, %v1158
      %v2924 = vpop.permute.xlu0 %2923
      %2926 = vset.pattern.permute.xlu0 15
      %2927 = vperm.xlu0 %2926, %v1159
      %v2928 = vpop.permute.xlu0 %2927
      %2930 = vset.pattern.permute.xlu0 15
      %2931 = vperm.xlu0 %2930, %v1160
      %v2932 = vpop.permute.xlu0 %2931
      %2934 = vset.pattern.permute.xlu0 15
      %2935 = vperm.xlu0 %2934, %v1161
      %v2936 = vpop.permute.xlu0 %2935
      %2938 = vset.pattern.permute.xlu0 15
      %2939 = vperm.xlu0 %2938, %v1162
      %v2940 = vpop.permute.xlu0 %2939
      %2942 = vset.pattern.permute.xlu0 15
      %2943 = vperm.xlu0 %2942, %v1163
      %v2944 = vpop.permute.xlu0 %2943
      %2946 = vset.pattern.permute.xlu0 15
      %2947 = vperm.xlu0 %2946, %v1164
      %v2948 = vpop.permute.xlu0 %2947
      %2950 = vset.pattern.permute.xlu0 15
      %2951 = vperm.xlu0 %2950, %v1165
      %v2952 = vpop.permute.xlu0 %2951
      %2954 = vset.pattern.permute.xlu0 15
      %2955 = vperm.xlu0 %2954, %v1166
      %v2956 = vpop.permute.xlu0 %2955
      %2958 = vset.pattern.permute.xlu0 15
      %2959 = vperm.xlu0 %2958, %v1167
      %v2960 = vpop.permute.xlu0 %2959
      %2962 = vset.pattern.permute.xlu0 15
      %2963 = vperm.xlu0 %2962, %v1168
      %v2964 = vpop.permute.xlu0 %2963
      %2966 = vset.pattern.permute.xlu0 15
      %2967 = vperm.xlu0 %2966, %v1169
      %v2968 = vpop.permute.xlu0 %2967
      %2970 = vset.pattern.permute.xlu0 15
      %2971 = vperm.xlu0 %2970, %v1170
      %v2972 = vpop.permute.xlu0 %2971
      %2974 = vset.pattern.permute.xlu0 15
      %2975 = vperm.xlu0 %2974, %v1171
      %v2976 = vpop.permute.xlu0 %2975
      %2978 = vset.pattern.permute.xlu0 15
      %2979 = vperm.xlu0 %2978, %v1172
      %v2980 = vpop.permute.xlu0 %2979
      %2982 = vset.pattern.permute.xlu0 15
      %2983 = vperm.xlu0 %2982, %v1173
      %v2984 = vpop.permute.xlu0 %2983
      %2986 = vset.pattern.permute.xlu0 15
      %2987 = vperm.xlu0 %2986, %v1174
      %v2988 = vpop.permute.xlu0 %2987
      %2990 = vset.pattern.permute.xlu0 15
      %2991 = vperm.xlu0 %2990, %v1175
      %v2992 = vpop.permute.xlu0 %2991
      %2994 = vset.pattern.permute.xlu0 15
      %2995 = vperm.xlu0 %2994, %v1176
      %v2996 = vpop.permute.xlu0 %2995
      %2998 = vset.pattern.permute.xlu0 15
      %2999 = vperm.xlu0 %2998, %v1177
      %v3000 = vpop.permute.xlu0 %2999
      %3002 = vset.pattern.permute.xlu0 15
      %3003 = vperm.xlu0 %3002, %v1178
      %v3004 = vpop.permute.xlu0 %3003
      %v3006 = vmul.f32 %v2880, %v923
      %v3007 = vmul.f32 %v2884, %v924
      %v3008 = vmul.f32 %v2888, %v925
      %v3009 = vmul.f32 %v2892, %v926
      %v3010 = vmul.f32 %v2896, %v927
      %v3011 = vmul.f32 %v2900, %v928
      %v3012 = vmul.f32 %v2904, %v929
      %v3013 = vmul.f32 %v2908, %v930
      %v3014 = vmul.f32 %v2912, %v931
      %v3015 = vmul.f32 %v2916, %v932
      %v3016 = vmul.f32 %v2920, %v933
      %v3017 = vmul.f32 %v2924, %v934
      %v3018 = vmul.f32 %v2928, %v935
      %v3019 = vmul.f32 %v2932, %v936
      %v3020 = vmul.f32 %v2936, %v937
      %v3021 = vmul.f32 %v2940, %v938
      %v3022 = vmul.f32 %v2944, %v939
      %v3023 = vmul.f32 %v2948, %v940
      %v3024 = vmul.f32 %v2952, %v941
      %v3025 = vmul.f32 %v2956, %v942
      %v3026 = vmul.f32 %v2960, %v943
      %v3027 = vmul.f32 %v2964, %v944
      %v3028 = vmul.f32 %v2968, %v945
      %v3029 = vmul.f32 %v2972, %v946
      %v3030 = vmul.f32 %v2976, %v947
      %v3031 = vmul.f32 %v2980, %v948
      %v3032 = vmul.f32 %v2984, %v949
      %v3033 = vmul.f32 %v2988, %v950
      %v3034 = vmul.f32 %v2992, %v951
      %v3035 = vmul.f32 %v2996, %v952
      %v3036 = vmul.f32 %v3000, %v953
      %v3037 = vmul.f32 %v3004, %v954
      %3070 = vrot.lane.b32.xlu0 %v3006, 3
      %v3071 = vpop.permute.xlu0 %3070
      %3072 = vrot.lane.b32.xlu0 %v3007, 3
      %v3073 = vpop.permute.xlu0 %3072
      %3074 = vrot.lane.b32.xlu0 %v3008, 3
      %v3075 = vpop.permute.xlu0 %3074
      %3076 = vrot.lane.b32.xlu0 %v3009, 3
      %v3077 = vpop.permute.xlu0 %3076
      %3078 = vrot.lane.b32.xlu0 %v3010, 3
      %v3079 = vpop.permute.xlu0 %3078
      %3080 = vrot.lane.b32.xlu0 %v3011, 3
      %v3081 = vpop.permute.xlu0 %3080
      %3082 = vrot.lane.b32.xlu0 %v3012, 3
      %v3083 = vpop.permute.xlu0 %3082
      %3084 = vrot.lane.b32.xlu0 %v3013, 3
      %v3085 = vpop.permute.xlu0 %3084
      %3086 = vrot.lane.b32.xlu0 %v3014, 3
      %v3087 = vpop.permute.xlu0 %3086
      %3088 = vrot.lane.b32.xlu0 %v3015, 3
      %v3089 = vpop.permute.xlu0 %3088
      %3090 = vrot.lane.b32.xlu0 %v3016, 3
      %v3091 = vpop.permute.xlu0 %3090
      %3092 = vrot.lane.b32.xlu0 %v3017, 3
      %v3093 = vpop.permute.xlu0 %3092
      %3094 = vrot.lane.b32.xlu0 %v3018, 3
      %v3095 = vpop.permute.xlu0 %3094
      %3096 = vrot.lane.b32.xlu0 %v3019, 3
      %v3097 = vpop.permute.xlu0 %3096
      %3098 = vrot.lane.b32.xlu0 %v3020, 3
      %v3099 = vpop.permute.xlu0 %3098
      %3100 = vrot.lane.b32.xlu0 %v3021, 3
      %v3101 = vpop.permute.xlu0 %3100
      %3102 = vrot.lane.b32.xlu0 %v3022, 3
      %v3103 = vpop.permute.xlu0 %3102
      %3104 = vrot.lane.b32.xlu0 %v3023, 3
      %v3105 = vpop.permute.xlu0 %3104
      %3106 = vrot.lane.b32.xlu0 %v3024, 3
      %v3107 = vpop.permute.xlu0 %3106
      %3108 = vrot.lane.b32.xlu0 %v3025, 3
      %v3109 = vpop.permute.xlu0 %3108
      %3110 = vrot.lane.b32.xlu0 %v3026, 3
      %v3111 = vpop.permute.xlu0 %3110
      %3112 = vrot.lane.b32.xlu0 %v3027, 3
      %v3113 = vpop.permute.xlu0 %3112
      %3114 = vrot.lane.b32.xlu0 %v3028, 3
      %v3115 = vpop.permute.xlu0 %3114
      %3116 = vrot.lane.b32.xlu0 %v3029, 3
      %v3117 = vpop.permute.xlu0 %3116
      %3118 = vrot.lane.b32.xlu0 %v3030, 3
      %v3119 = vpop.permute.xlu0 %3118
      %3120 = vrot.lane.b32.xlu0 %v3031, 3
      %v3121 = vpop.permute.xlu0 %3120
      %3122 = vrot.lane.b32.xlu0 %v3032, 3
      %v3123 = vpop.permute.xlu0 %3122
      %3124 = vrot.lane.b32.xlu0 %v3033, 3
      %v3125 = vpop.permute.xlu0 %3124
      %3126 = vrot.lane.b32.xlu0 %v3034, 3
      %v3127 = vpop.permute.xlu0 %3126
      %3128 = vrot.lane.b32.xlu0 %v3035, 3
      %v3129 = vpop.permute.xlu0 %3128
      %3130 = vrot.lane.b32.xlu0 %v3036, 3
      %v3131 = vpop.permute.xlu0 %3130
      %3132 = vrot.lane.b32.xlu0 %v3037, 3
      %v3133 = vpop.permute.xlu0 %3132
      %v3166 = vadd.f32 %v2846, %v3071
      %v3167 = vadd.f32 %v2847, %v3073
      %v3168 = vadd.f32 %v2848, %v3075
      %v3169 = vadd.f32 %v2849, %v3077
      %v3170 = vadd.f32 %v2850, %v3079
      %v3171 = vadd.f32 %v2851, %v3081
      %v3172 = vadd.f32 %v2852, %v3083
      %v3173 = vadd.f32 %v2853, %v3085
      %v3174 = vadd.f32 %v2854, %v3087
      %v3175 = vadd.f32 %v2855, %v3089
      %v3176 = vadd.f32 %v2856, %v3091
      %v3177 = vadd.f32 %v2857, %v3093
      %v3178 = vadd.f32 %v2858, %v3095
      %v3179 = vadd.f32 %v2859, %v3097
      %v3180 = vadd.f32 %v2860, %v3099
      %v3181 = vadd.f32 %v2861, %v3101
      %v3182 = vadd.f32 %v2862, %v3103
      %v3183 = vadd.f32 %v2863, %v3105
      %v3184 = vadd.f32 %v2864, %v3107
      %v3185 = vadd.f32 %v2865, %v3109
      %v3186 = vadd.f32 %v2866, %v3111
      %v3187 = vadd.f32 %v2867, %v3113
      %v3188 = vadd.f32 %v2868, %v3115
      %v3189 = vadd.f32 %v2869, %v3117
      %v3190 = vadd.f32 %v2870, %v3119
      %v3191 = vadd.f32 %v2871, %v3121
      %v3192 = vadd.f32 %v2872, %v3123
      %v3193 = vadd.f32 %v2873, %v3125
      %v3194 = vadd.f32 %v2874, %v3127
      %v3195 = vadd.f32 %v2875, %v3129
      %v3196 = vadd.f32 %v2876, %v3131
      %v3197 = vadd.f32 %v2877, %v3133
      %3230 = vrot.lane.b32.xlu0 %v3166, 125
      %v3231 = vpop.permute.xlu0 %3230
      %3232 = vrot.lane.b32.xlu0 %v3167, 125
      %v3233 = vpop.permute.xlu0 %3232
      %3234 = vrot.lane.b32.xlu0 %v3168, 125
      %v3235 = vpop.permute.xlu0 %3234
      %3236 = vrot.lane.b32.xlu0 %v3169, 125
      %v3237 = vpop.permute.xlu0 %3236
      %3238 = vrot.lane.b32.xlu0 %v3170, 125
      %v3239 = vpop.permute.xlu0 %3238
      %3240 = vrot.lane.b32.xlu0 %v3171, 125
      %v3241 = vpop.permute.xlu0 %3240
      %3242 = vrot.lane.b32.xlu0 %v3172, 125
      %v3243 = vpop.permute.xlu0 %3242
      %3244 = vrot.lane.b32.xlu0 %v3173, 125
      %v3245 = vpop.permute.xlu0 %3244
      %3246 = vrot.lane.b32.xlu0 %v3174, 125
      %v3247 = vpop.permute.xlu0 %3246
      %3248 = vrot.lane.b32.xlu0 %v3175, 125
      %v3249 = vpop.permute.xlu0 %3248
      %3250 = vrot.lane.b32.xlu0 %v3176, 125
      %v3251 = vpop.permute.xlu0 %3250
      %3252 = vrot.lane.b32.xlu0 %v3177, 125
      %v3253 = vpop.permute.xlu0 %3252
      %3254 = vrot.lane.b32.xlu0 %v3178, 125
      %v3255 = vpop.permute.xlu0 %3254
      %3256 = vrot.lane.b32.xlu0 %v3179, 125
      %v3257 = vpop.permute.xlu0 %3256
      %3258 = vrot.lane.b32.xlu0 %v3180, 125
      %v3259 = vpop.permute.xlu0 %3258
      %3260 = vrot.lane.b32.xlu0 %v3181, 125
      %v3261 = vpop.permute.xlu0 %3260
      %3262 = vrot.lane.b32.xlu0 %v3182, 125
      %v3263 = vpop.permute.xlu0 %3262
      %3264 = vrot.lane.b32.xlu0 %v3183, 125
      %v3265 = vpop.permute.xlu0 %3264
      %3266 = vrot.lane.b32.xlu0 %v3184, 125
      %v3267 = vpop.permute.xlu0 %3266
      %3268 = vrot.lane.b32.xlu0 %v3185, 125
      %v3269 = vpop.permute.xlu0 %3268
      %3270 = vrot.lane.b32.xlu0 %v3186, 125
      %v3271 = vpop.permute.xlu0 %3270
      %3272 = vrot.lane.b32.xlu0 %v3187, 125
      %v3273 = vpop.permute.xlu0 %3272
      %3274 = vrot.lane.b32.xlu0 %v3188, 125
      %v3275 = vpop.permute.xlu0 %3274
      %3276 = vrot.lane.b32.xlu0 %v3189, 125
      %v3277 = vpop.permute.xlu0 %3276
      %3278 = vrot.lane.b32.xlu0 %v3190, 125
      %v3279 = vpop.permute.xlu0 %3278
      %3280 = vrot.lane.b32.xlu0 %v3191, 125
      %v3281 = vpop.permute.xlu0 %3280
      %3282 = vrot.lane.b32.xlu0 %v3192, 125
      %v3283 = vpop.permute.xlu0 %3282
      %3284 = vrot.lane.b32.xlu0 %v3193, 125
      %v3285 = vpop.permute.xlu0 %3284
      %3286 = vrot.lane.b32.xlu0 %v3194, 125
      %v3287 = vpop.permute.xlu0 %3286
      %3288 = vrot.lane.b32.xlu0 %v3195, 125
      %v3289 = vpop.permute.xlu0 %3288
      %3290 = vrot.lane.b32.xlu0 %v3196, 125
      %v3291 = vpop.permute.xlu0 %3290
      %3292 = vrot.lane.b32.xlu0 %v3197, 125
      %v3293 = vpop.permute.xlu0 %3292
      %vm3326 = vcmask 97352
      %3327 = vst.msk [vmem:[%s238] sm:$0xff] %vm3326, %v3231
      %3328 = vst.msk [vmem:[%s238 + $0x8] sm:$0xff] %vm3326, %v3233
      %3329 = vst.msk [vmem:[%s238 + $0x10] sm:$0xff] %vm3326, %v3235
      %3330 = vst.msk [vmem:[%s238 + $0x18] sm:$0xff] %vm3326, %v3237
      %3331 = vst.msk [vmem:[%s238 + $0x20] sm:$0xff] %vm3326, %v3239
      %3332 = vst.msk [vmem:[%s238 + $0x28] sm:$0xff] %vm3326, %v3241
      %3333 = vst.msk [vmem:[%s238 + $0x30] sm:$0xff] %vm3326, %v3243
      %3334 = vst.msk [vmem:[%s238 + $0x38] sm:$0xff] %vm3326, %v3245
      %3335 = vst.msk [vmem:[%s238 + $0x40] sm:$0xff] %vm3326, %v3247
      %3336 = vst.msk [vmem:[%s238 + $0x48] sm:$0xff] %vm3326, %v3249
      %3337 = vst.msk [vmem:[%s238 + $0x50] sm:$0xff] %vm3326, %v3251
      %3338 = vst.msk [vmem:[%s238 + $0x58] sm:$0xff] %vm3326, %v3253
      %3339 = vst.msk [vmem:[%s238 + $0x60] sm:$0xff] %vm3326, %v3255
      %3340 = vst.msk [vmem:[%s238 + $0x68] sm:$0xff] %vm3326, %v3257
      %3341 = vst.msk [vmem:[%s238 + $0x70] sm:$0xff] %vm3326, %v3259
      %3342 = vst.msk [vmem:[%s238 + $0x78] sm:$0xff] %vm3326, %v3261
      %3343 = vst.msk [vmem:[%s238 + $0x80] sm:$0xff] %vm3326, %v3263
      %3344 = vst.msk [vmem:[%s238 + $0x88] sm:$0xff] %vm3326, %v3265
      %3345 = vst.msk [vmem:[%s238 + $0x90] sm:$0xff] %vm3326, %v3267
      %3346 = vst.msk [vmem:[%s238 + $0x98] sm:$0xff] %vm3326, %v3269
      %3347 = vst.msk [vmem:[%s238 + $0xa0] sm:$0xff] %vm3326, %v3271
      %3348 = vst.msk [vmem:[%s238 + $0xa8] sm:$0xff] %vm3326, %v3273
      %3349 = vst.msk [vmem:[%s238 + $0xb0] sm:$0xff] %vm3326, %v3275
      %3350 = vst.msk [vmem:[%s238 + $0xb8] sm:$0xff] %vm3326, %v3277
      %3351 = vst.msk [vmem:[%s238 + $0xc0] sm:$0xff] %vm3326, %v3279
      %3352 = vst.msk [vmem:[%s238 + $0xc8] sm:$0xff] %vm3326, %v3281
      %3353 = vst.msk [vmem:[%s238 + $0xd0] sm:$0xff] %vm3326, %v3283
      %3354 = vst.msk [vmem:[%s238 + $0xd8] sm:$0xff] %vm3326, %v3285
      %3355 = vst.msk [vmem:[%s238 + $0xe0] sm:$0xff] %vm3326, %v3287
      %3356 = vst.msk [vmem:[%s238 + $0xe8] sm:$0xff] %vm3326, %v3289
      %3357 = vst.msk [vmem:[%s238 + $0xf0] sm:$0xff] %vm3326, %v3291
      %3358 = vst.msk [vmem:[%s238 + $0xf8] sm:$0xff] %vm3326, %v3293
      %s3359 = smul.u32 32, %s16
      %p3360 = scmp.lt.s32.totalorder %s3359, 63
      %s3361 = scalar_select %p3360, %s3359, 63
      %s3362 = smul.addr %s3361, 8
      %s3363 = scalar_lea.vmem %s3, %s3362
      %s3364 = smul.u32 32, %s16
      %p3365 = scmp.lt.s32.totalorder %s3364, 63
      %s3366 = scalar_select %p3365, %s3364, 63
      %s3367 = smul.addr %s3366, 8
      %s3368 = scalar_lea.vmem %s4, %s3367
      // Predicated region
      $region33: #{generator_forward.27} parent=31 // pred_check
        %p3369 = pneg %p107
      $region34: #{generator_forward.27} parent=31 // pred_check_branch
        %3371 = sbr.rel (%p3369) target = $region36
      $region35: #{generator_forward.27} parent=31 // pred_region
        %s3372 = smul.u32 32, %s16
      $region36: #{generator_forward.27} parent=31 // pred_fallthru
        _
      // Predicated region
      $region37: #{generator_forward.27} parent=31 // pred_check
        %p3373 = pneg %p133
      $region38: #{generator_forward.27} parent=31 // pred_check_branch
        %3375 = sbr.rel (%p3373) target = $region40
      $region39: #{generator_forward.27} parent=31 // pred_region
        %s3376 = smul.u32 32, %s16
      $region40: #{generator_forward.27} parent=31 // pred_fallthru
        _
    $region32: #{generator_forward.27} parent=5 // pred_fallthru
      _
    %p3377 = scmp.le.s32.totalorder 2, %s11
    // Predicated region
    $region41: #{generator_forward.27} parent=5 // pred_check
      %p3378 = pneg %p3377
    $region42: #{generator_forward.27} parent=5 // pred_check_branch
      %3380 = sbr.rel (%p3378) target = $region44
    $region43: #{generator_forward.27} parent=5 // pred_region
      %s3381 = ssub.s32 %s11, 2
      // Predicated region
      $region45: #{generator_forward.27} parent=43 // pred_check
        %p3382 = pneg %p113
      $region46: #{generator_forward.27} parent=43 // pred_check_branch
        %3384 = sbr.rel (%p3382) target = $region48
      $region47: #{generator_forward.27} parent=43 // pred_region
        %s3385 = smul.u32 32, %s17
        %p3386 = scmp.lt.s32.totalorder %s3385, 63
        %s3387 = scalar_select %p3386, %s3385, 63
        %s3388 = smul.addr %s3387, 8
        %s3389 = scalar_lea.vmem %s3, %s3388
      $region48: #{generator_forward.27} parent=43 // pred_fallthru
        _
      // Predicated region
      $region49: #{generator_forward.27} parent=43 // pred_check
        %p3390 = pneg %p139
      $region50: #{generator_forward.27} parent=43 // pred_check_branch
        %3392 = sbr.rel (%p3390) target = $region52
      $region51: #{generator_forward.27} parent=43 // pred_region
        %s3393 = smul.u32 32, %s17
        %p3394 = scmp.lt.s32.totalorder %s3393, 63
        %s3395 = scalar_select %p3394, %s3393, 63
        %s3396 = smul.addr %s3395, 8
        %s3397 = scalar_lea.vmem %s4, %s3396
      $region52: #{generator_forward.27} parent=43 // pred_fallthru
        _
    $region44: #{generator_forward.27} parent=5 // pred_fallthru
      _
  $region6: #{generator_forward.27} parent=0 // loop_footer
    %s15 = sadd.s32 1, %s11
  $region7: #{generator_forward.27} parent=0 // loop_footer_branch
    %10 = sbr.rel target = $region3
  $region8: #{generator_forward.27} parent=0 // loop_exit
    _

</llo_original>
